<compile_context>
chip_gen: v7x
topology: tpu7x:2x2x1
jax: 0.10.0
libtpu: 0.0.40
codegen_flags: <defaults>
</compile_context>

<pallas_src>
import jax
import jax.numpy as jnp
from jax.experimental import pallas as pl


# ---------------------------------------------------------------------------
# In-kernel building blocks (traced inside the single fused pallas_call)
# ---------------------------------------------------------------------------
def _lstm_layer(xs, w_ref, b_ref):
    """Single-layer LSTM (batch_first, zero initial state) over a sequence.

    xs    : list of T (B, Din) f32 values -- one value per timestep
            (wavefront feed: element t only depends on the producer's step t).
    w_ref : (Din + H, 4H) VMEM ref -- fused [W_ih^T ; W_hh^T], gates [i|f|g|o].
    b_ref : (1, 4H) VMEM ref -- b_ih + b_hh.
    Returns the list of T (B, H) hidden states h_1 .. h_T.
    """
    w = w_ref[...]
    b = b_ref[...]
    H = w.shape[1] // 4
    B = xs[0].shape[0]
    h = jnp.zeros((B, H), jnp.float32)
    c = jnp.zeros((B, H), jnp.float32)
    outs = []
    for x_t in xs:                       # static unroll: recurrence is serial
        xh = jnp.concatenate([x_t, h], axis=1)                  # (B, Din+H)
        pre = jnp.dot(xh, w, preferred_element_type=jnp.float32) + b
        sig = jax.nn.sigmoid(pre)        # one EUP pass for i, f, o gates
        th = jnp.tanh(pre)               # one EUP pass, g gate lane-sliced out
        c = sig[:, H:2 * H] * c + sig[:, :H] * th[:, 2 * H:3 * H]
        h = sig[:, 3 * H:] * jnp.tanh(c)
        outs.append(h)
    return outs


def _mse(a, b):
    d = a - b
    return jnp.mean(d * d).reshape(1, 1)


def _make_usad_kernel(B, T):
    def kernel(x_ref,
               e1_w, e1_b, e2_w, e2_b,          # encoder  : D  -> H1 -> H2
               d1a_w, d1a_b, d1b_w, d1b_b,      # decoder1 : H2 -> H1 -> D
               d2a_w, d2a_b, d2b_w, d2b_b,      # decoder2 : H2 -> H1 -> D
               out_ref, w2_ref, w3_ref, mse_ref):
        x = x_ref[...]                                   # (T*B, D), t-major
        xs = [x[t * B:(t + 1) * B, :] for t in range(T)]

        # out_ = encoder(x)
        z0 = _lstm_layer(_lstm_layer(xs, e1_w, e1_b), e2_w, e2_b)

        # w1 = decoder1(out_)   |   w2 = decoder2(out_)   (independent chains)
        w1 = _lstm_layer(_lstm_layer(z0, d1a_w, d1a_b), d1b_w, d1b_b)
        w2 = _lstm_layer(_lstm_layer(z0, d2a_w, d2a_b), d2b_w, d2b_b)

        # w3 = decoder2(encoder(w1))
        # (the extra discarded `self.encoder(w1)` call in the PyTorch forward
        #  is dead code, so encoder(w1) is evaluated exactly once here)
        z1 = _lstm_layer(_lstm_layer(w1, e1_w, e1_b), e2_w, e2_b)
        w3 = _lstm_layer(_lstm_layer(z1, d2a_w, d2a_b), d2b_w, d2b_b)

        # Lane-dense output writes: one full-width (B, T*H) store per tensor.
        out_ref[...] = jnp.concatenate(z0, axis=1)       # (B, T*H2)
        w2_ref[...] = jnp.concatenate(w2, axis=1)        # (B, T*D)
        w3_ref[...] = jnp.concatenate(w3, axis=1)        # (B, T*D)

        # Fused MSE epilogue -> a single (1, 3) writeback.
        w1_tm = jnp.concatenate(w1, axis=0)              # (T*B, D) == x layout
        w2_tm = jnp.concatenate(w2, axis=0)
        w3_tm = jnp.concatenate(w3, axis=0)
        mse_ref[...] = jnp.concatenate(
            [_mse(x, w1_tm), _mse(x, w2_tm), _mse(x, w3_tm)], axis=1)

    return kernel


# ---------------------------------------------------------------------------
# Parameter construction (fused per-layer layout, PyTorch gate order [i,f,g,o])
# ---------------------------------------------------------------------------
_LAYER_NAMES = ("enc_l1", "enc_l2", "dec1_l1", "dec1_l2", "dec2_l1", "dec2_l2")


def init_lstm_params(key, in_size, hidden):
    k1, k2, k3, k4 = jax.random.split(key, 4)
    s = 1.0 / (hidden ** 0.5)
    w_ih = jax.random.uniform(k1, (in_size, 4 * hidden), jnp.float32, -s, s)
    w_hh = jax.random.uniform(k2, (hidden, 4 * hidden), jnp.float32, -s, s)
    b_ih = jax.random.uniform(k3, (1, 4 * hidden), jnp.float32, -s, s)
    b_hh = jax.random.uniform(k4, (1, 4 * hidden), jnp.float32, -s, s)
    return {"w_xh": jnp.concatenate([w_ih, w_hh], axis=0),   # (Din+H, 4H)
            "b": b_ih + b_hh}                                # (1, 4H)


def init_usad_params(key, input_size, h1, h2):
    keys = jax.random.split(key, 6)
    dims = [(input_size, h1), (h1, h2), (h2, h1), (h1, input_size),
            (h2, h1), (h1, input_size)]
    return {name: init_lstm_params(k, din, dout)
            for name, k, (din, dout) in zip(_LAYER_NAMES, keys, dims)}


# ---------------------------------------------------------------------------
# UsadModel forward (single fused, grid-less pallas_call)
# ---------------------------------------------------------------------------
def usad_forward(params, x, n):
    B, T, D = x.shape
    H2 = params["enc_l2"]["w_xh"].shape[1] // 4

    # Timestep-major flatten in the XLA wrapper (HBM) so the kernel only ever
    # touches sublane-contiguous per-timestep slices.
    x_tm = jnp.transpose(x, (1, 0, 2)).reshape(T * B, D)

    flat = []
    for name in _LAYER_NAMES:
        flat += [params[name]["w_xh"], params[name]["b"]]

    out_l, w2_l, w3_l, mse = pl.pallas_call(
        _make_usad_kernel(B, T),
        out_shape=(
            jax.ShapeDtypeStruct((B, T * H2), jnp.float32),  # out_ (lane-dense)
            jax.ShapeDtypeStruct((B, T * D), jnp.float32),   # w2   (lane-dense)
            jax.ShapeDtypeStruct((B, T * D), jnp.float32),   # w3   (lane-dense)
            jax.ShapeDtypeStruct((1, 3), jnp.float32),       # [mse1, mse2, mse3]
        ),
    )(x_tm, *flat)

    out_ = out_l.reshape(B, T, H2)
    w2 = w2_l.reshape(B, T, D)
    w3 = w3_l.reshape(B, T, D)

    inv_n = 1.0 / n
    m1, m2, m3 = mse[0, 0], mse[0, 1], mse[0, 2]
    loss1 = inv_n * m1 + (1.0 - inv_n) * m3
    loss2 = inv_n * m2 - (1.0 - inv_n) * m3
    return loss1, loss2, out_, w2, w3


# ---------------------------------------------------------------------------
# Pure-JAX reference (lax.scan) for a numerical self-check
# ---------------------------------------------------------------------------
def _lstm_ref(x, w_xh, b):
    B, T, _ = x.shape
    H = w_xh.shape[1] // 4

    def step(carry, x_t):
        h, c = carry
        pre = jnp.concatenate([x_t, h], axis=1) @ w_xh + b
        i = jax.nn.sigmoid(pre[:, :H])
        f = jax.nn.sigmoid(pre[:, H:2 * H])
        g = jnp.tanh(pre[:, 2 * H:3 * H])
        o = jax.nn.sigmoid(pre[:, 3 * H:])
        c = f * c + i * g
        h = o * jnp.tanh(c)
        return (h, c), h

    init = (jnp.zeros((B, H), jnp.float32), jnp.zeros((B, H), jnp.float32))
    _, ys = jax.lax.scan(step, init, jnp.transpose(x, (1, 0, 2)))
    return jnp.transpose(ys, (1, 0, 2))


def usad_forward_ref(params, x, n):
    def two(v, n1, n2):
        h = _lstm_ref(v, params[n1]["w_xh"], params[n1]["b"])
        return _lstm_ref(h, params[n2]["w_xh"], params[n2]["b"])

    out_ = two(x, "enc_l1", "enc_l2")
    w1 = two(out_, "dec1_l1", "dec1_l2")
    w2 = two(out_, "dec2_l1", "dec2_l2")
    w3 = two(two(w1, "enc_l1", "enc_l2"), "dec2_l1", "dec2_l2")

    m = lambda a, b: jnp.mean((a - b) ** 2)
    inv_n = 1.0 / n
    loss1 = inv_n * m(x, w1) + (1.0 - inv_n) * m(x, w3)
    loss2 = inv_n * m(x, w2) - (1.0 - inv_n) * m(x, w3)
    return loss1, loss2, out_, w2, w3


# ---------------------------------------------------------------------------
if __name__ == "__main__":
    B, T = 2, 8
    input_size, hidden_size_1, hidden_size_2 = 16, 32, 16

    key = jax.random.PRNGKey(0)
    kx, kp = jax.random.split(key)
    x = jax.random.normal(kx, (B, T, input_size), dtype=jnp.float32)
    params = init_usad_params(kp, input_size, hidden_size_1, hidden_size_2)
    n = jnp.float32(4.0)

    fwd = jax.jit(usad_forward)
    outs = fwd(params, x, n)
    jax.block_until_ready(outs)
    loss1, loss2, out_, w2, w3 = outs

    assert out_.shape == (B, T, hidden_size_2)
    assert w2.shape == (B, T, input_size)
    assert w3.shape == (B, T, input_size)
    assert bool(jnp.isfinite(loss1)) and bool(jnp.isfinite(loss2))

    # Numerical self-check against the pure-JAX reference of the same model.
    ref = jax.jit(usad_forward_ref)(params, x, n)
    for got, want in zip(outs, ref):
        assert jnp.allclose(got, want, rtol=5e-3, atol=5e-3)

    print("KERNEL_OK")
</pallas_src>

<mosaic_0001>
module attributes {stable_mosaic.version = 11 : i64} {
  func.func @kernel(%arg0: memref<16x16xf32, #tpu.memory_space<vmem>>, %arg1: memref<48x128xf32, #tpu.memory_space<vmem>>, %arg2: memref<1x128xf32, #tpu.memory_space<vmem>>, %arg3: memref<48x64xf32, #tpu.memory_space<vmem>>, %arg4: memref<1x64xf32, #tpu.memory_space<vmem>>, %arg5: memref<48x128xf32, #tpu.memory_space<vmem>>, %arg6: memref<1x128xf32, #tpu.memory_space<vmem>>, %arg7: memref<48x64xf32, #tpu.memory_space<vmem>>, %arg8: memref<1x64xf32, #tpu.memory_space<vmem>>, %arg9: memref<48x128xf32, #tpu.memory_space<vmem>>, %arg10: memref<1x128xf32, #tpu.memory_space<vmem>>, %arg11: memref<48x64xf32, #tpu.memory_space<vmem>>, %arg12: memref<1x64xf32, #tpu.memory_space<vmem>>, %arg13: memref<2x128xf32, #tpu.memory_space<vmem>>, %arg14: memref<2x128xf32, #tpu.memory_space<vmem>>, %arg15: memref<2x128xf32, #tpu.memory_space<vmem>>, %arg16: memref<1x3xf32, #tpu.memory_space<vmem>>) attributes {dimension_semantics = [], scalar_prefetch = 0 : i64, scratch_operands = 0 : i64, tpu.core_type = #tpu.core_type<tc>} {
    %c0 = arith.constant 0 : index
    %c0_0 = arith.constant 0 : index
    %0 = vector.load %arg0[%c0, %c0_0] : memref<16x16xf32, #tpu.memory_space<vmem>>, vector<16x16xf32>
    %1 = vector.extract_strided_slice %0 {offsets = [0, 0], sizes = [2, 16], strides = [1, 1]} : vector<16x16xf32> to vector<2x16xf32>
    %2 = vector.extract_strided_slice %0 {offsets = [2, 0], sizes = [2, 16], strides = [1, 1]} : vector<16x16xf32> to vector<2x16xf32>
    %3 = vector.extract_strided_slice %0 {offsets = [4, 0], sizes = [2, 16], strides = [1, 1]} : vector<16x16xf32> to vector<2x16xf32>
    %4 = vector.extract_strided_slice %0 {offsets = [6, 0], sizes = [2, 16], strides = [1, 1]} : vector<16x16xf32> to vector<2x16xf32>
    %5 = vector.extract_strided_slice %0 {offsets = [8, 0], sizes = [2, 16], strides = [1, 1]} : vector<16x16xf32> to vector<2x16xf32>
    %6 = vector.extract_strided_slice %0 {offsets = [10, 0], sizes = [2, 16], strides = [1, 1]} : vector<16x16xf32> to vector<2x16xf32>
    %7 = vector.extract_strided_slice %0 {offsets = [12, 0], sizes = [2, 16], strides = [1, 1]} : vector<16x16xf32> to vector<2x16xf32>
    %8 = vector.extract_strided_slice %0 {offsets = [14, 0], sizes = [2, 16], strides = [1, 1]} : vector<16x16xf32> to vector<2x16xf32>
    %c0_1 = arith.constant 0 : index
    %c0_2 = arith.constant 0 : index
    %9 = vector.load %arg1[%c0_1, %c0_2] : memref<48x128xf32, #tpu.memory_space<vmem>>, vector<48x128xf32>
    %c0_3 = arith.constant 0 : index
    %c0_4 = arith.constant 0 : index
    %10 = vector.load %arg2[%c0_3, %c0_4] : memref<1x128xf32, #tpu.memory_space<vmem>>, vector<1x128xf32>
    %cst = arith.constant 0.000000e+00 : f32
    %11 = vector.broadcast %cst : f32 to vector<2x32xf32>
    %cst_5 = arith.constant 0.000000e+00 : f32
    %12 = vector.broadcast %cst_5 : f32 to vector<2x32xf32>
    %13 = tpu.concatenate %1, %11 in 1 : vector<2x16xf32>, vector<2x32xf32> -> vector<2x48xf32>
    %cst_6 = arith.constant dense<0.000000e+00> : vector<2x128xf32>
    %14 = tpu.matmul %13, %9, %cst_6 {dimension_numbers = #tpu.dot_dimension_numbers<[1], [0], [0], [1], [0, 0, 1, 1], [], []>} : vector<2x48xf32>, vector<48x128xf32>, vector<2x128xf32> -> vector<2x128xf32>
    %15 = vector.broadcast %10 : vector<1x128xf32> to vector<2x128xf32>
    %16 = arith.addf %14, %15 : vector<2x128xf32>
    %17 = arith.negf %16 : vector<2x128xf32>
    %18 = math.exp %17 : vector<2x128xf32>
    %cst_7 = arith.constant 1.000000e+00 : f32
    %19 = vector.broadcast %cst_7 : f32 to vector<2x128xf32>
    %20 = arith.addf %19, %18 : vector<2x128xf32>
    %21 = arith.divf %19, %20 : vector<2x128xf32>
    %22 = math.tanh %16 : vector<2x128xf32>
    %23 = vector.extract_strided_slice %21 {offsets = [0, 32], sizes = [2, 32], strides = [1, 1]} : vector<2x128xf32> to vector<2x32xf32>
    %24 = arith.mulf %23, %12 : vector<2x32xf32>
    %25 = vector.extract_strided_slice %21 {offsets = [0, 0], sizes = [2, 32], strides = [1, 1]} : vector<2x128xf32> to vector<2x32xf32>
    %26 = vector.extract_strided_slice %22 {offsets = [0, 64], sizes = [2, 32], strides = [1, 1]} : vector<2x128xf32> to vector<2x32xf32>
    %27 = arith.mulf %25, %26 : vector<2x32xf32>
    %28 = arith.addf %24, %27 : vector<2x32xf32>
    %29 = vector.extract_strided_slice %21 {offsets = [0, 96], sizes = [2, 32], strides = [1, 1]} : vector<2x128xf32> to vector<2x32xf32>
    %30 = math.tanh %28 : vector<2x32xf32>
    %31 = arith.mulf %29, %30 : vector<2x32xf32>
    %32 = tpu.concatenate %2, %31 in 1 : vector<2x16xf32>, vector<2x32xf32> -> vector<2x48xf32>
    %cst_8 = arith.constant dense<0.000000e+00> : vector<2x128xf32>
    %33 = tpu.matmul %32, %9, %cst_8 {dimension_numbers = #tpu.dot_dimension_numbers<[1], [0], [0], [1], [0, 0, 1, 1], [], []>} : vector<2x48xf32>, vector<48x128xf32>, vector<2x128xf32> -> vector<2x128xf32>
    %34 = vector.broadcast %10 : vector<1x128xf32> to vector<2x128xf32>
    %35 = arith.addf %33, %34 : vector<2x128xf32>
    %36 = arith.negf %35 : vector<2x128xf32>
    %37 = math.exp %36 : vector<2x128xf32>
    %cst_9 = arith.constant 1.000000e+00 : f32
    %38 = vector.broadcast %cst_9 : f32 to vector<2x128xf32>
    %39 = arith.addf %38, %37 : vector<2x128xf32>
    %40 = arith.divf %38, %39 : vector<2x128xf32>
    %41 = math.tanh %35 : vector<2x128xf32>
    %42 = vector.extract_strided_slice %40 {offsets = [0, 32], sizes = [2, 32], strides = [1, 1]} : vector<2x128xf32> to vector<2x32xf32>
    %43 = arith.mulf %42, %28 : vector<2x32xf32>
    %44 = vector.extract_strided_slice %40 {offsets = [0, 0], sizes = [2, 32], strides = [1, 1]} : vector<2x128xf32> to vector<2x32xf32>
    %45 = vector.extract_strided_slice %41 {offsets = [0, 64], sizes = [2, 32], strides = [1, 1]} : vector<2x128xf32> to vector<2x32xf32>
    %46 = arith.mulf %44, %45 : vector<2x32xf32>
    %47 = arith.addf %43, %46 : vector<2x32xf32>
    %48 = vector.extract_strided_slice %40 {offsets = [0, 96], sizes = [2, 32], strides = [1, 1]} : vector<2x128xf32> to vector<2x32xf32>
    %49 = math.tanh %47 : vector<2x32xf32>
    %50 = arith.mulf %48, %49 : vector<2x32xf32>
    %51 = tpu.concatenate %3, %50 in 1 : vector<2x16xf32>, vector<2x32xf32> -> vector<2x48xf32>
    %cst_10 = arith.constant dense<0.000000e+00> : vector<2x128xf32>
    %52 = tpu.matmul %51, %9, %cst_10 {dimension_numbers = #tpu.dot_dimension_numbers<[1], [0], [0], [1], [0, 0, 1, 1], [], []>} : vector<2x48xf32>, vector<48x128xf32>, vector<2x128xf32> -> vector<2x128xf32>
    %53 = vector.broadcast %10 : vector<1x128xf32> to vector<2x128xf32>
    %54 = arith.addf %52, %53 : vector<2x128xf32>
    %55 = arith.negf %54 : vector<2x128xf32>
    %56 = math.exp %55 : vector<2x128xf32>
    %cst_11 = arith.constant 1.000000e+00 : f32
    %57 = vector.broadcast %cst_11 : f32 to vector<2x128xf32>
    %58 = arith.addf %57, %56 : vector<2x128xf32>
    %59 = arith.divf %57, %58 : vector<2x128xf32>
    %60 = math.tanh %54 : vector<2x128xf32>
    %61 = vector.extract_strided_slice %59 {offsets = [0, 32], sizes = [2, 32], strides = [1, 1]} : vector<2x128xf32> to vector<2x32xf32>
    %62 = arith.mulf %61, %47 : vector<2x32xf32>
    %63 = vector.extract_strided_slice %59 {offsets = [0, 0], sizes = [2, 32], strides = [1, 1]} : vector<2x128xf32> to vector<2x32xf32>
    %64 = vector.extract_strided_slice %60 {offsets = [0, 64], sizes = [2, 32], strides = [1, 1]} : vector<2x128xf32> to vector<2x32xf32>
    %65 = arith.mulf %63, %64 : vector<2x32xf32>
    %66 = arith.addf %62, %65 : vector<2x32xf32>
    %67 = vector.extract_strided_slice %59 {offsets = [0, 96], sizes = [2, 32], strides = [1, 1]} : vector<2x128xf32> to vector<2x32xf32>
    %68 = math.tanh %66 : vector<2x32xf32>
    %69 = arith.mulf %67, %68 : vector<2x32xf32>
    %70 = tpu.concatenate %4, %69 in 1 : vector<2x16xf32>, vector<2x32xf32> -> vector<2x48xf32>
    %cst_12 = arith.constant dense<0.000000e+00> : vector<2x128xf32>
    %71 = tpu.matmul %70, %9, %cst_12 {dimension_numbers = #tpu.dot_dimension_numbers<[1], [0], [0], [1], [0, 0, 1, 1], [], []>} : vector<2x48xf32>, vector<48x128xf32>, vector<2x128xf32> -> vector<2x128xf32>
    %72 = vector.broadcast %10 : vector<1x128xf32> to vector<2x128xf32>
    %73 = arith.addf %71, %72 : vector<2x128xf32>
    %74 = arith.negf %73 : vector<2x128xf32>
    %75 = math.exp %74 : vector<2x128xf32>
    %cst_13 = arith.constant 1.000000e+00 : f32
    %76 = vector.broadcast %cst_13 : f32 to vector<2x128xf32>
    %77 = arith.addf %76, %75 : vector<2x128xf32>
    %78 = arith.divf %76, %77 : vector<2x128xf32>
    %79 = math.tanh %73 : vector<2x128xf32>
    %80 = vector.extract_strided_slice %78 {offsets = [0, 32], sizes = [2, 32], strides = [1, 1]} : vector<2x128xf32> to vector<2x32xf32>
    %81 = arith.mulf %80, %66 : vector<2x32xf32>
    %82 = vector.extract_strided_slice %78 {offsets = [0, 0], sizes = [2, 32], strides = [1, 1]} : vector<2x128xf32> to vector<2x32xf32>
    %83 = vector.extract_strided_slice %79 {offsets = [0, 64], sizes = [2, 32], strides = [1, 1]} : vector<2x128xf32> to vector<2x32xf32>
    %84 = arith.mulf %82, %83 : vector<2x32xf32>
    %85 = arith.addf %81, %84 : vector<2x32xf32>
    %86 = vector.extract_strided_slice %78 {offsets = [0, 96], sizes = [2, 32], strides = [1, 1]} : vector<2x128xf32> to vector<2x32xf32>
    %87 = math.tanh %85 : vector<2x32xf32>
    %88 = arith.mulf %86, %87 : vector<2x32xf32>
    %89 = tpu.concatenate %5, %88 in 1 : vector<2x16xf32>, vector<2x32xf32> -> vector<2x48xf32>
    %cst_14 = arith.constant dense<0.000000e+00> : vector<2x128xf32>
    %90 = tpu.matmul %89, %9, %cst_14 {dimension_numbers = #tpu.dot_dimension_numbers<[1], [0], [0], [1], [0, 0, 1, 1], [], []>} : vector<2x48xf32>, vector<48x128xf32>, vector<2x128xf32> -> vector<2x128xf32>
    %91 = vector.broadcast %10 : vector<1x128xf32> to vector<2x128xf32>
    %92 = arith.addf %90, %91 : vector<2x128xf32>
    %93 = arith.negf %92 : vector<2x128xf32>
    %94 = math.exp %93 : vector<2x128xf32>
    %cst_15 = arith.constant 1.000000e+00 : f32
    %95 = vector.broadcast %cst_15 : f32 to vector<2x128xf32>
    %96 = arith.addf %95, %94 : vector<2x128xf32>
    %97 = arith.divf %95, %96 : vector<2x128xf32>
    %98 = math.tanh %92 : vector<2x128xf32>
    %99 = vector.extract_strided_slice %97 {offsets = [0, 32], sizes = [2, 32], strides = [1, 1]} : vector<2x128xf32> to vector<2x32xf32>
    %100 = arith.mulf %99, %85 : vector<2x32xf32>
    %101 = vector.extract_strided_slice %97 {offsets = [0, 0], sizes = [2, 32], strides = [1, 1]} : vector<2x128xf32> to vector<2x32xf32>
    %102 = vector.extract_strided_slice %98 {offsets = [0, 64], sizes = [2, 32], strides = [1, 1]} : vector<2x128xf32> to vector<2x32xf32>
    %103 = arith.mulf %101, %102 : vector<2x32xf32>
    %104 = arith.addf %100, %103 : vector<2x32xf32>
    %105 = vector.extract_strided_slice %97 {offsets = [0, 96], sizes = [2, 32], strides = [1, 1]} : vector<2x128xf32> to vector<2x32xf32>
    %106 = math.tanh %104 : vector<2x32xf32>
    %107 = arith.mulf %105, %106 : vector<2x32xf32>
    %108 = tpu.concatenate %6, %107 in 1 : vector<2x16xf32>, vector<2x32xf32> -> vector<2x48xf32>
    %cst_16 = arith.constant dense<0.000000e+00> : vector<2x128xf32>
    %109 = tpu.matmul %108, %9, %cst_16 {dimension_numbers = #tpu.dot_dimension_numbers<[1], [0], [0], [1], [0, 0, 1, 1], [], []>} : vector<2x48xf32>, vector<48x128xf32>, vector<2x128xf32> -> vector<2x128xf32>
    %110 = vector.broadcast %10 : vector<1x128xf32> to vector<2x128xf32>
    %111 = arith.addf %109, %110 : vector<2x128xf32>
    %112 = arith.negf %111 : vector<2x128xf32>
    %113 = math.exp %112 : vector<2x128xf32>
    %cst_17 = arith.constant 1.000000e+00 : f32
    %114 = vector.broadcast %cst_17 : f32 to vector<2x128xf32>
    %115 = arith.addf %114, %113 : vector<2x128xf32>
    %116 = arith.divf %114, %115 : vector<2x128xf32>
    %117 = math.tanh %111 : vector<2x128xf32>
    %118 = vector.extract_strided_slice %116 {offsets = [0, 32], sizes = [2, 32], strides = [1, 1]} : vector<2x128xf32> to vector<2x32xf32>
    %119 = arith.mulf %118, %104 : vector<2x32xf32>
    %120 = vector.extract_strided_slice %116 {offsets = [0, 0], sizes = [2, 32], strides = [1, 1]} : vector<2x128xf32> to vector<2x32xf32>
    %121 = vector.extract_strided_slice %117 {offsets = [0, 64], sizes = [2, 32], strides = [1, 1]} : vector<2x128xf32> to vector<2x32xf32>
    %122 = arith.mulf %120, %121 : vector<2x32xf32>
    %123 = arith.addf %119, %122 : vector<2x32xf32>
    %124 = vector.extract_strided_slice %116 {offsets = [0, 96], sizes = [2, 32], strides = [1, 1]} : vector<2x128xf32> to vector<2x32xf32>
    %125 = math.tanh %123 : vector<2x32xf32>
    %126 = arith.mulf %124, %125 : vector<2x32xf32>
    %127 = tpu.concatenate %7, %126 in 1 : vector<2x16xf32>, vector<2x32xf32> -> vector<2x48xf32>
    %cst_18 = arith.constant dense<0.000000e+00> : vector<2x128xf32>
    %128 = tpu.matmul %127, %9, %cst_18 {dimension_numbers = #tpu.dot_dimension_numbers<[1], [0], [0], [1], [0, 0, 1, 1], [], []>} : vector<2x48xf32>, vector<48x128xf32>, vector<2x128xf32> -> vector<2x128xf32>
    %129 = vector.broadcast %10 : vector<1x128xf32> to vector<2x128xf32>
    %130 = arith.addf %128, %129 : vector<2x128xf32>
    %131 = arith.negf %130 : vector<2x128xf32>
    %132 = math.exp %131 : vector<2x128xf32>
    %cst_19 = arith.constant 1.000000e+00 : f32
    %133 = vector.broadcast %cst_19 : f32 to vector<2x128xf32>
    %134 = arith.addf %133, %132 : vector<2x128xf32>
    %135 = arith.divf %133, %134 : vector<2x128xf32>
    %136 = math.tanh %130 : vector<2x128xf32>
    %137 = vector.extract_strided_slice %135 {offsets = [0, 32], sizes = [2, 32], strides = [1, 1]} : vector<2x128xf32> to vector<2x32xf32>
    %138 = arith.mulf %137, %123 : vector<2x32xf32>
    %139 = vector.extract_strided_slice %135 {offsets = [0, 0], sizes = [2, 32], strides = [1, 1]} : vector<2x128xf32> to vector<2x32xf32>
    %140 = vector.extract_strided_slice %136 {offsets = [0, 64], sizes = [2, 32], strides = [1, 1]} : vector<2x128xf32> to vector<2x32xf32>
    %141 = arith.mulf %139, %140 : vector<2x32xf32>
    %142 = arith.addf %138, %141 : vector<2x32xf32>
    %143 = vector.extract_strided_slice %135 {offsets = [0, 96], sizes = [2, 32], strides = [1, 1]} : vector<2x128xf32> to vector<2x32xf32>
    %144 = math.tanh %142 : vector<2x32xf32>
    %145 = arith.mulf %143, %144 : vector<2x32xf32>
    %146 = tpu.concatenate %8, %145 in 1 : vector<2x16xf32>, vector<2x32xf32> -> vector<2x48xf32>
    %cst_20 = arith.constant dense<0.000000e+00> : vector<2x128xf32>
    %147 = tpu.matmul %146, %9, %cst_20 {dimension_numbers = #tpu.dot_dimension_numbers<[1], [0], [0], [1], [0, 0, 1, 1], [], []>} : vector<2x48xf32>, vector<48x128xf32>, vector<2x128xf32> -> vector<2x128xf32>
    %148 = vector.broadcast %10 : vector<1x128xf32> to vector<2x128xf32>
    %149 = arith.addf %147, %148 : vector<2x128xf32>
    %150 = arith.negf %149 : vector<2x128xf32>
    %151 = math.exp %150 : vector<2x128xf32>
    %cst_21 = arith.constant 1.000000e+00 : f32
    %152 = vector.broadcast %cst_21 : f32 to vector<2x128xf32>
    %153 = arith.addf %152, %151 : vector<2x128xf32>
    %154 = arith.divf %152, %153 : vector<2x128xf32>
    %155 = math.tanh %149 : vector<2x128xf32>
    %156 = vector.extract_strided_slice %154 {offsets = [0, 32], sizes = [2, 32], strides = [1, 1]} : vector<2x128xf32> to vector<2x32xf32>
    %157 = arith.mulf %156, %142 : vector<2x32xf32>
    %158 = vector.extract_strided_slice %154 {offsets = [0, 0], sizes = [2, 32], strides = [1, 1]} : vector<2x128xf32> to vector<2x32xf32>
    %159 = vector.extract_strided_slice %155 {offsets = [0, 64], sizes = [2, 32], strides = [1, 1]} : vector<2x128xf32> to vector<2x32xf32>
    %160 = arith.mulf %158, %159 : vector<2x32xf32>
    %161 = arith.addf %157, %160 : vector<2x32xf32>
    %162 = vector.extract_strided_slice %154 {offsets = [0, 96], sizes = [2, 32], strides = [1, 1]} : vector<2x128xf32> to vector<2x32xf32>
    %163 = math.tanh %161 : vector<2x32xf32>
    %164 = arith.mulf %162, %163 : vector<2x32xf32>
    %c0_22 = arith.constant 0 : index
    %c0_23 = arith.constant 0 : index
    %165 = vector.load %arg3[%c0_22, %c0_23] : memref<48x64xf32, #tpu.memory_space<vmem>>, vector<48x64xf32>
    %c0_24 = arith.constant 0 : index
    %c0_25 = arith.constant 0 : index
    %166 = vector.load %arg4[%c0_24, %c0_25] : memref<1x64xf32, #tpu.memory_space<vmem>>, vector<1x64xf32>
    %cst_26 = arith.constant 0.000000e+00 : f32
    %167 = vector.broadcast %cst_26 : f32 to vector<2x16xf32>
    %cst_27 = arith.constant 0.000000e+00 : f32
    %168 = vector.broadcast %cst_27 : f32 to vector<2x16xf32>
    %169 = tpu.concatenate %31, %167 in 1 : vector<2x32xf32>, vector<2x16xf32> -> vector<2x48xf32>
    %cst_28 = arith.constant dense<0.000000e+00> : vector<2x64xf32>
    %170 = tpu.matmul %169, %165, %cst_28 {dimension_numbers = #tpu.dot_dimension_numbers<[1], [0], [0], [1], [0, 0, 1, 1], [], []>} : vector<2x48xf32>, vector<48x64xf32>, vector<2x64xf32> -> vector<2x64xf32>
    %171 = vector.broadcast %166 : vector<1x64xf32> to vector<2x64xf32>
    %172 = arith.addf %170, %171 : vector<2x64xf32>
    %173 = arith.negf %172 : vector<2x64xf32>
    %174 = math.exp %173 : vector<2x64xf32>
    %cst_29 = arith.constant 1.000000e+00 : f32
    %175 = vector.broadcast %cst_29 : f32 to vector<2x64xf32>
    %176 = arith.addf %175, %174 : vector<2x64xf32>
    %177 = arith.divf %175, %176 : vector<2x64xf32>
    %178 = math.tanh %172 : vector<2x64xf32>
    %179 = vector.extract_strided_slice %177 {offsets = [0, 16], sizes = [2, 16], strides = [1, 1]} : vector<2x64xf32> to vector<2x16xf32>
    %180 = arith.mulf %179, %168 : vector<2x16xf32>
    %181 = vector.extract_strided_slice %177 {offsets = [0, 0], sizes = [2, 16], strides = [1, 1]} : vector<2x64xf32> to vector<2x16xf32>
    %182 = vector.extract_strided_slice %178 {offsets = [0, 32], sizes = [2, 16], strides = [1, 1]} : vector<2x64xf32> to vector<2x16xf32>
    %183 = arith.mulf %181, %182 : vector<2x16xf32>
    %184 = arith.addf %180, %183 : vector<2x16xf32>
    %185 = vector.extract_strided_slice %177 {offsets = [0, 48], sizes = [2, 16], strides = [1, 1]} : vector<2x64xf32> to vector<2x16xf32>
    %186 = math.tanh %184 : vector<2x16xf32>
    %187 = arith.mulf %185, %186 : vector<2x16xf32>
    %188 = tpu.concatenate %50, %187 in 1 : vector<2x32xf32>, vector<2x16xf32> -> vector<2x48xf32>
    %cst_30 = arith.constant dense<0.000000e+00> : vector<2x64xf32>
    %189 = tpu.matmul %188, %165, %cst_30 {dimension_numbers = #tpu.dot_dimension_numbers<[1], [0], [0], [1], [0, 0, 1, 1], [], []>} : vector<2x48xf32>, vector<48x64xf32>, vector<2x64xf32> -> vector<2x64xf32>
    %190 = vector.broadcast %166 : vector<1x64xf32> to vector<2x64xf32>
    %191 = arith.addf %189, %190 : vector<2x64xf32>
    %192 = arith.negf %191 : vector<2x64xf32>
    %193 = math.exp %192 : vector<2x64xf32>
    %cst_31 = arith.constant 1.000000e+00 : f32
    %194 = vector.broadcast %cst_31 : f32 to vector<2x64xf32>
    %195 = arith.addf %194, %193 : vector<2x64xf32>
    %196 = arith.divf %194, %195 : vector<2x64xf32>
    %197 = math.tanh %191 : vector<2x64xf32>
    %198 = vector.extract_strided_slice %196 {offsets = [0, 16], sizes = [2, 16], strides = [1, 1]} : vector<2x64xf32> to vector<2x16xf32>
    %199 = arith.mulf %198, %184 : vector<2x16xf32>
    %200 = vector.extract_strided_slice %196 {offsets = [0, 0], sizes = [2, 16], strides = [1, 1]} : vector<2x64xf32> to vector<2x16xf32>
    %201 = vector.extract_strided_slice %197 {offsets = [0, 32], sizes = [2, 16], strides = [1, 1]} : vector<2x64xf32> to vector<2x16xf32>
    %202 = arith.mulf %200, %201 : vector<2x16xf32>
    %203 = arith.addf %199, %202 : vector<2x16xf32>
    %204 = vector.extract_strided_slice %196 {offsets = [0, 48], sizes = [2, 16], strides = [1, 1]} : vector<2x64xf32> to vector<2x16xf32>
    %205 = math.tanh %203 : vector<2x16xf32>
    %206 = arith.mulf %204, %205 : vector<2x16xf32>
    %207 = tpu.concatenate %69, %206 in 1 : vector<2x32xf32>, vector<2x16xf32> -> vector<2x48xf32>
    %cst_32 = arith.constant dense<0.000000e+00> : vector<2x64xf32>
    %208 = tpu.matmul %207, %165, %cst_32 {dimension_numbers = #tpu.dot_dimension_numbers<[1], [0], [0], [1], [0, 0, 1, 1], [], []>} : vector<2x48xf32>, vector<48x64xf32>, vector<2x64xf32> -> vector<2x64xf32>
    %209 = vector.broadcast %166 : vector<1x64xf32> to vector<2x64xf32>
    %210 = arith.addf %208, %209 : vector<2x64xf32>
    %211 = arith.negf %210 : vector<2x64xf32>
    %212 = math.exp %211 : vector<2x64xf32>
    %cst_33 = arith.constant 1.000000e+00 : f32
    %213 = vector.broadcast %cst_33 : f32 to vector<2x64xf32>
    %214 = arith.addf %213, %212 : vector<2x64xf32>
    %215 = arith.divf %213, %214 : vector<2x64xf32>
    %216 = math.tanh %210 : vector<2x64xf32>
    %217 = vector.extract_strided_slice %215 {offsets = [0, 16], sizes = [2, 16], strides = [1, 1]} : vector<2x64xf32> to vector<2x16xf32>
    %218 = arith.mulf %217, %203 : vector<2x16xf32>
    %219 = vector.extract_strided_slice %215 {offsets = [0, 0], sizes = [2, 16], strides = [1, 1]} : vector<2x64xf32> to vector<2x16xf32>
    %220 = vector.extract_strided_slice %216 {offsets = [0, 32], sizes = [2, 16], strides = [1, 1]} : vector<2x64xf32> to vector<2x16xf32>
    %221 = arith.mulf %219, %220 : vector<2x16xf32>
    %222 = arith.addf %218, %221 : vector<2x16xf32>
    %223 = vector.extract_strided_slice %215 {offsets = [0, 48], sizes = [2, 16], strides = [1, 1]} : vector<2x64xf32> to vector<2x16xf32>
    %224 = math.tanh %222 : vector<2x16xf32>
    %225 = arith.mulf %223, %224 : vector<2x16xf32>
    %226 = tpu.concatenate %88, %225 in 1 : vector<2x32xf32>, vector<2x16xf32> -> vector<2x48xf32>
    %cst_34 = arith.constant dense<0.000000e+00> : vector<2x64xf32>
    %227 = tpu.matmul %226, %165, %cst_34 {dimension_numbers = #tpu.dot_dimension_numbers<[1], [0], [0], [1], [0, 0, 1, 1], [], []>} : vector<2x48xf32>, vector<48x64xf32>, vector<2x64xf32> -> vector<2x64xf32>
    %228 = vector.broadcast %166 : vector<1x64xf32> to vector<2x64xf32>
    %229 = arith.addf %227, %228 : vector<2x64xf32>
    %230 = arith.negf %229 : vector<2x64xf32>
    %231 = math.exp %230 : vector<2x64xf32>
    %cst_35 = arith.constant 1.000000e+00 : f32
    %232 = vector.broadcast %cst_35 : f32 to vector<2x64xf32>
    %233 = arith.addf %232, %231 : vector<2x64xf32>
    %234 = arith.divf %232, %233 : vector<2x64xf32>
    %235 = math.tanh %229 : vector<2x64xf32>
    %236 = vector.extract_strided_slice %234 {offsets = [0, 16], sizes = [2, 16], strides = [1, 1]} : vector<2x64xf32> to vector<2x16xf32>
    %237 = arith.mulf %236, %222 : vector<2x16xf32>
    %238 = vector.extract_strided_slice %234 {offsets = [0, 0], sizes = [2, 16], strides = [1, 1]} : vector<2x64xf32> to vector<2x16xf32>
    %239 = vector.extract_strided_slice %235 {offsets = [0, 32], sizes = [2, 16], strides = [1, 1]} : vector<2x64xf32> to vector<2x16xf32>
    %240 = arith.mulf %238, %239 : vector<2x16xf32>
    %241 = arith.addf %237, %240 : vector<2x16xf32>
    %242 = vector.extract_strided_slice %234 {offsets = [0, 48], sizes = [2, 16], strides = [1, 1]} : vector<2x64xf32> to vector<2x16xf32>
    %243 = math.tanh %241 : vector<2x16xf32>
    %244 = arith.mulf %242, %243 : vector<2x16xf32>
    %245 = tpu.concatenate %107, %244 in 1 : vector<2x32xf32>, vector<2x16xf32> -> vector<2x48xf32>
    %cst_36 = arith.constant dense<0.000000e+00> : vector<2x64xf32>
    %246 = tpu.matmul %245, %165, %cst_36 {dimension_numbers = #tpu.dot_dimension_numbers<[1], [0], [0], [1], [0, 0, 1, 1], [], []>} : vector<2x48xf32>, vector<48x64xf32>, vector<2x64xf32> -> vector<2x64xf32>
    %247 = vector.broadcast %166 : vector<1x64xf32> to vector<2x64xf32>
    %248 = arith.addf %246, %247 : vector<2x64xf32>
    %249 = arith.negf %248 : vector<2x64xf32>
    %250 = math.exp %249 : vector<2x64xf32>
    %cst_37 = arith.constant 1.000000e+00 : f32
    %251 = vector.broadcast %cst_37 : f32 to vector<2x64xf32>
    %252 = arith.addf %251, %250 : vector<2x64xf32>
    %253 = arith.divf %251, %252 : vector<2x64xf32>
    %254 = math.tanh %248 : vector<2x64xf32>
    %255 = vector.extract_strided_slice %253 {offsets = [0, 16], sizes = [2, 16], strides = [1, 1]} : vector<2x64xf32> to vector<2x16xf32>
    %256 = arith.mulf %255, %241 : vector<2x16xf32>
    %257 = vector.extract_strided_slice %253 {offsets = [0, 0], sizes = [2, 16], strides = [1, 1]} : vector<2x64xf32> to vector<2x16xf32>
    %258 = vector.extract_strided_slice %254 {offsets = [0, 32], sizes = [2, 16], strides = [1, 1]} : vector<2x64xf32> to vector<2x16xf32>
    %259 = arith.mulf %257, %258 : vector<2x16xf32>
    %260 = arith.addf %256, %259 : vector<2x16xf32>
    %261 = vector.extract_strided_slice %253 {offsets = [0, 48], sizes = [2, 16], strides = [1, 1]} : vector<2x64xf32> to vector<2x16xf32>
    %262 = math.tanh %260 : vector<2x16xf32>
    %263 = arith.mulf %261, %262 : vector<2x16xf32>
    %264 = tpu.concatenate %126, %263 in 1 : vector<2x32xf32>, vector<2x16xf32> -> vector<2x48xf32>
    %cst_38 = arith.constant dense<0.000000e+00> : vector<2x64xf32>
    %265 = tpu.matmul %264, %165, %cst_38 {dimension_numbers = #tpu.dot_dimension_numbers<[1], [0], [0], [1], [0, 0, 1, 1], [], []>} : vector<2x48xf32>, vector<48x64xf32>, vector<2x64xf32> -> vector<2x64xf32>
    %266 = vector.broadcast %166 : vector<1x64xf32> to vector<2x64xf32>
    %267 = arith.addf %265, %266 : vector<2x64xf32>
    %268 = arith.negf %267 : vector<2x64xf32>
    %269 = math.exp %268 : vector<2x64xf32>
    %cst_39 = arith.constant 1.000000e+00 : f32
    %270 = vector.broadcast %cst_39 : f32 to vector<2x64xf32>
    %271 = arith.addf %270, %269 : vector<2x64xf32>
    %272 = arith.divf %270, %271 : vector<2x64xf32>
    %273 = math.tanh %267 : vector<2x64xf32>
    %274 = vector.extract_strided_slice %272 {offsets = [0, 16], sizes = [2, 16], strides = [1, 1]} : vector<2x64xf32> to vector<2x16xf32>
    %275 = arith.mulf %274, %260 : vector<2x16xf32>
    %276 = vector.extract_strided_slice %272 {offsets = [0, 0], sizes = [2, 16], strides = [1, 1]} : vector<2x64xf32> to vector<2x16xf32>
    %277 = vector.extract_strided_slice %273 {offsets = [0, 32], sizes = [2, 16], strides = [1, 1]} : vector<2x64xf32> to vector<2x16xf32>
    %278 = arith.mulf %276, %277 : vector<2x16xf32>
    %279 = arith.addf %275, %278 : vector<2x16xf32>
    %280 = vector.extract_strided_slice %272 {offsets = [0, 48], sizes = [2, 16], strides = [1, 1]} : vector<2x64xf32> to vector<2x16xf32>
    %281 = math.tanh %279 : vector<2x16xf32>
    %282 = arith.mulf %280, %281 : vector<2x16xf32>
    %283 = tpu.concatenate %145, %282 in 1 : vector<2x32xf32>, vector<2x16xf32> -> vector<2x48xf32>
    %cst_40 = arith.constant dense<0.000000e+00> : vector<2x64xf32>
    %284 = tpu.matmul %283, %165, %cst_40 {dimension_numbers = #tpu.dot_dimension_numbers<[1], [0], [0], [1], [0, 0, 1, 1], [], []>} : vector<2x48xf32>, vector<48x64xf32>, vector<2x64xf32> -> vector<2x64xf32>
    %285 = vector.broadcast %166 : vector<1x64xf32> to vector<2x64xf32>
    %286 = arith.addf %284, %285 : vector<2x64xf32>
    %287 = arith.negf %286 : vector<2x64xf32>
    %288 = math.exp %287 : vector<2x64xf32>
    %cst_41 = arith.constant 1.000000e+00 : f32
    %289 = vector.broadcast %cst_41 : f32 to vector<2x64xf32>
    %290 = arith.addf %289, %288 : vector<2x64xf32>
    %291 = arith.divf %289, %290 : vector<2x64xf32>
    %292 = math.tanh %286 : vector<2x64xf32>
    %293 = vector.extract_strided_slice %291 {offsets = [0, 16], sizes = [2, 16], strides = [1, 1]} : vector<2x64xf32> to vector<2x16xf32>
    %294 = arith.mulf %293, %279 : vector<2x16xf32>
    %295 = vector.extract_strided_slice %291 {offsets = [0, 0], sizes = [2, 16], strides = [1, 1]} : vector<2x64xf32> to vector<2x16xf32>
    %296 = vector.extract_strided_slice %292 {offsets = [0, 32], sizes = [2, 16], strides = [1, 1]} : vector<2x64xf32> to vector<2x16xf32>
    %297 = arith.mulf %295, %296 : vector<2x16xf32>
    %298 = arith.addf %294, %297 : vector<2x16xf32>
    %299 = vector.extract_strided_slice %291 {offsets = [0, 48], sizes = [2, 16], strides = [1, 1]} : vector<2x64xf32> to vector<2x16xf32>
    %300 = math.tanh %298 : vector<2x16xf32>
    %301 = arith.mulf %299, %300 : vector<2x16xf32>
    %302 = tpu.concatenate %164, %301 in 1 : vector<2x32xf32>, vector<2x16xf32> -> vector<2x48xf32>
    %cst_42 = arith.constant dense<0.000000e+00> : vector<2x64xf32>
    %303 = tpu.matmul %302, %165, %cst_42 {dimension_numbers = #tpu.dot_dimension_numbers<[1], [0], [0], [1], [0, 0, 1, 1], [], []>} : vector<2x48xf32>, vector<48x64xf32>, vector<2x64xf32> -> vector<2x64xf32>
    %304 = vector.broadcast %166 : vector<1x64xf32> to vector<2x64xf32>
    %305 = arith.addf %303, %304 : vector<2x64xf32>
    %306 = arith.negf %305 : vector<2x64xf32>
    %307 = math.exp %306 : vector<2x64xf32>
    %cst_43 = arith.constant 1.000000e+00 : f32
    %308 = vector.broadcast %cst_43 : f32 to vector<2x64xf32>
    %309 = arith.addf %308, %307 : vector<2x64xf32>
    %310 = arith.divf %308, %309 : vector<2x64xf32>
    %311 = math.tanh %305 : vector<2x64xf32>
    %312 = vector.extract_strided_slice %310 {offsets = [0, 16], sizes = [2, 16], strides = [1, 1]} : vector<2x64xf32> to vector<2x16xf32>
    %313 = arith.mulf %312, %298 : vector<2x16xf32>
    %314 = vector.extract_strided_slice %310 {offsets = [0, 0], sizes = [2, 16], strides = [1, 1]} : vector<2x64xf32> to vector<2x16xf32>
    %315 = vector.extract_strided_slice %311 {offsets = [0, 32], sizes = [2, 16], strides = [1, 1]} : vector<2x64xf32> to vector<2x16xf32>
    %316 = arith.mulf %314, %315 : vector<2x16xf32>
    %317 = arith.addf %313, %316 : vector<2x16xf32>
    %318 = vector.extract_strided_slice %310 {offsets = [0, 48], sizes = [2, 16], strides = [1, 1]} : vector<2x64xf32> to vector<2x16xf32>
    %319 = math.tanh %317 : vector<2x16xf32>
    %320 = arith.mulf %318, %319 : vector<2x16xf32>
    %c0_44 = arith.constant 0 : index
    %c0_45 = arith.constant 0 : index
    %321 = vector.load %arg5[%c0_44, %c0_45] : memref<48x128xf32, #tpu.memory_space<vmem>>, vector<48x128xf32>
    %c0_46 = arith.constant 0 : index
    %c0_47 = arith.constant 0 : index
    %322 = vector.load %arg6[%c0_46, %c0_47] : memref<1x128xf32, #tpu.memory_space<vmem>>, vector<1x128xf32>
    %cst_48 = arith.constant 0.000000e+00 : f32
    %323 = vector.broadcast %cst_48 : f32 to vector<2x32xf32>
    %cst_49 = arith.constant 0.000000e+00 : f32
    %324 = vector.broadcast %cst_49 : f32 to vector<2x32xf32>
    %325 = tpu.concatenate %187, %323 in 1 : vector<2x16xf32>, vector<2x32xf32> -> vector<2x48xf32>
    %cst_50 = arith.constant dense<0.000000e+00> : vector<2x128xf32>
    %326 = tpu.matmul %325, %321, %cst_50 {dimension_numbers = #tpu.dot_dimension_numbers<[1], [0], [0], [1], [0, 0, 1, 1], [], []>} : vector<2x48xf32>, vector<48x128xf32>, vector<2x128xf32> -> vector<2x128xf32>
    %327 = vector.broadcast %322 : vector<1x128xf32> to vector<2x128xf32>
    %328 = arith.addf %326, %327 : vector<2x128xf32>
    %329 = arith.negf %328 : vector<2x128xf32>
    %330 = math.exp %329 : vector<2x128xf32>
    %cst_51 = arith.constant 1.000000e+00 : f32
    %331 = vector.broadcast %cst_51 : f32 to vector<2x128xf32>
    %332 = arith.addf %331, %330 : vector<2x128xf32>
    %333 = arith.divf %331, %332 : vector<2x128xf32>
    %334 = math.tanh %328 : vector<2x128xf32>
    %335 = vector.extract_strided_slice %333 {offsets = [0, 32], sizes = [2, 32], strides = [1, 1]} : vector<2x128xf32> to vector<2x32xf32>
    %336 = arith.mulf %335, %324 : vector<2x32xf32>
    %337 = vector.extract_strided_slice %333 {offsets = [0, 0], sizes = [2, 32], strides = [1, 1]} : vector<2x128xf32> to vector<2x32xf32>
    %338 = vector.extract_strided_slice %334 {offsets = [0, 64], sizes = [2, 32], strides = [1, 1]} : vector<2x128xf32> to vector<2x32xf32>
    %339 = arith.mulf %337, %338 : vector<2x32xf32>
    %340 = arith.addf %336, %339 : vector<2x32xf32>
    %341 = vector.extract_strided_slice %333 {offsets = [0, 96], sizes = [2, 32], strides = [1, 1]} : vector<2x128xf32> to vector<2x32xf32>
    %342 = math.tanh %340 : vector<2x32xf32>
    %343 = arith.mulf %341, %342 : vector<2x32xf32>
    %344 = tpu.concatenate %206, %343 in 1 : vector<2x16xf32>, vector<2x32xf32> -> vector<2x48xf32>
    %cst_52 = arith.constant dense<0.000000e+00> : vector<2x128xf32>
    %345 = tpu.matmul %344, %321, %cst_52 {dimension_numbers = #tpu.dot_dimension_numbers<[1], [0], [0], [1], [0, 0, 1, 1], [], []>} : vector<2x48xf32>, vector<48x128xf32>, vector<2x128xf32> -> vector<2x128xf32>
    %346 = vector.broadcast %322 : vector<1x128xf32> to vector<2x128xf32>
    %347 = arith.addf %345, %346 : vector<2x128xf32>
    %348 = arith.negf %347 : vector<2x128xf32>
    %349 = math.exp %348 : vector<2x128xf32>
    %cst_53 = arith.constant 1.000000e+00 : f32
    %350 = vector.broadcast %cst_53 : f32 to vector<2x128xf32>
    %351 = arith.addf %350, %349 : vector<2x128xf32>
    %352 = arith.divf %350, %351 : vector<2x128xf32>
    %353 = math.tanh %347 : vector<2x128xf32>
    %354 = vector.extract_strided_slice %352 {offsets = [0, 32], sizes = [2, 32], strides = [1, 1]} : vector<2x128xf32> to vector<2x32xf32>
    %355 = arith.mulf %354, %340 : vector<2x32xf32>
    %356 = vector.extract_strided_slice %352 {offsets = [0, 0], sizes = [2, 32], strides = [1, 1]} : vector<2x128xf32> to vector<2x32xf32>
    %357 = vector.extract_strided_slice %353 {offsets = [0, 64], sizes = [2, 32], strides = [1, 1]} : vector<2x128xf32> to vector<2x32xf32>
    %358 = arith.mulf %356, %357 : vector<2x32xf32>
    %359 = arith.addf %355, %358 : vector<2x32xf32>
    %360 = vector.extract_strided_slice %352 {offsets = [0, 96], sizes = [2, 32], strides = [1, 1]} : vector<2x128xf32> to vector<2x32xf32>
    %361 = math.tanh %359 : vector<2x32xf32>
    %362 = arith.mulf %360, %361 : vector<2x32xf32>
    %363 = tpu.concatenate %225, %362 in 1 : vector<2x16xf32>, vector<2x32xf32> -> vector<2x48xf32>
    %cst_54 = arith.constant dense<0.000000e+00> : vector<2x128xf32>
    %364 = tpu.matmul %363, %321, %cst_54 {dimension_numbers = #tpu.dot_dimension_numbers<[1], [0], [0], [1], [0, 0, 1, 1], [], []>} : vector<2x48xf32>, vector<48x128xf32>, vector<2x128xf32> -> vector<2x128xf32>
    %365 = vector.broadcast %322 : vector<1x128xf32> to vector<2x128xf32>
    %366 = arith.addf %364, %365 : vector<2x128xf32>
    %367 = arith.negf %366 : vector<2x128xf32>
    %368 = math.exp %367 : vector<2x128xf32>
    %cst_55 = arith.constant 1.000000e+00 : f32
    %369 = vector.broadcast %cst_55 : f32 to vector<2x128xf32>
    %370 = arith.addf %369, %368 : vector<2x128xf32>
    %371 = arith.divf %369, %370 : vector<2x128xf32>
    %372 = math.tanh %366 : vector<2x128xf32>
    %373 = vector.extract_strided_slice %371 {offsets = [0, 32], sizes = [2, 32], strides = [1, 1]} : vector<2x128xf32> to vector<2x32xf32>
    %374 = arith.mulf %373, %359 : vector<2x32xf32>
    %375 = vector.extract_strided_slice %371 {offsets = [0, 0], sizes = [2, 32], strides = [1, 1]} : vector<2x128xf32> to vector<2x32xf32>
    %376 = vector.extract_strided_slice %372 {offsets = [0, 64], sizes = [2, 32], strides = [1, 1]} : vector<2x128xf32> to vector<2x32xf32>
    %377 = arith.mulf %375, %376 : vector<2x32xf32>
    %378 = arith.addf %374, %377 : vector<2x32xf32>
    %379 = vector.extract_strided_slice %371 {offsets = [0, 96], sizes = [2, 32], strides = [1, 1]} : vector<2x128xf32> to vector<2x32xf32>
    %380 = math.tanh %378 : vector<2x32xf32>
    %381 = arith.mulf %379, %380 : vector<2x32xf32>
    %382 = tpu.concatenate %244, %381 in 1 : vector<2x16xf32>, vector<2x32xf32> -> vector<2x48xf32>
    %cst_56 = arith.constant dense<0.000000e+00> : vector<2x128xf32>
    %383 = tpu.matmul %382, %321, %cst_56 {dimension_numbers = #tpu.dot_dimension_numbers<[1], [0], [0], [1], [0, 0, 1, 1], [], []>} : vector<2x48xf32>, vector<48x128xf32>, vector<2x128xf32> -> vector<2x128xf32>
    %384 = vector.broadcast %322 : vector<1x128xf32> to vector<2x128xf32>
    %385 = arith.addf %383, %384 : vector<2x128xf32>
    %386 = arith.negf %385 : vector<2x128xf32>
    %387 = math.exp %386 : vector<2x128xf32>
    %cst_57 = arith.constant 1.000000e+00 : f32
    %388 = vector.broadcast %cst_57 : f32 to vector<2x128xf32>
    %389 = arith.addf %388, %387 : vector<2x128xf32>
    %390 = arith.divf %388, %389 : vector<2x128xf32>
    %391 = math.tanh %385 : vector<2x128xf32>
    %392 = vector.extract_strided_slice %390 {offsets = [0, 32], sizes = [2, 32], strides = [1, 1]} : vector<2x128xf32> to vector<2x32xf32>
    %393 = arith.mulf %392, %378 : vector<2x32xf32>
    %394 = vector.extract_strided_slice %390 {offsets = [0, 0], sizes = [2, 32], strides = [1, 1]} : vector<2x128xf32> to vector<2x32xf32>
    %395 = vector.extract_strided_slice %391 {offsets = [0, 64], sizes = [2, 32], strides = [1, 1]} : vector<2x128xf32> to vector<2x32xf32>
    %396 = arith.mulf %394, %395 : vector<2x32xf32>
    %397 = arith.addf %393, %396 : vector<2x32xf32>
    %398 = vector.extract_strided_slice %390 {offsets = [0, 96], sizes = [2, 32], strides = [1, 1]} : vector<2x128xf32> to vector<2x32xf32>
    %399 = math.tanh %397 : vector<2x32xf32>
    %400 = arith.mulf %398, %399 : vector<2x32xf32>
    %401 = tpu.concatenate %263, %400 in 1 : vector<2x16xf32>, vector<2x32xf32> -> vector<2x48xf32>
    %cst_58 = arith.constant dense<0.000000e+00> : vector<2x128xf32>
    %402 = tpu.matmul %401, %321, %cst_58 {dimension_numbers = #tpu.dot_dimension_numbers<[1], [0], [0], [1], [0, 0, 1, 1], [], []>} : vector<2x48xf32>, vector<48x128xf32>, vector<2x128xf32> -> vector<2x128xf32>
    %403 = vector.broadcast %322 : vector<1x128xf32> to vector<2x128xf32>
    %404 = arith.addf %402, %403 : vector<2x128xf32>
    %405 = arith.negf %404 : vector<2x128xf32>
    %406 = math.exp %405 : vector<2x128xf32>
    %cst_59 = arith.constant 1.000000e+00 : f32
    %407 = vector.broadcast %cst_59 : f32 to vector<2x128xf32>
    %408 = arith.addf %407, %406 : vector<2x128xf32>
    %409 = arith.divf %407, %408 : vector<2x128xf32>
    %410 = math.tanh %404 : vector<2x128xf32>
    %411 = vector.extract_strided_slice %409 {offsets = [0, 32], sizes = [2, 32], strides = [1, 1]} : vector<2x128xf32> to vector<2x32xf32>
    %412 = arith.mulf %411, %397 : vector<2x32xf32>
    %413 = vector.extract_strided_slice %409 {offsets = [0, 0], sizes = [2, 32], strides = [1, 1]} : vector<2x128xf32> to vector<2x32xf32>
    %414 = vector.extract_strided_slice %410 {offsets = [0, 64], sizes = [2, 32], strides = [1, 1]} : vector<2x128xf32> to vector<2x32xf32>
    %415 = arith.mulf %413, %414 : vector<2x32xf32>
    %416 = arith.addf %412, %415 : vector<2x32xf32>
    %417 = vector.extract_strided_slice %409 {offsets = [0, 96], sizes = [2, 32], strides = [1, 1]} : vector<2x128xf32> to vector<2x32xf32>
    %418 = math.tanh %416 : vector<2x32xf32>
    %419 = arith.mulf %417, %418 : vector<2x32xf32>
    %420 = tpu.concatenate %282, %419 in 1 : vector<2x16xf32>, vector<2x32xf32> -> vector<2x48xf32>
    %cst_60 = arith.constant dense<0.000000e+00> : vector<2x128xf32>
    %421 = tpu.matmul %420, %321, %cst_60 {dimension_numbers = #tpu.dot_dimension_numbers<[1], [0], [0], [1], [0, 0, 1, 1], [], []>} : vector<2x48xf32>, vector<48x128xf32>, vector<2x128xf32> -> vector<2x128xf32>
    %422 = vector.broadcast %322 : vector<1x128xf32> to vector<2x128xf32>
    %423 = arith.addf %421, %422 : vector<2x128xf32>
    %424 = arith.negf %423 : vector<2x128xf32>
    %425 = math.exp %424 : vector<2x128xf32>
    %cst_61 = arith.constant 1.000000e+00 : f32
    %426 = vector.broadcast %cst_61 : f32 to vector<2x128xf32>
    %427 = arith.addf %426, %425 : vector<2x128xf32>
    %428 = arith.divf %426, %427 : vector<2x128xf32>
    %429 = math.tanh %423 : vector<2x128xf32>
    %430 = vector.extract_strided_slice %428 {offsets = [0, 32], sizes = [2, 32], strides = [1, 1]} : vector<2x128xf32> to vector<2x32xf32>
    %431 = arith.mulf %430, %416 : vector<2x32xf32>
    %432 = vector.extract_strided_slice %428 {offsets = [0, 0], sizes = [2, 32], strides = [1, 1]} : vector<2x128xf32> to vector<2x32xf32>
    %433 = vector.extract_strided_slice %429 {offsets = [0, 64], sizes = [2, 32], strides = [1, 1]} : vector<2x128xf32> to vector<2x32xf32>
    %434 = arith.mulf %432, %433 : vector<2x32xf32>
    %435 = arith.addf %431, %434 : vector<2x32xf32>
    %436 = vector.extract_strided_slice %428 {offsets = [0, 96], sizes = [2, 32], strides = [1, 1]} : vector<2x128xf32> to vector<2x32xf32>
    %437 = math.tanh %435 : vector<2x32xf32>
    %438 = arith.mulf %436, %437 : vector<2x32xf32>
    %439 = tpu.concatenate %301, %438 in 1 : vector<2x16xf32>, vector<2x32xf32> -> vector<2x48xf32>
    %cst_62 = arith.constant dense<0.000000e+00> : vector<2x128xf32>
    %440 = tpu.matmul %439, %321, %cst_62 {dimension_numbers = #tpu.dot_dimension_numbers<[1], [0], [0], [1], [0, 0, 1, 1], [], []>} : vector<2x48xf32>, vector<48x128xf32>, vector<2x128xf32> -> vector<2x128xf32>
    %441 = vector.broadcast %322 : vector<1x128xf32> to vector<2x128xf32>
    %442 = arith.addf %440, %441 : vector<2x128xf32>
    %443 = arith.negf %442 : vector<2x128xf32>
    %444 = math.exp %443 : vector<2x128xf32>
    %cst_63 = arith.constant 1.000000e+00 : f32
    %445 = vector.broadcast %cst_63 : f32 to vector<2x128xf32>
    %446 = arith.addf %445, %444 : vector<2x128xf32>
    %447 = arith.divf %445, %446 : vector<2x128xf32>
    %448 = math.tanh %442 : vector<2x128xf32>
    %449 = vector.extract_strided_slice %447 {offsets = [0, 32], sizes = [2, 32], strides = [1, 1]} : vector<2x128xf32> to vector<2x32xf32>
    %450 = arith.mulf %449, %435 : vector<2x32xf32>
    %451 = vector.extract_strided_slice %447 {offsets = [0, 0], sizes = [2, 32], strides = [1, 1]} : vector<2x128xf32> to vector<2x32xf32>
    %452 = vector.extract_strided_slice %448 {offsets = [0, 64], sizes = [2, 32], strides = [1, 1]} : vector<2x128xf32> to vector<2x32xf32>
    %453 = arith.mulf %451, %452 : vector<2x32xf32>
    %454 = arith.addf %450, %453 : vector<2x32xf32>
    %455 = vector.extract_strided_slice %447 {offsets = [0, 96], sizes = [2, 32], strides = [1, 1]} : vector<2x128xf32> to vector<2x32xf32>
    %456 = math.tanh %454 : vector<2x32xf32>
    %457 = arith.mulf %455, %456 : vector<2x32xf32>
    %458 = tpu.concatenate %320, %457 in 1 : vector<2x16xf32>, vector<2x32xf32> -> vector<2x48xf32>
    %cst_64 = arith.constant dense<0.000000e+00> : vector<2x128xf32>
    %459 = tpu.matmul %458, %321, %cst_64 {dimension_numbers = #tpu.dot_dimension_numbers<[1], [0], [0], [1], [0, 0, 1, 1], [], []>} : vector<2x48xf32>, vector<48x128xf32>, vector<2x128xf32> -> vector<2x128xf32>
    %460 = vector.broadcast %322 : vector<1x128xf32> to vector<2x128xf32>
    %461 = arith.addf %459, %460 : vector<2x128xf32>
    %462 = arith.negf %461 : vector<2x128xf32>
    %463 = math.exp %462 : vector<2x128xf32>
    %cst_65 = arith.constant 1.000000e+00 : f32
    %464 = vector.broadcast %cst_65 : f32 to vector<2x128xf32>
    %465 = arith.addf %464, %463 : vector<2x128xf32>
    %466 = arith.divf %464, %465 : vector<2x128xf32>
    %467 = math.tanh %461 : vector<2x128xf32>
    %468 = vector.extract_strided_slice %466 {offsets = [0, 32], sizes = [2, 32], strides = [1, 1]} : vector<2x128xf32> to vector<2x32xf32>
    %469 = arith.mulf %468, %454 : vector<2x32xf32>
    %470 = vector.extract_strided_slice %466 {offsets = [0, 0], sizes = [2, 32], strides = [1, 1]} : vector<2x128xf32> to vector<2x32xf32>
    %471 = vector.extract_strided_slice %467 {offsets = [0, 64], sizes = [2, 32], strides = [1, 1]} : vector<2x128xf32> to vector<2x32xf32>
    %472 = arith.mulf %470, %471 : vector<2x32xf32>
    %473 = arith.addf %469, %472 : vector<2x32xf32>
    %474 = vector.extract_strided_slice %466 {offsets = [0, 96], sizes = [2, 32], strides = [1, 1]} : vector<2x128xf32> to vector<2x32xf32>
    %475 = math.tanh %473 : vector<2x32xf32>
    %476 = arith.mulf %474, %475 : vector<2x32xf32>
    %c0_66 = arith.constant 0 : index
    %c0_67 = arith.constant 0 : index
    %477 = vector.load %arg7[%c0_66, %c0_67] : memref<48x64xf32, #tpu.memory_space<vmem>>, vector<48x64xf32>
    %c0_68 = arith.constant 0 : index
    %c0_69 = arith.constant 0 : index
    %478 = vector.load %arg8[%c0_68, %c0_69] : memref<1x64xf32, #tpu.memory_space<vmem>>, vector<1x64xf32>
    %cst_70 = arith.constant 0.000000e+00 : f32
    %479 = vector.broadcast %cst_70 : f32 to vector<2x16xf32>
    %cst_71 = arith.constant 0.000000e+00 : f32
    %480 = vector.broadcast %cst_71 : f32 to vector<2x16xf32>
    %481 = tpu.concatenate %343, %479 in 1 : vector<2x32xf32>, vector<2x16xf32> -> vector<2x48xf32>
    %cst_72 = arith.constant dense<0.000000e+00> : vector<2x64xf32>
    %482 = tpu.matmul %481, %477, %cst_72 {dimension_numbers = #tpu.dot_dimension_numbers<[1], [0], [0], [1], [0, 0, 1, 1], [], []>} : vector<2x48xf32>, vector<48x64xf32>, vector<2x64xf32> -> vector<2x64xf32>
    %483 = vector.broadcast %478 : vector<1x64xf32> to vector<2x64xf32>
    %484 = arith.addf %482, %483 : vector<2x64xf32>
    %485 = arith.negf %484 : vector<2x64xf32>
    %486 = math.exp %485 : vector<2x64xf32>
    %cst_73 = arith.constant 1.000000e+00 : f32
    %487 = vector.broadcast %cst_73 : f32 to vector<2x64xf32>
    %488 = arith.addf %487, %486 : vector<2x64xf32>
    %489 = arith.divf %487, %488 : vector<2x64xf32>
    %490 = math.tanh %484 : vector<2x64xf32>
    %491 = vector.extract_strided_slice %489 {offsets = [0, 16], sizes = [2, 16], strides = [1, 1]} : vector<2x64xf32> to vector<2x16xf32>
    %492 = arith.mulf %491, %480 : vector<2x16xf32>
    %493 = vector.extract_strided_slice %489 {offsets = [0, 0], sizes = [2, 16], strides = [1, 1]} : vector<2x64xf32> to vector<2x16xf32>
    %494 = vector.extract_strided_slice %490 {offsets = [0, 32], sizes = [2, 16], strides = [1, 1]} : vector<2x64xf32> to vector<2x16xf32>
    %495 = arith.mulf %493, %494 : vector<2x16xf32>
    %496 = arith.addf %492, %495 : vector<2x16xf32>
    %497 = vector.extract_strided_slice %489 {offsets = [0, 48], sizes = [2, 16], strides = [1, 1]} : vector<2x64xf32> to vector<2x16xf32>
    %498 = math.tanh %496 : vector<2x16xf32>
    %499 = arith.mulf %497, %498 : vector<2x16xf32>
    %500 = tpu.concatenate %362, %499 in 1 : vector<2x32xf32>, vector<2x16xf32> -> vector<2x48xf32>
    %cst_74 = arith.constant dense<0.000000e+00> : vector<2x64xf32>
    %501 = tpu.matmul %500, %477, %cst_74 {dimension_numbers = #tpu.dot_dimension_numbers<[1], [0], [0], [1], [0, 0, 1, 1], [], []>} : vector<2x48xf32>, vector<48x64xf32>, vector<2x64xf32> -> vector<2x64xf32>
    %502 = vector.broadcast %478 : vector<1x64xf32> to vector<2x64xf32>
    %503 = arith.addf %501, %502 : vector<2x64xf32>
    %504 = arith.negf %503 : vector<2x64xf32>
    %505 = math.exp %504 : vector<2x64xf32>
    %cst_75 = arith.constant 1.000000e+00 : f32
    %506 = vector.broadcast %cst_75 : f32 to vector<2x64xf32>
    %507 = arith.addf %506, %505 : vector<2x64xf32>
    %508 = arith.divf %506, %507 : vector<2x64xf32>
    %509 = math.tanh %503 : vector<2x64xf32>
    %510 = vector.extract_strided_slice %508 {offsets = [0, 16], sizes = [2, 16], strides = [1, 1]} : vector<2x64xf32> to vector<2x16xf32>
    %511 = arith.mulf %510, %496 : vector<2x16xf32>
    %512 = vector.extract_strided_slice %508 {offsets = [0, 0], sizes = [2, 16], strides = [1, 1]} : vector<2x64xf32> to vector<2x16xf32>
    %513 = vector.extract_strided_slice %509 {offsets = [0, 32], sizes = [2, 16], strides = [1, 1]} : vector<2x64xf32> to vector<2x16xf32>
    %514 = arith.mulf %512, %513 : vector<2x16xf32>
    %515 = arith.addf %511, %514 : vector<2x16xf32>
    %516 = vector.extract_strided_slice %508 {offsets = [0, 48], sizes = [2, 16], strides = [1, 1]} : vector<2x64xf32> to vector<2x16xf32>
    %517 = math.tanh %515 : vector<2x16xf32>
    %518 = arith.mulf %516, %517 : vector<2x16xf32>
    %519 = tpu.concatenate %381, %518 in 1 : vector<2x32xf32>, vector<2x16xf32> -> vector<2x48xf32>
    %cst_76 = arith.constant dense<0.000000e+00> : vector<2x64xf32>
    %520 = tpu.matmul %519, %477, %cst_76 {dimension_numbers = #tpu.dot_dimension_numbers<[1], [0], [0], [1], [0, 0, 1, 1], [], []>} : vector<2x48xf32>, vector<48x64xf32>, vector<2x64xf32> -> vector<2x64xf32>
    %521 = vector.broadcast %478 : vector<1x64xf32> to vector<2x64xf32>
    %522 = arith.addf %520, %521 : vector<2x64xf32>
    %523 = arith.negf %522 : vector<2x64xf32>
    %524 = math.exp %523 : vector<2x64xf32>
    %cst_77 = arith.constant 1.000000e+00 : f32
    %525 = vector.broadcast %cst_77 : f32 to vector<2x64xf32>
    %526 = arith.addf %525, %524 : vector<2x64xf32>
    %527 = arith.divf %525, %526 : vector<2x64xf32>
    %528 = math.tanh %522 : vector<2x64xf32>
    %529 = vector.extract_strided_slice %527 {offsets = [0, 16], sizes = [2, 16], strides = [1, 1]} : vector<2x64xf32> to vector<2x16xf32>
    %530 = arith.mulf %529, %515 : vector<2x16xf32>
    %531 = vector.extract_strided_slice %527 {offsets = [0, 0], sizes = [2, 16], strides = [1, 1]} : vector<2x64xf32> to vector<2x16xf32>
    %532 = vector.extract_strided_slice %528 {offsets = [0, 32], sizes = [2, 16], strides = [1, 1]} : vector<2x64xf32> to vector<2x16xf32>
    %533 = arith.mulf %531, %532 : vector<2x16xf32>
    %534 = arith.addf %530, %533 : vector<2x16xf32>
    %535 = vector.extract_strided_slice %527 {offsets = [0, 48], sizes = [2, 16], strides = [1, 1]} : vector<2x64xf32> to vector<2x16xf32>
    %536 = math.tanh %534 : vector<2x16xf32>
    %537 = arith.mulf %535, %536 : vector<2x16xf32>
    %538 = tpu.concatenate %400, %537 in 1 : vector<2x32xf32>, vector<2x16xf32> -> vector<2x48xf32>
    %cst_78 = arith.constant dense<0.000000e+00> : vector<2x64xf32>
    %539 = tpu.matmul %538, %477, %cst_78 {dimension_numbers = #tpu.dot_dimension_numbers<[1], [0], [0], [1], [0, 0, 1, 1], [], []>} : vector<2x48xf32>, vector<48x64xf32>, vector<2x64xf32> -> vector<2x64xf32>
    %540 = vector.broadcast %478 : vector<1x64xf32> to vector<2x64xf32>
    %541 = arith.addf %539, %540 : vector<2x64xf32>
    %542 = arith.negf %541 : vector<2x64xf32>
    %543 = math.exp %542 : vector<2x64xf32>
    %cst_79 = arith.constant 1.000000e+00 : f32
    %544 = vector.broadcast %cst_79 : f32 to vector<2x64xf32>
    %545 = arith.addf %544, %543 : vector<2x64xf32>
    %546 = arith.divf %544, %545 : vector<2x64xf32>
    %547 = math.tanh %541 : vector<2x64xf32>
    %548 = vector.extract_strided_slice %546 {offsets = [0, 16], sizes = [2, 16], strides = [1, 1]} : vector<2x64xf32> to vector<2x16xf32>
    %549 = arith.mulf %548, %534 : vector<2x16xf32>
    %550 = vector.extract_strided_slice %546 {offsets = [0, 0], sizes = [2, 16], strides = [1, 1]} : vector<2x64xf32> to vector<2x16xf32>
    %551 = vector.extract_strided_slice %547 {offsets = [0, 32], sizes = [2, 16], strides = [1, 1]} : vector<2x64xf32> to vector<2x16xf32>
    %552 = arith.mulf %550, %551 : vector<2x16xf32>
    %553 = arith.addf %549, %552 : vector<2x16xf32>
    %554 = vector.extract_strided_slice %546 {offsets = [0, 48], sizes = [2, 16], strides = [1, 1]} : vector<2x64xf32> to vector<2x16xf32>
    %555 = math.tanh %553 : vector<2x16xf32>
    %556 = arith.mulf %554, %555 : vector<2x16xf32>
    %557 = tpu.concatenate %419, %556 in 1 : vector<2x32xf32>, vector<2x16xf32> -> vector<2x48xf32>
    %cst_80 = arith.constant dense<0.000000e+00> : vector<2x64xf32>
    %558 = tpu.matmul %557, %477, %cst_80 {dimension_numbers = #tpu.dot_dimension_numbers<[1], [0], [0], [1], [0, 0, 1, 1], [], []>} : vector<2x48xf32>, vector<48x64xf32>, vector<2x64xf32> -> vector<2x64xf32>
    %559 = vector.broadcast %478 : vector<1x64xf32> to vector<2x64xf32>
    %560 = arith.addf %558, %559 : vector<2x64xf32>
    %561 = arith.negf %560 : vector<2x64xf32>
    %562 = math.exp %561 : vector<2x64xf32>
    %cst_81 = arith.constant 1.000000e+00 : f32
    %563 = vector.broadcast %cst_81 : f32 to vector<2x64xf32>
    %564 = arith.addf %563, %562 : vector<2x64xf32>
    %565 = arith.divf %563, %564 : vector<2x64xf32>
    %566 = math.tanh %560 : vector<2x64xf32>
    %567 = vector.extract_strided_slice %565 {offsets = [0, 16], sizes = [2, 16], strides = [1, 1]} : vector<2x64xf32> to vector<2x16xf32>
    %568 = arith.mulf %567, %553 : vector<2x16xf32>
    %569 = vector.extract_strided_slice %565 {offsets = [0, 0], sizes = [2, 16], strides = [1, 1]} : vector<2x64xf32> to vector<2x16xf32>
    %570 = vector.extract_strided_slice %566 {offsets = [0, 32], sizes = [2, 16], strides = [1, 1]} : vector<2x64xf32> to vector<2x16xf32>
    %571 = arith.mulf %569, %570 : vector<2x16xf32>
    %572 = arith.addf %568, %571 : vector<2x16xf32>
    %573 = vector.extract_strided_slice %565 {offsets = [0, 48], sizes = [2, 16], strides = [1, 1]} : vector<2x64xf32> to vector<2x16xf32>
    %574 = math.tanh %572 : vector<2x16xf32>
    %575 = arith.mulf %573, %574 : vector<2x16xf32>
    %576 = tpu.concatenate %438, %575 in 1 : vector<2x32xf32>, vector<2x16xf32> -> vector<2x48xf32>
    %cst_82 = arith.constant dense<0.000000e+00> : vector<2x64xf32>
    %577 = tpu.matmul %576, %477, %cst_82 {dimension_numbers = #tpu.dot_dimension_numbers<[1], [0], [0], [1], [0, 0, 1, 1], [], []>} : vector<2x48xf32>, vector<48x64xf32>, vector<2x64xf32> -> vector<2x64xf32>
    %578 = vector.broadcast %478 : vector<1x64xf32> to vector<2x64xf32>
    %579 = arith.addf %577, %578 : vector<2x64xf32>
    %580 = arith.negf %579 : vector<2x64xf32>
    %581 = math.exp %580 : vector<2x64xf32>
    %cst_83 = arith.constant 1.000000e+00 : f32
    %582 = vector.broadcast %cst_83 : f32 to vector<2x64xf32>
    %583 = arith.addf %582, %581 : vector<2x64xf32>
    %584 = arith.divf %582, %583 : vector<2x64xf32>
    %585 = math.tanh %579 : vector<2x64xf32>
    %586 = vector.extract_strided_slice %584 {offsets = [0, 16], sizes = [2, 16], strides = [1, 1]} : vector<2x64xf32> to vector<2x16xf32>
    %587 = arith.mulf %586, %572 : vector<2x16xf32>
    %588 = vector.extract_strided_slice %584 {offsets = [0, 0], sizes = [2, 16], strides = [1, 1]} : vector<2x64xf32> to vector<2x16xf32>
    %589 = vector.extract_strided_slice %585 {offsets = [0, 32], sizes = [2, 16], strides = [1, 1]} : vector<2x64xf32> to vector<2x16xf32>
    %590 = arith.mulf %588, %589 : vector<2x16xf32>
    %591 = arith.addf %587, %590 : vector<2x16xf32>
    %592 = vector.extract_strided_slice %584 {offsets = [0, 48], sizes = [2, 16], strides = [1, 1]} : vector<2x64xf32> to vector<2x16xf32>
    %593 = math.tanh %591 : vector<2x16xf32>
    %594 = arith.mulf %592, %593 : vector<2x16xf32>
    %595 = tpu.concatenate %457, %594 in 1 : vector<2x32xf32>, vector<2x16xf32> -> vector<2x48xf32>
    %cst_84 = arith.constant dense<0.000000e+00> : vector<2x64xf32>
    %596 = tpu.matmul %595, %477, %cst_84 {dimension_numbers = #tpu.dot_dimension_numbers<[1], [0], [0], [1], [0, 0, 1, 1], [], []>} : vector<2x48xf32>, vector<48x64xf32>, vector<2x64xf32> -> vector<2x64xf32>
    %597 = vector.broadcast %478 : vector<1x64xf32> to vector<2x64xf32>
    %598 = arith.addf %596, %597 : vector<2x64xf32>
    %599 = arith.negf %598 : vector<2x64xf32>
    %600 = math.exp %599 : vector<2x64xf32>
    %cst_85 = arith.constant 1.000000e+00 : f32
    %601 = vector.broadcast %cst_85 : f32 to vector<2x64xf32>
    %602 = arith.addf %601, %600 : vector<2x64xf32>
    %603 = arith.divf %601, %602 : vector<2x64xf32>
    %604 = math.tanh %598 : vector<2x64xf32>
    %605 = vector.extract_strided_slice %603 {offsets = [0, 16], sizes = [2, 16], strides = [1, 1]} : vector<2x64xf32> to vector<2x16xf32>
    %606 = arith.mulf %605, %591 : vector<2x16xf32>
    %607 = vector.extract_strided_slice %603 {offsets = [0, 0], sizes = [2, 16], strides = [1, 1]} : vector<2x64xf32> to vector<2x16xf32>
    %608 = vector.extract_strided_slice %604 {offsets = [0, 32], sizes = [2, 16], strides = [1, 1]} : vector<2x64xf32> to vector<2x16xf32>
    %609 = arith.mulf %607, %608 : vector<2x16xf32>
    %610 = arith.addf %606, %609 : vector<2x16xf32>
    %611 = vector.extract_strided_slice %603 {offsets = [0, 48], sizes = [2, 16], strides = [1, 1]} : vector<2x64xf32> to vector<2x16xf32>
    %612 = math.tanh %610 : vector<2x16xf32>
    %613 = arith.mulf %611, %612 : vector<2x16xf32>
    %614 = tpu.concatenate %476, %613 in 1 : vector<2x32xf32>, vector<2x16xf32> -> vector<2x48xf32>
    %cst_86 = arith.constant dense<0.000000e+00> : vector<2x64xf32>
    %615 = tpu.matmul %614, %477, %cst_86 {dimension_numbers = #tpu.dot_dimension_numbers<[1], [0], [0], [1], [0, 0, 1, 1], [], []>} : vector<2x48xf32>, vector<48x64xf32>, vector<2x64xf32> -> vector<2x64xf32>
    %616 = vector.broadcast %478 : vector<1x64xf32> to vector<2x64xf32>
    %617 = arith.addf %615, %616 : vector<2x64xf32>
    %618 = arith.negf %617 : vector<2x64xf32>
    %619 = math.exp %618 : vector<2x64xf32>
    %cst_87 = arith.constant 1.000000e+00 : f32
    %620 = vector.broadcast %cst_87 : f32 to vector<2x64xf32>
    %621 = arith.addf %620, %619 : vector<2x64xf32>
    %622 = arith.divf %620, %621 : vector<2x64xf32>
    %623 = math.tanh %617 : vector<2x64xf32>
    %624 = vector.extract_strided_slice %622 {offsets = [0, 16], sizes = [2, 16], strides = [1, 1]} : vector<2x64xf32> to vector<2x16xf32>
    %625 = arith.mulf %624, %610 : vector<2x16xf32>
    %626 = vector.extract_strided_slice %622 {offsets = [0, 0], sizes = [2, 16], strides = [1, 1]} : vector<2x64xf32> to vector<2x16xf32>
    %627 = vector.extract_strided_slice %623 {offsets = [0, 32], sizes = [2, 16], strides = [1, 1]} : vector<2x64xf32> to vector<2x16xf32>
    %628 = arith.mulf %626, %627 : vector<2x16xf32>
    %629 = arith.addf %625, %628 : vector<2x16xf32>
    %630 = vector.extract_strided_slice %622 {offsets = [0, 48], sizes = [2, 16], strides = [1, 1]} : vector<2x64xf32> to vector<2x16xf32>
    %631 = math.tanh %629 : vector<2x16xf32>
    %632 = arith.mulf %630, %631 : vector<2x16xf32>
    %c0_88 = arith.constant 0 : index
    %c0_89 = arith.constant 0 : index
    %633 = vector.load %arg9[%c0_88, %c0_89] : memref<48x128xf32, #tpu.memory_space<vmem>>, vector<48x128xf32>
    %c0_90 = arith.constant 0 : index
    %c0_91 = arith.constant 0 : index
    %634 = vector.load %arg10[%c0_90, %c0_91] : memref<1x128xf32, #tpu.memory_space<vmem>>, vector<1x128xf32>
    %cst_92 = arith.constant 0.000000e+00 : f32
    %635 = vector.broadcast %cst_92 : f32 to vector<2x32xf32>
    %cst_93 = arith.constant 0.000000e+00 : f32
    %636 = vector.broadcast %cst_93 : f32 to vector<2x32xf32>
    %637 = tpu.concatenate %187, %635 in 1 : vector<2x16xf32>, vector<2x32xf32> -> vector<2x48xf32>
    %cst_94 = arith.constant dense<0.000000e+00> : vector<2x128xf32>
    %638 = tpu.matmul %637, %633, %cst_94 {dimension_numbers = #tpu.dot_dimension_numbers<[1], [0], [0], [1], [0, 0, 1, 1], [], []>} : vector<2x48xf32>, vector<48x128xf32>, vector<2x128xf32> -> vector<2x128xf32>
    %639 = vector.broadcast %634 : vector<1x128xf32> to vector<2x128xf32>
    %640 = arith.addf %638, %639 : vector<2x128xf32>
    %641 = arith.negf %640 : vector<2x128xf32>
    %642 = math.exp %641 : vector<2x128xf32>
    %cst_95 = arith.constant 1.000000e+00 : f32
    %643 = vector.broadcast %cst_95 : f32 to vector<2x128xf32>
    %644 = arith.addf %643, %642 : vector<2x128xf32>
    %645 = arith.divf %643, %644 : vector<2x128xf32>
    %646 = math.tanh %640 : vector<2x128xf32>
    %647 = vector.extract_strided_slice %645 {offsets = [0, 32], sizes = [2, 32], strides = [1, 1]} : vector<2x128xf32> to vector<2x32xf32>
    %648 = arith.mulf %647, %636 : vector<2x32xf32>
    %649 = vector.extract_strided_slice %645 {offsets = [0, 0], sizes = [2, 32], strides = [1, 1]} : vector<2x128xf32> to vector<2x32xf32>
    %650 = vector.extract_strided_slice %646 {offsets = [0, 64], sizes = [2, 32], strides = [1, 1]} : vector<2x128xf32> to vector<2x32xf32>
    %651 = arith.mulf %649, %650 : vector<2x32xf32>
    %652 = arith.addf %648, %651 : vector<2x32xf32>
    %653 = vector.extract_strided_slice %645 {offsets = [0, 96], sizes = [2, 32], strides = [1, 1]} : vector<2x128xf32> to vector<2x32xf32>
    %654 = math.tanh %652 : vector<2x32xf32>
    %655 = arith.mulf %653, %654 : vector<2x32xf32>
    %656 = tpu.concatenate %206, %655 in 1 : vector<2x16xf32>, vector<2x32xf32> -> vector<2x48xf32>
    %cst_96 = arith.constant dense<0.000000e+00> : vector<2x128xf32>
    %657 = tpu.matmul %656, %633, %cst_96 {dimension_numbers = #tpu.dot_dimension_numbers<[1], [0], [0], [1], [0, 0, 1, 1], [], []>} : vector<2x48xf32>, vector<48x128xf32>, vector<2x128xf32> -> vector<2x128xf32>
    %658 = vector.broadcast %634 : vector<1x128xf32> to vector<2x128xf32>
    %659 = arith.addf %657, %658 : vector<2x128xf32>
    %660 = arith.negf %659 : vector<2x128xf32>
    %661 = math.exp %660 : vector<2x128xf32>
    %cst_97 = arith.constant 1.000000e+00 : f32
    %662 = vector.broadcast %cst_97 : f32 to vector<2x128xf32>
    %663 = arith.addf %662, %661 : vector<2x128xf32>
    %664 = arith.divf %662, %663 : vector<2x128xf32>
    %665 = math.tanh %659 : vector<2x128xf32>
    %666 = vector.extract_strided_slice %664 {offsets = [0, 32], sizes = [2, 32], strides = [1, 1]} : vector<2x128xf32> to vector<2x32xf32>
    %667 = arith.mulf %666, %652 : vector<2x32xf32>
    %668 = vector.extract_strided_slice %664 {offsets = [0, 0], sizes = [2, 32], strides = [1, 1]} : vector<2x128xf32> to vector<2x32xf32>
    %669 = vector.extract_strided_slice %665 {offsets = [0, 64], sizes = [2, 32], strides = [1, 1]} : vector<2x128xf32> to vector<2x32xf32>
    %670 = arith.mulf %668, %669 : vector<2x32xf32>
    %671 = arith.addf %667, %670 : vector<2x32xf32>
    %672 = vector.extract_strided_slice %664 {offsets = [0, 96], sizes = [2, 32], strides = [1, 1]} : vector<2x128xf32> to vector<2x32xf32>
    %673 = math.tanh %671 : vector<2x32xf32>
    %674 = arith.mulf %672, %673 : vector<2x32xf32>
    %675 = tpu.concatenate %225, %674 in 1 : vector<2x16xf32>, vector<2x32xf32> -> vector<2x48xf32>
    %cst_98 = arith.constant dense<0.000000e+00> : vector<2x128xf32>
    %676 = tpu.matmul %675, %633, %cst_98 {dimension_numbers = #tpu.dot_dimension_numbers<[1], [0], [0], [1], [0, 0, 1, 1], [], []>} : vector<2x48xf32>, vector<48x128xf32>, vector<2x128xf32> -> vector<2x128xf32>
    %677 = vector.broadcast %634 : vector<1x128xf32> to vector<2x128xf32>
    %678 = arith.addf %676, %677 : vector<2x128xf32>
    %679 = arith.negf %678 : vector<2x128xf32>
    %680 = math.exp %679 : vector<2x128xf32>
    %cst_99 = arith.constant 1.000000e+00 : f32
    %681 = vector.broadcast %cst_99 : f32 to vector<2x128xf32>
    %682 = arith.addf %681, %680 : vector<2x128xf32>
    %683 = arith.divf %681, %682 : vector<2x128xf32>
    %684 = math.tanh %678 : vector<2x128xf32>
    %685 = vector.extract_strided_slice %683 {offsets = [0, 32], sizes = [2, 32], strides = [1, 1]} : vector<2x128xf32> to vector<2x32xf32>
    %686 = arith.mulf %685, %671 : vector<2x32xf32>
    %687 = vector.extract_strided_slice %683 {offsets = [0, 0], sizes = [2, 32], strides = [1, 1]} : vector<2x128xf32> to vector<2x32xf32>
    %688 = vector.extract_strided_slice %684 {offsets = [0, 64], sizes = [2, 32], strides = [1, 1]} : vector<2x128xf32> to vector<2x32xf32>
    %689 = arith.mulf %687, %688 : vector<2x32xf32>
    %690 = arith.addf %686, %689 : vector<2x32xf32>
    %691 = vector.extract_strided_slice %683 {offsets = [0, 96], sizes = [2, 32], strides = [1, 1]} : vector<2x128xf32> to vector<2x32xf32>
    %692 = math.tanh %690 : vector<2x32xf32>
    %693 = arith.mulf %691, %692 : vector<2x32xf32>
    %694 = tpu.concatenate %244, %693 in 1 : vector<2x16xf32>, vector<2x32xf32> -> vector<2x48xf32>
    %cst_100 = arith.constant dense<0.000000e+00> : vector<2x128xf32>
    %695 = tpu.matmul %694, %633, %cst_100 {dimension_numbers = #tpu.dot_dimension_numbers<[1], [0], [0], [1], [0, 0, 1, 1], [], []>} : vector<2x48xf32>, vector<48x128xf32>, vector<2x128xf32> -> vector<2x128xf32>
    %696 = vector.broadcast %634 : vector<1x128xf32> to vector<2x128xf32>
    %697 = arith.addf %695, %696 : vector<2x128xf32>
    %698 = arith.negf %697 : vector<2x128xf32>
    %699 = math.exp %698 : vector<2x128xf32>
    %cst_101 = arith.constant 1.000000e+00 : f32
    %700 = vector.broadcast %cst_101 : f32 to vector<2x128xf32>
    %701 = arith.addf %700, %699 : vector<2x128xf32>
    %702 = arith.divf %700, %701 : vector<2x128xf32>
    %703 = math.tanh %697 : vector<2x128xf32>
    %704 = vector.extract_strided_slice %702 {offsets = [0, 32], sizes = [2, 32], strides = [1, 1]} : vector<2x128xf32> to vector<2x32xf32>
    %705 = arith.mulf %704, %690 : vector<2x32xf32>
    %706 = vector.extract_strided_slice %702 {offsets = [0, 0], sizes = [2, 32], strides = [1, 1]} : vector<2x128xf32> to vector<2x32xf32>
    %707 = vector.extract_strided_slice %703 {offsets = [0, 64], sizes = [2, 32], strides = [1, 1]} : vector<2x128xf32> to vector<2x32xf32>
    %708 = arith.mulf %706, %707 : vector<2x32xf32>
    %709 = arith.addf %705, %708 : vector<2x32xf32>
    %710 = vector.extract_strided_slice %702 {offsets = [0, 96], sizes = [2, 32], strides = [1, 1]} : vector<2x128xf32> to vector<2x32xf32>
    %711 = math.tanh %709 : vector<2x32xf32>
    %712 = arith.mulf %710, %711 : vector<2x32xf32>
    %713 = tpu.concatenate %263, %712 in 1 : vector<2x16xf32>, vector<2x32xf32> -> vector<2x48xf32>
    %cst_102 = arith.constant dense<0.000000e+00> : vector<2x128xf32>
    %714 = tpu.matmul %713, %633, %cst_102 {dimension_numbers = #tpu.dot_dimension_numbers<[1], [0], [0], [1], [0, 0, 1, 1], [], []>} : vector<2x48xf32>, vector<48x128xf32>, vector<2x128xf32> -> vector<2x128xf32>
    %715 = vector.broadcast %634 : vector<1x128xf32> to vector<2x128xf32>
    %716 = arith.addf %714, %715 : vector<2x128xf32>
    %717 = arith.negf %716 : vector<2x128xf32>
    %718 = math.exp %717 : vector<2x128xf32>
    %cst_103 = arith.constant 1.000000e+00 : f32
    %719 = vector.broadcast %cst_103 : f32 to vector<2x128xf32>
    %720 = arith.addf %719, %718 : vector<2x128xf32>
    %721 = arith.divf %719, %720 : vector<2x128xf32>
    %722 = math.tanh %716 : vector<2x128xf32>
    %723 = vector.extract_strided_slice %721 {offsets = [0, 32], sizes = [2, 32], strides = [1, 1]} : vector<2x128xf32> to vector<2x32xf32>
    %724 = arith.mulf %723, %709 : vector<2x32xf32>
    %725 = vector.extract_strided_slice %721 {offsets = [0, 0], sizes = [2, 32], strides = [1, 1]} : vector<2x128xf32> to vector<2x32xf32>
    %726 = vector.extract_strided_slice %722 {offsets = [0, 64], sizes = [2, 32], strides = [1, 1]} : vector<2x128xf32> to vector<2x32xf32>
    %727 = arith.mulf %725, %726 : vector<2x32xf32>
    %728 = arith.addf %724, %727 : vector<2x32xf32>
    %729 = vector.extract_strided_slice %721 {offsets = [0, 96], sizes = [2, 32], strides = [1, 1]} : vector<2x128xf32> to vector<2x32xf32>
    %730 = math.tanh %728 : vector<2x32xf32>
    %731 = arith.mulf %729, %730 : vector<2x32xf32>
    %732 = tpu.concatenate %282, %731 in 1 : vector<2x16xf32>, vector<2x32xf32> -> vector<2x48xf32>
    %cst_104 = arith.constant dense<0.000000e+00> : vector<2x128xf32>
    %733 = tpu.matmul %732, %633, %cst_104 {dimension_numbers = #tpu.dot_dimension_numbers<[1], [0], [0], [1], [0, 0, 1, 1], [], []>} : vector<2x48xf32>, vector<48x128xf32>, vector<2x128xf32> -> vector<2x128xf32>
    %734 = vector.broadcast %634 : vector<1x128xf32> to vector<2x128xf32>
    %735 = arith.addf %733, %734 : vector<2x128xf32>
    %736 = arith.negf %735 : vector<2x128xf32>
    %737 = math.exp %736 : vector<2x128xf32>
    %cst_105 = arith.constant 1.000000e+00 : f32
    %738 = vector.broadcast %cst_105 : f32 to vector<2x128xf32>
    %739 = arith.addf %738, %737 : vector<2x128xf32>
    %740 = arith.divf %738, %739 : vector<2x128xf32>
    %741 = math.tanh %735 : vector<2x128xf32>
    %742 = vector.extract_strided_slice %740 {offsets = [0, 32], sizes = [2, 32], strides = [1, 1]} : vector<2x128xf32> to vector<2x32xf32>
    %743 = arith.mulf %742, %728 : vector<2x32xf32>
    %744 = vector.extract_strided_slice %740 {offsets = [0, 0], sizes = [2, 32], strides = [1, 1]} : vector<2x128xf32> to vector<2x32xf32>
    %745 = vector.extract_strided_slice %741 {offsets = [0, 64], sizes = [2, 32], strides = [1, 1]} : vector<2x128xf32> to vector<2x32xf32>
    %746 = arith.mulf %744, %745 : vector<2x32xf32>
    %747 = arith.addf %743, %746 : vector<2x32xf32>
    %748 = vector.extract_strided_slice %740 {offsets = [0, 96], sizes = [2, 32], strides = [1, 1]} : vector<2x128xf32> to vector<2x32xf32>
    %749 = math.tanh %747 : vector<2x32xf32>
    %750 = arith.mulf %748, %749 : vector<2x32xf32>
    %751 = tpu.concatenate %301, %750 in 1 : vector<2x16xf32>, vector<2x32xf32> -> vector<2x48xf32>
    %cst_106 = arith.constant dense<0.000000e+00> : vector<2x128xf32>
    %752 = tpu.matmul %751, %633, %cst_106 {dimension_numbers = #tpu.dot_dimension_numbers<[1], [0], [0], [1], [0, 0, 1, 1], [], []>} : vector<2x48xf32>, vector<48x128xf32>, vector<2x128xf32> -> vector<2x128xf32>
    %753 = vector.broadcast %634 : vector<1x128xf32> to vector<2x128xf32>
    %754 = arith.addf %752, %753 : vector<2x128xf32>
    %755 = arith.negf %754 : vector<2x128xf32>
    %756 = math.exp %755 : vector<2x128xf32>
    %cst_107 = arith.constant 1.000000e+00 : f32
    %757 = vector.broadcast %cst_107 : f32 to vector<2x128xf32>
    %758 = arith.addf %757, %756 : vector<2x128xf32>
    %759 = arith.divf %757, %758 : vector<2x128xf32>
    %760 = math.tanh %754 : vector<2x128xf32>
    %761 = vector.extract_strided_slice %759 {offsets = [0, 32], sizes = [2, 32], strides = [1, 1]} : vector<2x128xf32> to vector<2x32xf32>
    %762 = arith.mulf %761, %747 : vector<2x32xf32>
    %763 = vector.extract_strided_slice %759 {offsets = [0, 0], sizes = [2, 32], strides = [1, 1]} : vector<2x128xf32> to vector<2x32xf32>
    %764 = vector.extract_strided_slice %760 {offsets = [0, 64], sizes = [2, 32], strides = [1, 1]} : vector<2x128xf32> to vector<2x32xf32>
    %765 = arith.mulf %763, %764 : vector<2x32xf32>
    %766 = arith.addf %762, %765 : vector<2x32xf32>
    %767 = vector.extract_strided_slice %759 {offsets = [0, 96], sizes = [2, 32], strides = [1, 1]} : vector<2x128xf32> to vector<2x32xf32>
    %768 = math.tanh %766 : vector<2x32xf32>
    %769 = arith.mulf %767, %768 : vector<2x32xf32>
    %770 = tpu.concatenate %320, %769 in 1 : vector<2x16xf32>, vector<2x32xf32> -> vector<2x48xf32>
    %cst_108 = arith.constant dense<0.000000e+00> : vector<2x128xf32>
    %771 = tpu.matmul %770, %633, %cst_108 {dimension_numbers = #tpu.dot_dimension_numbers<[1], [0], [0], [1], [0, 0, 1, 1], [], []>} : vector<2x48xf32>, vector<48x128xf32>, vector<2x128xf32> -> vector<2x128xf32>
    %772 = vector.broadcast %634 : vector<1x128xf32> to vector<2x128xf32>
    %773 = arith.addf %771, %772 : vector<2x128xf32>
    %774 = arith.negf %773 : vector<2x128xf32>
    %775 = math.exp %774 : vector<2x128xf32>
    %cst_109 = arith.constant 1.000000e+00 : f32
    %776 = vector.broadcast %cst_109 : f32 to vector<2x128xf32>
    %777 = arith.addf %776, %775 : vector<2x128xf32>
    %778 = arith.divf %776, %777 : vector<2x128xf32>
    %779 = math.tanh %773 : vector<2x128xf32>
    %780 = vector.extract_strided_slice %778 {offsets = [0, 32], sizes = [2, 32], strides = [1, 1]} : vector<2x128xf32> to vector<2x32xf32>
    %781 = arith.mulf %780, %766 : vector<2x32xf32>
    %782 = vector.extract_strided_slice %778 {offsets = [0, 0], sizes = [2, 32], strides = [1, 1]} : vector<2x128xf32> to vector<2x32xf32>
    %783 = vector.extract_strided_slice %779 {offsets = [0, 64], sizes = [2, 32], strides = [1, 1]} : vector<2x128xf32> to vector<2x32xf32>
    %784 = arith.mulf %782, %783 : vector<2x32xf32>
    %785 = arith.addf %781, %784 : vector<2x32xf32>
    %786 = vector.extract_strided_slice %778 {offsets = [0, 96], sizes = [2, 32], strides = [1, 1]} : vector<2x128xf32> to vector<2x32xf32>
    %787 = math.tanh %785 : vector<2x32xf32>
    %788 = arith.mulf %786, %787 : vector<2x32xf32>
    %c0_110 = arith.constant 0 : index
    %c0_111 = arith.constant 0 : index
    %789 = vector.load %arg11[%c0_110, %c0_111] : memref<48x64xf32, #tpu.memory_space<vmem>>, vector<48x64xf32>
    %c0_112 = arith.constant 0 : index
    %c0_113 = arith.constant 0 : index
    %790 = vector.load %arg12[%c0_112, %c0_113] : memref<1x64xf32, #tpu.memory_space<vmem>>, vector<1x64xf32>
    %cst_114 = arith.constant 0.000000e+00 : f32
    %791 = vector.broadcast %cst_114 : f32 to vector<2x16xf32>
    %cst_115 = arith.constant 0.000000e+00 : f32
    %792 = vector.broadcast %cst_115 : f32 to vector<2x16xf32>
    %793 = tpu.concatenate %655, %791 in 1 : vector<2x32xf32>, vector<2x16xf32> -> vector<2x48xf32>
    %cst_116 = arith.constant dense<0.000000e+00> : vector<2x64xf32>
    %794 = tpu.matmul %793, %789, %cst_116 {dimension_numbers = #tpu.dot_dimension_numbers<[1], [0], [0], [1], [0, 0, 1, 1], [], []>} : vector<2x48xf32>, vector<48x64xf32>, vector<2x64xf32> -> vector<2x64xf32>
    %795 = vector.broadcast %790 : vector<1x64xf32> to vector<2x64xf32>
    %796 = arith.addf %794, %795 : vector<2x64xf32>
    %797 = arith.negf %796 : vector<2x64xf32>
    %798 = math.exp %797 : vector<2x64xf32>
    %cst_117 = arith.constant 1.000000e+00 : f32
    %799 = vector.broadcast %cst_117 : f32 to vector<2x64xf32>
    %800 = arith.addf %799, %798 : vector<2x64xf32>
    %801 = arith.divf %799, %800 : vector<2x64xf32>
    %802 = math.tanh %796 : vector<2x64xf32>
    %803 = vector.extract_strided_slice %801 {offsets = [0, 16], sizes = [2, 16], strides = [1, 1]} : vector<2x64xf32> to vector<2x16xf32>
    %804 = arith.mulf %803, %792 : vector<2x16xf32>
    %805 = vector.extract_strided_slice %801 {offsets = [0, 0], sizes = [2, 16], strides = [1, 1]} : vector<2x64xf32> to vector<2x16xf32>
    %806 = vector.extract_strided_slice %802 {offsets = [0, 32], sizes = [2, 16], strides = [1, 1]} : vector<2x64xf32> to vector<2x16xf32>
    %807 = arith.mulf %805, %806 : vector<2x16xf32>
    %808 = arith.addf %804, %807 : vector<2x16xf32>
    %809 = vector.extract_strided_slice %801 {offsets = [0, 48], sizes = [2, 16], strides = [1, 1]} : vector<2x64xf32> to vector<2x16xf32>
    %810 = math.tanh %808 : vector<2x16xf32>
    %811 = arith.mulf %809, %810 : vector<2x16xf32>
    %812 = tpu.concatenate %674, %811 in 1 : vector<2x32xf32>, vector<2x16xf32> -> vector<2x48xf32>
    %cst_118 = arith.constant dense<0.000000e+00> : vector<2x64xf32>
    %813 = tpu.matmul %812, %789, %cst_118 {dimension_numbers = #tpu.dot_dimension_numbers<[1], [0], [0], [1], [0, 0, 1, 1], [], []>} : vector<2x48xf32>, vector<48x64xf32>, vector<2x64xf32> -> vector<2x64xf32>
    %814 = vector.broadcast %790 : vector<1x64xf32> to vector<2x64xf32>
    %815 = arith.addf %813, %814 : vector<2x64xf32>
    %816 = arith.negf %815 : vector<2x64xf32>
    %817 = math.exp %816 : vector<2x64xf32>
    %cst_119 = arith.constant 1.000000e+00 : f32
    %818 = vector.broadcast %cst_119 : f32 to vector<2x64xf32>
    %819 = arith.addf %818, %817 : vector<2x64xf32>
    %820 = arith.divf %818, %819 : vector<2x64xf32>
    %821 = math.tanh %815 : vector<2x64xf32>
    %822 = vector.extract_strided_slice %820 {offsets = [0, 16], sizes = [2, 16], strides = [1, 1]} : vector<2x64xf32> to vector<2x16xf32>
    %823 = arith.mulf %822, %808 : vector<2x16xf32>
    %824 = vector.extract_strided_slice %820 {offsets = [0, 0], sizes = [2, 16], strides = [1, 1]} : vector<2x64xf32> to vector<2x16xf32>
    %825 = vector.extract_strided_slice %821 {offsets = [0, 32], sizes = [2, 16], strides = [1, 1]} : vector<2x64xf32> to vector<2x16xf32>
    %826 = arith.mulf %824, %825 : vector<2x16xf32>
    %827 = arith.addf %823, %826 : vector<2x16xf32>
    %828 = vector.extract_strided_slice %820 {offsets = [0, 48], sizes = [2, 16], strides = [1, 1]} : vector<2x64xf32> to vector<2x16xf32>
    %829 = math.tanh %827 : vector<2x16xf32>
    %830 = arith.mulf %828, %829 : vector<2x16xf32>
    %831 = tpu.concatenate %693, %830 in 1 : vector<2x32xf32>, vector<2x16xf32> -> vector<2x48xf32>
    %cst_120 = arith.constant dense<0.000000e+00> : vector<2x64xf32>
    %832 = tpu.matmul %831, %789, %cst_120 {dimension_numbers = #tpu.dot_dimension_numbers<[1], [0], [0], [1], [0, 0, 1, 1], [], []>} : vector<2x48xf32>, vector<48x64xf32>, vector<2x64xf32> -> vector<2x64xf32>
    %833 = vector.broadcast %790 : vector<1x64xf32> to vector<2x64xf32>
    %834 = arith.addf %832, %833 : vector<2x64xf32>
    %835 = arith.negf %834 : vector<2x64xf32>
    %836 = math.exp %835 : vector<2x64xf32>
    %cst_121 = arith.constant 1.000000e+00 : f32
    %837 = vector.broadcast %cst_121 : f32 to vector<2x64xf32>
    %838 = arith.addf %837, %836 : vector<2x64xf32>
    %839 = arith.divf %837, %838 : vector<2x64xf32>
    %840 = math.tanh %834 : vector<2x64xf32>
    %841 = vector.extract_strided_slice %839 {offsets = [0, 16], sizes = [2, 16], strides = [1, 1]} : vector<2x64xf32> to vector<2x16xf32>
    %842 = arith.mulf %841, %827 : vector<2x16xf32>
    %843 = vector.extract_strided_slice %839 {offsets = [0, 0], sizes = [2, 16], strides = [1, 1]} : vector<2x64xf32> to vector<2x16xf32>
    %844 = vector.extract_strided_slice %840 {offsets = [0, 32], sizes = [2, 16], strides = [1, 1]} : vector<2x64xf32> to vector<2x16xf32>
    %845 = arith.mulf %843, %844 : vector<2x16xf32>
    %846 = arith.addf %842, %845 : vector<2x16xf32>
    %847 = vector.extract_strided_slice %839 {offsets = [0, 48], sizes = [2, 16], strides = [1, 1]} : vector<2x64xf32> to vector<2x16xf32>
    %848 = math.tanh %846 : vector<2x16xf32>
    %849 = arith.mulf %847, %848 : vector<2x16xf32>
    %850 = tpu.concatenate %712, %849 in 1 : vector<2x32xf32>, vector<2x16xf32> -> vector<2x48xf32>
    %cst_122 = arith.constant dense<0.000000e+00> : vector<2x64xf32>
    %851 = tpu.matmul %850, %789, %cst_122 {dimension_numbers = #tpu.dot_dimension_numbers<[1], [0], [0], [1], [0, 0, 1, 1], [], []>} : vector<2x48xf32>, vector<48x64xf32>, vector<2x64xf32> -> vector<2x64xf32>
    %852 = vector.broadcast %790 : vector<1x64xf32> to vector<2x64xf32>
    %853 = arith.addf %851, %852 : vector<2x64xf32>
    %854 = arith.negf %853 : vector<2x64xf32>
    %855 = math.exp %854 : vector<2x64xf32>
    %cst_123 = arith.constant 1.000000e+00 : f32
    %856 = vector.broadcast %cst_123 : f32 to vector<2x64xf32>
    %857 = arith.addf %856, %855 : vector<2x64xf32>
    %858 = arith.divf %856, %857 : vector<2x64xf32>
    %859 = math.tanh %853 : vector<2x64xf32>
    %860 = vector.extract_strided_slice %858 {offsets = [0, 16], sizes = [2, 16], strides = [1, 1]} : vector<2x64xf32> to vector<2x16xf32>
    %861 = arith.mulf %860, %846 : vector<2x16xf32>
    %862 = vector.extract_strided_slice %858 {offsets = [0, 0], sizes = [2, 16], strides = [1, 1]} : vector<2x64xf32> to vector<2x16xf32>
    %863 = vector.extract_strided_slice %859 {offsets = [0, 32], sizes = [2, 16], strides = [1, 1]} : vector<2x64xf32> to vector<2x16xf32>
    %864 = arith.mulf %862, %863 : vector<2x16xf32>
    %865 = arith.addf %861, %864 : vector<2x16xf32>
    %866 = vector.extract_strided_slice %858 {offsets = [0, 48], sizes = [2, 16], strides = [1, 1]} : vector<2x64xf32> to vector<2x16xf32>
    %867 = math.tanh %865 : vector<2x16xf32>
    %868 = arith.mulf %866, %867 : vector<2x16xf32>
    %869 = tpu.concatenate %731, %868 in 1 : vector<2x32xf32>, vector<2x16xf32> -> vector<2x48xf32>
    %cst_124 = arith.constant dense<0.000000e+00> : vector<2x64xf32>
    %870 = tpu.matmul %869, %789, %cst_124 {dimension_numbers = #tpu.dot_dimension_numbers<[1], [0], [0], [1], [0, 0, 1, 1], [], []>} : vector<2x48xf32>, vector<48x64xf32>, vector<2x64xf32> -> vector<2x64xf32>
    %871 = vector.broadcast %790 : vector<1x64xf32> to vector<2x64xf32>
    %872 = arith.addf %870, %871 : vector<2x64xf32>
    %873 = arith.negf %872 : vector<2x64xf32>
    %874 = math.exp %873 : vector<2x64xf32>
    %cst_125 = arith.constant 1.000000e+00 : f32
    %875 = vector.broadcast %cst_125 : f32 to vector<2x64xf32>
    %876 = arith.addf %875, %874 : vector<2x64xf32>
    %877 = arith.divf %875, %876 : vector<2x64xf32>
    %878 = math.tanh %872 : vector<2x64xf32>
    %879 = vector.extract_strided_slice %877 {offsets = [0, 16], sizes = [2, 16], strides = [1, 1]} : vector<2x64xf32> to vector<2x16xf32>
    %880 = arith.mulf %879, %865 : vector<2x16xf32>
    %881 = vector.extract_strided_slice %877 {offsets = [0, 0], sizes = [2, 16], strides = [1, 1]} : vector<2x64xf32> to vector<2x16xf32>
    %882 = vector.extract_strided_slice %878 {offsets = [0, 32], sizes = [2, 16], strides = [1, 1]} : vector<2x64xf32> to vector<2x16xf32>
    %883 = arith.mulf %881, %882 : vector<2x16xf32>
    %884 = arith.addf %880, %883 : vector<2x16xf32>
    %885 = vector.extract_strided_slice %877 {offsets = [0, 48], sizes = [2, 16], strides = [1, 1]} : vector<2x64xf32> to vector<2x16xf32>
    %886 = math.tanh %884 : vector<2x16xf32>
    %887 = arith.mulf %885, %886 : vector<2x16xf32>
    %888 = tpu.concatenate %750, %887 in 1 : vector<2x32xf32>, vector<2x16xf32> -> vector<2x48xf32>
    %cst_126 = arith.constant dense<0.000000e+00> : vector<2x64xf32>
    %889 = tpu.matmul %888, %789, %cst_126 {dimension_numbers = #tpu.dot_dimension_numbers<[1], [0], [0], [1], [0, 0, 1, 1], [], []>} : vector<2x48xf32>, vector<48x64xf32>, vector<2x64xf32> -> vector<2x64xf32>
    %890 = vector.broadcast %790 : vector<1x64xf32> to vector<2x64xf32>
    %891 = arith.addf %889, %890 : vector<2x64xf32>
    %892 = arith.negf %891 : vector<2x64xf32>
    %893 = math.exp %892 : vector<2x64xf32>
    %cst_127 = arith.constant 1.000000e+00 : f32
    %894 = vector.broadcast %cst_127 : f32 to vector<2x64xf32>
    %895 = arith.addf %894, %893 : vector<2x64xf32>
    %896 = arith.divf %894, %895 : vector<2x64xf32>
    %897 = math.tanh %891 : vector<2x64xf32>
    %898 = vector.extract_strided_slice %896 {offsets = [0, 16], sizes = [2, 16], strides = [1, 1]} : vector<2x64xf32> to vector<2x16xf32>
    %899 = arith.mulf %898, %884 : vector<2x16xf32>
    %900 = vector.extract_strided_slice %896 {offsets = [0, 0], sizes = [2, 16], strides = [1, 1]} : vector<2x64xf32> to vector<2x16xf32>
    %901 = vector.extract_strided_slice %897 {offsets = [0, 32], sizes = [2, 16], strides = [1, 1]} : vector<2x64xf32> to vector<2x16xf32>
    %902 = arith.mulf %900, %901 : vector<2x16xf32>
    %903 = arith.addf %899, %902 : vector<2x16xf32>
    %904 = vector.extract_strided_slice %896 {offsets = [0, 48], sizes = [2, 16], strides = [1, 1]} : vector<2x64xf32> to vector<2x16xf32>
    %905 = math.tanh %903 : vector<2x16xf32>
    %906 = arith.mulf %904, %905 : vector<2x16xf32>
    %907 = tpu.concatenate %769, %906 in 1 : vector<2x32xf32>, vector<2x16xf32> -> vector<2x48xf32>
    %cst_128 = arith.constant dense<0.000000e+00> : vector<2x64xf32>
    %908 = tpu.matmul %907, %789, %cst_128 {dimension_numbers = #tpu.dot_dimension_numbers<[1], [0], [0], [1], [0, 0, 1, 1], [], []>} : vector<2x48xf32>, vector<48x64xf32>, vector<2x64xf32> -> vector<2x64xf32>
    %909 = vector.broadcast %790 : vector<1x64xf32> to vector<2x64xf32>
    %910 = arith.addf %908, %909 : vector<2x64xf32>
    %911 = arith.negf %910 : vector<2x64xf32>
    %912 = math.exp %911 : vector<2x64xf32>
    %cst_129 = arith.constant 1.000000e+00 : f32
    %913 = vector.broadcast %cst_129 : f32 to vector<2x64xf32>
    %914 = arith.addf %913, %912 : vector<2x64xf32>
    %915 = arith.divf %913, %914 : vector<2x64xf32>
    %916 = math.tanh %910 : vector<2x64xf32>
    %917 = vector.extract_strided_slice %915 {offsets = [0, 16], sizes = [2, 16], strides = [1, 1]} : vector<2x64xf32> to vector<2x16xf32>
    %918 = arith.mulf %917, %903 : vector<2x16xf32>
    %919 = vector.extract_strided_slice %915 {offsets = [0, 0], sizes = [2, 16], strides = [1, 1]} : vector<2x64xf32> to vector<2x16xf32>
    %920 = vector.extract_strided_slice %916 {offsets = [0, 32], sizes = [2, 16], strides = [1, 1]} : vector<2x64xf32> to vector<2x16xf32>
    %921 = arith.mulf %919, %920 : vector<2x16xf32>
    %922 = arith.addf %918, %921 : vector<2x16xf32>
    %923 = vector.extract_strided_slice %915 {offsets = [0, 48], sizes = [2, 16], strides = [1, 1]} : vector<2x64xf32> to vector<2x16xf32>
    %924 = math.tanh %922 : vector<2x16xf32>
    %925 = arith.mulf %923, %924 : vector<2x16xf32>
    %926 = tpu.concatenate %788, %925 in 1 : vector<2x32xf32>, vector<2x16xf32> -> vector<2x48xf32>
    %cst_130 = arith.constant dense<0.000000e+00> : vector<2x64xf32>
    %927 = tpu.matmul %926, %789, %cst_130 {dimension_numbers = #tpu.dot_dimension_numbers<[1], [0], [0], [1], [0, 0, 1, 1], [], []>} : vector<2x48xf32>, vector<48x64xf32>, vector<2x64xf32> -> vector<2x64xf32>
    %928 = vector.broadcast %790 : vector<1x64xf32> to vector<2x64xf32>
    %929 = arith.addf %927, %928 : vector<2x64xf32>
    %930 = arith.negf %929 : vector<2x64xf32>
    %931 = math.exp %930 : vector<2x64xf32>
    %cst_131 = arith.constant 1.000000e+00 : f32
    %932 = vector.broadcast %cst_131 : f32 to vector<2x64xf32>
    %933 = arith.addf %932, %931 : vector<2x64xf32>
    %934 = arith.divf %932, %933 : vector<2x64xf32>
    %935 = math.tanh %929 : vector<2x64xf32>
    %936 = vector.extract_strided_slice %934 {offsets = [0, 16], sizes = [2, 16], strides = [1, 1]} : vector<2x64xf32> to vector<2x16xf32>
    %937 = arith.mulf %936, %922 : vector<2x16xf32>
    %938 = vector.extract_strided_slice %934 {offsets = [0, 0], sizes = [2, 16], strides = [1, 1]} : vector<2x64xf32> to vector<2x16xf32>
    %939 = vector.extract_strided_slice %935 {offsets = [0, 32], sizes = [2, 16], strides = [1, 1]} : vector<2x64xf32> to vector<2x16xf32>
    %940 = arith.mulf %938, %939 : vector<2x16xf32>
    %941 = arith.addf %937, %940 : vector<2x16xf32>
    %942 = vector.extract_strided_slice %934 {offsets = [0, 48], sizes = [2, 16], strides = [1, 1]} : vector<2x64xf32> to vector<2x16xf32>
    %943 = math.tanh %941 : vector<2x16xf32>
    %944 = arith.mulf %942, %943 : vector<2x16xf32>
    %c0_132 = arith.constant 0 : index
    %c0_133 = arith.constant 0 : index
    %945 = vector.load %arg1[%c0_132, %c0_133] : memref<48x128xf32, #tpu.memory_space<vmem>>, vector<48x128xf32>
    %c0_134 = arith.constant 0 : index
    %c0_135 = arith.constant 0 : index
    %946 = vector.load %arg2[%c0_134, %c0_135] : memref<1x128xf32, #tpu.memory_space<vmem>>, vector<1x128xf32>
    %cst_136 = arith.constant 0.000000e+00 : f32
    %947 = vector.broadcast %cst_136 : f32 to vector<2x32xf32>
    %cst_137 = arith.constant 0.000000e+00 : f32
    %948 = vector.broadcast %cst_137 : f32 to vector<2x32xf32>
    %949 = tpu.concatenate %499, %947 in 1 : vector<2x16xf32>, vector<2x32xf32> -> vector<2x48xf32>
    %cst_138 = arith.constant dense<0.000000e+00> : vector<2x128xf32>
    %950 = tpu.matmul %949, %945, %cst_138 {dimension_numbers = #tpu.dot_dimension_numbers<[1], [0], [0], [1], [0, 0, 1, 1], [], []>} : vector<2x48xf32>, vector<48x128xf32>, vector<2x128xf32> -> vector<2x128xf32>
    %951 = vector.broadcast %946 : vector<1x128xf32> to vector<2x128xf32>
    %952 = arith.addf %950, %951 : vector<2x128xf32>
    %953 = arith.negf %952 : vector<2x128xf32>
    %954 = math.exp %953 : vector<2x128xf32>
    %cst_139 = arith.constant 1.000000e+00 : f32
    %955 = vector.broadcast %cst_139 : f32 to vector<2x128xf32>
    %956 = arith.addf %955, %954 : vector<2x128xf32>
    %957 = arith.divf %955, %956 : vector<2x128xf32>
    %958 = math.tanh %952 : vector<2x128xf32>
    %959 = vector.extract_strided_slice %957 {offsets = [0, 32], sizes = [2, 32], strides = [1, 1]} : vector<2x128xf32> to vector<2x32xf32>
    %960 = arith.mulf %959, %948 : vector<2x32xf32>
    %961 = vector.extract_strided_slice %957 {offsets = [0, 0], sizes = [2, 32], strides = [1, 1]} : vector<2x128xf32> to vector<2x32xf32>
    %962 = vector.extract_strided_slice %958 {offsets = [0, 64], sizes = [2, 32], strides = [1, 1]} : vector<2x128xf32> to vector<2x32xf32>
    %963 = arith.mulf %961, %962 : vector<2x32xf32>
    %964 = arith.addf %960, %963 : vector<2x32xf32>
    %965 = vector.extract_strided_slice %957 {offsets = [0, 96], sizes = [2, 32], strides = [1, 1]} : vector<2x128xf32> to vector<2x32xf32>
    %966 = math.tanh %964 : vector<2x32xf32>
    %967 = arith.mulf %965, %966 : vector<2x32xf32>
    %968 = tpu.concatenate %518, %967 in 1 : vector<2x16xf32>, vector<2x32xf32> -> vector<2x48xf32>
    %cst_140 = arith.constant dense<0.000000e+00> : vector<2x128xf32>
    %969 = tpu.matmul %968, %945, %cst_140 {dimension_numbers = #tpu.dot_dimension_numbers<[1], [0], [0], [1], [0, 0, 1, 1], [], []>} : vector<2x48xf32>, vector<48x128xf32>, vector<2x128xf32> -> vector<2x128xf32>
    %970 = vector.broadcast %946 : vector<1x128xf32> to vector<2x128xf32>
    %971 = arith.addf %969, %970 : vector<2x128xf32>
    %972 = arith.negf %971 : vector<2x128xf32>
    %973 = math.exp %972 : vector<2x128xf32>
    %cst_141 = arith.constant 1.000000e+00 : f32
    %974 = vector.broadcast %cst_141 : f32 to vector<2x128xf32>
    %975 = arith.addf %974, %973 : vector<2x128xf32>
    %976 = arith.divf %974, %975 : vector<2x128xf32>
    %977 = math.tanh %971 : vector<2x128xf32>
    %978 = vector.extract_strided_slice %976 {offsets = [0, 32], sizes = [2, 32], strides = [1, 1]} : vector<2x128xf32> to vector<2x32xf32>
    %979 = arith.mulf %978, %964 : vector<2x32xf32>
    %980 = vector.extract_strided_slice %976 {offsets = [0, 0], sizes = [2, 32], strides = [1, 1]} : vector<2x128xf32> to vector<2x32xf32>
    %981 = vector.extract_strided_slice %977 {offsets = [0, 64], sizes = [2, 32], strides = [1, 1]} : vector<2x128xf32> to vector<2x32xf32>
    %982 = arith.mulf %980, %981 : vector<2x32xf32>
    %983 = arith.addf %979, %982 : vector<2x32xf32>
    %984 = vector.extract_strided_slice %976 {offsets = [0, 96], sizes = [2, 32], strides = [1, 1]} : vector<2x128xf32> to vector<2x32xf32>
    %985 = math.tanh %983 : vector<2x32xf32>
    %986 = arith.mulf %984, %985 : vector<2x32xf32>
    %987 = tpu.concatenate %537, %986 in 1 : vector<2x16xf32>, vector<2x32xf32> -> vector<2x48xf32>
    %cst_142 = arith.constant dense<0.000000e+00> : vector<2x128xf32>
    %988 = tpu.matmul %987, %945, %cst_142 {dimension_numbers = #tpu.dot_dimension_numbers<[1], [0], [0], [1], [0, 0, 1, 1], [], []>} : vector<2x48xf32>, vector<48x128xf32>, vector<2x128xf32> -> vector<2x128xf32>
    %989 = vector.broadcast %946 : vector<1x128xf32> to vector<2x128xf32>
    %990 = arith.addf %988, %989 : vector<2x128xf32>
    %991 = arith.negf %990 : vector<2x128xf32>
    %992 = math.exp %991 : vector<2x128xf32>
    %cst_143 = arith.constant 1.000000e+00 : f32
    %993 = vector.broadcast %cst_143 : f32 to vector<2x128xf32>
    %994 = arith.addf %993, %992 : vector<2x128xf32>
    %995 = arith.divf %993, %994 : vector<2x128xf32>
    %996 = math.tanh %990 : vector<2x128xf32>
    %997 = vector.extract_strided_slice %995 {offsets = [0, 32], sizes = [2, 32], strides = [1, 1]} : vector<2x128xf32> to vector<2x32xf32>
    %998 = arith.mulf %997, %983 : vector<2x32xf32>
    %999 = vector.extract_strided_slice %995 {offsets = [0, 0], sizes = [2, 32], strides = [1, 1]} : vector<2x128xf32> to vector<2x32xf32>
    %1000 = vector.extract_strided_slice %996 {offsets = [0, 64], sizes = [2, 32], strides = [1, 1]} : vector<2x128xf32> to vector<2x32xf32>
    %1001 = arith.mulf %999, %1000 : vector<2x32xf32>
    %1002 = arith.addf %998, %1001 : vector<2x32xf32>
    %1003 = vector.extract_strided_slice %995 {offsets = [0, 96], sizes = [2, 32], strides = [1, 1]} : vector<2x128xf32> to vector<2x32xf32>
    %1004 = math.tanh %1002 : vector<2x32xf32>
    %1005 = arith.mulf %1003, %1004 : vector<2x32xf32>
    %1006 = tpu.concatenate %556, %1005 in 1 : vector<2x16xf32>, vector<2x32xf32> -> vector<2x48xf32>
    %cst_144 = arith.constant dense<0.000000e+00> : vector<2x128xf32>
    %1007 = tpu.matmul %1006, %945, %cst_144 {dimension_numbers = #tpu.dot_dimension_numbers<[1], [0], [0], [1], [0, 0, 1, 1], [], []>} : vector<2x48xf32>, vector<48x128xf32>, vector<2x128xf32> -> vector<2x128xf32>
    %1008 = vector.broadcast %946 : vector<1x128xf32> to vector<2x128xf32>
    %1009 = arith.addf %1007, %1008 : vector<2x128xf32>
    %1010 = arith.negf %1009 : vector<2x128xf32>
    %1011 = math.exp %1010 : vector<2x128xf32>
    %cst_145 = arith.constant 1.000000e+00 : f32
    %1012 = vector.broadcast %cst_145 : f32 to vector<2x128xf32>
    %1013 = arith.addf %1012, %1011 : vector<2x128xf32>
    %1014 = arith.divf %1012, %1013 : vector<2x128xf32>
    %1015 = math.tanh %1009 : vector<2x128xf32>
    %1016 = vector.extract_strided_slice %1014 {offsets = [0, 32], sizes = [2, 32], strides = [1, 1]} : vector<2x128xf32> to vector<2x32xf32>
    %1017 = arith.mulf %1016, %1002 : vector<2x32xf32>
    %1018 = vector.extract_strided_slice %1014 {offsets = [0, 0], sizes = [2, 32], strides = [1, 1]} : vector<2x128xf32> to vector<2x32xf32>
    %1019 = vector.extract_strided_slice %1015 {offsets = [0, 64], sizes = [2, 32], strides = [1, 1]} : vector<2x128xf32> to vector<2x32xf32>
    %1020 = arith.mulf %1018, %1019 : vector<2x32xf32>
    %1021 = arith.addf %1017, %1020 : vector<2x32xf32>
    %1022 = vector.extract_strided_slice %1014 {offsets = [0, 96], sizes = [2, 32], strides = [1, 1]} : vector<2x128xf32> to vector<2x32xf32>
    %1023 = math.tanh %1021 : vector<2x32xf32>
    %1024 = arith.mulf %1022, %1023 : vector<2x32xf32>
    %1025 = tpu.concatenate %575, %1024 in 1 : vector<2x16xf32>, vector<2x32xf32> -> vector<2x48xf32>
    %cst_146 = arith.constant dense<0.000000e+00> : vector<2x128xf32>
    %1026 = tpu.matmul %1025, %945, %cst_146 {dimension_numbers = #tpu.dot_dimension_numbers<[1], [0], [0], [1], [0, 0, 1, 1], [], []>} : vector<2x48xf32>, vector<48x128xf32>, vector<2x128xf32> -> vector<2x128xf32>
    %1027 = vector.broadcast %946 : vector<1x128xf32> to vector<2x128xf32>
    %1028 = arith.addf %1026, %1027 : vector<2x128xf32>
    %1029 = arith.negf %1028 : vector<2x128xf32>
    %1030 = math.exp %1029 : vector<2x128xf32>
    %cst_147 = arith.constant 1.000000e+00 : f32
    %1031 = vector.broadcast %cst_147 : f32 to vector<2x128xf32>
    %1032 = arith.addf %1031, %1030 : vector<2x128xf32>
    %1033 = arith.divf %1031, %1032 : vector<2x128xf32>
    %1034 = math.tanh %1028 : vector<2x128xf32>
    %1035 = vector.extract_strided_slice %1033 {offsets = [0, 32], sizes = [2, 32], strides = [1, 1]} : vector<2x128xf32> to vector<2x32xf32>
    %1036 = arith.mulf %1035, %1021 : vector<2x32xf32>
    %1037 = vector.extract_strided_slice %1033 {offsets = [0, 0], sizes = [2, 32], strides = [1, 1]} : vector<2x128xf32> to vector<2x32xf32>
    %1038 = vector.extract_strided_slice %1034 {offsets = [0, 64], sizes = [2, 32], strides = [1, 1]} : vector<2x128xf32> to vector<2x32xf32>
    %1039 = arith.mulf %1037, %1038 : vector<2x32xf32>
    %1040 = arith.addf %1036, %1039 : vector<2x32xf32>
    %1041 = vector.extract_strided_slice %1033 {offsets = [0, 96], sizes = [2, 32], strides = [1, 1]} : vector<2x128xf32> to vector<2x32xf32>
    %1042 = math.tanh %1040 : vector<2x32xf32>
    %1043 = arith.mulf %1041, %1042 : vector<2x32xf32>
    %1044 = tpu.concatenate %594, %1043 in 1 : vector<2x16xf32>, vector<2x32xf32> -> vector<2x48xf32>
    %cst_148 = arith.constant dense<0.000000e+00> : vector<2x128xf32>
    %1045 = tpu.matmul %1044, %945, %cst_148 {dimension_numbers = #tpu.dot_dimension_numbers<[1], [0], [0], [1], [0, 0, 1, 1], [], []>} : vector<2x48xf32>, vector<48x128xf32>, vector<2x128xf32> -> vector<2x128xf32>
    %1046 = vector.broadcast %946 : vector<1x128xf32> to vector<2x128xf32>
    %1047 = arith.addf %1045, %1046 : vector<2x128xf32>
    %1048 = arith.negf %1047 : vector<2x128xf32>
    %1049 = math.exp %1048 : vector<2x128xf32>
    %cst_149 = arith.constant 1.000000e+00 : f32
    %1050 = vector.broadcast %cst_149 : f32 to vector<2x128xf32>
    %1051 = arith.addf %1050, %1049 : vector<2x128xf32>
    %1052 = arith.divf %1050, %1051 : vector<2x128xf32>
    %1053 = math.tanh %1047 : vector<2x128xf32>
    %1054 = vector.extract_strided_slice %1052 {offsets = [0, 32], sizes = [2, 32], strides = [1, 1]} : vector<2x128xf32> to vector<2x32xf32>
    %1055 = arith.mulf %1054, %1040 : vector<2x32xf32>
    %1056 = vector.extract_strided_slice %1052 {offsets = [0, 0], sizes = [2, 32], strides = [1, 1]} : vector<2x128xf32> to vector<2x32xf32>
    %1057 = vector.extract_strided_slice %1053 {offsets = [0, 64], sizes = [2, 32], strides = [1, 1]} : vector<2x128xf32> to vector<2x32xf32>
    %1058 = arith.mulf %1056, %1057 : vector<2x32xf32>
    %1059 = arith.addf %1055, %1058 : vector<2x32xf32>
    %1060 = vector.extract_strided_slice %1052 {offsets = [0, 96], sizes = [2, 32], strides = [1, 1]} : vector<2x128xf32> to vector<2x32xf32>
    %1061 = math.tanh %1059 : vector<2x32xf32>
    %1062 = arith.mulf %1060, %1061 : vector<2x32xf32>
    %1063 = tpu.concatenate %613, %1062 in 1 : vector<2x16xf32>, vector<2x32xf32> -> vector<2x48xf32>
    %cst_150 = arith.constant dense<0.000000e+00> : vector<2x128xf32>
    %1064 = tpu.matmul %1063, %945, %cst_150 {dimension_numbers = #tpu.dot_dimension_numbers<[1], [0], [0], [1], [0, 0, 1, 1], [], []>} : vector<2x48xf32>, vector<48x128xf32>, vector<2x128xf32> -> vector<2x128xf32>
    %1065 = vector.broadcast %946 : vector<1x128xf32> to vector<2x128xf32>
    %1066 = arith.addf %1064, %1065 : vector<2x128xf32>
    %1067 = arith.negf %1066 : vector<2x128xf32>
    %1068 = math.exp %1067 : vector<2x128xf32>
    %cst_151 = arith.constant 1.000000e+00 : f32
    %1069 = vector.broadcast %cst_151 : f32 to vector<2x128xf32>
    %1070 = arith.addf %1069, %1068 : vector<2x128xf32>
    %1071 = arith.divf %1069, %1070 : vector<2x128xf32>
    %1072 = math.tanh %1066 : vector<2x128xf32>
    %1073 = vector.extract_strided_slice %1071 {offsets = [0, 32], sizes = [2, 32], strides = [1, 1]} : vector<2x128xf32> to vector<2x32xf32>
    %1074 = arith.mulf %1073, %1059 : vector<2x32xf32>
    %1075 = vector.extract_strided_slice %1071 {offsets = [0, 0], sizes = [2, 32], strides = [1, 1]} : vector<2x128xf32> to vector<2x32xf32>
    %1076 = vector.extract_strided_slice %1072 {offsets = [0, 64], sizes = [2, 32], strides = [1, 1]} : vector<2x128xf32> to vector<2x32xf32>
    %1077 = arith.mulf %1075, %1076 : vector<2x32xf32>
    %1078 = arith.addf %1074, %1077 : vector<2x32xf32>
    %1079 = vector.extract_strided_slice %1071 {offsets = [0, 96], sizes = [2, 32], strides = [1, 1]} : vector<2x128xf32> to vector<2x32xf32>
    %1080 = math.tanh %1078 : vector<2x32xf32>
    %1081 = arith.mulf %1079, %1080 : vector<2x32xf32>
    %1082 = tpu.concatenate %632, %1081 in 1 : vector<2x16xf32>, vector<2x32xf32> -> vector<2x48xf32>
    %cst_152 = arith.constant dense<0.000000e+00> : vector<2x128xf32>
    %1083 = tpu.matmul %1082, %945, %cst_152 {dimension_numbers = #tpu.dot_dimension_numbers<[1], [0], [0], [1], [0, 0, 1, 1], [], []>} : vector<2x48xf32>, vector<48x128xf32>, vector<2x128xf32> -> vector<2x128xf32>
    %1084 = vector.broadcast %946 : vector<1x128xf32> to vector<2x128xf32>
    %1085 = arith.addf %1083, %1084 : vector<2x128xf32>
    %1086 = arith.negf %1085 : vector<2x128xf32>
    %1087 = math.exp %1086 : vector<2x128xf32>
    %cst_153 = arith.constant 1.000000e+00 : f32
    %1088 = vector.broadcast %cst_153 : f32 to vector<2x128xf32>
    %1089 = arith.addf %1088, %1087 : vector<2x128xf32>
    %1090 = arith.divf %1088, %1089 : vector<2x128xf32>
    %1091 = math.tanh %1085 : vector<2x128xf32>
    %1092 = vector.extract_strided_slice %1090 {offsets = [0, 32], sizes = [2, 32], strides = [1, 1]} : vector<2x128xf32> to vector<2x32xf32>
    %1093 = arith.mulf %1092, %1078 : vector<2x32xf32>
    %1094 = vector.extract_strided_slice %1090 {offsets = [0, 0], sizes = [2, 32], strides = [1, 1]} : vector<2x128xf32> to vector<2x32xf32>
    %1095 = vector.extract_strided_slice %1091 {offsets = [0, 64], sizes = [2, 32], strides = [1, 1]} : vector<2x128xf32> to vector<2x32xf32>
    %1096 = arith.mulf %1094, %1095 : vector<2x32xf32>
    %1097 = arith.addf %1093, %1096 : vector<2x32xf32>
    %1098 = vector.extract_strided_slice %1090 {offsets = [0, 96], sizes = [2, 32], strides = [1, 1]} : vector<2x128xf32> to vector<2x32xf32>
    %1099 = math.tanh %1097 : vector<2x32xf32>
    %1100 = arith.mulf %1098, %1099 : vector<2x32xf32>
    %c0_154 = arith.constant 0 : index
    %c0_155 = arith.constant 0 : index
    %1101 = vector.load %arg3[%c0_154, %c0_155] : memref<48x64xf32, #tpu.memory_space<vmem>>, vector<48x64xf32>
    %c0_156 = arith.constant 0 : index
    %c0_157 = arith.constant 0 : index
    %1102 = vector.load %arg4[%c0_156, %c0_157] : memref<1x64xf32, #tpu.memory_space<vmem>>, vector<1x64xf32>
    %cst_158 = arith.constant 0.000000e+00 : f32
    %1103 = vector.broadcast %cst_158 : f32 to vector<2x16xf32>
    %cst_159 = arith.constant 0.000000e+00 : f32
    %1104 = vector.broadcast %cst_159 : f32 to vector<2x16xf32>
    %1105 = tpu.concatenate %967, %1103 in 1 : vector<2x32xf32>, vector<2x16xf32> -> vector<2x48xf32>
    %cst_160 = arith.constant dense<0.000000e+00> : vector<2x64xf32>
    %1106 = tpu.matmul %1105, %1101, %cst_160 {dimension_numbers = #tpu.dot_dimension_numbers<[1], [0], [0], [1], [0, 0, 1, 1], [], []>} : vector<2x48xf32>, vector<48x64xf32>, vector<2x64xf32> -> vector<2x64xf32>
    %1107 = vector.broadcast %1102 : vector<1x64xf32> to vector<2x64xf32>
    %1108 = arith.addf %1106, %1107 : vector<2x64xf32>
    %1109 = arith.negf %1108 : vector<2x64xf32>
    %1110 = math.exp %1109 : vector<2x64xf32>
    %cst_161 = arith.constant 1.000000e+00 : f32
    %1111 = vector.broadcast %cst_161 : f32 to vector<2x64xf32>
    %1112 = arith.addf %1111, %1110 : vector<2x64xf32>
    %1113 = arith.divf %1111, %1112 : vector<2x64xf32>
    %1114 = math.tanh %1108 : vector<2x64xf32>
    %1115 = vector.extract_strided_slice %1113 {offsets = [0, 16], sizes = [2, 16], strides = [1, 1]} : vector<2x64xf32> to vector<2x16xf32>
    %1116 = arith.mulf %1115, %1104 : vector<2x16xf32>
    %1117 = vector.extract_strided_slice %1113 {offsets = [0, 0], sizes = [2, 16], strides = [1, 1]} : vector<2x64xf32> to vector<2x16xf32>
    %1118 = vector.extract_strided_slice %1114 {offsets = [0, 32], sizes = [2, 16], strides = [1, 1]} : vector<2x64xf32> to vector<2x16xf32>
    %1119 = arith.mulf %1117, %1118 : vector<2x16xf32>
    %1120 = arith.addf %1116, %1119 : vector<2x16xf32>
    %1121 = vector.extract_strided_slice %1113 {offsets = [0, 48], sizes = [2, 16], strides = [1, 1]} : vector<2x64xf32> to vector<2x16xf32>
    %1122 = math.tanh %1120 : vector<2x16xf32>
    %1123 = arith.mulf %1121, %1122 : vector<2x16xf32>
    %1124 = tpu.concatenate %986, %1123 in 1 : vector<2x32xf32>, vector<2x16xf32> -> vector<2x48xf32>
    %cst_162 = arith.constant dense<0.000000e+00> : vector<2x64xf32>
    %1125 = tpu.matmul %1124, %1101, %cst_162 {dimension_numbers = #tpu.dot_dimension_numbers<[1], [0], [0], [1], [0, 0, 1, 1], [], []>} : vector<2x48xf32>, vector<48x64xf32>, vector<2x64xf32> -> vector<2x64xf32>
    %1126 = vector.broadcast %1102 : vector<1x64xf32> to vector<2x64xf32>
    %1127 = arith.addf %1125, %1126 : vector<2x64xf32>
    %1128 = arith.negf %1127 : vector<2x64xf32>
    %1129 = math.exp %1128 : vector<2x64xf32>
    %cst_163 = arith.constant 1.000000e+00 : f32
    %1130 = vector.broadcast %cst_163 : f32 to vector<2x64xf32>
    %1131 = arith.addf %1130, %1129 : vector<2x64xf32>
    %1132 = arith.divf %1130, %1131 : vector<2x64xf32>
    %1133 = math.tanh %1127 : vector<2x64xf32>
    %1134 = vector.extract_strided_slice %1132 {offsets = [0, 16], sizes = [2, 16], strides = [1, 1]} : vector<2x64xf32> to vector<2x16xf32>
    %1135 = arith.mulf %1134, %1120 : vector<2x16xf32>
    %1136 = vector.extract_strided_slice %1132 {offsets = [0, 0], sizes = [2, 16], strides = [1, 1]} : vector<2x64xf32> to vector<2x16xf32>
    %1137 = vector.extract_strided_slice %1133 {offsets = [0, 32], sizes = [2, 16], strides = [1, 1]} : vector<2x64xf32> to vector<2x16xf32>
    %1138 = arith.mulf %1136, %1137 : vector<2x16xf32>
    %1139 = arith.addf %1135, %1138 : vector<2x16xf32>
    %1140 = vector.extract_strided_slice %1132 {offsets = [0, 48], sizes = [2, 16], strides = [1, 1]} : vector<2x64xf32> to vector<2x16xf32>
    %1141 = math.tanh %1139 : vector<2x16xf32>
    %1142 = arith.mulf %1140, %1141 : vector<2x16xf32>
    %1143 = tpu.concatenate %1005, %1142 in 1 : vector<2x32xf32>, vector<2x16xf32> -> vector<2x48xf32>
    %cst_164 = arith.constant dense<0.000000e+00> : vector<2x64xf32>
    %1144 = tpu.matmul %1143, %1101, %cst_164 {dimension_numbers = #tpu.dot_dimension_numbers<[1], [0], [0], [1], [0, 0, 1, 1], [], []>} : vector<2x48xf32>, vector<48x64xf32>, vector<2x64xf32> -> vector<2x64xf32>
    %1145 = vector.broadcast %1102 : vector<1x64xf32> to vector<2x64xf32>
    %1146 = arith.addf %1144, %1145 : vector<2x64xf32>
    %1147 = arith.negf %1146 : vector<2x64xf32>
    %1148 = math.exp %1147 : vector<2x64xf32>
    %cst_165 = arith.constant 1.000000e+00 : f32
    %1149 = vector.broadcast %cst_165 : f32 to vector<2x64xf32>
    %1150 = arith.addf %1149, %1148 : vector<2x64xf32>
    %1151 = arith.divf %1149, %1150 : vector<2x64xf32>
    %1152 = math.tanh %1146 : vector<2x64xf32>
    %1153 = vector.extract_strided_slice %1151 {offsets = [0, 16], sizes = [2, 16], strides = [1, 1]} : vector<2x64xf32> to vector<2x16xf32>
    %1154 = arith.mulf %1153, %1139 : vector<2x16xf32>
    %1155 = vector.extract_strided_slice %1151 {offsets = [0, 0], sizes = [2, 16], strides = [1, 1]} : vector<2x64xf32> to vector<2x16xf32>
    %1156 = vector.extract_strided_slice %1152 {offsets = [0, 32], sizes = [2, 16], strides = [1, 1]} : vector<2x64xf32> to vector<2x16xf32>
    %1157 = arith.mulf %1155, %1156 : vector<2x16xf32>
    %1158 = arith.addf %1154, %1157 : vector<2x16xf32>
    %1159 = vector.extract_strided_slice %1151 {offsets = [0, 48], sizes = [2, 16], strides = [1, 1]} : vector<2x64xf32> to vector<2x16xf32>
    %1160 = math.tanh %1158 : vector<2x16xf32>
    %1161 = arith.mulf %1159, %1160 : vector<2x16xf32>
    %1162 = tpu.concatenate %1024, %1161 in 1 : vector<2x32xf32>, vector<2x16xf32> -> vector<2x48xf32>
    %cst_166 = arith.constant dense<0.000000e+00> : vector<2x64xf32>
    %1163 = tpu.matmul %1162, %1101, %cst_166 {dimension_numbers = #tpu.dot_dimension_numbers<[1], [0], [0], [1], [0, 0, 1, 1], [], []>} : vector<2x48xf32>, vector<48x64xf32>, vector<2x64xf32> -> vector<2x64xf32>
    %1164 = vector.broadcast %1102 : vector<1x64xf32> to vector<2x64xf32>
    %1165 = arith.addf %1163, %1164 : vector<2x64xf32>
    %1166 = arith.negf %1165 : vector<2x64xf32>
    %1167 = math.exp %1166 : vector<2x64xf32>
    %cst_167 = arith.constant 1.000000e+00 : f32
    %1168 = vector.broadcast %cst_167 : f32 to vector<2x64xf32>
    %1169 = arith.addf %1168, %1167 : vector<2x64xf32>
    %1170 = arith.divf %1168, %1169 : vector<2x64xf32>
    %1171 = math.tanh %1165 : vector<2x64xf32>
    %1172 = vector.extract_strided_slice %1170 {offsets = [0, 16], sizes = [2, 16], strides = [1, 1]} : vector<2x64xf32> to vector<2x16xf32>
    %1173 = arith.mulf %1172, %1158 : vector<2x16xf32>
    %1174 = vector.extract_strided_slice %1170 {offsets = [0, 0], sizes = [2, 16], strides = [1, 1]} : vector<2x64xf32> to vector<2x16xf32>
    %1175 = vector.extract_strided_slice %1171 {offsets = [0, 32], sizes = [2, 16], strides = [1, 1]} : vector<2x64xf32> to vector<2x16xf32>
    %1176 = arith.mulf %1174, %1175 : vector<2x16xf32>
    %1177 = arith.addf %1173, %1176 : vector<2x16xf32>
    %1178 = vector.extract_strided_slice %1170 {offsets = [0, 48], sizes = [2, 16], strides = [1, 1]} : vector<2x64xf32> to vector<2x16xf32>
    %1179 = math.tanh %1177 : vector<2x16xf32>
    %1180 = arith.mulf %1178, %1179 : vector<2x16xf32>
    %1181 = tpu.concatenate %1043, %1180 in 1 : vector<2x32xf32>, vector<2x16xf32> -> vector<2x48xf32>
    %cst_168 = arith.constant dense<0.000000e+00> : vector<2x64xf32>
    %1182 = tpu.matmul %1181, %1101, %cst_168 {dimension_numbers = #tpu.dot_dimension_numbers<[1], [0], [0], [1], [0, 0, 1, 1], [], []>} : vector<2x48xf32>, vector<48x64xf32>, vector<2x64xf32> -> vector<2x64xf32>
    %1183 = vector.broadcast %1102 : vector<1x64xf32> to vector<2x64xf32>
    %1184 = arith.addf %1182, %1183 : vector<2x64xf32>
    %1185 = arith.negf %1184 : vector<2x64xf32>
    %1186 = math.exp %1185 : vector<2x64xf32>
    %cst_169 = arith.constant 1.000000e+00 : f32
    %1187 = vector.broadcast %cst_169 : f32 to vector<2x64xf32>
    %1188 = arith.addf %1187, %1186 : vector<2x64xf32>
    %1189 = arith.divf %1187, %1188 : vector<2x64xf32>
    %1190 = math.tanh %1184 : vector<2x64xf32>
    %1191 = vector.extract_strided_slice %1189 {offsets = [0, 16], sizes = [2, 16], strides = [1, 1]} : vector<2x64xf32> to vector<2x16xf32>
    %1192 = arith.mulf %1191, %1177 : vector<2x16xf32>
    %1193 = vector.extract_strided_slice %1189 {offsets = [0, 0], sizes = [2, 16], strides = [1, 1]} : vector<2x64xf32> to vector<2x16xf32>
    %1194 = vector.extract_strided_slice %1190 {offsets = [0, 32], sizes = [2, 16], strides = [1, 1]} : vector<2x64xf32> to vector<2x16xf32>
    %1195 = arith.mulf %1193, %1194 : vector<2x16xf32>
    %1196 = arith.addf %1192, %1195 : vector<2x16xf32>
    %1197 = vector.extract_strided_slice %1189 {offsets = [0, 48], sizes = [2, 16], strides = [1, 1]} : vector<2x64xf32> to vector<2x16xf32>
    %1198 = math.tanh %1196 : vector<2x16xf32>
    %1199 = arith.mulf %1197, %1198 : vector<2x16xf32>
    %1200 = tpu.concatenate %1062, %1199 in 1 : vector<2x32xf32>, vector<2x16xf32> -> vector<2x48xf32>
    %cst_170 = arith.constant dense<0.000000e+00> : vector<2x64xf32>
    %1201 = tpu.matmul %1200, %1101, %cst_170 {dimension_numbers = #tpu.dot_dimension_numbers<[1], [0], [0], [1], [0, 0, 1, 1], [], []>} : vector<2x48xf32>, vector<48x64xf32>, vector<2x64xf32> -> vector<2x64xf32>
    %1202 = vector.broadcast %1102 : vector<1x64xf32> to vector<2x64xf32>
    %1203 = arith.addf %1201, %1202 : vector<2x64xf32>
    %1204 = arith.negf %1203 : vector<2x64xf32>
    %1205 = math.exp %1204 : vector<2x64xf32>
    %cst_171 = arith.constant 1.000000e+00 : f32
    %1206 = vector.broadcast %cst_171 : f32 to vector<2x64xf32>
    %1207 = arith.addf %1206, %1205 : vector<2x64xf32>
    %1208 = arith.divf %1206, %1207 : vector<2x64xf32>
    %1209 = math.tanh %1203 : vector<2x64xf32>
    %1210 = vector.extract_strided_slice %1208 {offsets = [0, 16], sizes = [2, 16], strides = [1, 1]} : vector<2x64xf32> to vector<2x16xf32>
    %1211 = arith.mulf %1210, %1196 : vector<2x16xf32>
    %1212 = vector.extract_strided_slice %1208 {offsets = [0, 0], sizes = [2, 16], strides = [1, 1]} : vector<2x64xf32> to vector<2x16xf32>
    %1213 = vector.extract_strided_slice %1209 {offsets = [0, 32], sizes = [2, 16], strides = [1, 1]} : vector<2x64xf32> to vector<2x16xf32>
    %1214 = arith.mulf %1212, %1213 : vector<2x16xf32>
    %1215 = arith.addf %1211, %1214 : vector<2x16xf32>
    %1216 = vector.extract_strided_slice %1208 {offsets = [0, 48], sizes = [2, 16], strides = [1, 1]} : vector<2x64xf32> to vector<2x16xf32>
    %1217 = math.tanh %1215 : vector<2x16xf32>
    %1218 = arith.mulf %1216, %1217 : vector<2x16xf32>
    %1219 = tpu.concatenate %1081, %1218 in 1 : vector<2x32xf32>, vector<2x16xf32> -> vector<2x48xf32>
    %cst_172 = arith.constant dense<0.000000e+00> : vector<2x64xf32>
    %1220 = tpu.matmul %1219, %1101, %cst_172 {dimension_numbers = #tpu.dot_dimension_numbers<[1], [0], [0], [1], [0, 0, 1, 1], [], []>} : vector<2x48xf32>, vector<48x64xf32>, vector<2x64xf32> -> vector<2x64xf32>
    %1221 = vector.broadcast %1102 : vector<1x64xf32> to vector<2x64xf32>
    %1222 = arith.addf %1220, %1221 : vector<2x64xf32>
    %1223 = arith.negf %1222 : vector<2x64xf32>
    %1224 = math.exp %1223 : vector<2x64xf32>
    %cst_173 = arith.constant 1.000000e+00 : f32
    %1225 = vector.broadcast %cst_173 : f32 to vector<2x64xf32>
    %1226 = arith.addf %1225, %1224 : vector<2x64xf32>
    %1227 = arith.divf %1225, %1226 : vector<2x64xf32>
    %1228 = math.tanh %1222 : vector<2x64xf32>
    %1229 = vector.extract_strided_slice %1227 {offsets = [0, 16], sizes = [2, 16], strides = [1, 1]} : vector<2x64xf32> to vector<2x16xf32>
    %1230 = arith.mulf %1229, %1215 : vector<2x16xf32>
    %1231 = vector.extract_strided_slice %1227 {offsets = [0, 0], sizes = [2, 16], strides = [1, 1]} : vector<2x64xf32> to vector<2x16xf32>
    %1232 = vector.extract_strided_slice %1228 {offsets = [0, 32], sizes = [2, 16], strides = [1, 1]} : vector<2x64xf32> to vector<2x16xf32>
    %1233 = arith.mulf %1231, %1232 : vector<2x16xf32>
    %1234 = arith.addf %1230, %1233 : vector<2x16xf32>
    %1235 = vector.extract_strided_slice %1227 {offsets = [0, 48], sizes = [2, 16], strides = [1, 1]} : vector<2x64xf32> to vector<2x16xf32>
    %1236 = math.tanh %1234 : vector<2x16xf32>
    %1237 = arith.mulf %1235, %1236 : vector<2x16xf32>
    %1238 = tpu.concatenate %1100, %1237 in 1 : vector<2x32xf32>, vector<2x16xf32> -> vector<2x48xf32>
    %cst_174 = arith.constant dense<0.000000e+00> : vector<2x64xf32>
    %1239 = tpu.matmul %1238, %1101, %cst_174 {dimension_numbers = #tpu.dot_dimension_numbers<[1], [0], [0], [1], [0, 0, 1, 1], [], []>} : vector<2x48xf32>, vector<48x64xf32>, vector<2x64xf32> -> vector<2x64xf32>
    %1240 = vector.broadcast %1102 : vector<1x64xf32> to vector<2x64xf32>
    %1241 = arith.addf %1239, %1240 : vector<2x64xf32>
    %1242 = arith.negf %1241 : vector<2x64xf32>
    %1243 = math.exp %1242 : vector<2x64xf32>
    %cst_175 = arith.constant 1.000000e+00 : f32
    %1244 = vector.broadcast %cst_175 : f32 to vector<2x64xf32>
    %1245 = arith.addf %1244, %1243 : vector<2x64xf32>
    %1246 = arith.divf %1244, %1245 : vector<2x64xf32>
    %1247 = math.tanh %1241 : vector<2x64xf32>
    %1248 = vector.extract_strided_slice %1246 {offsets = [0, 16], sizes = [2, 16], strides = [1, 1]} : vector<2x64xf32> to vector<2x16xf32>
    %1249 = arith.mulf %1248, %1234 : vector<2x16xf32>
    %1250 = vector.extract_strided_slice %1246 {offsets = [0, 0], sizes = [2, 16], strides = [1, 1]} : vector<2x64xf32> to vector<2x16xf32>
    %1251 = vector.extract_strided_slice %1247 {offsets = [0, 32], sizes = [2, 16], strides = [1, 1]} : vector<2x64xf32> to vector<2x16xf32>
    %1252 = arith.mulf %1250, %1251 : vector<2x16xf32>
    %1253 = arith.addf %1249, %1252 : vector<2x16xf32>
    %1254 = vector.extract_strided_slice %1246 {offsets = [0, 48], sizes = [2, 16], strides = [1, 1]} : vector<2x64xf32> to vector<2x16xf32>
    %1255 = math.tanh %1253 : vector<2x16xf32>
    %1256 = arith.mulf %1254, %1255 : vector<2x16xf32>
    %c0_176 = arith.constant 0 : index
    %c0_177 = arith.constant 0 : index
    %1257 = vector.load %arg9[%c0_176, %c0_177] : memref<48x128xf32, #tpu.memory_space<vmem>>, vector<48x128xf32>
    %c0_178 = arith.constant 0 : index
    %c0_179 = arith.constant 0 : index
    %1258 = vector.load %arg10[%c0_178, %c0_179] : memref<1x128xf32, #tpu.memory_space<vmem>>, vector<1x128xf32>
    %cst_180 = arith.constant 0.000000e+00 : f32
    %1259 = vector.broadcast %cst_180 : f32 to vector<2x32xf32>
    %cst_181 = arith.constant 0.000000e+00 : f32
    %1260 = vector.broadcast %cst_181 : f32 to vector<2x32xf32>
    %1261 = tpu.concatenate %1123, %1259 in 1 : vector<2x16xf32>, vector<2x32xf32> -> vector<2x48xf32>
    %cst_182 = arith.constant dense<0.000000e+00> : vector<2x128xf32>
    %1262 = tpu.matmul %1261, %1257, %cst_182 {dimension_numbers = #tpu.dot_dimension_numbers<[1], [0], [0], [1], [0, 0, 1, 1], [], []>} : vector<2x48xf32>, vector<48x128xf32>, vector<2x128xf32> -> vector<2x128xf32>
    %1263 = vector.broadcast %1258 : vector<1x128xf32> to vector<2x128xf32>
    %1264 = arith.addf %1262, %1263 : vector<2x128xf32>
    %1265 = arith.negf %1264 : vector<2x128xf32>
    %1266 = math.exp %1265 : vector<2x128xf32>
    %cst_183 = arith.constant 1.000000e+00 : f32
    %1267 = vector.broadcast %cst_183 : f32 to vector<2x128xf32>
    %1268 = arith.addf %1267, %1266 : vector<2x128xf32>
    %1269 = arith.divf %1267, %1268 : vector<2x128xf32>
    %1270 = math.tanh %1264 : vector<2x128xf32>
    %1271 = vector.extract_strided_slice %1269 {offsets = [0, 32], sizes = [2, 32], strides = [1, 1]} : vector<2x128xf32> to vector<2x32xf32>
    %1272 = arith.mulf %1271, %1260 : vector<2x32xf32>
    %1273 = vector.extract_strided_slice %1269 {offsets = [0, 0], sizes = [2, 32], strides = [1, 1]} : vector<2x128xf32> to vector<2x32xf32>
    %1274 = vector.extract_strided_slice %1270 {offsets = [0, 64], sizes = [2, 32], strides = [1, 1]} : vector<2x128xf32> to vector<2x32xf32>
    %1275 = arith.mulf %1273, %1274 : vector<2x32xf32>
    %1276 = arith.addf %1272, %1275 : vector<2x32xf32>
    %1277 = vector.extract_strided_slice %1269 {offsets = [0, 96], sizes = [2, 32], strides = [1, 1]} : vector<2x128xf32> to vector<2x32xf32>
    %1278 = math.tanh %1276 : vector<2x32xf32>
    %1279 = arith.mulf %1277, %1278 : vector<2x32xf32>
    %1280 = tpu.concatenate %1142, %1279 in 1 : vector<2x16xf32>, vector<2x32xf32> -> vector<2x48xf32>
    %cst_184 = arith.constant dense<0.000000e+00> : vector<2x128xf32>
    %1281 = tpu.matmul %1280, %1257, %cst_184 {dimension_numbers = #tpu.dot_dimension_numbers<[1], [0], [0], [1], [0, 0, 1, 1], [], []>} : vector<2x48xf32>, vector<48x128xf32>, vector<2x128xf32> -> vector<2x128xf32>
    %1282 = vector.broadcast %1258 : vector<1x128xf32> to vector<2x128xf32>
    %1283 = arith.addf %1281, %1282 : vector<2x128xf32>
    %1284 = arith.negf %1283 : vector<2x128xf32>
    %1285 = math.exp %1284 : vector<2x128xf32>
    %cst_185 = arith.constant 1.000000e+00 : f32
    %1286 = vector.broadcast %cst_185 : f32 to vector<2x128xf32>
    %1287 = arith.addf %1286, %1285 : vector<2x128xf32>
    %1288 = arith.divf %1286, %1287 : vector<2x128xf32>
    %1289 = math.tanh %1283 : vector<2x128xf32>
    %1290 = vector.extract_strided_slice %1288 {offsets = [0, 32], sizes = [2, 32], strides = [1, 1]} : vector<2x128xf32> to vector<2x32xf32>
    %1291 = arith.mulf %1290, %1276 : vector<2x32xf32>
    %1292 = vector.extract_strided_slice %1288 {offsets = [0, 0], sizes = [2, 32], strides = [1, 1]} : vector<2x128xf32> to vector<2x32xf32>
    %1293 = vector.extract_strided_slice %1289 {offsets = [0, 64], sizes = [2, 32], strides = [1, 1]} : vector<2x128xf32> to vector<2x32xf32>
    %1294 = arith.mulf %1292, %1293 : vector<2x32xf32>
    %1295 = arith.addf %1291, %1294 : vector<2x32xf32>
    %1296 = vector.extract_strided_slice %1288 {offsets = [0, 96], sizes = [2, 32], strides = [1, 1]} : vector<2x128xf32> to vector<2x32xf32>
    %1297 = math.tanh %1295 : vector<2x32xf32>
    %1298 = arith.mulf %1296, %1297 : vector<2x32xf32>
    %1299 = tpu.concatenate %1161, %1298 in 1 : vector<2x16xf32>, vector<2x32xf32> -> vector<2x48xf32>
    %cst_186 = arith.constant dense<0.000000e+00> : vector<2x128xf32>
    %1300 = tpu.matmul %1299, %1257, %cst_186 {dimension_numbers = #tpu.dot_dimension_numbers<[1], [0], [0], [1], [0, 0, 1, 1], [], []>} : vector<2x48xf32>, vector<48x128xf32>, vector<2x128xf32> -> vector<2x128xf32>
    %1301 = vector.broadcast %1258 : vector<1x128xf32> to vector<2x128xf32>
    %1302 = arith.addf %1300, %1301 : vector<2x128xf32>
    %1303 = arith.negf %1302 : vector<2x128xf32>
    %1304 = math.exp %1303 : vector<2x128xf32>
    %cst_187 = arith.constant 1.000000e+00 : f32
    %1305 = vector.broadcast %cst_187 : f32 to vector<2x128xf32>
    %1306 = arith.addf %1305, %1304 : vector<2x128xf32>
    %1307 = arith.divf %1305, %1306 : vector<2x128xf32>
    %1308 = math.tanh %1302 : vector<2x128xf32>
    %1309 = vector.extract_strided_slice %1307 {offsets = [0, 32], sizes = [2, 32], strides = [1, 1]} : vector<2x128xf32> to vector<2x32xf32>
    %1310 = arith.mulf %1309, %1295 : vector<2x32xf32>
    %1311 = vector.extract_strided_slice %1307 {offsets = [0, 0], sizes = [2, 32], strides = [1, 1]} : vector<2x128xf32> to vector<2x32xf32>
    %1312 = vector.extract_strided_slice %1308 {offsets = [0, 64], sizes = [2, 32], strides = [1, 1]} : vector<2x128xf32> to vector<2x32xf32>
    %1313 = arith.mulf %1311, %1312 : vector<2x32xf32>
    %1314 = arith.addf %1310, %1313 : vector<2x32xf32>
    %1315 = vector.extract_strided_slice %1307 {offsets = [0, 96], sizes = [2, 32], strides = [1, 1]} : vector<2x128xf32> to vector<2x32xf32>
    %1316 = math.tanh %1314 : vector<2x32xf32>
    %1317 = arith.mulf %1315, %1316 : vector<2x32xf32>
    %1318 = tpu.concatenate %1180, %1317 in 1 : vector<2x16xf32>, vector<2x32xf32> -> vector<2x48xf32>
    %cst_188 = arith.constant dense<0.000000e+00> : vector<2x128xf32>
    %1319 = tpu.matmul %1318, %1257, %cst_188 {dimension_numbers = #tpu.dot_dimension_numbers<[1], [0], [0], [1], [0, 0, 1, 1], [], []>} : vector<2x48xf32>, vector<48x128xf32>, vector<2x128xf32> -> vector<2x128xf32>
    %1320 = vector.broadcast %1258 : vector<1x128xf32> to vector<2x128xf32>
    %1321 = arith.addf %1319, %1320 : vector<2x128xf32>
    %1322 = arith.negf %1321 : vector<2x128xf32>
    %1323 = math.exp %1322 : vector<2x128xf32>
    %cst_189 = arith.constant 1.000000e+00 : f32
    %1324 = vector.broadcast %cst_189 : f32 to vector<2x128xf32>
    %1325 = arith.addf %1324, %1323 : vector<2x128xf32>
    %1326 = arith.divf %1324, %1325 : vector<2x128xf32>
    %1327 = math.tanh %1321 : vector<2x128xf32>
    %1328 = vector.extract_strided_slice %1326 {offsets = [0, 32], sizes = [2, 32], strides = [1, 1]} : vector<2x128xf32> to vector<2x32xf32>
    %1329 = arith.mulf %1328, %1314 : vector<2x32xf32>
    %1330 = vector.extract_strided_slice %1326 {offsets = [0, 0], sizes = [2, 32], strides = [1, 1]} : vector<2x128xf32> to vector<2x32xf32>
    %1331 = vector.extract_strided_slice %1327 {offsets = [0, 64], sizes = [2, 32], strides = [1, 1]} : vector<2x128xf32> to vector<2x32xf32>
    %1332 = arith.mulf %1330, %1331 : vector<2x32xf32>
    %1333 = arith.addf %1329, %1332 : vector<2x32xf32>
    %1334 = vector.extract_strided_slice %1326 {offsets = [0, 96], sizes = [2, 32], strides = [1, 1]} : vector<2x128xf32> to vector<2x32xf32>
    %1335 = math.tanh %1333 : vector<2x32xf32>
    %1336 = arith.mulf %1334, %1335 : vector<2x32xf32>
    %1337 = tpu.concatenate %1199, %1336 in 1 : vector<2x16xf32>, vector<2x32xf32> -> vector<2x48xf32>
    %cst_190 = arith.constant dense<0.000000e+00> : vector<2x128xf32>
    %1338 = tpu.matmul %1337, %1257, %cst_190 {dimension_numbers = #tpu.dot_dimension_numbers<[1], [0], [0], [1], [0, 0, 1, 1], [], []>} : vector<2x48xf32>, vector<48x128xf32>, vector<2x128xf32> -> vector<2x128xf32>
    %1339 = vector.broadcast %1258 : vector<1x128xf32> to vector<2x128xf32>
    %1340 = arith.addf %1338, %1339 : vector<2x128xf32>
    %1341 = arith.negf %1340 : vector<2x128xf32>
    %1342 = math.exp %1341 : vector<2x128xf32>
    %cst_191 = arith.constant 1.000000e+00 : f32
    %1343 = vector.broadcast %cst_191 : f32 to vector<2x128xf32>
    %1344 = arith.addf %1343, %1342 : vector<2x128xf32>
    %1345 = arith.divf %1343, %1344 : vector<2x128xf32>
    %1346 = math.tanh %1340 : vector<2x128xf32>
    %1347 = vector.extract_strided_slice %1345 {offsets = [0, 32], sizes = [2, 32], strides = [1, 1]} : vector<2x128xf32> to vector<2x32xf32>
    %1348 = arith.mulf %1347, %1333 : vector<2x32xf32>
    %1349 = vector.extract_strided_slice %1345 {offsets = [0, 0], sizes = [2, 32], strides = [1, 1]} : vector<2x128xf32> to vector<2x32xf32>
    %1350 = vector.extract_strided_slice %1346 {offsets = [0, 64], sizes = [2, 32], strides = [1, 1]} : vector<2x128xf32> to vector<2x32xf32>
    %1351 = arith.mulf %1349, %1350 : vector<2x32xf32>
    %1352 = arith.addf %1348, %1351 : vector<2x32xf32>
    %1353 = vector.extract_strided_slice %1345 {offsets = [0, 96], sizes = [2, 32], strides = [1, 1]} : vector<2x128xf32> to vector<2x32xf32>
    %1354 = math.tanh %1352 : vector<2x32xf32>
    %1355 = arith.mulf %1353, %1354 : vector<2x32xf32>
    %1356 = tpu.concatenate %1218, %1355 in 1 : vector<2x16xf32>, vector<2x32xf32> -> vector<2x48xf32>
    %cst_192 = arith.constant dense<0.000000e+00> : vector<2x128xf32>
    %1357 = tpu.matmul %1356, %1257, %cst_192 {dimension_numbers = #tpu.dot_dimension_numbers<[1], [0], [0], [1], [0, 0, 1, 1], [], []>} : vector<2x48xf32>, vector<48x128xf32>, vector<2x128xf32> -> vector<2x128xf32>
    %1358 = vector.broadcast %1258 : vector<1x128xf32> to vector<2x128xf32>
    %1359 = arith.addf %1357, %1358 : vector<2x128xf32>
    %1360 = arith.negf %1359 : vector<2x128xf32>
    %1361 = math.exp %1360 : vector<2x128xf32>
    %cst_193 = arith.constant 1.000000e+00 : f32
    %1362 = vector.broadcast %cst_193 : f32 to vector<2x128xf32>
    %1363 = arith.addf %1362, %1361 : vector<2x128xf32>
    %1364 = arith.divf %1362, %1363 : vector<2x128xf32>
    %1365 = math.tanh %1359 : vector<2x128xf32>
    %1366 = vector.extract_strided_slice %1364 {offsets = [0, 32], sizes = [2, 32], strides = [1, 1]} : vector<2x128xf32> to vector<2x32xf32>
    %1367 = arith.mulf %1366, %1352 : vector<2x32xf32>
    %1368 = vector.extract_strided_slice %1364 {offsets = [0, 0], sizes = [2, 32], strides = [1, 1]} : vector<2x128xf32> to vector<2x32xf32>
    %1369 = vector.extract_strided_slice %1365 {offsets = [0, 64], sizes = [2, 32], strides = [1, 1]} : vector<2x128xf32> to vector<2x32xf32>
    %1370 = arith.mulf %1368, %1369 : vector<2x32xf32>
    %1371 = arith.addf %1367, %1370 : vector<2x32xf32>
    %1372 = vector.extract_strided_slice %1364 {offsets = [0, 96], sizes = [2, 32], strides = [1, 1]} : vector<2x128xf32> to vector<2x32xf32>
    %1373 = math.tanh %1371 : vector<2x32xf32>
    %1374 = arith.mulf %1372, %1373 : vector<2x32xf32>
    %1375 = tpu.concatenate %1237, %1374 in 1 : vector<2x16xf32>, vector<2x32xf32> -> vector<2x48xf32>
    %cst_194 = arith.constant dense<0.000000e+00> : vector<2x128xf32>
    %1376 = tpu.matmul %1375, %1257, %cst_194 {dimension_numbers = #tpu.dot_dimension_numbers<[1], [0], [0], [1], [0, 0, 1, 1], [], []>} : vector<2x48xf32>, vector<48x128xf32>, vector<2x128xf32> -> vector<2x128xf32>
    %1377 = vector.broadcast %1258 : vector<1x128xf32> to vector<2x128xf32>
    %1378 = arith.addf %1376, %1377 : vector<2x128xf32>
    %1379 = arith.negf %1378 : vector<2x128xf32>
    %1380 = math.exp %1379 : vector<2x128xf32>
    %cst_195 = arith.constant 1.000000e+00 : f32
    %1381 = vector.broadcast %cst_195 : f32 to vector<2x128xf32>
    %1382 = arith.addf %1381, %1380 : vector<2x128xf32>
    %1383 = arith.divf %1381, %1382 : vector<2x128xf32>
    %1384 = math.tanh %1378 : vector<2x128xf32>
    %1385 = vector.extract_strided_slice %1383 {offsets = [0, 32], sizes = [2, 32], strides = [1, 1]} : vector<2x128xf32> to vector<2x32xf32>
    %1386 = arith.mulf %1385, %1371 : vector<2x32xf32>
    %1387 = vector.extract_strided_slice %1383 {offsets = [0, 0], sizes = [2, 32], strides = [1, 1]} : vector<2x128xf32> to vector<2x32xf32>
    %1388 = vector.extract_strided_slice %1384 {offsets = [0, 64], sizes = [2, 32], strides = [1, 1]} : vector<2x128xf32> to vector<2x32xf32>
    %1389 = arith.mulf %1387, %1388 : vector<2x32xf32>
    %1390 = arith.addf %1386, %1389 : vector<2x32xf32>
    %1391 = vector.extract_strided_slice %1383 {offsets = [0, 96], sizes = [2, 32], strides = [1, 1]} : vector<2x128xf32> to vector<2x32xf32>
    %1392 = math.tanh %1390 : vector<2x32xf32>
    %1393 = arith.mulf %1391, %1392 : vector<2x32xf32>
    %1394 = tpu.concatenate %1256, %1393 in 1 : vector<2x16xf32>, vector<2x32xf32> -> vector<2x48xf32>
    %cst_196 = arith.constant dense<0.000000e+00> : vector<2x128xf32>
    %1395 = tpu.matmul %1394, %1257, %cst_196 {dimension_numbers = #tpu.dot_dimension_numbers<[1], [0], [0], [1], [0, 0, 1, 1], [], []>} : vector<2x48xf32>, vector<48x128xf32>, vector<2x128xf32> -> vector<2x128xf32>
    %1396 = vector.broadcast %1258 : vector<1x128xf32> to vector<2x128xf32>
    %1397 = arith.addf %1395, %1396 : vector<2x128xf32>
    %1398 = arith.negf %1397 : vector<2x128xf32>
    %1399 = math.exp %1398 : vector<2x128xf32>
    %cst_197 = arith.constant 1.000000e+00 : f32
    %1400 = vector.broadcast %cst_197 : f32 to vector<2x128xf32>
    %1401 = arith.addf %1400, %1399 : vector<2x128xf32>
    %1402 = arith.divf %1400, %1401 : vector<2x128xf32>
    %1403 = math.tanh %1397 : vector<2x128xf32>
    %1404 = vector.extract_strided_slice %1402 {offsets = [0, 32], sizes = [2, 32], strides = [1, 1]} : vector<2x128xf32> to vector<2x32xf32>
    %1405 = arith.mulf %1404, %1390 : vector<2x32xf32>
    %1406 = vector.extract_strided_slice %1402 {offsets = [0, 0], sizes = [2, 32], strides = [1, 1]} : vector<2x128xf32> to vector<2x32xf32>
    %1407 = vector.extract_strided_slice %1403 {offsets = [0, 64], sizes = [2, 32], strides = [1, 1]} : vector<2x128xf32> to vector<2x32xf32>
    %1408 = arith.mulf %1406, %1407 : vector<2x32xf32>
    %1409 = arith.addf %1405, %1408 : vector<2x32xf32>
    %1410 = vector.extract_strided_slice %1402 {offsets = [0, 96], sizes = [2, 32], strides = [1, 1]} : vector<2x128xf32> to vector<2x32xf32>
    %1411 = math.tanh %1409 : vector<2x32xf32>
    %1412 = arith.mulf %1410, %1411 : vector<2x32xf32>
    %c0_198 = arith.constant 0 : index
    %c0_199 = arith.constant 0 : index
    %1413 = vector.load %arg11[%c0_198, %c0_199] : memref<48x64xf32, #tpu.memory_space<vmem>>, vector<48x64xf32>
    %c0_200 = arith.constant 0 : index
    %c0_201 = arith.constant 0 : index
    %1414 = vector.load %arg12[%c0_200, %c0_201] : memref<1x64xf32, #tpu.memory_space<vmem>>, vector<1x64xf32>
    %cst_202 = arith.constant 0.000000e+00 : f32
    %1415 = vector.broadcast %cst_202 : f32 to vector<2x16xf32>
    %cst_203 = arith.constant 0.000000e+00 : f32
    %1416 = vector.broadcast %cst_203 : f32 to vector<2x16xf32>
    %1417 = tpu.concatenate %1279, %1415 in 1 : vector<2x32xf32>, vector<2x16xf32> -> vector<2x48xf32>
    %cst_204 = arith.constant dense<0.000000e+00> : vector<2x64xf32>
    %1418 = tpu.matmul %1417, %1413, %cst_204 {dimension_numbers = #tpu.dot_dimension_numbers<[1], [0], [0], [1], [0, 0, 1, 1], [], []>} : vector<2x48xf32>, vector<48x64xf32>, vector<2x64xf32> -> vector<2x64xf32>
    %1419 = vector.broadcast %1414 : vector<1x64xf32> to vector<2x64xf32>
    %1420 = arith.addf %1418, %1419 : vector<2x64xf32>
    %1421 = arith.negf %1420 : vector<2x64xf32>
    %1422 = math.exp %1421 : vector<2x64xf32>
    %cst_205 = arith.constant 1.000000e+00 : f32
    %1423 = vector.broadcast %cst_205 : f32 to vector<2x64xf32>
    %1424 = arith.addf %1423, %1422 : vector<2x64xf32>
    %1425 = arith.divf %1423, %1424 : vector<2x64xf32>
    %1426 = math.tanh %1420 : vector<2x64xf32>
    %1427 = vector.extract_strided_slice %1425 {offsets = [0, 16], sizes = [2, 16], strides = [1, 1]} : vector<2x64xf32> to vector<2x16xf32>
    %1428 = arith.mulf %1427, %1416 : vector<2x16xf32>
    %1429 = vector.extract_strided_slice %1425 {offsets = [0, 0], sizes = [2, 16], strides = [1, 1]} : vector<2x64xf32> to vector<2x16xf32>
    %1430 = vector.extract_strided_slice %1426 {offsets = [0, 32], sizes = [2, 16], strides = [1, 1]} : vector<2x64xf32> to vector<2x16xf32>
    %1431 = arith.mulf %1429, %1430 : vector<2x16xf32>
    %1432 = arith.addf %1428, %1431 : vector<2x16xf32>
    %1433 = vector.extract_strided_slice %1425 {offsets = [0, 48], sizes = [2, 16], strides = [1, 1]} : vector<2x64xf32> to vector<2x16xf32>
    %1434 = math.tanh %1432 : vector<2x16xf32>
    %1435 = arith.mulf %1433, %1434 : vector<2x16xf32>
    %1436 = tpu.concatenate %1298, %1435 in 1 : vector<2x32xf32>, vector<2x16xf32> -> vector<2x48xf32>
    %cst_206 = arith.constant dense<0.000000e+00> : vector<2x64xf32>
    %1437 = tpu.matmul %1436, %1413, %cst_206 {dimension_numbers = #tpu.dot_dimension_numbers<[1], [0], [0], [1], [0, 0, 1, 1], [], []>} : vector<2x48xf32>, vector<48x64xf32>, vector<2x64xf32> -> vector<2x64xf32>
    %1438 = vector.broadcast %1414 : vector<1x64xf32> to vector<2x64xf32>
    %1439 = arith.addf %1437, %1438 : vector<2x64xf32>
    %1440 = arith.negf %1439 : vector<2x64xf32>
    %1441 = math.exp %1440 : vector<2x64xf32>
    %cst_207 = arith.constant 1.000000e+00 : f32
    %1442 = vector.broadcast %cst_207 : f32 to vector<2x64xf32>
    %1443 = arith.addf %1442, %1441 : vector<2x64xf32>
    %1444 = arith.divf %1442, %1443 : vector<2x64xf32>
    %1445 = math.tanh %1439 : vector<2x64xf32>
    %1446 = vector.extract_strided_slice %1444 {offsets = [0, 16], sizes = [2, 16], strides = [1, 1]} : vector<2x64xf32> to vector<2x16xf32>
    %1447 = arith.mulf %1446, %1432 : vector<2x16xf32>
    %1448 = vector.extract_strided_slice %1444 {offsets = [0, 0], sizes = [2, 16], strides = [1, 1]} : vector<2x64xf32> to vector<2x16xf32>
    %1449 = vector.extract_strided_slice %1445 {offsets = [0, 32], sizes = [2, 16], strides = [1, 1]} : vector<2x64xf32> to vector<2x16xf32>
    %1450 = arith.mulf %1448, %1449 : vector<2x16xf32>
    %1451 = arith.addf %1447, %1450 : vector<2x16xf32>
    %1452 = vector.extract_strided_slice %1444 {offsets = [0, 48], sizes = [2, 16], strides = [1, 1]} : vector<2x64xf32> to vector<2x16xf32>
    %1453 = math.tanh %1451 : vector<2x16xf32>
    %1454 = arith.mulf %1452, %1453 : vector<2x16xf32>
    %1455 = tpu.concatenate %1317, %1454 in 1 : vector<2x32xf32>, vector<2x16xf32> -> vector<2x48xf32>
    %cst_208 = arith.constant dense<0.000000e+00> : vector<2x64xf32>
    %1456 = tpu.matmul %1455, %1413, %cst_208 {dimension_numbers = #tpu.dot_dimension_numbers<[1], [0], [0], [1], [0, 0, 1, 1], [], []>} : vector<2x48xf32>, vector<48x64xf32>, vector<2x64xf32> -> vector<2x64xf32>
    %1457 = vector.broadcast %1414 : vector<1x64xf32> to vector<2x64xf32>
    %1458 = arith.addf %1456, %1457 : vector<2x64xf32>
    %1459 = arith.negf %1458 : vector<2x64xf32>
    %1460 = math.exp %1459 : vector<2x64xf32>
    %cst_209 = arith.constant 1.000000e+00 : f32
    %1461 = vector.broadcast %cst_209 : f32 to vector<2x64xf32>
    %1462 = arith.addf %1461, %1460 : vector<2x64xf32>
    %1463 = arith.divf %1461, %1462 : vector<2x64xf32>
    %1464 = math.tanh %1458 : vector<2x64xf32>
    %1465 = vector.extract_strided_slice %1463 {offsets = [0, 16], sizes = [2, 16], strides = [1, 1]} : vector<2x64xf32> to vector<2x16xf32>
    %1466 = arith.mulf %1465, %1451 : vector<2x16xf32>
    %1467 = vector.extract_strided_slice %1463 {offsets = [0, 0], sizes = [2, 16], strides = [1, 1]} : vector<2x64xf32> to vector<2x16xf32>
    %1468 = vector.extract_strided_slice %1464 {offsets = [0, 32], sizes = [2, 16], strides = [1, 1]} : vector<2x64xf32> to vector<2x16xf32>
    %1469 = arith.mulf %1467, %1468 : vector<2x16xf32>
    %1470 = arith.addf %1466, %1469 : vector<2x16xf32>
    %1471 = vector.extract_strided_slice %1463 {offsets = [0, 48], sizes = [2, 16], strides = [1, 1]} : vector<2x64xf32> to vector<2x16xf32>
    %1472 = math.tanh %1470 : vector<2x16xf32>
    %1473 = arith.mulf %1471, %1472 : vector<2x16xf32>
    %1474 = tpu.concatenate %1336, %1473 in 1 : vector<2x32xf32>, vector<2x16xf32> -> vector<2x48xf32>
    %cst_210 = arith.constant dense<0.000000e+00> : vector<2x64xf32>
    %1475 = tpu.matmul %1474, %1413, %cst_210 {dimension_numbers = #tpu.dot_dimension_numbers<[1], [0], [0], [1], [0, 0, 1, 1], [], []>} : vector<2x48xf32>, vector<48x64xf32>, vector<2x64xf32> -> vector<2x64xf32>
    %1476 = vector.broadcast %1414 : vector<1x64xf32> to vector<2x64xf32>
    %1477 = arith.addf %1475, %1476 : vector<2x64xf32>
    %1478 = arith.negf %1477 : vector<2x64xf32>
    %1479 = math.exp %1478 : vector<2x64xf32>
    %cst_211 = arith.constant 1.000000e+00 : f32
    %1480 = vector.broadcast %cst_211 : f32 to vector<2x64xf32>
    %1481 = arith.addf %1480, %1479 : vector<2x64xf32>
    %1482 = arith.divf %1480, %1481 : vector<2x64xf32>
    %1483 = math.tanh %1477 : vector<2x64xf32>
    %1484 = vector.extract_strided_slice %1482 {offsets = [0, 16], sizes = [2, 16], strides = [1, 1]} : vector<2x64xf32> to vector<2x16xf32>
    %1485 = arith.mulf %1484, %1470 : vector<2x16xf32>
    %1486 = vector.extract_strided_slice %1482 {offsets = [0, 0], sizes = [2, 16], strides = [1, 1]} : vector<2x64xf32> to vector<2x16xf32>
    %1487 = vector.extract_strided_slice %1483 {offsets = [0, 32], sizes = [2, 16], strides = [1, 1]} : vector<2x64xf32> to vector<2x16xf32>
    %1488 = arith.mulf %1486, %1487 : vector<2x16xf32>
    %1489 = arith.addf %1485, %1488 : vector<2x16xf32>
    %1490 = vector.extract_strided_slice %1482 {offsets = [0, 48], sizes = [2, 16], strides = [1, 1]} : vector<2x64xf32> to vector<2x16xf32>
    %1491 = math.tanh %1489 : vector<2x16xf32>
    %1492 = arith.mulf %1490, %1491 : vector<2x16xf32>
    %1493 = tpu.concatenate %1355, %1492 in 1 : vector<2x32xf32>, vector<2x16xf32> -> vector<2x48xf32>
    %cst_212 = arith.constant dense<0.000000e+00> : vector<2x64xf32>
    %1494 = tpu.matmul %1493, %1413, %cst_212 {dimension_numbers = #tpu.dot_dimension_numbers<[1], [0], [0], [1], [0, 0, 1, 1], [], []>} : vector<2x48xf32>, vector<48x64xf32>, vector<2x64xf32> -> vector<2x64xf32>
    %1495 = vector.broadcast %1414 : vector<1x64xf32> to vector<2x64xf32>
    %1496 = arith.addf %1494, %1495 : vector<2x64xf32>
    %1497 = arith.negf %1496 : vector<2x64xf32>
    %1498 = math.exp %1497 : vector<2x64xf32>
    %cst_213 = arith.constant 1.000000e+00 : f32
    %1499 = vector.broadcast %cst_213 : f32 to vector<2x64xf32>
    %1500 = arith.addf %1499, %1498 : vector<2x64xf32>
    %1501 = arith.divf %1499, %1500 : vector<2x64xf32>
    %1502 = math.tanh %1496 : vector<2x64xf32>
    %1503 = vector.extract_strided_slice %1501 {offsets = [0, 16], sizes = [2, 16], strides = [1, 1]} : vector<2x64xf32> to vector<2x16xf32>
    %1504 = arith.mulf %1503, %1489 : vector<2x16xf32>
    %1505 = vector.extract_strided_slice %1501 {offsets = [0, 0], sizes = [2, 16], strides = [1, 1]} : vector<2x64xf32> to vector<2x16xf32>
    %1506 = vector.extract_strided_slice %1502 {offsets = [0, 32], sizes = [2, 16], strides = [1, 1]} : vector<2x64xf32> to vector<2x16xf32>
    %1507 = arith.mulf %1505, %1506 : vector<2x16xf32>
    %1508 = arith.addf %1504, %1507 : vector<2x16xf32>
    %1509 = vector.extract_strided_slice %1501 {offsets = [0, 48], sizes = [2, 16], strides = [1, 1]} : vector<2x64xf32> to vector<2x16xf32>
    %1510 = math.tanh %1508 : vector<2x16xf32>
    %1511 = arith.mulf %1509, %1510 : vector<2x16xf32>
    %1512 = tpu.concatenate %1374, %1511 in 1 : vector<2x32xf32>, vector<2x16xf32> -> vector<2x48xf32>
    %cst_214 = arith.constant dense<0.000000e+00> : vector<2x64xf32>
    %1513 = tpu.matmul %1512, %1413, %cst_214 {dimension_numbers = #tpu.dot_dimension_numbers<[1], [0], [0], [1], [0, 0, 1, 1], [], []>} : vector<2x48xf32>, vector<48x64xf32>, vector<2x64xf32> -> vector<2x64xf32>
    %1514 = vector.broadcast %1414 : vector<1x64xf32> to vector<2x64xf32>
    %1515 = arith.addf %1513, %1514 : vector<2x64xf32>
    %1516 = arith.negf %1515 : vector<2x64xf32>
    %1517 = math.exp %1516 : vector<2x64xf32>
    %cst_215 = arith.constant 1.000000e+00 : f32
    %1518 = vector.broadcast %cst_215 : f32 to vector<2x64xf32>
    %1519 = arith.addf %1518, %1517 : vector<2x64xf32>
    %1520 = arith.divf %1518, %1519 : vector<2x64xf32>
    %1521 = math.tanh %1515 : vector<2x64xf32>
    %1522 = vector.extract_strided_slice %1520 {offsets = [0, 16], sizes = [2, 16], strides = [1, 1]} : vector<2x64xf32> to vector<2x16xf32>
    %1523 = arith.mulf %1522, %1508 : vector<2x16xf32>
    %1524 = vector.extract_strided_slice %1520 {offsets = [0, 0], sizes = [2, 16], strides = [1, 1]} : vector<2x64xf32> to vector<2x16xf32>
    %1525 = vector.extract_strided_slice %1521 {offsets = [0, 32], sizes = [2, 16], strides = [1, 1]} : vector<2x64xf32> to vector<2x16xf32>
    %1526 = arith.mulf %1524, %1525 : vector<2x16xf32>
    %1527 = arith.addf %1523, %1526 : vector<2x16xf32>
    %1528 = vector.extract_strided_slice %1520 {offsets = [0, 48], sizes = [2, 16], strides = [1, 1]} : vector<2x64xf32> to vector<2x16xf32>
    %1529 = math.tanh %1527 : vector<2x16xf32>
    %1530 = arith.mulf %1528, %1529 : vector<2x16xf32>
    %1531 = tpu.concatenate %1393, %1530 in 1 : vector<2x32xf32>, vector<2x16xf32> -> vector<2x48xf32>
    %cst_216 = arith.constant dense<0.000000e+00> : vector<2x64xf32>
    %1532 = tpu.matmul %1531, %1413, %cst_216 {dimension_numbers = #tpu.dot_dimension_numbers<[1], [0], [0], [1], [0, 0, 1, 1], [], []>} : vector<2x48xf32>, vector<48x64xf32>, vector<2x64xf32> -> vector<2x64xf32>
    %1533 = vector.broadcast %1414 : vector<1x64xf32> to vector<2x64xf32>
    %1534 = arith.addf %1532, %1533 : vector<2x64xf32>
    %1535 = arith.negf %1534 : vector<2x64xf32>
    %1536 = math.exp %1535 : vector<2x64xf32>
    %cst_217 = arith.constant 1.000000e+00 : f32
    %1537 = vector.broadcast %cst_217 : f32 to vector<2x64xf32>
    %1538 = arith.addf %1537, %1536 : vector<2x64xf32>
    %1539 = arith.divf %1537, %1538 : vector<2x64xf32>
    %1540 = math.tanh %1534 : vector<2x64xf32>
    %1541 = vector.extract_strided_slice %1539 {offsets = [0, 16], sizes = [2, 16], strides = [1, 1]} : vector<2x64xf32> to vector<2x16xf32>
    %1542 = arith.mulf %1541, %1527 : vector<2x16xf32>
    %1543 = vector.extract_strided_slice %1539 {offsets = [0, 0], sizes = [2, 16], strides = [1, 1]} : vector<2x64xf32> to vector<2x16xf32>
    %1544 = vector.extract_strided_slice %1540 {offsets = [0, 32], sizes = [2, 16], strides = [1, 1]} : vector<2x64xf32> to vector<2x16xf32>
    %1545 = arith.mulf %1543, %1544 : vector<2x16xf32>
    %1546 = arith.addf %1542, %1545 : vector<2x16xf32>
    %1547 = vector.extract_strided_slice %1539 {offsets = [0, 48], sizes = [2, 16], strides = [1, 1]} : vector<2x64xf32> to vector<2x16xf32>
    %1548 = math.tanh %1546 : vector<2x16xf32>
    %1549 = arith.mulf %1547, %1548 : vector<2x16xf32>
    %1550 = tpu.concatenate %1412, %1549 in 1 : vector<2x32xf32>, vector<2x16xf32> -> vector<2x48xf32>
    %cst_218 = arith.constant dense<0.000000e+00> : vector<2x64xf32>
    %1551 = tpu.matmul %1550, %1413, %cst_218 {dimension_numbers = #tpu.dot_dimension_numbers<[1], [0], [0], [1], [0, 0, 1, 1], [], []>} : vector<2x48xf32>, vector<48x64xf32>, vector<2x64xf32> -> vector<2x64xf32>
    %1552 = vector.broadcast %1414 : vector<1x64xf32> to vector<2x64xf32>
    %1553 = arith.addf %1551, %1552 : vector<2x64xf32>
    %1554 = arith.negf %1553 : vector<2x64xf32>
    %1555 = math.exp %1554 : vector<2x64xf32>
    %cst_219 = arith.constant 1.000000e+00 : f32
    %1556 = vector.broadcast %cst_219 : f32 to vector<2x64xf32>
    %1557 = arith.addf %1556, %1555 : vector<2x64xf32>
    %1558 = arith.divf %1556, %1557 : vector<2x64xf32>
    %1559 = math.tanh %1553 : vector<2x64xf32>
    %1560 = vector.extract_strided_slice %1558 {offsets = [0, 16], sizes = [2, 16], strides = [1, 1]} : vector<2x64xf32> to vector<2x16xf32>
    %1561 = arith.mulf %1560, %1546 : vector<2x16xf32>
    %1562 = vector.extract_strided_slice %1558 {offsets = [0, 0], sizes = [2, 16], strides = [1, 1]} : vector<2x64xf32> to vector<2x16xf32>
    %1563 = vector.extract_strided_slice %1559 {offsets = [0, 32], sizes = [2, 16], strides = [1, 1]} : vector<2x64xf32> to vector<2x16xf32>
    %1564 = arith.mulf %1562, %1563 : vector<2x16xf32>
    %1565 = arith.addf %1561, %1564 : vector<2x16xf32>
    %1566 = vector.extract_strided_slice %1558 {offsets = [0, 48], sizes = [2, 16], strides = [1, 1]} : vector<2x64xf32> to vector<2x16xf32>
    %1567 = math.tanh %1565 : vector<2x16xf32>
    %1568 = arith.mulf %1566, %1567 : vector<2x16xf32>
    %1569 = tpu.concatenate %187, %206, %225, %244, %263, %282, %301, %320 in 1 : vector<2x16xf32>, vector<2x16xf32>, vector<2x16xf32>, vector<2x16xf32>, vector<2x16xf32>, vector<2x16xf32>, vector<2x16xf32>, vector<2x16xf32> -> vector<2x128xf32>
    %c0_220 = arith.constant 0 : index
    %c0_221 = arith.constant 0 : index
    %1570 = vector.load %arg13[%c0_220, %c0_221] : memref<2x128xf32, #tpu.memory_space<vmem>>, vector<2x128xf32>
    tpu.vector_store %arg13[%c0_220, %c0_221], %1569 {strides = array<i32>} : memref<2x128xf32, #tpu.memory_space<vmem>>, vector<2x128xf32>,
    %1571 = tpu.concatenate %811, %830, %849, %868, %887, %906, %925, %944 in 1 : vector<2x16xf32>, vector<2x16xf32>, vector<2x16xf32>, vector<2x16xf32>, vector<2x16xf32>, vector<2x16xf32>, vector<2x16xf32>, vector<2x16xf32> -> vector<2x128xf32>
    %c0_222 = arith.constant 0 : index
    %c0_223 = arith.constant 0 : index
    %1572 = vector.load %arg14[%c0_222, %c0_223] : memref<2x128xf32, #tpu.memory_space<vmem>>, vector<2x128xf32>
    tpu.vector_store %arg14[%c0_222, %c0_223], %1571 {strides = array<i32>} : memref<2x128xf32, #tpu.memory_space<vmem>>, vector<2x128xf32>,
    %1573 = tpu.concatenate %1435, %1454, %1473, %1492, %1511, %1530, %1549, %1568 in 1 : vector<2x16xf32>, vector<2x16xf32>, vector<2x16xf32>, vector<2x16xf32>, vector<2x16xf32>, vector<2x16xf32>, vector<2x16xf32>, vector<2x16xf32> -> vector<2x128xf32>
    %c0_224 = arith.constant 0 : index
    %c0_225 = arith.constant 0 : index
    %1574 = vector.load %arg15[%c0_224, %c0_225] : memref<2x128xf32, #tpu.memory_space<vmem>>, vector<2x128xf32>
    tpu.vector_store %arg15[%c0_224, %c0_225], %1573 {strides = array<i32>} : memref<2x128xf32, #tpu.memory_space<vmem>>, vector<2x128xf32>,
    %1575 = tpu.concatenate %499, %518, %537, %556, %575, %594, %613, %632 in 0 : vector<2x16xf32>, vector<2x16xf32>, vector<2x16xf32>, vector<2x16xf32>, vector<2x16xf32>, vector<2x16xf32>, vector<2x16xf32>, vector<2x16xf32> -> vector<16x16xf32>
    %1576 = tpu.concatenate %811, %830, %849, %868, %887, %906, %925, %944 in 0 : vector<2x16xf32>, vector<2x16xf32>, vector<2x16xf32>, vector<2x16xf32>, vector<2x16xf32>, vector<2x16xf32>, vector<2x16xf32>, vector<2x16xf32> -> vector<16x16xf32>
    %1577 = tpu.concatenate %1435, %1454, %1473, %1492, %1511, %1530, %1549, %1568 in 0 : vector<2x16xf32>, vector<2x16xf32>, vector<2x16xf32>, vector<2x16xf32>, vector<2x16xf32>, vector<2x16xf32>, vector<2x16xf32>, vector<2x16xf32> -> vector<16x16xf32>
    %1578 = arith.subf %0, %1575 : vector<16x16xf32>
    %1579 = arith.mulf %1578, %1578 : vector<16x16xf32>
    %1580 = vector.shape_cast %1579 : vector<16x16xf32> to vector<1x16x16xf32>
    %cst_226 = arith.constant dense<0.000000e+00> : vector<1xf32>
    %1581 = vector.multi_reduction <add>, %1580, %cst_226 [1, 2] : vector<1x16x16xf32> to vector<1xf32>
    %1582 = vector.shape_cast %1581 : vector<1xf32> to vector<1x1x1xf32>
    %1583 = vector.extract %1582[0, 0, 0] : f32 from vector<1x1x1xf32>
    %cst_227 = arith.constant 2.560000e+02 : f32
    %1584 = arith.divf %1583, %cst_227 : f32
    %1585 = vector.broadcast %1584 : f32 to vector<1x1xf32>
    %1586 = arith.subf %0, %1576 : vector<16x16xf32>
    %1587 = arith.mulf %1586, %1586 : vector<16x16xf32>
    %1588 = vector.shape_cast %1587 : vector<16x16xf32> to vector<1x16x16xf32>
    %cst_228 = arith.constant dense<0.000000e+00> : vector<1xf32>
    %1589 = vector.multi_reduction <add>, %1588, %cst_228 [1, 2] : vector<1x16x16xf32> to vector<1xf32>
    %1590 = vector.shape_cast %1589 : vector<1xf32> to vector<1x1x1xf32>
    %1591 = vector.extract %1590[0, 0, 0] : f32 from vector<1x1x1xf32>
    %cst_229 = arith.constant 2.560000e+02 : f32
    %1592 = arith.divf %1591, %cst_229 : f32
    %1593 = vector.broadcast %1592 : f32 to vector<1x1xf32>
    %1594 = arith.subf %0, %1577 : vector<16x16xf32>
    %1595 = arith.mulf %1594, %1594 : vector<16x16xf32>
    %1596 = vector.shape_cast %1595 : vector<16x16xf32> to vector<1x16x16xf32>
    %cst_230 = arith.constant dense<0.000000e+00> : vector<1xf32>
    %1597 = vector.multi_reduction <add>, %1596, %cst_230 [1, 2] : vector<1x16x16xf32> to vector<1xf32>
    %1598 = vector.shape_cast %1597 : vector<1xf32> to vector<1x1x1xf32>
    %1599 = vector.extract %1598[0, 0, 0] : f32 from vector<1x1x1xf32>
    %cst_231 = arith.constant 2.560000e+02 : f32
    %1600 = arith.divf %1599, %cst_231 : f32
    %1601 = vector.broadcast %1600 : f32 to vector<1x1xf32>
    %1602 = tpu.concatenate %1585, %1593, %1601 in 1 : vector<1x1xf32>, vector<1x1xf32>, vector<1x1xf32> -> vector<1x3xf32>
    %c0_232 = arith.constant 0 : index
    %c0_233 = arith.constant 0 : index
    %1603 = vector.load %arg16[%c0_232, %c0_233] : memref<1x3xf32, #tpu.memory_space<vmem>>, vector<1x3xf32>
    tpu.vector_store %arg16[%c0_232, %c0_233], %1602 {strides = array<i32>} : memref<1x3xf32, #tpu.memory_space<vmem>>, vector<1x3xf32>,
    return
  }
}

</mosaic_0001>

<llo_original>
// kernel: usad_forward.1
$region0: #{usad_forward.1}
  #allocation0 [shape = 'u32[]', space=smem, size = 0x4, offset = 0x4, fixed_abs, tag = 'smem constant byte address 0x4 - core index']
  #allocation1 [shape = 'u32[144,128]{1,0:T(1,128)}', space=vmem, size = 0x12000, scoped, tag = 'internal scratch']
  %s0 = inlined_call_operand.vmem [shape: f32[16,16], index: 0, kind: input, shape index: {}]
  %s1 = inlined_call_operand.vmem [shape: f32[48,128], index: 1, kind: input, shape index: {}]
  %s2 = inlined_call_operand.vmem [shape: f32[1,128], index: 2, kind: input, shape index: {}]
  %s3 = inlined_call_operand.hbm [shape: f32[48,64], index: 3, kind: input, shape index: {}]
  %s4 = inlined_call_operand.vmem [shape: f32[1,64], index: 4, kind: input, shape index: {}]
  %s5 = inlined_call_operand.hbm [shape: f32[48,128], index: 5, kind: input, shape index: {}]
  %s6 = inlined_call_operand.vmem [shape: f32[1,128], index: 6, kind: input, shape index: {}]
  %s7 = inlined_call_operand.hbm [shape: f32[48,64], index: 7, kind: input, shape index: {}]
  %s8 = inlined_call_operand.vmem [shape: f32[1,64], index: 8, kind: input, shape index: {}]
  %s9 = inlined_call_operand.hbm [shape: f32[48,128], index: 9, kind: input, shape index: {}]
  %s10 = inlined_call_operand.vmem [shape: f32[1,128], index: 10, kind: input, shape index: {}]
  %s11 = inlined_call_operand.hbm [shape: f32[48,64], index: 11, kind: input, shape index: {}]
  %s12 = inlined_call_operand.vmem [shape: f32[1,64], index: 12, kind: input, shape index: {}]
  %s13 = inlined_call_operand.vmem [shape: f32[2,128], index: 13, kind: output, shape index: {0}]
  %s14 = inlined_call_operand.vmem [shape: f32[2,128], index: 14, kind: output, shape index: {1}]
  %s15 = inlined_call_operand.vmem [shape: f32[2,128], index: 15, kind: output, shape index: {2}]
  %s16 = inlined_call_operand.vmem [shape: f32[1,3], index: 16, kind: output, shape index: {3}]
  %17 = xla_tuple %s13, %s14, %s15, %s16
  %s18 = sld [smem:[#allocation0]]
  $region106: #{usad_forward.1} parent=0
    _
  %s20 = ssub.s32 1, %s18
  %s21 = scalar_select 0, %s20, %s18
  $region1: #{usad_forward.1} parent=0
    #allocation2 [shape = 'u8[24576]{0}', space=vmem, size = 0x6000, scoped, tag = 'input window, operand 3, single buffered']
    #allocation3 [shape = 's32[1]{0}', space=sflag, size = 0x4, scoped, tag = 'scoped memory for usad_forward.1']
    #allocation4 [shape = 'u8[24576]{0}', space=vmem, size = 0x6000, scoped, tag = 'input window, operand 5, single buffered']
    #allocation5 [shape = 's32[1]{0}', space=sflag, size = 0x4, scoped, tag = 'scoped memory for usad_forward.1']
    #allocation6 [shape = 'u8[24576]{0}', space=vmem, size = 0x6000, scoped, tag = 'input window, operand 7, single buffered']
    #allocation7 [shape = 'u8[24576]{0}', space=vmem, size = 0x6000, scoped, tag = 'input window, operand 9, single buffered']
    #allocation8 [shape = 's32[1]{0}', space=sflag, size = 0x4, scoped, tag = 'scoped memory for usad_forward.1']
    #allocation9 [shape = 'u8[24576]{0}', space=vmem, size = 0x6000, scoped, tag = 'input window, operand 11, single buffered']
    %22 = vsyncpa [#allocation3], 0
    %23 = vsyncpa [#allocation5], 0
    %24 = vsyncpa [#allocation8], 0
    // Predicated region
    $region2: #{usad_forward.1} parent=1 // pred_check
      _
    $region3: #{usad_forward.1} parent=1 // pred_check_branch
      %26 = sbr.rel (0) target = $region5
    $region4: #{usad_forward.1} parent=1 // pred_region
      _
    $region5: #{usad_forward.1} parent=1 // pred_fallthru
      _
    // Predicated region
    $region6: #{usad_forward.1} parent=1 // pred_check
      _
    $region7: #{usad_forward.1} parent=1 // pred_check_branch
      %28 = sbr.rel (0) target = $region9
    $region8: #{usad_forward.1} parent=1 // pred_region
      _
    $region9: #{usad_forward.1} parent=1 // pred_fallthru
      _
    // Predicated region
    $region10: #{usad_forward.1} parent=1 // pred_check
      _
    $region11: #{usad_forward.1} parent=1 // pred_check_branch
      %30 = sbr.rel (0) target = $region13
    $region12: #{usad_forward.1} parent=1 // pred_region
      _
    $region13: #{usad_forward.1} parent=1 // pred_fallthru
      _
    // Predicated region
    $region14: #{usad_forward.1} parent=1 // pred_check
      _
    $region15: #{usad_forward.1} parent=1 // pred_check_branch
      %32 = sbr.rel (0) target = $region17
    $region16: #{usad_forward.1} parent=1 // pred_region
      %s34 = ssub.s32 768, 768
      %35 = vsyncadd [#allocation3], %s34
      %s36 = sshll.u32 [#allocation2], 4
      %s37 = int_to_ptr.vmem [resolvable:$true] %s36
      %42 = dma.hbm_to_vmem [thread:$0]  %s3, 768, %s37, [#allocation3], 128, 128, 8
    $region17: #{usad_forward.1} parent=1 // pred_fallthru
      _
    // Predicated region
    $region18: #{usad_forward.1} parent=1 // pred_check
      _
    $region19: #{usad_forward.1} parent=1 // pred_check_branch
      %44 = sbr.rel (0) target = $region21
    $region20: #{usad_forward.1} parent=1 // pred_region
      _
    $region21: #{usad_forward.1} parent=1 // pred_fallthru
      _
    // Predicated region
    $region22: #{usad_forward.1} parent=1 // pred_check
      _
    $region23: #{usad_forward.1} parent=1 // pred_check_branch
      %46 = sbr.rel (0) target = $region25
    $region24: #{usad_forward.1} parent=1 // pred_region
      %s48 = ssub.s32 768, 768
      %49 = vsyncadd [#allocation5], %s48
      %s50 = sshll.u32 [#allocation4], 4
      %s51 = int_to_ptr.vmem [resolvable:$true] %s50
      %56 = dma.hbm_to_vmem [thread:$0]  %s5, 768, %s51, [#allocation5], 128, 128, 8
    $region25: #{usad_forward.1} parent=1 // pred_fallthru
      _
    // Predicated region
    $region26: #{usad_forward.1} parent=1 // pred_check
      _
    $region27: #{usad_forward.1} parent=1 // pred_check_branch
      %58 = sbr.rel (0) target = $region29
    $region28: #{usad_forward.1} parent=1 // pred_region
      _
    $region29: #{usad_forward.1} parent=1 // pred_fallthru
      _
    // Predicated region
    $region30: #{usad_forward.1} parent=1 // pred_check
      _
    $region31: #{usad_forward.1} parent=1 // pred_check_branch
      %60 = sbr.rel (0) target = $region33
    $region32: #{usad_forward.1} parent=1 // pred_region
      %s62 = ssub.s32 768, 768
      %63 = vsyncadd [#allocation5], %s62
      %s64 = sshll.u32 [#allocation6], 4
      %s65 = int_to_ptr.vmem [resolvable:$true] %s64
      %70 = dma.hbm_to_vmem [thread:$0]  %s7, 768, %s65, [#allocation5], 128, 128, 8
    $region33: #{usad_forward.1} parent=1 // pred_fallthru
      _
    // Predicated region
    $region34: #{usad_forward.1} parent=1 // pred_check
      _
    $region35: #{usad_forward.1} parent=1 // pred_check_branch
      %72 = sbr.rel (0) target = $region37
    $region36: #{usad_forward.1} parent=1 // pred_region
      _
    $region37: #{usad_forward.1} parent=1 // pred_fallthru
      _
    // Predicated region
    $region38: #{usad_forward.1} parent=1 // pred_check
      _
    $region39: #{usad_forward.1} parent=1 // pred_check_branch
      %74 = sbr.rel (0) target = $region41
    $region40: #{usad_forward.1} parent=1 // pred_region
      %s76 = ssub.s32 768, 768
      %77 = vsyncadd [#allocation8], %s76
      %s78 = sshll.u32 [#allocation7], 4
      %s79 = int_to_ptr.vmem [resolvable:$true] %s78
      %84 = dma.hbm_to_vmem [thread:$0]  %s9, 768, %s79, [#allocation8], 128, 128, 8
    $region41: #{usad_forward.1} parent=1 // pred_fallthru
      _
    // Predicated region
    $region42: #{usad_forward.1} parent=1 // pred_check
      _
    $region43: #{usad_forward.1} parent=1 // pred_check_branch
      %86 = sbr.rel (0) target = $region45
    $region44: #{usad_forward.1} parent=1 // pred_region
      _
    $region45: #{usad_forward.1} parent=1 // pred_fallthru
      _
    // Predicated region
    $region46: #{usad_forward.1} parent=1 // pred_check
      _
    $region47: #{usad_forward.1} parent=1 // pred_check_branch
      %88 = sbr.rel (0) target = $region49
    $region48: #{usad_forward.1} parent=1 // pred_region
      %s90 = ssub.s32 768, 768
      %91 = vsyncadd [#allocation8], %s90
      %s92 = sshll.u32 [#allocation9], 4
      %s93 = int_to_ptr.vmem [resolvable:$true] %s92
      %98 = dma.hbm_to_vmem [thread:$0]  %s11, 768, %s93, [#allocation8], 128, 128, 8
    $region49: #{usad_forward.1} parent=1 // pred_fallthru
      _
    // Predicated region
    $region50: #{usad_forward.1} parent=1 // pred_check
      _
    $region51: #{usad_forward.1} parent=1 // pred_check_branch
      %100 = sbr.rel (0) target = $region53
    $region52: #{usad_forward.1} parent=1 // pred_region
      _
    $region53: #{usad_forward.1} parent=1 // pred_fallthru
      _
    // Predicated region
    $region54: #{usad_forward.1} parent=1 // pred_check
      _
    $region55: #{usad_forward.1} parent=1 // pred_check_branch
      %102 = sbr.rel (0) target = $region57
    $region56: #{usad_forward.1} parent=1 // pred_region
      %103 = dma.done [#allocation3], 768
    $region57: #{usad_forward.1} parent=1 // pred_fallthru
      _
    // Predicated region
    $region58: #{usad_forward.1} parent=1 // pred_check
      _
    $region59: #{usad_forward.1} parent=1 // pred_check_branch
      %105 = sbr.rel (0) target = $region61
    $region60: #{usad_forward.1} parent=1 // pred_region
      %106 = dma.done [#allocation5], 768
    $region61: #{usad_forward.1} parent=1 // pred_fallthru
      _
    // Predicated region
    $region62: #{usad_forward.1} parent=1 // pred_check
      _
    $region63: #{usad_forward.1} parent=1 // pred_check_branch
      %108 = sbr.rel (0) target = $region65
    $region64: #{usad_forward.1} parent=1 // pred_region
      %109 = dma.done [#allocation5], 768
    $region65: #{usad_forward.1} parent=1 // pred_fallthru
      _
    // Predicated region
    $region66: #{usad_forward.1} parent=1 // pred_check
      _
    $region67: #{usad_forward.1} parent=1 // pred_check_branch
      %111 = sbr.rel (0) target = $region69
    $region68: #{usad_forward.1} parent=1 // pred_region
      %112 = dma.done [#allocation8], 768
    $region69: #{usad_forward.1} parent=1 // pred_fallthru
      _
    // Predicated region
    $region70: #{usad_forward.1} parent=1 // pred_check
      _
    $region71: #{usad_forward.1} parent=1 // pred_check_branch
      %114 = sbr.rel (0) target = $region73
    $region72: #{usad_forward.1} parent=1 // pred_region
      %115 = dma.done [#allocation8], 768
    $region73: #{usad_forward.1} parent=1 // pred_fallthru
      _
    %v116 = vld [vmem:[%s0] sm:$0xff]
    %v117 = vld [vmem:[%s0 + $0x8] sm:$0xff]
    %v118 = vld [vmem:[%s1] sm:$0xff]
    %v119 = vld [vmem:[%s1 + $0x8] sm:$0xff]
    %v120 = vld [vmem:[%s1 + $0x10] sm:$0xff]
    %v121 = vld [vmem:[%s1 + $0x18] sm:$0xff]
    %v122 = vld [vmem:[%s1 + $0x20] sm:$0xff]
    %v123 = vld [vmem:[%s1 + $0x28] sm:$0xff]
    %v124 = vld [vmem:[%s2] sm:$0x1]
    %vm125 = vcmask 130048
    %v126 = vsel %vm125, %v116, 0.0
    %v128 = vlaneseq
    %v129 = vshrl.u32 %v128, 7
    %v130 = vsub.s32 0, %v129
    %v131 = vrot.slane %v124, %v130
    %vm133 = vcmask 392192
    %v135 = vsel %vm133, %v126, 0
    %137 = vmatprep.subr.mxu0 0.0
    %138 = vmatpush1.msra.mxu0 %v118
    %139 = vmatprep.subr.mxu0 0.0
    %140 = vmatpush1.msra.mxu0 %v119
    %141 = vmatprep.subr.mxu0 0.0
    %142 = vmatpush1.msra.mxu0 %v120
    %143 = vmatprep.subr.mxu0 0.0
    %144 = vmatpush1.msra.mxu0 %v121
    %145 = vmatprep.subr.mxu0 0.0
    %146 = vmatpush1.msra.mxu0 %v122
    %147 = vmatprep.subr.mxu0 0.0
    %148 = vmatpush1.msra.mxu0 %v123
    %149 = vmatprep.subr.mxu0 0.0
    %150 = vmatpush1.msra.mxu0 0.0
    %151 = vmatprep.subr.mxu0 0.0
    %152 = vmatpush1.msra.mxu0 0.0
    %153 = vmatprep.subr.mxu0 0.0
    %154 = vmatpush1.msra.mxu0 0.0
    %155 = vmatprep.subr.mxu0 0.0
    %156 = vmatpush1.msra.mxu0 0.0
    %157 = vmatprep.subr.mxu0 0.0
    %158 = vmatpush1.msra.mxu0 0.0
    %159 = vmatprep.subr.mxu0 0.0
    %160 = vmatpush1.msra.mxu0 0.0
    %161 = vmatprep.subr.mxu0 0.0
    %162 = vmatpush1.msra.mxu0 0.0
    %163 = vmatprep.subr.mxu0 0.0
    %164 = vmatpush1.msra.mxu0 0.0
    %165 = vmatprep.subr.mxu0 0.0
    %166 = vmatpush1.msra.mxu0 0.0
    %167 = vmatprep.subr.mxu0 0.0
    %168 = vmatpush1.msra.mxu0 0.0
    %169 = vmatprep.subr.mxu0 0.0
    %170 = vmatpush1.msra.mxu0 0.0
    %171 = vmatprep.subr.mxu0 0.0
    %172 = vmatpush1.msra.mxu0 0.0
    %173 = vmatprep.subr.mxu0 0.0
    %174 = vmatpush1.msra.mxu0 0.0
    %175 = vmatprep.subr.mxu0 0.0
    %176 = vmatpush1.msra.mxu0 0.0
    %177 = vmatprep.subr.mxu0 0.0
    %178 = vmatpush1.msra.mxu0 0.0
    %179 = vmatprep.subr.mxu0 0.0
    %180 = vmatpush1.msra.mxu0 0.0
    %181 = vmatprep.subr.mxu0 0.0
    %182 = vmatpush1.msra.mxu0 0.0
    %183 = vmatprep.subr.mxu0 0.0
    %184 = vmatpush1.msra.mxu0 0.0
    %185 = vmatprep.subr.mxu0 0.0
    %186 = vmatpush1.msra.mxu0 0.0
    %187 = vmatprep.subr.mxu0 0.0
    %188 = vmatpush1.msra.mxu0 0.0
    %189 = vmatprep.subr.mxu0 0.0
    %190 = vmatpush1.msra.mxu0 0.0
    %191 = vmatprep.subr.mxu0 0.0
    %192 = vmatpush1.msra.mxu0 0.0
    %193 = vmatprep.subr.mxu0 0.0
    %194 = vmatpush1.msra.mxu0 0.0
    %195 = vmatprep.subr.mxu0 0.0
    %196 = vmatpush1.msra.mxu0 0.0
    %197 = vmatprep.subr.mxu0 0.0
    %198 = vmatpush1.msra.mxu0 0.0
    %199 = vmatprep.subr.mxu0 0.0
    %200 = vmatpush1.msra.mxu0 0.0
    %201 = vmatprep.mubr.f32.mxu0 0.0
    %202 = vmatmul.mubr.f32.gmra.mrb[0].mxu0 %v135
    %v203 = vpop.f32.mrb[0].mxu0
    %v204 = vadd.f32 %v131, %v203
    %v205 = vpop.f32.mrb[0].mxu0
    %206 = vdwg.mxu0
    %v207 = vxor.u32 %v204, 2147483648
    %v208 = vmul.f32 %v207, 1.442695
    %v209 = vpow.pop %v208
    %v210 = vadd.f32 %v209, 1.0
    %v211 = vrcp.pop %v210
    %v212 = vmul.f32 1.0, %v211
    %v213 = vtanh.pop %v204
    %v214 = vmul.f32 %v212, 0.0
    %216 = vrot.lane.b32.xlu0 %v213, 64
    %v217 = vpop.permute.xlu0 %216
    %v219 = vmul.f32 %v212, %v217
    %221 = vrot.lane.b32.xlu0 %v219, 32
    %v222 = vpop.permute.xlu0 %221
    %v224 = vadd.f32 %v214, %v222
    %v225 = vtanh.pop %v224
    %227 = vrot.lane.b32.xlu0 %v225, 64
    %v228 = vpop.permute.xlu0 %227
    %v230 = vmul.f32 %v212, %v228
    %v232 = vrot.slane %v230, 6
    %233 = vrot.lane.b32.xlu0 %v232, 48
    %v234 = vpop.permute.xlu0 %233
    %v236 = vsel %vm125, %v116, %v234
    %v238 = vrot.slane %v236, 2
    %v239 = vsel %vm133, %v238, 0
    %241 = vmatprep.subr.mxu0 0.0
    %242 = vmatpush1.msra.mxu0 %v118
    %243 = vmatprep.subr.mxu0 0.0
    %244 = vmatpush1.msra.mxu0 %v119
    %245 = vmatprep.subr.mxu0 0.0
    %246 = vmatpush1.msra.mxu0 %v120
    %247 = vmatprep.subr.mxu0 0.0
    %248 = vmatpush1.msra.mxu0 %v121
    %249 = vmatprep.subr.mxu0 0.0
    %250 = vmatpush1.msra.mxu0 %v122
    %251 = vmatprep.subr.mxu0 0.0
    %252 = vmatpush1.msra.mxu0 %v123
    %253 = vmatprep.subr.mxu0 0.0
    %254 = vmatpush1.msra.mxu0 0.0
    %255 = vmatprep.subr.mxu0 0.0
    %256 = vmatpush1.msra.mxu0 0.0
    %257 = vmatprep.subr.mxu0 0.0
    %258 = vmatpush1.msra.mxu0 0.0
    %259 = vmatprep.subr.mxu0 0.0
    %260 = vmatpush1.msra.mxu0 0.0
    %261 = vmatprep.subr.mxu0 0.0
    %262 = vmatpush1.msra.mxu0 0.0
    %263 = vmatprep.subr.mxu0 0.0
    %264 = vmatpush1.msra.mxu0 0.0
    %265 = vmatprep.subr.mxu0 0.0
    %266 = vmatpush1.msra.mxu0 0.0
    %267 = vmatprep.subr.mxu0 0.0
    %268 = vmatpush1.msra.mxu0 0.0
    %269 = vmatprep.subr.mxu0 0.0
    %270 = vmatpush1.msra.mxu0 0.0
    %271 = vmatprep.subr.mxu0 0.0
    %272 = vmatpush1.msra.mxu0 0.0
    %273 = vmatprep.subr.mxu0 0.0
    %274 = vmatpush1.msra.mxu0 0.0
    %275 = vmatprep.subr.mxu0 0.0
    %276 = vmatpush1.msra.mxu0 0.0
    %277 = vmatprep.subr.mxu0 0.0
    %278 = vmatpush1.msra.mxu0 0.0
    %279 = vmatprep.subr.mxu0 0.0
    %280 = vmatpush1.msra.mxu0 0.0
    %281 = vmatprep.subr.mxu0 0.0
    %282 = vmatpush1.msra.mxu0 0.0
    %283 = vmatprep.subr.mxu0 0.0
    %284 = vmatpush1.msra.mxu0 0.0
    %285 = vmatprep.subr.mxu0 0.0
    %286 = vmatpush1.msra.mxu0 0.0
    %287 = vmatprep.subr.mxu0 0.0
    %288 = vmatpush1.msra.mxu0 0.0
    %289 = vmatprep.subr.mxu0 0.0
    %290 = vmatpush1.msra.mxu0 0.0
    %291 = vmatprep.subr.mxu0 0.0
    %292 = vmatpush1.msra.mxu0 0.0
    %293 = vmatprep.subr.mxu0 0.0
    %294 = vmatpush1.msra.mxu0 0.0
    %295 = vmatprep.subr.mxu0 0.0
    %296 = vmatpush1.msra.mxu0 0.0
    %297 = vmatprep.subr.mxu0 0.0
    %298 = vmatpush1.msra.mxu0 0.0
    %299 = vmatprep.subr.mxu0 0.0
    %300 = vmatpush1.msra.mxu0 0.0
    %301 = vmatprep.subr.mxu0 0.0
    %302 = vmatpush1.msra.mxu0 0.0
    %303 = vmatprep.subr.mxu0 0.0
    %304 = vmatpush1.msra.mxu0 0.0
    %305 = vmatprep.mubr.f32.mxu0 0.0
    %306 = vmatmul.mubr.f32.gmra.mrb[0].mxu0 %v239
    %v307 = vpop.f32.mrb[0].mxu0
    %v308 = vadd.f32 %v131, %v307
    %v309 = vpop.f32.mrb[0].mxu0
    %310 = vdwg.mxu0
    %v311 = vxor.u32 %v308, 2147483648
    %v312 = vmul.f32 %v311, 1.442695
    %v313 = vpow.pop %v312
    %v314 = vadd.f32 %v313, 1.0
    %v315 = vrcp.pop %v314
    %v316 = vmul.f32 1.0, %v315
    %v317 = vtanh.pop %v308
    %v318 = vmul.f32 %v316, %v224
    %320 = vrot.lane.b32.xlu0 %v317, 64
    %v321 = vpop.permute.xlu0 %320
    %v323 = vmul.f32 %v316, %v321
    %325 = vrot.lane.b32.xlu0 %v323, 32
    %v326 = vpop.permute.xlu0 %325
    %v328 = vadd.f32 %v318, %v326
    %v329 = vtanh.pop %v328
    %331 = vrot.lane.b32.xlu0 %v329, 64
    %v332 = vpop.permute.xlu0 %331
    %v334 = vmul.f32 %v316, %v332
    %v336 = vrot.slane %v334, 4
    %337 = vrot.lane.b32.xlu0 %v336, 48
    %v338 = vpop.permute.xlu0 %337
    %v340 = vsel %vm125, %v116, %v338
    %v342 = vrot.slane %v340, 4
    %v343 = vsel %vm133, %v342, 0
    %345 = vmatprep.subr.mxu0 0.0
    %346 = vmatpush1.msra.mxu0 %v118
    %347 = vmatprep.subr.mxu0 0.0
    %348 = vmatpush1.msra.mxu0 %v119
    %349 = vmatprep.subr.mxu0 0.0
    %350 = vmatpush1.msra.mxu0 %v120
    %351 = vmatprep.subr.mxu0 0.0
    %352 = vmatpush1.msra.mxu0 %v121
    %353 = vmatprep.subr.mxu0 0.0
    %354 = vmatpush1.msra.mxu0 %v122
    %355 = vmatprep.subr.mxu0 0.0
    %356 = vmatpush1.msra.mxu0 %v123
    %357 = vmatprep.subr.mxu0 0.0
    %358 = vmatpush1.msra.mxu0 0.0
    %359 = vmatprep.subr.mxu0 0.0
    %360 = vmatpush1.msra.mxu0 0.0
    %361 = vmatprep.subr.mxu0 0.0
    %362 = vmatpush1.msra.mxu0 0.0
    %363 = vmatprep.subr.mxu0 0.0
    %364 = vmatpush1.msra.mxu0 0.0
    %365 = vmatprep.subr.mxu0 0.0
    %366 = vmatpush1.msra.mxu0 0.0
    %367 = vmatprep.subr.mxu0 0.0
    %368 = vmatpush1.msra.mxu0 0.0
    %369 = vmatprep.subr.mxu0 0.0
    %370 = vmatpush1.msra.mxu0 0.0
    %371 = vmatprep.subr.mxu0 0.0
    %372 = vmatpush1.msra.mxu0 0.0
    %373 = vmatprep.subr.mxu0 0.0
    %374 = vmatpush1.msra.mxu0 0.0
    %375 = vmatprep.subr.mxu0 0.0
    %376 = vmatpush1.msra.mxu0 0.0
    %377 = vmatprep.subr.mxu0 0.0
    %378 = vmatpush1.msra.mxu0 0.0
    %379 = vmatprep.subr.mxu0 0.0
    %380 = vmatpush1.msra.mxu0 0.0
    %381 = vmatprep.subr.mxu0 0.0
    %382 = vmatpush1.msra.mxu0 0.0
    %383 = vmatprep.subr.mxu0 0.0
    %384 = vmatpush1.msra.mxu0 0.0
    %385 = vmatprep.subr.mxu0 0.0
    %386 = vmatpush1.msra.mxu0 0.0
    %387 = vmatprep.subr.mxu0 0.0
    %388 = vmatpush1.msra.mxu0 0.0
    %389 = vmatprep.subr.mxu0 0.0
    %390 = vmatpush1.msra.mxu0 0.0
    %391 = vmatprep.subr.mxu0 0.0
    %392 = vmatpush1.msra.mxu0 0.0
    %393 = vmatprep.subr.mxu0 0.0
    %394 = vmatpush1.msra.mxu0 0.0
    %395 = vmatprep.subr.mxu0 0.0
    %396 = vmatpush1.msra.mxu0 0.0
    %397 = vmatprep.subr.mxu0 0.0
    %398 = vmatpush1.msra.mxu0 0.0
    %399 = vmatprep.subr.mxu0 0.0
    %400 = vmatpush1.msra.mxu0 0.0
    %401 = vmatprep.subr.mxu0 0.0
    %402 = vmatpush1.msra.mxu0 0.0
    %403 = vmatprep.subr.mxu0 0.0
    %404 = vmatpush1.msra.mxu0 0.0
    %405 = vmatprep.subr.mxu0 0.0
    %406 = vmatpush1.msra.mxu0 0.0
    %407 = vmatprep.subr.mxu0 0.0
    %408 = vmatpush1.msra.mxu0 0.0
    %409 = vmatprep.mubr.f32.mxu0 0.0
    %410 = vmatmul.mubr.f32.gmra.mrb[0].mxu0 %v343
    %v411 = vpop.f32.mrb[0].mxu0
    %v412 = vadd.f32 %v131, %v411
    %v413 = vpop.f32.mrb[0].mxu0
    %414 = vdwg.mxu0
    %v415 = vxor.u32 %v412, 2147483648
    %v416 = vmul.f32 %v415, 1.442695
    %v417 = vpow.pop %v416
    %v418 = vadd.f32 %v417, 1.0
    %v419 = vrcp.pop %v418
    %v420 = vmul.f32 1.0, %v419
    %v421 = vtanh.pop %v412
    %v422 = vmul.f32 %v420, %v328
    %424 = vrot.lane.b32.xlu0 %v421, 64
    %v425 = vpop.permute.xlu0 %424
    %v427 = vmul.f32 %v420, %v425
    %429 = vrot.lane.b32.xlu0 %v427, 32
    %v430 = vpop.permute.xlu0 %429
    %v432 = vadd.f32 %v422, %v430
    %v433 = vtanh.pop %v432
    %435 = vrot.lane.b32.xlu0 %v433, 64
    %v436 = vpop.permute.xlu0 %435
    %v438 = vmul.f32 %v420, %v436
    %v440 = vrot.slane %v438, 2
    %441 = vrot.lane.b32.xlu0 %v440, 48
    %v442 = vpop.permute.xlu0 %441
    %v444 = vsel %vm125, %v116, %v442
    %v446 = vrot.slane %v444, 6
    %v447 = vsel %vm133, %v446, 0
    %449 = vmatprep.subr.mxu0 0.0
    %450 = vmatpush1.msra.mxu0 %v118
    %451 = vmatprep.subr.mxu0 0.0
    %452 = vmatpush1.msra.mxu0 %v119
    %453 = vmatprep.subr.mxu0 0.0
    %454 = vmatpush1.msra.mxu0 %v120
    %455 = vmatprep.subr.mxu0 0.0
    %456 = vmatpush1.msra.mxu0 %v121
    %457 = vmatprep.subr.mxu0 0.0
    %458 = vmatpush1.msra.mxu0 %v122
    %459 = vmatprep.subr.mxu0 0.0
    %460 = vmatpush1.msra.mxu0 %v123
    %461 = vmatprep.subr.mxu0 0.0
    %462 = vmatpush1.msra.mxu0 0.0
    %463 = vmatprep.subr.mxu0 0.0
    %464 = vmatpush1.msra.mxu0 0.0
    %465 = vmatprep.subr.mxu0 0.0
    %466 = vmatpush1.msra.mxu0 0.0
    %467 = vmatprep.subr.mxu0 0.0
    %468 = vmatpush1.msra.mxu0 0.0
    %469 = vmatprep.subr.mxu0 0.0
    %470 = vmatpush1.msra.mxu0 0.0
    %471 = vmatprep.subr.mxu0 0.0
    %472 = vmatpush1.msra.mxu0 0.0
    %473 = vmatprep.subr.mxu0 0.0
    %474 = vmatpush1.msra.mxu0 0.0
    %475 = vmatprep.subr.mxu0 0.0
    %476 = vmatpush1.msra.mxu0 0.0
    %477 = vmatprep.subr.mxu0 0.0
    %478 = vmatpush1.msra.mxu0 0.0
    %479 = vmatprep.subr.mxu0 0.0
    %480 = vmatpush1.msra.mxu0 0.0
    %481 = vmatprep.subr.mxu0 0.0
    %482 = vmatpush1.msra.mxu0 0.0
    %483 = vmatprep.subr.mxu0 0.0
    %484 = vmatpush1.msra.mxu0 0.0
    %485 = vmatprep.subr.mxu0 0.0
    %486 = vmatpush1.msra.mxu0 0.0
    %487 = vmatprep.subr.mxu0 0.0
    %488 = vmatpush1.msra.mxu0 0.0
    %489 = vmatprep.subr.mxu0 0.0
    %490 = vmatpush1.msra.mxu0 0.0
    %491 = vmatprep.subr.mxu0 0.0
    %492 = vmatpush1.msra.mxu0 0.0
    %493 = vmatprep.subr.mxu0 0.0
    %494 = vmatpush1.msra.mxu0 0.0
    %495 = vmatprep.subr.mxu0 0.0
    %496 = vmatpush1.msra.mxu0 0.0
    %497 = vmatprep.subr.mxu0 0.0
    %498 = vmatpush1.msra.mxu0 0.0
    %499 = vmatprep.subr.mxu0 0.0
    %500 = vmatpush1.msra.mxu0 0.0
    %501 = vmatprep.subr.mxu0 0.0
    %502 = vmatpush1.msra.mxu0 0.0
    %503 = vmatprep.subr.mxu0 0.0
    %504 = vmatpush1.msra.mxu0 0.0
    %505 = vmatprep.subr.mxu0 0.0
    %506 = vmatpush1.msra.mxu0 0.0
    %507 = vmatprep.subr.mxu0 0.0
    %508 = vmatpush1.msra.mxu0 0.0
    %509 = vmatprep.subr.mxu0 0.0
    %510 = vmatpush1.msra.mxu0 0.0
    %511 = vmatprep.subr.mxu0 0.0
    %512 = vmatpush1.msra.mxu0 0.0
    %513 = vmatprep.mubr.f32.mxu0 0.0
    %514 = vmatmul.mubr.f32.gmra.mrb[0].mxu0 %v447
    %v515 = vpop.f32.mrb[0].mxu0
    %v516 = vadd.f32 %v131, %v515
    %v517 = vpop.f32.mrb[0].mxu0
    %518 = vdwg.mxu0
    %v519 = vxor.u32 %v516, 2147483648
    %v520 = vmul.f32 %v519, 1.442695
    %v521 = vpow.pop %v520
    %v522 = vadd.f32 %v521, 1.0
    %v523 = vrcp.pop %v522
    %v524 = vmul.f32 1.0, %v523
    %v525 = vtanh.pop %v516
    %v526 = vmul.f32 %v524, %v432
    %528 = vrot.lane.b32.xlu0 %v525, 64
    %v529 = vpop.permute.xlu0 %528
    %v531 = vmul.f32 %v524, %v529
    %533 = vrot.lane.b32.xlu0 %v531, 32
    %v534 = vpop.permute.xlu0 %533
    %v536 = vadd.f32 %v526, %v534
    %v537 = vtanh.pop %v536
    %539 = vrot.lane.b32.xlu0 %v537, 64
    %v540 = vpop.permute.xlu0 %539
    %v542 = vmul.f32 %v524, %v540
    %544 = vrot.lane.b32.xlu0 %v542, 48
    %v545 = vpop.permute.xlu0 %544
    %v547 = vsel %vm125, %v117, %v545
    %v549 = vsel %vm133, %v547, 0
    %551 = vmatprep.subr.mxu0 0.0
    %552 = vmatpush1.msra.mxu0 %v118
    %553 = vmatprep.subr.mxu0 0.0
    %554 = vmatpush1.msra.mxu0 %v119
    %555 = vmatprep.subr.mxu0 0.0
    %556 = vmatpush1.msra.mxu0 %v120
    %557 = vmatprep.subr.mxu0 0.0
    %558 = vmatpush1.msra.mxu0 %v121
    %559 = vmatprep.subr.mxu0 0.0
    %560 = vmatpush1.msra.mxu0 %v122
    %561 = vmatprep.subr.mxu0 0.0
    %562 = vmatpush1.msra.mxu0 %v123
    %563 = vmatprep.subr.mxu0 0.0
    %564 = vmatpush1.msra.mxu0 0.0
    %565 = vmatprep.subr.mxu0 0.0
    %566 = vmatpush1.msra.mxu0 0.0
    %567 = vmatprep.subr.mxu0 0.0
    %568 = vmatpush1.msra.mxu0 0.0
    %569 = vmatprep.subr.mxu0 0.0
    %570 = vmatpush1.msra.mxu0 0.0
    %571 = vmatprep.subr.mxu0 0.0
    %572 = vmatpush1.msra.mxu0 0.0
    %573 = vmatprep.subr.mxu0 0.0
    %574 = vmatpush1.msra.mxu0 0.0
    %575 = vmatprep.subr.mxu0 0.0
    %576 = vmatpush1.msra.mxu0 0.0
    %577 = vmatprep.subr.mxu0 0.0
    %578 = vmatpush1.msra.mxu0 0.0
    %579 = vmatprep.subr.mxu0 0.0
    %580 = vmatpush1.msra.mxu0 0.0
    %581 = vmatprep.subr.mxu0 0.0
    %582 = vmatpush1.msra.mxu0 0.0
    %583 = vmatprep.subr.mxu0 0.0
    %584 = vmatpush1.msra.mxu0 0.0
    %585 = vmatprep.subr.mxu0 0.0
    %586 = vmatpush1.msra.mxu0 0.0
    %587 = vmatprep.subr.mxu0 0.0
    %588 = vmatpush1.msra.mxu0 0.0
    %589 = vmatprep.subr.mxu0 0.0
    %590 = vmatpush1.msra.mxu0 0.0
    %591 = vmatprep.subr.mxu0 0.0
    %592 = vmatpush1.msra.mxu0 0.0
    %593 = vmatprep.subr.mxu0 0.0
    %594 = vmatpush1.msra.mxu0 0.0
    %595 = vmatprep.subr.mxu0 0.0
    %596 = vmatpush1.msra.mxu0 0.0
    %597 = vmatprep.subr.mxu0 0.0
    %598 = vmatpush1.msra.mxu0 0.0
    %599 = vmatprep.subr.mxu0 0.0
    %600 = vmatpush1.msra.mxu0 0.0
    %601 = vmatprep.subr.mxu0 0.0
    %602 = vmatpush1.msra.mxu0 0.0
    %603 = vmatprep.subr.mxu0 0.0
    %604 = vmatpush1.msra.mxu0 0.0
    %605 = vmatprep.subr.mxu0 0.0
    %606 = vmatpush1.msra.mxu0 0.0
    %607 = vmatprep.subr.mxu0 0.0
    %608 = vmatpush1.msra.mxu0 0.0
    %609 = vmatprep.subr.mxu0 0.0
    %610 = vmatpush1.msra.mxu0 0.0
    %611 = vmatprep.subr.mxu0 0.0
    %612 = vmatpush1.msra.mxu0 0.0
    %613 = vmatprep.subr.mxu0 0.0
    %614 = vmatpush1.msra.mxu0 0.0
    %615 = vmatprep.mubr.f32.mxu0 0.0
    %616 = vmatmul.mubr.f32.gmra.mrb[0].mxu0 %v549
    %v617 = vpop.f32.mrb[0].mxu0
    %v618 = vadd.f32 %v131, %v617
    %v619 = vpop.f32.mrb[0].mxu0
    %620 = vdwg.mxu0
    %v621 = vxor.u32 %v618, 2147483648
    %v622 = vmul.f32 %v621, 1.442695
    %v623 = vpow.pop %v622
    %v624 = vadd.f32 %v623, 1.0
    %v625 = vrcp.pop %v624
    %v626 = vmul.f32 1.0, %v625
    %v627 = vtanh.pop %v618
    %v628 = vmul.f32 %v626, %v536
    %630 = vrot.lane.b32.xlu0 %v627, 64
    %v631 = vpop.permute.xlu0 %630
    %v633 = vmul.f32 %v626, %v631
    %635 = vrot.lane.b32.xlu0 %v633, 32
    %v636 = vpop.permute.xlu0 %635
    %v638 = vadd.f32 %v628, %v636
    %v639 = vtanh.pop %v638
    %641 = vrot.lane.b32.xlu0 %v639, 64
    %v642 = vpop.permute.xlu0 %641
    %v644 = vmul.f32 %v626, %v642
    %v646 = vrot.slane %v644, 6
    %647 = vrot.lane.b32.xlu0 %v646, 48
    %v648 = vpop.permute.xlu0 %647
    %v650 = vsel %vm125, %v117, %v648
    %v652 = vrot.slane %v650, 2
    %v653 = vsel %vm133, %v652, 0
    %655 = vmatprep.subr.mxu0 0.0
    %656 = vmatpush1.msra.mxu0 %v118
    %657 = vmatprep.subr.mxu0 0.0
    %658 = vmatpush1.msra.mxu0 %v119
    %659 = vmatprep.subr.mxu0 0.0
    %660 = vmatpush1.msra.mxu0 %v120
    %661 = vmatprep.subr.mxu0 0.0
    %662 = vmatpush1.msra.mxu0 %v121
    %663 = vmatprep.subr.mxu0 0.0
    %664 = vmatpush1.msra.mxu0 %v122
    %665 = vmatprep.subr.mxu0 0.0
    %666 = vmatpush1.msra.mxu0 %v123
    %667 = vmatprep.subr.mxu0 0.0
    %668 = vmatpush1.msra.mxu0 0.0
    %669 = vmatprep.subr.mxu0 0.0
    %670 = vmatpush1.msra.mxu0 0.0
    %671 = vmatprep.subr.mxu0 0.0
    %672 = vmatpush1.msra.mxu0 0.0
    %673 = vmatprep.subr.mxu0 0.0
    %674 = vmatpush1.msra.mxu0 0.0
    %675 = vmatprep.subr.mxu0 0.0
    %676 = vmatpush1.msra.mxu0 0.0
    %677 = vmatprep.subr.mxu0 0.0
    %678 = vmatpush1.msra.mxu0 0.0
    %679 = vmatprep.subr.mxu0 0.0
    %680 = vmatpush1.msra.mxu0 0.0
    %681 = vmatprep.subr.mxu0 0.0
    %682 = vmatpush1.msra.mxu0 0.0
    %683 = vmatprep.subr.mxu0 0.0
    %684 = vmatpush1.msra.mxu0 0.0
    %685 = vmatprep.subr.mxu0 0.0
    %686 = vmatpush1.msra.mxu0 0.0
    %687 = vmatprep.subr.mxu0 0.0
    %688 = vmatpush1.msra.mxu0 0.0
    %689 = vmatprep.subr.mxu0 0.0
    %690 = vmatpush1.msra.mxu0 0.0
    %691 = vmatprep.subr.mxu0 0.0
    %692 = vmatpush1.msra.mxu0 0.0
    %693 = vmatprep.subr.mxu0 0.0
    %694 = vmatpush1.msra.mxu0 0.0
    %695 = vmatprep.subr.mxu0 0.0
    %696 = vmatpush1.msra.mxu0 0.0
    %697 = vmatprep.subr.mxu0 0.0
    %698 = vmatpush1.msra.mxu0 0.0
    %699 = vmatprep.subr.mxu0 0.0
    %700 = vmatpush1.msra.mxu0 0.0
    %701 = vmatprep.subr.mxu0 0.0
    %702 = vmatpush1.msra.mxu0 0.0
    %703 = vmatprep.subr.mxu0 0.0
    %704 = vmatpush1.msra.mxu0 0.0
    %705 = vmatprep.subr.mxu0 0.0
    %706 = vmatpush1.msra.mxu0 0.0
    %707 = vmatprep.subr.mxu0 0.0
    %708 = vmatpush1.msra.mxu0 0.0
    %709 = vmatprep.subr.mxu0 0.0
    %710 = vmatpush1.msra.mxu0 0.0
    %711 = vmatprep.subr.mxu0 0.0
    %712 = vmatpush1.msra.mxu0 0.0
    %713 = vmatprep.subr.mxu0 0.0
    %714 = vmatpush1.msra.mxu0 0.0
    %715 = vmatprep.subr.mxu0 0.0
    %716 = vmatpush1.msra.mxu0 0.0
    %717 = vmatprep.subr.mxu0 0.0
    %718 = vmatpush1.msra.mxu0 0.0
    %719 = vmatprep.mubr.f32.mxu0 0.0
    %720 = vmatmul.mubr.f32.gmra.mrb[0].mxu0 %v653
    %v721 = vpop.f32.mrb[0].mxu0
    %v722 = vadd.f32 %v131, %v721
    %v723 = vpop.f32.mrb[0].mxu0
    %724 = vdwg.mxu0
    %v725 = vxor.u32 %v722, 2147483648
    %v726 = vmul.f32 %v725, 1.442695
    %v727 = vpow.pop %v726
    %v728 = vadd.f32 %v727, 1.0
    %v729 = vrcp.pop %v728
    %v730 = vmul.f32 1.0, %v729
    %v731 = vtanh.pop %v722
    %v732 = vmul.f32 %v730, %v638
    %734 = vrot.lane.b32.xlu0 %v731, 64
    %v735 = vpop.permute.xlu0 %734
    %v737 = vmul.f32 %v730, %v735
    %739 = vrot.lane.b32.xlu0 %v737, 32
    %v740 = vpop.permute.xlu0 %739
    %v742 = vadd.f32 %v732, %v740
    %v743 = vtanh.pop %v742
    %745 = vrot.lane.b32.xlu0 %v743, 64
    %v746 = vpop.permute.xlu0 %745
    %v748 = vmul.f32 %v730, %v746
    %v750 = vrot.slane %v748, 4
    %751 = vrot.lane.b32.xlu0 %v750, 48
    %v752 = vpop.permute.xlu0 %751
    %v754 = vsel %vm125, %v117, %v752
    %v756 = vrot.slane %v754, 4
    %v757 = vsel %vm133, %v756, 0
    %759 = vmatprep.subr.mxu0 0.0
    %760 = vmatpush1.msra.mxu0 %v118
    %761 = vmatprep.subr.mxu0 0.0
    %762 = vmatpush1.msra.mxu0 %v119
    %763 = vmatprep.subr.mxu0 0.0
    %764 = vmatpush1.msra.mxu0 %v120
    %765 = vmatprep.subr.mxu0 0.0
    %766 = vmatpush1.msra.mxu0 %v121
    %767 = vmatprep.subr.mxu0 0.0
    %768 = vmatpush1.msra.mxu0 %v122
    %769 = vmatprep.subr.mxu0 0.0
    %770 = vmatpush1.msra.mxu0 %v123
    %771 = vmatprep.subr.mxu0 0.0
    %772 = vmatpush1.msra.mxu0 0.0
    %773 = vmatprep.subr.mxu0 0.0
    %774 = vmatpush1.msra.mxu0 0.0
    %775 = vmatprep.subr.mxu0 0.0
    %776 = vmatpush1.msra.mxu0 0.0
    %777 = vmatprep.subr.mxu0 0.0
    %778 = vmatpush1.msra.mxu0 0.0
    %779 = vmatprep.subr.mxu0 0.0
    %780 = vmatpush1.msra.mxu0 0.0
    %781 = vmatprep.subr.mxu0 0.0
    %782 = vmatpush1.msra.mxu0 0.0
    %783 = vmatprep.subr.mxu0 0.0
    %784 = vmatpush1.msra.mxu0 0.0
    %785 = vmatprep.subr.mxu0 0.0
    %786 = vmatpush1.msra.mxu0 0.0
    %787 = vmatprep.subr.mxu0 0.0
    %788 = vmatpush1.msra.mxu0 0.0
    %789 = vmatprep.subr.mxu0 0.0
    %790 = vmatpush1.msra.mxu0 0.0
    %791 = vmatprep.subr.mxu0 0.0
    %792 = vmatpush1.msra.mxu0 0.0
    %793 = vmatprep.subr.mxu0 0.0
    %794 = vmatpush1.msra.mxu0 0.0
    %795 = vmatprep.subr.mxu0 0.0
    %796 = vmatpush1.msra.mxu0 0.0
    %797 = vmatprep.subr.mxu0 0.0
    %798 = vmatpush1.msra.mxu0 0.0
    %799 = vmatprep.subr.mxu0 0.0
    %800 = vmatpush1.msra.mxu0 0.0
    %801 = vmatprep.subr.mxu0 0.0
    %802 = vmatpush1.msra.mxu0 0.0
    %803 = vmatprep.subr.mxu0 0.0
    %804 = vmatpush1.msra.mxu0 0.0
    %805 = vmatprep.subr.mxu0 0.0
    %806 = vmatpush1.msra.mxu0 0.0
    %807 = vmatprep.subr.mxu0 0.0
    %808 = vmatpush1.msra.mxu0 0.0
    %809 = vmatprep.subr.mxu0 0.0
    %810 = vmatpush1.msra.mxu0 0.0
    %811 = vmatprep.subr.mxu0 0.0
    %812 = vmatpush1.msra.mxu0 0.0
    %813 = vmatprep.subr.mxu0 0.0
    %814 = vmatpush1.msra.mxu0 0.0
    %815 = vmatprep.subr.mxu0 0.0
    %816 = vmatpush1.msra.mxu0 0.0
    %817 = vmatprep.subr.mxu0 0.0
    %818 = vmatpush1.msra.mxu0 0.0
    %819 = vmatprep.subr.mxu0 0.0
    %820 = vmatpush1.msra.mxu0 0.0
    %821 = vmatprep.subr.mxu0 0.0
    %822 = vmatpush1.msra.mxu0 0.0
    %823 = vmatprep.mubr.f32.mxu0 0.0
    %824 = vmatmul.mubr.f32.gmra.mrb[0].mxu0 %v757
    %v825 = vpop.f32.mrb[0].mxu0
    %v826 = vadd.f32 %v131, %v825
    %v827 = vpop.f32.mrb[0].mxu0
    %828 = vdwg.mxu0
    %v829 = vxor.u32 %v826, 2147483648
    %v830 = vmul.f32 %v829, 1.442695
    %v831 = vpow.pop %v830
    %v832 = vadd.f32 %v831, 1.0
    %v833 = vrcp.pop %v832
    %v834 = vmul.f32 1.0, %v833
    %v835 = vtanh.pop %v826
    %v836 = vmul.f32 %v834, %v742
    %838 = vrot.lane.b32.xlu0 %v835, 64
    %v839 = vpop.permute.xlu0 %838
    %v841 = vmul.f32 %v834, %v839
    %843 = vrot.lane.b32.xlu0 %v841, 32
    %v844 = vpop.permute.xlu0 %843
    %v846 = vadd.f32 %v836, %v844
    %v847 = vtanh.pop %v846
    %849 = vrot.lane.b32.xlu0 %v847, 64
    %v850 = vpop.permute.xlu0 %849
    %v852 = vmul.f32 %v834, %v850
    %v854 = vrot.slane %v852, 2
    %855 = vrot.lane.b32.xlu0 %v854, 48
    %v856 = vpop.permute.xlu0 %855
    %v858 = vsel %vm125, %v117, %v856
    %v860 = vrot.slane %v858, 6
    %v861 = vsel %vm133, %v860, 0
    %863 = vmatprep.subr.mxu0 0.0
    %864 = vmatpush1.msra.mxu0 %v118
    %865 = vmatprep.subr.mxu0 0.0
    %866 = vmatpush1.msra.mxu0 %v119
    %867 = vmatprep.subr.mxu0 0.0
    %868 = vmatpush1.msra.mxu0 %v120
    %869 = vmatprep.subr.mxu0 0.0
    %870 = vmatpush1.msra.mxu0 %v121
    %871 = vmatprep.subr.mxu0 0.0
    %872 = vmatpush1.msra.mxu0 %v122
    %873 = vmatprep.subr.mxu0 0.0
    %874 = vmatpush1.msra.mxu0 %v123
    %875 = vmatprep.subr.mxu0 0.0
    %876 = vmatpush1.msra.mxu0 0.0
    %877 = vmatprep.subr.mxu0 0.0
    %878 = vmatpush1.msra.mxu0 0.0
    %879 = vmatprep.subr.mxu0 0.0
    %880 = vmatpush1.msra.mxu0 0.0
    %881 = vmatprep.subr.mxu0 0.0
    %882 = vmatpush1.msra.mxu0 0.0
    %883 = vmatprep.subr.mxu0 0.0
    %884 = vmatpush1.msra.mxu0 0.0
    %885 = vmatprep.subr.mxu0 0.0
    %886 = vmatpush1.msra.mxu0 0.0
    %887 = vmatprep.subr.mxu0 0.0
    %888 = vmatpush1.msra.mxu0 0.0
    %889 = vmatprep.subr.mxu0 0.0
    %890 = vmatpush1.msra.mxu0 0.0
    %891 = vmatprep.subr.mxu0 0.0
    %892 = vmatpush1.msra.mxu0 0.0
    %893 = vmatprep.subr.mxu0 0.0
    %894 = vmatpush1.msra.mxu0 0.0
    %895 = vmatprep.subr.mxu0 0.0
    %896 = vmatpush1.msra.mxu0 0.0
    %897 = vmatprep.subr.mxu0 0.0
    %898 = vmatpush1.msra.mxu0 0.0
    %899 = vmatprep.subr.mxu0 0.0
    %900 = vmatpush1.msra.mxu0 0.0
    %901 = vmatprep.subr.mxu0 0.0
    %902 = vmatpush1.msra.mxu0 0.0
    %903 = vmatprep.subr.mxu0 0.0
    %904 = vmatpush1.msra.mxu0 0.0
    %905 = vmatprep.subr.mxu0 0.0
    %906 = vmatpush1.msra.mxu0 0.0
    %907 = vmatprep.subr.mxu0 0.0
    %908 = vmatpush1.msra.mxu0 0.0
    %909 = vmatprep.subr.mxu0 0.0
    %910 = vmatpush1.msra.mxu0 0.0
    %911 = vmatprep.subr.mxu0 0.0
    %912 = vmatpush1.msra.mxu0 0.0
    %913 = vmatprep.subr.mxu0 0.0
    %914 = vmatpush1.msra.mxu0 0.0
    %915 = vmatprep.subr.mxu0 0.0
    %916 = vmatpush1.msra.mxu0 0.0
    %917 = vmatprep.subr.mxu0 0.0
    %918 = vmatpush1.msra.mxu0 0.0
    %919 = vmatprep.subr.mxu0 0.0
    %920 = vmatpush1.msra.mxu0 0.0
    %921 = vmatprep.subr.mxu0 0.0
    %922 = vmatpush1.msra.mxu0 0.0
    %923 = vmatprep.subr.mxu0 0.0
    %924 = vmatpush1.msra.mxu0 0.0
    %925 = vmatprep.subr.mxu0 0.0
    %926 = vmatpush1.msra.mxu0 0.0
    %927 = vmatprep.mubr.f32.mxu0 0.0
    %928 = vmatmul.mubr.f32.gmra.mrb[0].mxu0 %v861
    %v929 = vpop.f32.mrb[0].mxu0
    %v930 = vadd.f32 %v131, %v929
    %v931 = vpop.f32.mrb[0].mxu0
    %932 = vdwg.mxu0
    %v933 = vxor.u32 %v930, 2147483648
    %v934 = vmul.f32 %v933, 1.442695
    %v935 = vpow.pop %v934
    %v936 = vadd.f32 %v935, 1.0
    %v937 = vrcp.pop %v936
    %v938 = vmul.f32 1.0, %v937
    %v939 = vtanh.pop %v930
    %v940 = vmul.f32 %v938, %v846
    %942 = vrot.lane.b32.xlu0 %v939, 64
    %v943 = vpop.permute.xlu0 %942
    %v945 = vmul.f32 %v938, %v943
    %947 = vrot.lane.b32.xlu0 %v945, 32
    %v948 = vpop.permute.xlu0 %947
    %v950 = vadd.f32 %v940, %v948
    %v951 = vtanh.pop %v950
    %953 = vrot.lane.b32.xlu0 %v951, 64
    %v954 = vpop.permute.xlu0 %953
    %v956 = vmul.f32 %v938, %v954
    %v957 = vld [vmem:[#allocation2] sm:$0xff]
    %v958 = vld [vmem:[#allocation2 + $0x8] sm:$0xff]
    %v959 = vld [vmem:[#allocation2 + $0x10] sm:$0xff]
    %v960 = vld [vmem:[#allocation2 + $0x18] sm:$0xff]
    %v961 = vld [vmem:[#allocation2 + $0x20] sm:$0xff]
    %v962 = vld [vmem:[#allocation2 + $0x28] sm:$0xff]
    %v963 = vld [vmem:[%s4] sm:$0x1]
    %964 = vrot.lane.b32.xlu0 %v230, 32
    %v965 = vpop.permute.xlu0 %964
    %vm967 = vcmask 261120
    %v968 = vsel %vm967, %v965, 0.0
    %v970 = vlaneseq
    %v971 = vshrl.u32 %v970, 7
    %v972 = vsub.s32 0, %v971
    %v973 = vrot.slane %v963, %v972
    %v976 = vsel %vm133, %v968, 0
    %978 = vmatprep.subr.mxu0 0.0
    %979 = vmatpush1.msra.mxu0 %v957
    %980 = vmatprep.subr.mxu0 0.0
    %981 = vmatpush1.msra.mxu0 %v958
    %982 = vmatprep.subr.mxu0 0.0
    %983 = vmatpush1.msra.mxu0 %v959
    %984 = vmatprep.subr.mxu0 0.0
    %985 = vmatpush1.msra.mxu0 %v960
    %986 = vmatprep.subr.mxu0 0.0
    %987 = vmatpush1.msra.mxu0 %v961
    %988 = vmatprep.subr.mxu0 0.0
    %989 = vmatpush1.msra.mxu0 %v962
    %990 = vmatprep.subr.mxu0 0.0
    %991 = vmatpush1.msra.mxu0 0.0
    %992 = vmatprep.subr.mxu0 0.0
    %993 = vmatpush1.msra.mxu0 0.0
    %994 = vmatprep.subr.mxu0 0.0
    %995 = vmatpush1.msra.mxu0 0.0
    %996 = vmatprep.subr.mxu0 0.0
    %997 = vmatpush1.msra.mxu0 0.0
    %998 = vmatprep.subr.mxu0 0.0
    %999 = vmatpush1.msra.mxu0 0.0
    %1000 = vmatprep.subr.mxu0 0.0
    %1001 = vmatpush1.msra.mxu0 0.0
    %1002 = vmatprep.subr.mxu0 0.0
    %1003 = vmatpush1.msra.mxu0 0.0
    %1004 = vmatprep.subr.mxu0 0.0
    %1005 = vmatpush1.msra.mxu0 0.0
    %1006 = vmatprep.subr.mxu0 0.0
    %1007 = vmatpush1.msra.mxu0 0.0
    %1008 = vmatprep.subr.mxu0 0.0
    %1009 = vmatpush1.msra.mxu0 0.0
    %1010 = vmatprep.subr.mxu0 0.0
    %1011 = vmatpush1.msra.mxu0 0.0
    %1012 = vmatprep.subr.mxu0 0.0
    %1013 = vmatpush1.msra.mxu0 0.0
    %1014 = vmatprep.subr.mxu0 0.0
    %1015 = vmatpush1.msra.mxu0 0.0
    %1016 = vmatprep.subr.mxu0 0.0
    %1017 = vmatpush1.msra.mxu0 0.0
    %1018 = vmatprep.subr.mxu0 0.0
    %1019 = vmatpush1.msra.mxu0 0.0
    %1020 = vmatprep.subr.mxu0 0.0
    %1021 = vmatpush1.msra.mxu0 0.0
    %1022 = vmatprep.subr.mxu0 0.0
    %1023 = vmatpush1.msra.mxu0 0.0
    %1024 = vmatprep.subr.mxu0 0.0
    %1025 = vmatpush1.msra.mxu0 0.0
    %1026 = vmatprep.subr.mxu0 0.0
    %1027 = vmatpush1.msra.mxu0 0.0
    %1028 = vmatprep.subr.mxu0 0.0
    %1029 = vmatpush1.msra.mxu0 0.0
    %1030 = vmatprep.subr.mxu0 0.0
    %1031 = vmatpush1.msra.mxu0 0.0
    %1032 = vmatprep.subr.mxu0 0.0
    %1033 = vmatpush1.msra.mxu0 0.0
    %1034 = vmatprep.subr.mxu0 0.0
    %1035 = vmatpush1.msra.mxu0 0.0
    %1036 = vmatprep.subr.mxu0 0.0
    %1037 = vmatpush1.msra.mxu0 0.0
    %1038 = vmatprep.subr.mxu0 0.0
    %1039 = vmatpush1.msra.mxu0 0.0
    %1040 = vmatprep.subr.mxu0 0.0
    %1041 = vmatpush1.msra.mxu0 0.0
    %1042 = vmatprep.mubr.f32.mxu0 0.0
    %1043 = vmatmul.mubr.f32.gmra.mrb[0].mxu0 %v976
    %v1044 = vpop.f32.mrb[0].mxu0
    %v1045 = vadd.f32 %v973, %v1044
    %v1046 = vpop.f32.mrb[0].mxu0
    %1047 = vdwg.mxu0
    %v1048 = vxor.u32 %v1045, 2147483648
    %v1049 = vmul.f32 %v1048, 1.442695
    %v1050 = vpow.pop %v1049
    %v1051 = vadd.f32 %v1050, 1.0
    %v1052 = vrcp.pop %v1051
    %v1053 = vmul.f32 1.0, %v1052
    %v1054 = vtanh.pop %v1045
    %v1055 = vmul.f32 %v1053, 0.0
    %1057 = vrot.lane.b32.xlu0 %v1054, 96
    %v1058 = vpop.permute.xlu0 %1057
    %v1060 = vmul.f32 %v1053, %v1058
    %1062 = vrot.lane.b32.xlu0 %v1060, 16
    %v1063 = vpop.permute.xlu0 %1062
    %v1065 = vadd.f32 %v1055, %v1063
    %v1066 = vtanh.pop %v1065
    %1068 = vrot.lane.b32.xlu0 %v1066, 32
    %v1069 = vpop.permute.xlu0 %1068
    %v1071 = vmul.f32 %v1053, %v1069
    %1072 = vrot.lane.b32.xlu0 %v334, 32
    %v1073 = vpop.permute.xlu0 %1072
    %1076 = vrot.lane.b32.xlu0 %v1071, 112
    %v1077 = vpop.permute.xlu0 %1076
    %v1079 = vsel %vm967, %v1073, %v1077
    %v1081 = vsel %vm133, %v1079, 0
    %1083 = vmatprep.subr.mxu0 0.0
    %1084 = vmatpush1.msra.mxu0 %v957
    %1085 = vmatprep.subr.mxu0 0.0
    %1086 = vmatpush1.msra.mxu0 %v958
    %1087 = vmatprep.subr.mxu0 0.0
    %1088 = vmatpush1.msra.mxu0 %v959
    %1089 = vmatprep.subr.mxu0 0.0
    %1090 = vmatpush1.msra.mxu0 %v960
    %1091 = vmatprep.subr.mxu0 0.0
    %1092 = vmatpush1.msra.mxu0 %v961
    %1093 = vmatprep.subr.mxu0 0.0
    %1094 = vmatpush1.msra.mxu0 %v962
    %1095 = vmatprep.subr.mxu0 0.0
    %1096 = vmatpush1.msra.mxu0 0.0
    %1097 = vmatprep.subr.mxu0 0.0
    %1098 = vmatpush1.msra.mxu0 0.0
    %1099 = vmatprep.subr.mxu0 0.0
    %1100 = vmatpush1.msra.mxu0 0.0
    %1101 = vmatprep.subr.mxu0 0.0
    %1102 = vmatpush1.msra.mxu0 0.0
    %1103 = vmatprep.subr.mxu0 0.0
    %1104 = vmatpush1.msra.mxu0 0.0
    %1105 = vmatprep.subr.mxu0 0.0
    %1106 = vmatpush1.msra.mxu0 0.0
    %1107 = vmatprep.subr.mxu0 0.0
    %1108 = vmatpush1.msra.mxu0 0.0
    %1109 = vmatprep.subr.mxu0 0.0
    %1110 = vmatpush1.msra.mxu0 0.0
    %1111 = vmatprep.subr.mxu0 0.0
    %1112 = vmatpush1.msra.mxu0 0.0
    %1113 = vmatprep.subr.mxu0 0.0
    %1114 = vmatpush1.msra.mxu0 0.0
    %1115 = vmatprep.subr.mxu0 0.0
    %1116 = vmatpush1.msra.mxu0 0.0
    %1117 = vmatprep.subr.mxu0 0.0
    %1118 = vmatpush1.msra.mxu0 0.0
    %1119 = vmatprep.subr.mxu0 0.0
    %1120 = vmatpush1.msra.mxu0 0.0
    %1121 = vmatprep.subr.mxu0 0.0
    %1122 = vmatpush1.msra.mxu0 0.0
    %1123 = vmatprep.subr.mxu0 0.0
    %1124 = vmatpush1.msra.mxu0 0.0
    %1125 = vmatprep.subr.mxu0 0.0
    %1126 = vmatpush1.msra.mxu0 0.0
    %1127 = vmatprep.subr.mxu0 0.0
    %1128 = vmatpush1.msra.mxu0 0.0
    %1129 = vmatprep.subr.mxu0 0.0
    %1130 = vmatpush1.msra.mxu0 0.0
    %1131 = vmatprep.subr.mxu0 0.0
    %1132 = vmatpush1.msra.mxu0 0.0
    %1133 = vmatprep.subr.mxu0 0.0
    %1134 = vmatpush1.msra.mxu0 0.0
    %1135 = vmatprep.subr.mxu0 0.0
    %1136 = vmatpush1.msra.mxu0 0.0
    %1137 = vmatprep.subr.mxu0 0.0
    %1138 = vmatpush1.msra.mxu0 0.0
    %1139 = vmatprep.subr.mxu0 0.0
    %1140 = vmatpush1.msra.mxu0 0.0
    %1141 = vmatprep.subr.mxu0 0.0
    %1142 = vmatpush1.msra.mxu0 0.0
    %1143 = vmatprep.subr.mxu0 0.0
    %1144 = vmatpush1.msra.mxu0 0.0
    %1145 = vmatprep.subr.mxu0 0.0
    %1146 = vmatpush1.msra.mxu0 0.0
    %1147 = vmatprep.mubr.f32.mxu0 0.0
    %1148 = vmatmul.mubr.f32.gmra.mrb[0].mxu0 %v1081
    %v1149 = vpop.f32.mrb[0].mxu0
    %v1150 = vadd.f32 %v973, %v1149
    %v1151 = vpop.f32.mrb[0].mxu0
    %1152 = vdwg.mxu0
    %v1153 = vxor.u32 %v1150, 2147483648
    %v1154 = vmul.f32 %v1153, 1.442695
    %v1155 = vpow.pop %v1154
    %v1156 = vadd.f32 %v1155, 1.0
    %v1157 = vrcp.pop %v1156
    %v1158 = vmul.f32 1.0, %v1157
    %v1159 = vtanh.pop %v1150
    %v1160 = vmul.f32 %v1158, %v1065
    %1162 = vrot.lane.b32.xlu0 %v1159, 96
    %v1163 = vpop.permute.xlu0 %1162
    %v1165 = vmul.f32 %v1158, %v1163
    %1167 = vrot.lane.b32.xlu0 %v1165, 16
    %v1168 = vpop.permute.xlu0 %1167
    %v1170 = vadd.f32 %v1160, %v1168
    %v1171 = vtanh.pop %v1170
    %1173 = vrot.lane.b32.xlu0 %v1171, 32
    %v1174 = vpop.permute.xlu0 %1173
    %v1176 = vmul.f32 %v1158, %v1174
    %1177 = vrot.lane.b32.xlu0 %v438, 32
    %v1178 = vpop.permute.xlu0 %1177
    %1181 = vrot.lane.b32.xlu0 %v1176, 112
    %v1182 = vpop.permute.xlu0 %1181
    %v1184 = vsel %vm967, %v1178, %v1182
    %v1186 = vsel %vm133, %v1184, 0
    %1188 = vmatprep.subr.mxu0 0.0
    %1189 = vmatpush1.msra.mxu0 %v957
    %1190 = vmatprep.subr.mxu0 0.0
    %1191 = vmatpush1.msra.mxu0 %v958
    %1192 = vmatprep.subr.mxu0 0.0
    %1193 = vmatpush1.msra.mxu0 %v959
    %1194 = vmatprep.subr.mxu0 0.0
    %1195 = vmatpush1.msra.mxu0 %v960
    %1196 = vmatprep.subr.mxu0 0.0
    %1197 = vmatpush1.msra.mxu0 %v961
    %1198 = vmatprep.subr.mxu0 0.0
    %1199 = vmatpush1.msra.mxu0 %v962
    %1200 = vmatprep.subr.mxu0 0.0
    %1201 = vmatpush1.msra.mxu0 0.0
    %1202 = vmatprep.subr.mxu0 0.0
    %1203 = vmatpush1.msra.mxu0 0.0
    %1204 = vmatprep.subr.mxu0 0.0
    %1205 = vmatpush1.msra.mxu0 0.0
    %1206 = vmatprep.subr.mxu0 0.0
    %1207 = vmatpush1.msra.mxu0 0.0
    %1208 = vmatprep.subr.mxu0 0.0
    %1209 = vmatpush1.msra.mxu0 0.0
    %1210 = vmatprep.subr.mxu0 0.0
    %1211 = vmatpush1.msra.mxu0 0.0
    %1212 = vmatprep.subr.mxu0 0.0
    %1213 = vmatpush1.msra.mxu0 0.0
    %1214 = vmatprep.subr.mxu0 0.0
    %1215 = vmatpush1.msra.mxu0 0.0
    %1216 = vmatprep.subr.mxu0 0.0
    %1217 = vmatpush1.msra.mxu0 0.0
    %1218 = vmatprep.subr.mxu0 0.0
    %1219 = vmatpush1.msra.mxu0 0.0
    %1220 = vmatprep.subr.mxu0 0.0
    %1221 = vmatpush1.msra.mxu0 0.0
    %1222 = vmatprep.subr.mxu0 0.0
    %1223 = vmatpush1.msra.mxu0 0.0
    %1224 = vmatprep.subr.mxu0 0.0
    %1225 = vmatpush1.msra.mxu0 0.0
    %1226 = vmatprep.subr.mxu0 0.0
    %1227 = vmatpush1.msra.mxu0 0.0
    %1228 = vmatprep.subr.mxu0 0.0
    %1229 = vmatpush1.msra.mxu0 0.0
    %1230 = vmatprep.subr.mxu0 0.0
    %1231 = vmatpush1.msra.mxu0 0.0
    %1232 = vmatprep.subr.mxu0 0.0
    %1233 = vmatpush1.msra.mxu0 0.0
    %1234 = vmatprep.subr.mxu0 0.0
    %1235 = vmatpush1.msra.mxu0 0.0
    %1236 = vmatprep.subr.mxu0 0.0
    %1237 = vmatpush1.msra.mxu0 0.0
    %1238 = vmatprep.subr.mxu0 0.0
    %1239 = vmatpush1.msra.mxu0 0.0
    %1240 = vmatprep.subr.mxu0 0.0
    %1241 = vmatpush1.msra.mxu0 0.0
    %1242 = vmatprep.subr.mxu0 0.0
    %1243 = vmatpush1.msra.mxu0 0.0
    %1244 = vmatprep.subr.mxu0 0.0
    %1245 = vmatpush1.msra.mxu0 0.0
    %1246 = vmatprep.subr.mxu0 0.0
    %1247 = vmatpush1.msra.mxu0 0.0
    %1248 = vmatprep.subr.mxu0 0.0
    %1249 = vmatpush1.msra.mxu0 0.0
    %1250 = vmatprep.subr.mxu0 0.0
    %1251 = vmatpush1.msra.mxu0 0.0
    %1252 = vmatprep.mubr.f32.mxu0 0.0
    %1253 = vmatmul.mubr.f32.gmra.mrb[0].mxu0 %v1186
    %v1254 = vpop.f32.mrb[0].mxu0
    %v1255 = vadd.f32 %v973, %v1254
    %v1256 = vpop.f32.mrb[0].mxu0
    %1257 = vdwg.mxu0
    %v1258 = vxor.u32 %v1255, 2147483648
    %v1259 = vmul.f32 %v1258, 1.442695
    %v1260 = vpow.pop %v1259
    %v1261 = vadd.f32 %v1260, 1.0
    %v1262 = vrcp.pop %v1261
    %v1263 = vmul.f32 1.0, %v1262
    %v1264 = vtanh.pop %v1255
    %v1265 = vmul.f32 %v1263, %v1170
    %1267 = vrot.lane.b32.xlu0 %v1264, 96
    %v1268 = vpop.permute.xlu0 %1267
    %v1270 = vmul.f32 %v1263, %v1268
    %1272 = vrot.lane.b32.xlu0 %v1270, 16
    %v1273 = vpop.permute.xlu0 %1272
    %v1275 = vadd.f32 %v1265, %v1273
    %v1276 = vtanh.pop %v1275
    %1278 = vrot.lane.b32.xlu0 %v1276, 32
    %v1279 = vpop.permute.xlu0 %1278
    %v1281 = vmul.f32 %v1263, %v1279
    %1282 = vrot.lane.b32.xlu0 %v542, 32
    %v1283 = vpop.permute.xlu0 %1282
    %1286 = vrot.lane.b32.xlu0 %v1281, 112
    %v1287 = vpop.permute.xlu0 %1286
    %v1289 = vsel %vm967, %v1283, %v1287
    %v1291 = vsel %vm133, %v1289, 0
    %1293 = vmatprep.subr.mxu0 0.0
    %1294 = vmatpush1.msra.mxu0 %v957
    %1295 = vmatprep.subr.mxu0 0.0
    %1296 = vmatpush1.msra.mxu0 %v958
    %1297 = vmatprep.subr.mxu0 0.0
    %1298 = vmatpush1.msra.mxu0 %v959
    %1299 = vmatprep.subr.mxu0 0.0
    %1300 = vmatpush1.msra.mxu0 %v960
    %1301 = vmatprep.subr.mxu0 0.0
    %1302 = vmatpush1.msra.mxu0 %v961
    %1303 = vmatprep.subr.mxu0 0.0
    %1304 = vmatpush1.msra.mxu0 %v962
    %1305 = vmatprep.subr.mxu0 0.0
    %1306 = vmatpush1.msra.mxu0 0.0
    %1307 = vmatprep.subr.mxu0 0.0
    %1308 = vmatpush1.msra.mxu0 0.0
    %1309 = vmatprep.subr.mxu0 0.0
    %1310 = vmatpush1.msra.mxu0 0.0
    %1311 = vmatprep.subr.mxu0 0.0
    %1312 = vmatpush1.msra.mxu0 0.0
    %1313 = vmatprep.subr.mxu0 0.0
    %1314 = vmatpush1.msra.mxu0 0.0
    %1315 = vmatprep.subr.mxu0 0.0
    %1316 = vmatpush1.msra.mxu0 0.0
    %1317 = vmatprep.subr.mxu0 0.0
    %1318 = vmatpush1.msra.mxu0 0.0
    %1319 = vmatprep.subr.mxu0 0.0
    %1320 = vmatpush1.msra.mxu0 0.0
    %1321 = vmatprep.subr.mxu0 0.0
    %1322 = vmatpush1.msra.mxu0 0.0
    %1323 = vmatprep.subr.mxu0 0.0
    %1324 = vmatpush1.msra.mxu0 0.0
    %1325 = vmatprep.subr.mxu0 0.0
    %1326 = vmatpush1.msra.mxu0 0.0
    %1327 = vmatprep.subr.mxu0 0.0
    %1328 = vmatpush1.msra.mxu0 0.0
    %1329 = vmatprep.subr.mxu0 0.0
    %1330 = vmatpush1.msra.mxu0 0.0
    %1331 = vmatprep.subr.mxu0 0.0
    %1332 = vmatpush1.msra.mxu0 0.0
    %1333 = vmatprep.subr.mxu0 0.0
    %1334 = vmatpush1.msra.mxu0 0.0
    %1335 = vmatprep.subr.mxu0 0.0
    %1336 = vmatpush1.msra.mxu0 0.0
    %1337 = vmatprep.subr.mxu0 0.0
    %1338 = vmatpush1.msra.mxu0 0.0
    %1339 = vmatprep.subr.mxu0 0.0
    %1340 = vmatpush1.msra.mxu0 0.0
    %1341 = vmatprep.subr.mxu0 0.0
    %1342 = vmatpush1.msra.mxu0 0.0
    %1343 = vmatprep.subr.mxu0 0.0
    %1344 = vmatpush1.msra.mxu0 0.0
    %1345 = vmatprep.subr.mxu0 0.0
    %1346 = vmatpush1.msra.mxu0 0.0
    %1347 = vmatprep.subr.mxu0 0.0
    %1348 = vmatpush1.msra.mxu0 0.0
    %1349 = vmatprep.subr.mxu0 0.0
    %1350 = vmatpush1.msra.mxu0 0.0
    %1351 = vmatprep.subr.mxu0 0.0
    %1352 = vmatpush1.msra.mxu0 0.0
    %1353 = vmatprep.subr.mxu0 0.0
    %1354 = vmatpush1.msra.mxu0 0.0
    %1355 = vmatprep.subr.mxu0 0.0
    %1356 = vmatpush1.msra.mxu0 0.0
    %1357 = vmatprep.mubr.f32.mxu0 0.0
    %1358 = vmatmul.mubr.f32.gmra.mrb[0].mxu0 %v1291
    %v1359 = vpop.f32.mrb[0].mxu0
    %v1360 = vadd.f32 %v973, %v1359
    %v1361 = vpop.f32.mrb[0].mxu0
    %1362 = vdwg.mxu0
    %v1363 = vxor.u32 %v1360, 2147483648
    %v1364 = vmul.f32 %v1363, 1.442695
    %v1365 = vpow.pop %v1364
    %v1366 = vadd.f32 %v1365, 1.0
    %v1367 = vrcp.pop %v1366
    %v1368 = vmul.f32 1.0, %v1367
    %v1369 = vtanh.pop %v1360
    %v1370 = vmul.f32 %v1368, %v1275
    %1372 = vrot.lane.b32.xlu0 %v1369, 96
    %v1373 = vpop.permute.xlu0 %1372
    %v1375 = vmul.f32 %v1368, %v1373
    %1377 = vrot.lane.b32.xlu0 %v1375, 16
    %v1378 = vpop.permute.xlu0 %1377
    %v1380 = vadd.f32 %v1370, %v1378
    %v1381 = vtanh.pop %v1380
    %1383 = vrot.lane.b32.xlu0 %v1381, 32
    %v1384 = vpop.permute.xlu0 %1383
    %v1386 = vmul.f32 %v1368, %v1384
    %1387 = vrot.lane.b32.xlu0 %v644, 32
    %v1388 = vpop.permute.xlu0 %1387
    %1391 = vrot.lane.b32.xlu0 %v1386, 112
    %v1392 = vpop.permute.xlu0 %1391
    %v1394 = vsel %vm967, %v1388, %v1392
    %v1396 = vsel %vm133, %v1394, 0
    %1398 = vmatprep.subr.mxu0 0.0
    %1399 = vmatpush1.msra.mxu0 %v957
    %1400 = vmatprep.subr.mxu0 0.0
    %1401 = vmatpush1.msra.mxu0 %v958
    %1402 = vmatprep.subr.mxu0 0.0
    %1403 = vmatpush1.msra.mxu0 %v959
    %1404 = vmatprep.subr.mxu0 0.0
    %1405 = vmatpush1.msra.mxu0 %v960
    %1406 = vmatprep.subr.mxu0 0.0
    %1407 = vmatpush1.msra.mxu0 %v961
    %1408 = vmatprep.subr.mxu0 0.0
    %1409 = vmatpush1.msra.mxu0 %v962
    %1410 = vmatprep.subr.mxu0 0.0
    %1411 = vmatpush1.msra.mxu0 0.0
    %1412 = vmatprep.subr.mxu0 0.0
    %1413 = vmatpush1.msra.mxu0 0.0
    %1414 = vmatprep.subr.mxu0 0.0
    %1415 = vmatpush1.msra.mxu0 0.0
    %1416 = vmatprep.subr.mxu0 0.0
    %1417 = vmatpush1.msra.mxu0 0.0
    %1418 = vmatprep.subr.mxu0 0.0
    %1419 = vmatpush1.msra.mxu0 0.0
    %1420 = vmatprep.subr.mxu0 0.0
    %1421 = vmatpush1.msra.mxu0 0.0
    %1422 = vmatprep.subr.mxu0 0.0
    %1423 = vmatpush1.msra.mxu0 0.0
    %1424 = vmatprep.subr.mxu0 0.0
    %1425 = vmatpush1.msra.mxu0 0.0
    %1426 = vmatprep.subr.mxu0 0.0
    %1427 = vmatpush1.msra.mxu0 0.0
    %1428 = vmatprep.subr.mxu0 0.0
    %1429 = vmatpush1.msra.mxu0 0.0
    %1430 = vmatprep.subr.mxu0 0.0
    %1431 = vmatpush1.msra.mxu0 0.0
    %1432 = vmatprep.subr.mxu0 0.0
    %1433 = vmatpush1.msra.mxu0 0.0
    %1434 = vmatprep.subr.mxu0 0.0
    %1435 = vmatpush1.msra.mxu0 0.0
    %1436 = vmatprep.subr.mxu0 0.0
    %1437 = vmatpush1.msra.mxu0 0.0
    %1438 = vmatprep.subr.mxu0 0.0
    %1439 = vmatpush1.msra.mxu0 0.0
    %1440 = vmatprep.subr.mxu0 0.0
    %1441 = vmatpush1.msra.mxu0 0.0
    %1442 = vmatprep.subr.mxu0 0.0
    %1443 = vmatpush1.msra.mxu0 0.0
    %1444 = vmatprep.subr.mxu0 0.0
    %1445 = vmatpush1.msra.mxu0 0.0
    %1446 = vmatprep.subr.mxu0 0.0
    %1447 = vmatpush1.msra.mxu0 0.0
    %1448 = vmatprep.subr.mxu0 0.0
    %1449 = vmatpush1.msra.mxu0 0.0
    %1450 = vmatprep.subr.mxu0 0.0
    %1451 = vmatpush1.msra.mxu0 0.0
    %1452 = vmatprep.subr.mxu0 0.0
    %1453 = vmatpush1.msra.mxu0 0.0
    %1454 = vmatprep.subr.mxu0 0.0
    %1455 = vmatpush1.msra.mxu0 0.0
    %1456 = vmatprep.subr.mxu0 0.0
    %1457 = vmatpush1.msra.mxu0 0.0
    %1458 = vmatprep.subr.mxu0 0.0
    %1459 = vmatpush1.msra.mxu0 0.0
    %1460 = vmatprep.subr.mxu0 0.0
    %1461 = vmatpush1.msra.mxu0 0.0
    %1462 = vmatprep.mubr.f32.mxu0 0.0
    %1463 = vmatmul.mubr.f32.gmra.mrb[0].mxu0 %v1396
    %v1464 = vpop.f32.mrb[0].mxu0
    %v1465 = vadd.f32 %v973, %v1464
    %v1466 = vpop.f32.mrb[0].mxu0
    %1467 = vdwg.mxu0
    %v1468 = vxor.u32 %v1465, 2147483648
    %v1469 = vmul.f32 %v1468, 1.442695
    %v1470 = vpow.pop %v1469
    %v1471 = vadd.f32 %v1470, 1.0
    %v1472 = vrcp.pop %v1471
    %v1473 = vmul.f32 1.0, %v1472
    %v1474 = vtanh.pop %v1465
    %v1475 = vmul.f32 %v1473, %v1380
    %1477 = vrot.lane.b32.xlu0 %v1474, 96
    %v1478 = vpop.permute.xlu0 %1477
    %v1480 = vmul.f32 %v1473, %v1478
    %1482 = vrot.lane.b32.xlu0 %v1480, 16
    %v1483 = vpop.permute.xlu0 %1482
    %v1485 = vadd.f32 %v1475, %v1483
    %v1486 = vtanh.pop %v1485
    %1488 = vrot.lane.b32.xlu0 %v1486, 32
    %v1489 = vpop.permute.xlu0 %1488
    %v1491 = vmul.f32 %v1473, %v1489
    %1492 = vrot.lane.b32.xlu0 %v748, 32
    %v1493 = vpop.permute.xlu0 %1492
    %1496 = vrot.lane.b32.xlu0 %v1491, 112
    %v1497 = vpop.permute.xlu0 %1496
    %v1499 = vsel %vm967, %v1493, %v1497
    %v1501 = vsel %vm133, %v1499, 0
    %1503 = vmatprep.subr.mxu0 0.0
    %1504 = vmatpush1.msra.mxu0 %v957
    %1505 = vmatprep.subr.mxu0 0.0
    %1506 = vmatpush1.msra.mxu0 %v958
    %1507 = vmatprep.subr.mxu0 0.0
    %1508 = vmatpush1.msra.mxu0 %v959
    %1509 = vmatprep.subr.mxu0 0.0
    %1510 = vmatpush1.msra.mxu0 %v960
    %1511 = vmatprep.subr.mxu0 0.0
    %1512 = vmatpush1.msra.mxu0 %v961
    %1513 = vmatprep.subr.mxu0 0.0
    %1514 = vmatpush1.msra.mxu0 %v962
    %1515 = vmatprep.subr.mxu0 0.0
    %1516 = vmatpush1.msra.mxu0 0.0
    %1517 = vmatprep.subr.mxu0 0.0
    %1518 = vmatpush1.msra.mxu0 0.0
    %1519 = vmatprep.subr.mxu0 0.0
    %1520 = vmatpush1.msra.mxu0 0.0
    %1521 = vmatprep.subr.mxu0 0.0
    %1522 = vmatpush1.msra.mxu0 0.0
    %1523 = vmatprep.subr.mxu0 0.0
    %1524 = vmatpush1.msra.mxu0 0.0
    %1525 = vmatprep.subr.mxu0 0.0
    %1526 = vmatpush1.msra.mxu0 0.0
    %1527 = vmatprep.subr.mxu0 0.0
    %1528 = vmatpush1.msra.mxu0 0.0
    %1529 = vmatprep.subr.mxu0 0.0
    %1530 = vmatpush1.msra.mxu0 0.0
    %1531 = vmatprep.subr.mxu0 0.0
    %1532 = vmatpush1.msra.mxu0 0.0
    %1533 = vmatprep.subr.mxu0 0.0
    %1534 = vmatpush1.msra.mxu0 0.0
    %1535 = vmatprep.subr.mxu0 0.0
    %1536 = vmatpush1.msra.mxu0 0.0
    %1537 = vmatprep.subr.mxu0 0.0
    %1538 = vmatpush1.msra.mxu0 0.0
    %1539 = vmatprep.subr.mxu0 0.0
    %1540 = vmatpush1.msra.mxu0 0.0
    %1541 = vmatprep.subr.mxu0 0.0
    %1542 = vmatpush1.msra.mxu0 0.0
    %1543 = vmatprep.subr.mxu0 0.0
    %1544 = vmatpush1.msra.mxu0 0.0
    %1545 = vmatprep.subr.mxu0 0.0
    %1546 = vmatpush1.msra.mxu0 0.0
    %1547 = vmatprep.subr.mxu0 0.0
    %1548 = vmatpush1.msra.mxu0 0.0
    %1549 = vmatprep.subr.mxu0 0.0
    %1550 = vmatpush1.msra.mxu0 0.0
    %1551 = vmatprep.subr.mxu0 0.0
    %1552 = vmatpush1.msra.mxu0 0.0
    %1553 = vmatprep.subr.mxu0 0.0
    %1554 = vmatpush1.msra.mxu0 0.0
    %1555 = vmatprep.subr.mxu0 0.0
    %1556 = vmatpush1.msra.mxu0 0.0
    %1557 = vmatprep.subr.mxu0 0.0
    %1558 = vmatpush1.msra.mxu0 0.0
    %1559 = vmatprep.subr.mxu0 0.0
    %1560 = vmatpush1.msra.mxu0 0.0
    %1561 = vmatprep.subr.mxu0 0.0
    %1562 = vmatpush1.msra.mxu0 0.0
    %1563 = vmatprep.subr.mxu0 0.0
    %1564 = vmatpush1.msra.mxu0 0.0
    %1565 = vmatprep.subr.mxu0 0.0
    %1566 = vmatpush1.msra.mxu0 0.0
    %1567 = vmatprep.mubr.f32.mxu0 0.0
    %1568 = vmatmul.mubr.f32.gmra.mrb[0].mxu0 %v1501
    %v1569 = vpop.f32.mrb[0].mxu0
    %v1570 = vadd.f32 %v973, %v1569
    %v1571 = vpop.f32.mrb[0].mxu0
    %1572 = vdwg.mxu0
    %v1573 = vxor.u32 %v1570, 2147483648
    %v1574 = vmul.f32 %v1573, 1.442695
    %v1575 = vpow.pop %v1574
    %v1576 = vadd.f32 %v1575, 1.0
    %v1577 = vrcp.pop %v1576
    %v1578 = vmul.f32 1.0, %v1577
    %v1579 = vtanh.pop %v1570
    %v1580 = vmul.f32 %v1578, %v1485
    %1582 = vrot.lane.b32.xlu0 %v1579, 96
    %v1583 = vpop.permute.xlu0 %1582
    %v1585 = vmul.f32 %v1578, %v1583
    %1587 = vrot.lane.b32.xlu0 %v1585, 16
    %v1588 = vpop.permute.xlu0 %1587
    %v1590 = vadd.f32 %v1580, %v1588
    %v1591 = vtanh.pop %v1590
    %1593 = vrot.lane.b32.xlu0 %v1591, 32
    %v1594 = vpop.permute.xlu0 %1593
    %v1596 = vmul.f32 %v1578, %v1594
    %1597 = vrot.lane.b32.xlu0 %v852, 32
    %v1598 = vpop.permute.xlu0 %1597
    %1601 = vrot.lane.b32.xlu0 %v1596, 112
    %v1602 = vpop.permute.xlu0 %1601
    %v1604 = vsel %vm967, %v1598, %v1602
    %v1606 = vsel %vm133, %v1604, 0
    %1608 = vmatprep.subr.mxu0 0.0
    %1609 = vmatpush1.msra.mxu0 %v957
    %1610 = vmatprep.subr.mxu0 0.0
    %1611 = vmatpush1.msra.mxu0 %v958
    %1612 = vmatprep.subr.mxu0 0.0
    %1613 = vmatpush1.msra.mxu0 %v959
    %1614 = vmatprep.subr.mxu0 0.0
    %1615 = vmatpush1.msra.mxu0 %v960
    %1616 = vmatprep.subr.mxu0 0.0
    %1617 = vmatpush1.msra.mxu0 %v961
    %1618 = vmatprep.subr.mxu0 0.0
    %1619 = vmatpush1.msra.mxu0 %v962
    %1620 = vmatprep.subr.mxu0 0.0
    %1621 = vmatpush1.msra.mxu0 0.0
    %1622 = vmatprep.subr.mxu0 0.0
    %1623 = vmatpush1.msra.mxu0 0.0
    %1624 = vmatprep.subr.mxu0 0.0
    %1625 = vmatpush1.msra.mxu0 0.0
    %1626 = vmatprep.subr.mxu0 0.0
    %1627 = vmatpush1.msra.mxu0 0.0
    %1628 = vmatprep.subr.mxu0 0.0
    %1629 = vmatpush1.msra.mxu0 0.0
    %1630 = vmatprep.subr.mxu0 0.0
    %1631 = vmatpush1.msra.mxu0 0.0
    %1632 = vmatprep.subr.mxu0 0.0
    %1633 = vmatpush1.msra.mxu0 0.0
    %1634 = vmatprep.subr.mxu0 0.0
    %1635 = vmatpush1.msra.mxu0 0.0
    %1636 = vmatprep.subr.mxu0 0.0
    %1637 = vmatpush1.msra.mxu0 0.0
    %1638 = vmatprep.subr.mxu0 0.0
    %1639 = vmatpush1.msra.mxu0 0.0
    %1640 = vmatprep.subr.mxu0 0.0
    %1641 = vmatpush1.msra.mxu0 0.0
    %1642 = vmatprep.subr.mxu0 0.0
    %1643 = vmatpush1.msra.mxu0 0.0
    %1644 = vmatprep.subr.mxu0 0.0
    %1645 = vmatpush1.msra.mxu0 0.0
    %1646 = vmatprep.subr.mxu0 0.0
    %1647 = vmatpush1.msra.mxu0 0.0
    %1648 = vmatprep.subr.mxu0 0.0
    %1649 = vmatpush1.msra.mxu0 0.0
    %1650 = vmatprep.subr.mxu0 0.0
    %1651 = vmatpush1.msra.mxu0 0.0
    %1652 = vmatprep.subr.mxu0 0.0
    %1653 = vmatpush1.msra.mxu0 0.0
    %1654 = vmatprep.subr.mxu0 0.0
    %1655 = vmatpush1.msra.mxu0 0.0
    %1656 = vmatprep.subr.mxu0 0.0
    %1657 = vmatpush1.msra.mxu0 0.0
    %1658 = vmatprep.subr.mxu0 0.0
    %1659 = vmatpush1.msra.mxu0 0.0
    %1660 = vmatprep.subr.mxu0 0.0
    %1661 = vmatpush1.msra.mxu0 0.0
    %1662 = vmatprep.subr.mxu0 0.0
    %1663 = vmatpush1.msra.mxu0 0.0
    %1664 = vmatprep.subr.mxu0 0.0
    %1665 = vmatpush1.msra.mxu0 0.0
    %1666 = vmatprep.subr.mxu0 0.0
    %1667 = vmatpush1.msra.mxu0 0.0
    %1668 = vmatprep.subr.mxu0 0.0
    %1669 = vmatpush1.msra.mxu0 0.0
    %1670 = vmatprep.subr.mxu0 0.0
    %1671 = vmatpush1.msra.mxu0 0.0
    %1672 = vmatprep.mubr.f32.mxu0 0.0
    %1673 = vmatmul.mubr.f32.gmra.mrb[0].mxu0 %v1606
    %v1674 = vpop.f32.mrb[0].mxu0
    %v1675 = vadd.f32 %v973, %v1674
    %v1676 = vpop.f32.mrb[0].mxu0
    %1677 = vdwg.mxu0
    %v1678 = vxor.u32 %v1675, 2147483648
    %v1679 = vmul.f32 %v1678, 1.442695
    %v1680 = vpow.pop %v1679
    %v1681 = vadd.f32 %v1680, 1.0
    %v1682 = vrcp.pop %v1681
    %v1683 = vmul.f32 1.0, %v1682
    %v1684 = vtanh.pop %v1675
    %v1685 = vmul.f32 %v1683, %v1590
    %1687 = vrot.lane.b32.xlu0 %v1684, 96
    %v1688 = vpop.permute.xlu0 %1687
    %v1690 = vmul.f32 %v1683, %v1688
    %1692 = vrot.lane.b32.xlu0 %v1690, 16
    %v1693 = vpop.permute.xlu0 %1692
    %v1695 = vadd.f32 %v1685, %v1693
    %v1696 = vtanh.pop %v1695
    %1698 = vrot.lane.b32.xlu0 %v1696, 32
    %v1699 = vpop.permute.xlu0 %1698
    %v1701 = vmul.f32 %v1683, %v1699
    %1703 = vrot.lane.b32.xlu0 %v956, 32
    %v1704 = vpop.permute.xlu0 %1703
    %1707 = vrot.lane.b32.xlu0 %v1701, 112
    %v1708 = vpop.permute.xlu0 %1707
    %v1710 = vsel %vm967, %v1704, %v1708
    %v1712 = vsel %vm133, %v1710, 0
    %1714 = vmatprep.subr.mxu0 0.0
    %1715 = vmatpush1.msra.mxu0 %v957
    %1716 = vmatprep.subr.mxu0 0.0
    %1717 = vmatpush1.msra.mxu0 %v958
    %1718 = vmatprep.subr.mxu0 0.0
    %1719 = vmatpush1.msra.mxu0 %v959
    %1720 = vmatprep.subr.mxu0 0.0
    %1721 = vmatpush1.msra.mxu0 %v960
    %1722 = vmatprep.subr.mxu0 0.0
    %1723 = vmatpush1.msra.mxu0 %v961
    %1724 = vmatprep.subr.mxu0 0.0
    %1725 = vmatpush1.msra.mxu0 %v962
    %1726 = vmatprep.subr.mxu0 0.0
    %1727 = vmatpush1.msra.mxu0 0.0
    %1728 = vmatprep.subr.mxu0 0.0
    %1729 = vmatpush1.msra.mxu0 0.0
    %1730 = vmatprep.subr.mxu0 0.0
    %1731 = vmatpush1.msra.mxu0 0.0
    %1732 = vmatprep.subr.mxu0 0.0
    %1733 = vmatpush1.msra.mxu0 0.0
    %1734 = vmatprep.subr.mxu0 0.0
    %1735 = vmatpush1.msra.mxu0 0.0
    %1736 = vmatprep.subr.mxu0 0.0
    %1737 = vmatpush1.msra.mxu0 0.0
    %1738 = vmatprep.subr.mxu0 0.0
    %1739 = vmatpush1.msra.mxu0 0.0
    %1740 = vmatprep.subr.mxu0 0.0
    %1741 = vmatpush1.msra.mxu0 0.0
    %1742 = vmatprep.subr.mxu0 0.0
    %1743 = vmatpush1.msra.mxu0 0.0
    %1744 = vmatprep.subr.mxu0 0.0
    %1745 = vmatpush1.msra.mxu0 0.0
    %1746 = vmatprep.subr.mxu0 0.0
    %1747 = vmatpush1.msra.mxu0 0.0
    %1748 = vmatprep.subr.mxu0 0.0
    %1749 = vmatpush1.msra.mxu0 0.0
    %1750 = vmatprep.subr.mxu0 0.0
    %1751 = vmatpush1.msra.mxu0 0.0
    %1752 = vmatprep.subr.mxu0 0.0
    %1753 = vmatpush1.msra.mxu0 0.0
    %1754 = vmatprep.subr.mxu0 0.0
    %1755 = vmatpush1.msra.mxu0 0.0
    %1756 = vmatprep.subr.mxu0 0.0
    %1757 = vmatpush1.msra.mxu0 0.0
    %1758 = vmatprep.subr.mxu0 0.0
    %1759 = vmatpush1.msra.mxu0 0.0
    %1760 = vmatprep.subr.mxu0 0.0
    %1761 = vmatpush1.msra.mxu0 0.0
    %1762 = vmatprep.subr.mxu0 0.0
    %1763 = vmatpush1.msra.mxu0 0.0
    %1764 = vmatprep.subr.mxu0 0.0
    %1765 = vmatpush1.msra.mxu0 0.0
    %1766 = vmatprep.subr.mxu0 0.0
    %1767 = vmatpush1.msra.mxu0 0.0
    %1768 = vmatprep.subr.mxu0 0.0
    %1769 = vmatpush1.msra.mxu0 0.0
    %1770 = vmatprep.subr.mxu0 0.0
    %1771 = vmatpush1.msra.mxu0 0.0
    %1772 = vmatprep.subr.mxu0 0.0
    %1773 = vmatpush1.msra.mxu0 0.0
    %1774 = vmatprep.subr.mxu0 0.0
    %1775 = vmatpush1.msra.mxu0 0.0
    %1776 = vmatprep.subr.mxu0 0.0
    %1777 = vmatpush1.msra.mxu0 0.0
    %1778 = vmatprep.mubr.f32.mxu0 0.0
    %1779 = vmatmul.mubr.f32.gmra.mrb[0].mxu0 %v1712
    %v1780 = vpop.f32.mrb[0].mxu0
    %v1781 = vadd.f32 %v973, %v1780
    %v1782 = vpop.f32.mrb[0].mxu0
    %1783 = vdwg.mxu0
    %v1784 = vxor.u32 %v1781, 2147483648
    %v1785 = vmul.f32 %v1784, 1.442695
    %v1786 = vpow.pop %v1785
    %v1787 = vadd.f32 %v1786, 1.0
    %v1788 = vrcp.pop %v1787
    %v1789 = vmul.f32 1.0, %v1788
    %v1790 = vtanh.pop %v1781
    %v1791 = vmul.f32 %v1789, %v1695
    %1793 = vrot.lane.b32.xlu0 %v1790, 96
    %v1794 = vpop.permute.xlu0 %1793
    %v1796 = vmul.f32 %v1789, %v1794
    %1798 = vrot.lane.b32.xlu0 %v1796, 16
    %v1799 = vpop.permute.xlu0 %1798
    %v1801 = vadd.f32 %v1791, %v1799
    %v1802 = vtanh.pop %v1801
    %1804 = vrot.lane.b32.xlu0 %v1802, 32
    %v1805 = vpop.permute.xlu0 %1804
    %v1807 = vmul.f32 %v1789, %v1805
    %v1808 = vld [vmem:[#allocation4] sm:$0xff]
    %v1809 = vld [vmem:[#allocation4 + $0x8] sm:$0xff]
    %v1810 = vld [vmem:[#allocation4 + $0x10] sm:$0xff]
    %v1811 = vld [vmem:[#allocation4 + $0x18] sm:$0xff]
    %v1812 = vld [vmem:[#allocation4 + $0x20] sm:$0xff]
    %v1813 = vld [vmem:[#allocation4 + $0x28] sm:$0xff]
    %v1814 = vld [vmem:[%s6] sm:$0x1]
    %1815 = vrot.lane.b32.xlu0 %v1071, 80
    %v1816 = vpop.permute.xlu0 %1815
    %v1818 = vsel %vm125, %v1816, 0.0
    %v1820 = vlaneseq
    %v1821 = vshrl.u32 %v1820, 7
    %v1822 = vsub.s32 0, %v1821
    %v1823 = vrot.slane %v1814, %v1822
    %v1826 = vsel %vm133, %v1818, 0
    %1828 = vmatprep.subr.mxu0 0.0
    %1829 = vmatpush1.msra.mxu0 %v1808
    %1830 = vmatprep.subr.mxu0 0.0
    %1831 = vmatpush1.msra.mxu0 %v1809
    %1832 = vmatprep.subr.mxu0 0.0
    %1833 = vmatpush1.msra.mxu0 %v1810
    %1834 = vmatprep.subr.mxu0 0.0
    %1835 = vmatpush1.msra.mxu0 %v1811
    %1836 = vmatprep.subr.mxu0 0.0
    %1837 = vmatpush1.msra.mxu0 %v1812
    %1838 = vmatprep.subr.mxu0 0.0
    %1839 = vmatpush1.msra.mxu0 %v1813
    %1840 = vmatprep.subr.mxu0 0.0
    %1841 = vmatpush1.msra.mxu0 0.0
    %1842 = vmatprep.subr.mxu0 0.0
    %1843 = vmatpush1.msra.mxu0 0.0
    %1844 = vmatprep.subr.mxu0 0.0
    %1845 = vmatpush1.msra.mxu0 0.0
    %1846 = vmatprep.subr.mxu0 0.0
    %1847 = vmatpush1.msra.mxu0 0.0
    %1848 = vmatprep.subr.mxu0 0.0
    %1849 = vmatpush1.msra.mxu0 0.0
    %1850 = vmatprep.subr.mxu0 0.0
    %1851 = vmatpush1.msra.mxu0 0.0
    %1852 = vmatprep.subr.mxu0 0.0
    %1853 = vmatpush1.msra.mxu0 0.0
    %1854 = vmatprep.subr.mxu0 0.0
    %1855 = vmatpush1.msra.mxu0 0.0
    %1856 = vmatprep.subr.mxu0 0.0
    %1857 = vmatpush1.msra.mxu0 0.0
    %1858 = vmatprep.subr.mxu0 0.0
    %1859 = vmatpush1.msra.mxu0 0.0
    %1860 = vmatprep.subr.mxu0 0.0
    %1861 = vmatpush1.msra.mxu0 0.0
    %1862 = vmatprep.subr.mxu0 0.0
    %1863 = vmatpush1.msra.mxu0 0.0
    %1864 = vmatprep.subr.mxu0 0.0
    %1865 = vmatpush1.msra.mxu0 0.0
    %1866 = vmatprep.subr.mxu0 0.0
    %1867 = vmatpush1.msra.mxu0 0.0
    %1868 = vmatprep.subr.mxu0 0.0
    %1869 = vmatpush1.msra.mxu0 0.0
    %1870 = vmatprep.subr.mxu0 0.0
    %1871 = vmatpush1.msra.mxu0 0.0
    %1872 = vmatprep.subr.mxu0 0.0
    %1873 = vmatpush1.msra.mxu0 0.0
    %1874 = vmatprep.subr.mxu0 0.0
    %1875 = vmatpush1.msra.mxu0 0.0
    %1876 = vmatprep.subr.mxu0 0.0
    %1877 = vmatpush1.msra.mxu0 0.0
    %1878 = vmatprep.subr.mxu0 0.0
    %1879 = vmatpush1.msra.mxu0 0.0
    %1880 = vmatprep.subr.mxu0 0.0
    %1881 = vmatpush1.msra.mxu0 0.0
    %1882 = vmatprep.subr.mxu0 0.0
    %1883 = vmatpush1.msra.mxu0 0.0
    %1884 = vmatprep.subr.mxu0 0.0
    %1885 = vmatpush1.msra.mxu0 0.0
    %1886 = vmatprep.subr.mxu0 0.0
    %1887 = vmatpush1.msra.mxu0 0.0
    %1888 = vmatprep.subr.mxu0 0.0
    %1889 = vmatpush1.msra.mxu0 0.0
    %1890 = vmatprep.subr.mxu0 0.0
    %1891 = vmatpush1.msra.mxu0 0.0
    %1892 = vmatprep.mubr.f32.mxu0 0.0
    %1893 = vmatmul.mubr.f32.gmra.mrb[0].mxu0 %v1826
    %v1894 = vpop.f32.mrb[0].mxu0
    %v1895 = vadd.f32 %v1823, %v1894
    %v1896 = vpop.f32.mrb[0].mxu0
    %1897 = vdwg.mxu0
    %v1898 = vxor.u32 %v1895, 2147483648
    %v1899 = vmul.f32 %v1898, 1.442695
    %v1900 = vpow.pop %v1899
    %v1901 = vadd.f32 %v1900, 1.0
    %v1902 = vrcp.pop %v1901
    %v1903 = vmul.f32 1.0, %v1902
    %v1904 = vtanh.pop %v1895
    %v1905 = vmul.f32 %v1903, 0.0
    %1907 = vrot.lane.b32.xlu0 %v1904, 64
    %v1908 = vpop.permute.xlu0 %1907
    %v1910 = vmul.f32 %v1903, %v1908
    %1912 = vrot.lane.b32.xlu0 %v1910, 32
    %v1913 = vpop.permute.xlu0 %1912
    %v1915 = vadd.f32 %v1905, %v1913
    %v1916 = vtanh.pop %v1915
    %1918 = vrot.lane.b32.xlu0 %v1916, 64
    %v1919 = vpop.permute.xlu0 %1918
    %v1921 = vmul.f32 %v1903, %v1919
    %1922 = vrot.lane.b32.xlu0 %v1176, 80
    %v1923 = vpop.permute.xlu0 %1922
    %1926 = vrot.lane.b32.xlu0 %v1921, 48
    %v1927 = vpop.permute.xlu0 %1926
    %v1929 = vsel %vm125, %v1923, %v1927
    %v1931 = vsel %vm133, %v1929, 0
    %1933 = vmatprep.subr.mxu0 0.0
    %1934 = vmatpush1.msra.mxu0 %v1808
    %1935 = vmatprep.subr.mxu0 0.0
    %1936 = vmatpush1.msra.mxu0 %v1809
    %1937 = vmatprep.subr.mxu0 0.0
    %1938 = vmatpush1.msra.mxu0 %v1810
    %1939 = vmatprep.subr.mxu0 0.0
    %1940 = vmatpush1.msra.mxu0 %v1811
    %1941 = vmatprep.subr.mxu0 0.0
    %1942 = vmatpush1.msra.mxu0 %v1812
    %1943 = vmatprep.subr.mxu0 0.0
    %1944 = vmatpush1.msra.mxu0 %v1813
    %1945 = vmatprep.subr.mxu0 0.0
    %1946 = vmatpush1.msra.mxu0 0.0
    %1947 = vmatprep.subr.mxu0 0.0
    %1948 = vmatpush1.msra.mxu0 0.0
    %1949 = vmatprep.subr.mxu0 0.0
    %1950 = vmatpush1.msra.mxu0 0.0
    %1951 = vmatprep.subr.mxu0 0.0
    %1952 = vmatpush1.msra.mxu0 0.0
    %1953 = vmatprep.subr.mxu0 0.0
    %1954 = vmatpush1.msra.mxu0 0.0
    %1955 = vmatprep.subr.mxu0 0.0
    %1956 = vmatpush1.msra.mxu0 0.0
    %1957 = vmatprep.subr.mxu0 0.0
    %1958 = vmatpush1.msra.mxu0 0.0
    %1959 = vmatprep.subr.mxu0 0.0
    %1960 = vmatpush1.msra.mxu0 0.0
    %1961 = vmatprep.subr.mxu0 0.0
    %1962 = vmatpush1.msra.mxu0 0.0
    %1963 = vmatprep.subr.mxu0 0.0
    %1964 = vmatpush1.msra.mxu0 0.0
    %1965 = vmatprep.subr.mxu0 0.0
    %1966 = vmatpush1.msra.mxu0 0.0
    %1967 = vmatprep.subr.mxu0 0.0
    %1968 = vmatpush1.msra.mxu0 0.0
    %1969 = vmatprep.subr.mxu0 0.0
    %1970 = vmatpush1.msra.mxu0 0.0
    %1971 = vmatprep.subr.mxu0 0.0
    %1972 = vmatpush1.msra.mxu0 0.0
    %1973 = vmatprep.subr.mxu0 0.0
    %1974 = vmatpush1.msra.mxu0 0.0
    %1975 = vmatprep.subr.mxu0 0.0
    %1976 = vmatpush1.msra.mxu0 0.0
    %1977 = vmatprep.subr.mxu0 0.0
    %1978 = vmatpush1.msra.mxu0 0.0
    %1979 = vmatprep.subr.mxu0 0.0
    %1980 = vmatpush1.msra.mxu0 0.0
    %1981 = vmatprep.subr.mxu0 0.0
    %1982 = vmatpush1.msra.mxu0 0.0
    %1983 = vmatprep.subr.mxu0 0.0
    %1984 = vmatpush1.msra.mxu0 0.0
    %1985 = vmatprep.subr.mxu0 0.0
    %1986 = vmatpush1.msra.mxu0 0.0
    %1987 = vmatprep.subr.mxu0 0.0
    %1988 = vmatpush1.msra.mxu0 0.0
    %1989 = vmatprep.subr.mxu0 0.0
    %1990 = vmatpush1.msra.mxu0 0.0
    %1991 = vmatprep.subr.mxu0 0.0
    %1992 = vmatpush1.msra.mxu0 0.0
    %1993 = vmatprep.subr.mxu0 0.0
    %1994 = vmatpush1.msra.mxu0 0.0
    %1995 = vmatprep.subr.mxu0 0.0
    %1996 = vmatpush1.msra.mxu0 0.0
    %1997 = vmatprep.mubr.f32.mxu0 0.0
    %1998 = vmatmul.mubr.f32.gmra.mrb[0].mxu0 %v1931
    %v1999 = vpop.f32.mrb[0].mxu0
    %v2000 = vadd.f32 %v1823, %v1999
    %v2001 = vpop.f32.mrb[0].mxu0
    %2002 = vdwg.mxu0
    %v2003 = vxor.u32 %v2000, 2147483648
    %v2004 = vmul.f32 %v2003, 1.442695
    %v2005 = vpow.pop %v2004
    %v2006 = vadd.f32 %v2005, 1.0
    %v2007 = vrcp.pop %v2006
    %v2008 = vmul.f32 1.0, %v2007
    %v2009 = vtanh.pop %v2000
    %v2010 = vmul.f32 %v2008, %v1915
    %2012 = vrot.lane.b32.xlu0 %v2009, 64
    %v2013 = vpop.permute.xlu0 %2012
    %v2015 = vmul.f32 %v2008, %v2013
    %2017 = vrot.lane.b32.xlu0 %v2015, 32
    %v2018 = vpop.permute.xlu0 %2017
    %v2020 = vadd.f32 %v2010, %v2018
    %v2021 = vtanh.pop %v2020
    %2023 = vrot.lane.b32.xlu0 %v2021, 64
    %v2024 = vpop.permute.xlu0 %2023
    %v2026 = vmul.f32 %v2008, %v2024
    %2027 = vrot.lane.b32.xlu0 %v1281, 80
    %v2028 = vpop.permute.xlu0 %2027
    %2031 = vrot.lane.b32.xlu0 %v2026, 48
    %v2032 = vpop.permute.xlu0 %2031
    %v2034 = vsel %vm125, %v2028, %v2032
    %v2036 = vsel %vm133, %v2034, 0
    %2038 = vmatprep.subr.mxu0 0.0
    %2039 = vmatpush1.msra.mxu0 %v1808
    %2040 = vmatprep.subr.mxu0 0.0
    %2041 = vmatpush1.msra.mxu0 %v1809
    %2042 = vmatprep.subr.mxu0 0.0
    %2043 = vmatpush1.msra.mxu0 %v1810
    %2044 = vmatprep.subr.mxu0 0.0
    %2045 = vmatpush1.msra.mxu0 %v1811
    %2046 = vmatprep.subr.mxu0 0.0
    %2047 = vmatpush1.msra.mxu0 %v1812
    %2048 = vmatprep.subr.mxu0 0.0
    %2049 = vmatpush1.msra.mxu0 %v1813
    %2050 = vmatprep.subr.mxu0 0.0
    %2051 = vmatpush1.msra.mxu0 0.0
    %2052 = vmatprep.subr.mxu0 0.0
    %2053 = vmatpush1.msra.mxu0 0.0
    %2054 = vmatprep.subr.mxu0 0.0
    %2055 = vmatpush1.msra.mxu0 0.0
    %2056 = vmatprep.subr.mxu0 0.0
    %2057 = vmatpush1.msra.mxu0 0.0
    %2058 = vmatprep.subr.mxu0 0.0
    %2059 = vmatpush1.msra.mxu0 0.0
    %2060 = vmatprep.subr.mxu0 0.0
    %2061 = vmatpush1.msra.mxu0 0.0
    %2062 = vmatprep.subr.mxu0 0.0
    %2063 = vmatpush1.msra.mxu0 0.0
    %2064 = vmatprep.subr.mxu0 0.0
    %2065 = vmatpush1.msra.mxu0 0.0
    %2066 = vmatprep.subr.mxu0 0.0
    %2067 = vmatpush1.msra.mxu0 0.0
    %2068 = vmatprep.subr.mxu0 0.0
    %2069 = vmatpush1.msra.mxu0 0.0
    %2070 = vmatprep.subr.mxu0 0.0
    %2071 = vmatpush1.msra.mxu0 0.0
    %2072 = vmatprep.subr.mxu0 0.0
    %2073 = vmatpush1.msra.mxu0 0.0
    %2074 = vmatprep.subr.mxu0 0.0
    %2075 = vmatpush1.msra.mxu0 0.0
    %2076 = vmatprep.subr.mxu0 0.0
    %2077 = vmatpush1.msra.mxu0 0.0
    %2078 = vmatprep.subr.mxu0 0.0
    %2079 = vmatpush1.msra.mxu0 0.0
    %2080 = vmatprep.subr.mxu0 0.0
    %2081 = vmatpush1.msra.mxu0 0.0
    %2082 = vmatprep.subr.mxu0 0.0
    %2083 = vmatpush1.msra.mxu0 0.0
    %2084 = vmatprep.subr.mxu0 0.0
    %2085 = vmatpush1.msra.mxu0 0.0
    %2086 = vmatprep.subr.mxu0 0.0
    %2087 = vmatpush1.msra.mxu0 0.0
    %2088 = vmatprep.subr.mxu0 0.0
    %2089 = vmatpush1.msra.mxu0 0.0
    %2090 = vmatprep.subr.mxu0 0.0
    %2091 = vmatpush1.msra.mxu0 0.0
    %2092 = vmatprep.subr.mxu0 0.0
    %2093 = vmatpush1.msra.mxu0 0.0
    %2094 = vmatprep.subr.mxu0 0.0
    %2095 = vmatpush1.msra.mxu0 0.0
    %2096 = vmatprep.subr.mxu0 0.0
    %2097 = vmatpush1.msra.mxu0 0.0
    %2098 = vmatprep.subr.mxu0 0.0
    %2099 = vmatpush1.msra.mxu0 0.0
    %2100 = vmatprep.subr.mxu0 0.0
    %2101 = vmatpush1.msra.mxu0 0.0
    %2102 = vmatprep.mubr.f32.mxu0 0.0
    %2103 = vmatmul.mubr.f32.gmra.mrb[0].mxu0 %v2036
    %v2104 = vpop.f32.mrb[0].mxu0
    %v2105 = vadd.f32 %v1823, %v2104
    %v2106 = vpop.f32.mrb[0].mxu0
    %2107 = vdwg.mxu0
    %v2108 = vxor.u32 %v2105, 2147483648
    %v2109 = vmul.f32 %v2108, 1.442695
    %v2110 = vpow.pop %v2109
    %v2111 = vadd.f32 %v2110, 1.0
    %v2112 = vrcp.pop %v2111
    %v2113 = vmul.f32 1.0, %v2112
    %v2114 = vtanh.pop %v2105
    %v2115 = vmul.f32 %v2113, %v2020
    %2117 = vrot.lane.b32.xlu0 %v2114, 64
    %v2118 = vpop.permute.xlu0 %2117
    %v2120 = vmul.f32 %v2113, %v2118
    %2122 = vrot.lane.b32.xlu0 %v2120, 32
    %v2123 = vpop.permute.xlu0 %2122
    %v2125 = vadd.f32 %v2115, %v2123
    %v2126 = vtanh.pop %v2125
    %2128 = vrot.lane.b32.xlu0 %v2126, 64
    %v2129 = vpop.permute.xlu0 %2128
    %v2131 = vmul.f32 %v2113, %v2129
    %2132 = vrot.lane.b32.xlu0 %v1386, 80
    %v2133 = vpop.permute.xlu0 %2132
    %2136 = vrot.lane.b32.xlu0 %v2131, 48
    %v2137 = vpop.permute.xlu0 %2136
    %v2139 = vsel %vm125, %v2133, %v2137
    %v2141 = vsel %vm133, %v2139, 0
    %2143 = vmatprep.subr.mxu0 0.0
    %2144 = vmatpush1.msra.mxu0 %v1808
    %2145 = vmatprep.subr.mxu0 0.0
    %2146 = vmatpush1.msra.mxu0 %v1809
    %2147 = vmatprep.subr.mxu0 0.0
    %2148 = vmatpush1.msra.mxu0 %v1810
    %2149 = vmatprep.subr.mxu0 0.0
    %2150 = vmatpush1.msra.mxu0 %v1811
    %2151 = vmatprep.subr.mxu0 0.0
    %2152 = vmatpush1.msra.mxu0 %v1812
    %2153 = vmatprep.subr.mxu0 0.0
    %2154 = vmatpush1.msra.mxu0 %v1813
    %2155 = vmatprep.subr.mxu0 0.0
    %2156 = vmatpush1.msra.mxu0 0.0
    %2157 = vmatprep.subr.mxu0 0.0
    %2158 = vmatpush1.msra.mxu0 0.0
    %2159 = vmatprep.subr.mxu0 0.0
    %2160 = vmatpush1.msra.mxu0 0.0
    %2161 = vmatprep.subr.mxu0 0.0
    %2162 = vmatpush1.msra.mxu0 0.0
    %2163 = vmatprep.subr.mxu0 0.0
    %2164 = vmatpush1.msra.mxu0 0.0
    %2165 = vmatprep.subr.mxu0 0.0
    %2166 = vmatpush1.msra.mxu0 0.0
    %2167 = vmatprep.subr.mxu0 0.0
    %2168 = vmatpush1.msra.mxu0 0.0
    %2169 = vmatprep.subr.mxu0 0.0
    %2170 = vmatpush1.msra.mxu0 0.0
    %2171 = vmatprep.subr.mxu0 0.0
    %2172 = vmatpush1.msra.mxu0 0.0
    %2173 = vmatprep.subr.mxu0 0.0
    %2174 = vmatpush1.msra.mxu0 0.0
    %2175 = vmatprep.subr.mxu0 0.0
    %2176 = vmatpush1.msra.mxu0 0.0
    %2177 = vmatprep.subr.mxu0 0.0
    %2178 = vmatpush1.msra.mxu0 0.0
    %2179 = vmatprep.subr.mxu0 0.0
    %2180 = vmatpush1.msra.mxu0 0.0
    %2181 = vmatprep.subr.mxu0 0.0
    %2182 = vmatpush1.msra.mxu0 0.0
    %2183 = vmatprep.subr.mxu0 0.0
    %2184 = vmatpush1.msra.mxu0 0.0
    %2185 = vmatprep.subr.mxu0 0.0
    %2186 = vmatpush1.msra.mxu0 0.0
    %2187 = vmatprep.subr.mxu0 0.0
    %2188 = vmatpush1.msra.mxu0 0.0
    %2189 = vmatprep.subr.mxu0 0.0
    %2190 = vmatpush1.msra.mxu0 0.0
    %2191 = vmatprep.subr.mxu0 0.0
    %2192 = vmatpush1.msra.mxu0 0.0
    %2193 = vmatprep.subr.mxu0 0.0
    %2194 = vmatpush1.msra.mxu0 0.0
    %2195 = vmatprep.subr.mxu0 0.0
    %2196 = vmatpush1.msra.mxu0 0.0
    %2197 = vmatprep.subr.mxu0 0.0
    %2198 = vmatpush1.msra.mxu0 0.0
    %2199 = vmatprep.subr.mxu0 0.0
    %2200 = vmatpush1.msra.mxu0 0.0
    %2201 = vmatprep.subr.mxu0 0.0
    %2202 = vmatpush1.msra.mxu0 0.0
    %2203 = vmatprep.subr.mxu0 0.0
    %2204 = vmatpush1.msra.mxu0 0.0
    %2205 = vmatprep.subr.mxu0 0.0
    %2206 = vmatpush1.msra.mxu0 0.0
    %2207 = vmatprep.mubr.f32.mxu0 0.0
    %2208 = vmatmul.mubr.f32.gmra.mrb[0].mxu0 %v2141
    %v2209 = vpop.f32.mrb[0].mxu0
    %v2210 = vadd.f32 %v1823, %v2209
    %v2211 = vpop.f32.mrb[0].mxu0
    %2212 = vdwg.mxu0
    %v2213 = vxor.u32 %v2210, 2147483648
    %v2214 = vmul.f32 %v2213, 1.442695
    %v2215 = vpow.pop %v2214
    %v2216 = vadd.f32 %v2215, 1.0
    %v2217 = vrcp.pop %v2216
    %v2218 = vmul.f32 1.0, %v2217
    %v2219 = vtanh.pop %v2210
    %v2220 = vmul.f32 %v2218, %v2125
    %2222 = vrot.lane.b32.xlu0 %v2219, 64
    %v2223 = vpop.permute.xlu0 %2222
    %v2225 = vmul.f32 %v2218, %v2223
    %2227 = vrot.lane.b32.xlu0 %v2225, 32
    %v2228 = vpop.permute.xlu0 %2227
    %v2230 = vadd.f32 %v2220, %v2228
    %v2231 = vtanh.pop %v2230
    %2233 = vrot.lane.b32.xlu0 %v2231, 64
    %v2234 = vpop.permute.xlu0 %2233
    %v2236 = vmul.f32 %v2218, %v2234
    %2237 = vrot.lane.b32.xlu0 %v1491, 80
    %v2238 = vpop.permute.xlu0 %2237
    %2241 = vrot.lane.b32.xlu0 %v2236, 48
    %v2242 = vpop.permute.xlu0 %2241
    %v2244 = vsel %vm125, %v2238, %v2242
    %v2246 = vsel %vm133, %v2244, 0
    %2248 = vmatprep.subr.mxu0 0.0
    %2249 = vmatpush1.msra.mxu0 %v1808
    %2250 = vmatprep.subr.mxu0 0.0
    %2251 = vmatpush1.msra.mxu0 %v1809
    %2252 = vmatprep.subr.mxu0 0.0
    %2253 = vmatpush1.msra.mxu0 %v1810
    %2254 = vmatprep.subr.mxu0 0.0
    %2255 = vmatpush1.msra.mxu0 %v1811
    %2256 = vmatprep.subr.mxu0 0.0
    %2257 = vmatpush1.msra.mxu0 %v1812
    %2258 = vmatprep.subr.mxu0 0.0
    %2259 = vmatpush1.msra.mxu0 %v1813
    %2260 = vmatprep.subr.mxu0 0.0
    %2261 = vmatpush1.msra.mxu0 0.0
    %2262 = vmatprep.subr.mxu0 0.0
    %2263 = vmatpush1.msra.mxu0 0.0
    %2264 = vmatprep.subr.mxu0 0.0
    %2265 = vmatpush1.msra.mxu0 0.0
    %2266 = vmatprep.subr.mxu0 0.0
    %2267 = vmatpush1.msra.mxu0 0.0
    %2268 = vmatprep.subr.mxu0 0.0
    %2269 = vmatpush1.msra.mxu0 0.0
    %2270 = vmatprep.subr.mxu0 0.0
    %2271 = vmatpush1.msra.mxu0 0.0
    %2272 = vmatprep.subr.mxu0 0.0
    %2273 = vmatpush1.msra.mxu0 0.0
    %2274 = vmatprep.subr.mxu0 0.0
    %2275 = vmatpush1.msra.mxu0 0.0
    %2276 = vmatprep.subr.mxu0 0.0
    %2277 = vmatpush1.msra.mxu0 0.0
    %2278 = vmatprep.subr.mxu0 0.0
    %2279 = vmatpush1.msra.mxu0 0.0
    %2280 = vmatprep.subr.mxu0 0.0
    %2281 = vmatpush1.msra.mxu0 0.0
    %2282 = vmatprep.subr.mxu0 0.0
    %2283 = vmatpush1.msra.mxu0 0.0
    %2284 = vmatprep.subr.mxu0 0.0
    %2285 = vmatpush1.msra.mxu0 0.0
    %2286 = vmatprep.subr.mxu0 0.0
    %2287 = vmatpush1.msra.mxu0 0.0
    %2288 = vmatprep.subr.mxu0 0.0
    %2289 = vmatpush1.msra.mxu0 0.0
    %2290 = vmatprep.subr.mxu0 0.0
    %2291 = vmatpush1.msra.mxu0 0.0
    %2292 = vmatprep.subr.mxu0 0.0
    %2293 = vmatpush1.msra.mxu0 0.0
    %2294 = vmatprep.subr.mxu0 0.0
    %2295 = vmatpush1.msra.mxu0 0.0
    %2296 = vmatprep.subr.mxu0 0.0
    %2297 = vmatpush1.msra.mxu0 0.0
    %2298 = vmatprep.subr.mxu0 0.0
    %2299 = vmatpush1.msra.mxu0 0.0
    %2300 = vmatprep.subr.mxu0 0.0
    %2301 = vmatpush1.msra.mxu0 0.0
    %2302 = vmatprep.subr.mxu0 0.0
    %2303 = vmatpush1.msra.mxu0 0.0
    %2304 = vmatprep.subr.mxu0 0.0
    %2305 = vmatpush1.msra.mxu0 0.0
    %2306 = vmatprep.subr.mxu0 0.0
    %2307 = vmatpush1.msra.mxu0 0.0
    %2308 = vmatprep.subr.mxu0 0.0
    %2309 = vmatpush1.msra.mxu0 0.0
    %2310 = vmatprep.subr.mxu0 0.0
    %2311 = vmatpush1.msra.mxu0 0.0
    %2312 = vmatprep.mubr.f32.mxu0 0.0
    %2313 = vmatmul.mubr.f32.gmra.mrb[0].mxu0 %v2246
    %v2314 = vpop.f32.mrb[0].mxu0
    %v2315 = vadd.f32 %v1823, %v2314
    %v2316 = vpop.f32.mrb[0].mxu0
    %2317 = vdwg.mxu0
    %v2318 = vxor.u32 %v2315, 2147483648
    %v2319 = vmul.f32 %v2318, 1.442695
    %v2320 = vpow.pop %v2319
    %v2321 = vadd.f32 %v2320, 1.0
    %v2322 = vrcp.pop %v2321
    %v2323 = vmul.f32 1.0, %v2322
    %v2324 = vtanh.pop %v2315
    %v2325 = vmul.f32 %v2323, %v2230
    %2327 = vrot.lane.b32.xlu0 %v2324, 64
    %v2328 = vpop.permute.xlu0 %2327
    %v2330 = vmul.f32 %v2323, %v2328
    %2332 = vrot.lane.b32.xlu0 %v2330, 32
    %v2333 = vpop.permute.xlu0 %2332
    %v2335 = vadd.f32 %v2325, %v2333
    %v2336 = vtanh.pop %v2335
    %2338 = vrot.lane.b32.xlu0 %v2336, 64
    %v2339 = vpop.permute.xlu0 %2338
    %v2341 = vmul.f32 %v2323, %v2339
    %2342 = vrot.lane.b32.xlu0 %v1596, 80
    %v2343 = vpop.permute.xlu0 %2342
    %2346 = vrot.lane.b32.xlu0 %v2341, 48
    %v2347 = vpop.permute.xlu0 %2346
    %v2349 = vsel %vm125, %v2343, %v2347
    %v2351 = vsel %vm133, %v2349, 0
    %2353 = vmatprep.subr.mxu0 0.0
    %2354 = vmatpush1.msra.mxu0 %v1808
    %2355 = vmatprep.subr.mxu0 0.0
    %2356 = vmatpush1.msra.mxu0 %v1809
    %2357 = vmatprep.subr.mxu0 0.0
    %2358 = vmatpush1.msra.mxu0 %v1810
    %2359 = vmatprep.subr.mxu0 0.0
    %2360 = vmatpush1.msra.mxu0 %v1811
    %2361 = vmatprep.subr.mxu0 0.0
    %2362 = vmatpush1.msra.mxu0 %v1812
    %2363 = vmatprep.subr.mxu0 0.0
    %2364 = vmatpush1.msra.mxu0 %v1813
    %2365 = vmatprep.subr.mxu0 0.0
    %2366 = vmatpush1.msra.mxu0 0.0
    %2367 = vmatprep.subr.mxu0 0.0
    %2368 = vmatpush1.msra.mxu0 0.0
    %2369 = vmatprep.subr.mxu0 0.0
    %2370 = vmatpush1.msra.mxu0 0.0
    %2371 = vmatprep.subr.mxu0 0.0
    %2372 = vmatpush1.msra.mxu0 0.0
    %2373 = vmatprep.subr.mxu0 0.0
    %2374 = vmatpush1.msra.mxu0 0.0
    %2375 = vmatprep.subr.mxu0 0.0
    %2376 = vmatpush1.msra.mxu0 0.0
    %2377 = vmatprep.subr.mxu0 0.0
    %2378 = vmatpush1.msra.mxu0 0.0
    %2379 = vmatprep.subr.mxu0 0.0
    %2380 = vmatpush1.msra.mxu0 0.0
    %2381 = vmatprep.subr.mxu0 0.0
    %2382 = vmatpush1.msra.mxu0 0.0
    %2383 = vmatprep.subr.mxu0 0.0
    %2384 = vmatpush1.msra.mxu0 0.0
    %2385 = vmatprep.subr.mxu0 0.0
    %2386 = vmatpush1.msra.mxu0 0.0
    %2387 = vmatprep.subr.mxu0 0.0
    %2388 = vmatpush1.msra.mxu0 0.0
    %2389 = vmatprep.subr.mxu0 0.0
    %2390 = vmatpush1.msra.mxu0 0.0
    %2391 = vmatprep.subr.mxu0 0.0
    %2392 = vmatpush1.msra.mxu0 0.0
    %2393 = vmatprep.subr.mxu0 0.0
    %2394 = vmatpush1.msra.mxu0 0.0
    %2395 = vmatprep.subr.mxu0 0.0
    %2396 = vmatpush1.msra.mxu0 0.0
    %2397 = vmatprep.subr.mxu0 0.0
    %2398 = vmatpush1.msra.mxu0 0.0
    %2399 = vmatprep.subr.mxu0 0.0
    %2400 = vmatpush1.msra.mxu0 0.0
    %2401 = vmatprep.subr.mxu0 0.0
    %2402 = vmatpush1.msra.mxu0 0.0
    %2403 = vmatprep.subr.mxu0 0.0
    %2404 = vmatpush1.msra.mxu0 0.0
    %2405 = vmatprep.subr.mxu0 0.0
    %2406 = vmatpush1.msra.mxu0 0.0
    %2407 = vmatprep.subr.mxu0 0.0
    %2408 = vmatpush1.msra.mxu0 0.0
    %2409 = vmatprep.subr.mxu0 0.0
    %2410 = vmatpush1.msra.mxu0 0.0
    %2411 = vmatprep.subr.mxu0 0.0
    %2412 = vmatpush1.msra.mxu0 0.0
    %2413 = vmatprep.subr.mxu0 0.0
    %2414 = vmatpush1.msra.mxu0 0.0
    %2415 = vmatprep.subr.mxu0 0.0
    %2416 = vmatpush1.msra.mxu0 0.0
    %2417 = vmatprep.mubr.f32.mxu0 0.0
    %2418 = vmatmul.mubr.f32.gmra.mrb[0].mxu0 %v2351
    %v2419 = vpop.f32.mrb[0].mxu0
    %v2420 = vadd.f32 %v1823, %v2419
    %v2421 = vpop.f32.mrb[0].mxu0
    %2422 = vdwg.mxu0
    %v2423 = vxor.u32 %v2420, 2147483648
    %v2424 = vmul.f32 %v2423, 1.442695
    %v2425 = vpow.pop %v2424
    %v2426 = vadd.f32 %v2425, 1.0
    %v2427 = vrcp.pop %v2426
    %v2428 = vmul.f32 1.0, %v2427
    %v2429 = vtanh.pop %v2420
    %v2430 = vmul.f32 %v2428, %v2335
    %2432 = vrot.lane.b32.xlu0 %v2429, 64
    %v2433 = vpop.permute.xlu0 %2432
    %v2435 = vmul.f32 %v2428, %v2433
    %2437 = vrot.lane.b32.xlu0 %v2435, 32
    %v2438 = vpop.permute.xlu0 %2437
    %v2440 = vadd.f32 %v2430, %v2438
    %v2441 = vtanh.pop %v2440
    %2443 = vrot.lane.b32.xlu0 %v2441, 64
    %v2444 = vpop.permute.xlu0 %2443
    %v2446 = vmul.f32 %v2428, %v2444
    %2447 = vrot.lane.b32.xlu0 %v1701, 80
    %v2448 = vpop.permute.xlu0 %2447
    %2451 = vrot.lane.b32.xlu0 %v2446, 48
    %v2452 = vpop.permute.xlu0 %2451
    %v2454 = vsel %vm125, %v2448, %v2452
    %v2456 = vsel %vm133, %v2454, 0
    %2458 = vmatprep.subr.mxu0 0.0
    %2459 = vmatpush1.msra.mxu0 %v1808
    %2460 = vmatprep.subr.mxu0 0.0
    %2461 = vmatpush1.msra.mxu0 %v1809
    %2462 = vmatprep.subr.mxu0 0.0
    %2463 = vmatpush1.msra.mxu0 %v1810
    %2464 = vmatprep.subr.mxu0 0.0
    %2465 = vmatpush1.msra.mxu0 %v1811
    %2466 = vmatprep.subr.mxu0 0.0
    %2467 = vmatpush1.msra.mxu0 %v1812
    %2468 = vmatprep.subr.mxu0 0.0
    %2469 = vmatpush1.msra.mxu0 %v1813
    %2470 = vmatprep.subr.mxu0 0.0
    %2471 = vmatpush1.msra.mxu0 0.0
    %2472 = vmatprep.subr.mxu0 0.0
    %2473 = vmatpush1.msra.mxu0 0.0
    %2474 = vmatprep.subr.mxu0 0.0
    %2475 = vmatpush1.msra.mxu0 0.0
    %2476 = vmatprep.subr.mxu0 0.0
    %2477 = vmatpush1.msra.mxu0 0.0
    %2478 = vmatprep.subr.mxu0 0.0
    %2479 = vmatpush1.msra.mxu0 0.0
    %2480 = vmatprep.subr.mxu0 0.0
    %2481 = vmatpush1.msra.mxu0 0.0
    %2482 = vmatprep.subr.mxu0 0.0
    %2483 = vmatpush1.msra.mxu0 0.0
    %2484 = vmatprep.subr.mxu0 0.0
    %2485 = vmatpush1.msra.mxu0 0.0
    %2486 = vmatprep.subr.mxu0 0.0
    %2487 = vmatpush1.msra.mxu0 0.0
    %2488 = vmatprep.subr.mxu0 0.0
    %2489 = vmatpush1.msra.mxu0 0.0
    %2490 = vmatprep.subr.mxu0 0.0
    %2491 = vmatpush1.msra.mxu0 0.0
    %2492 = vmatprep.subr.mxu0 0.0
    %2493 = vmatpush1.msra.mxu0 0.0
    %2494 = vmatprep.subr.mxu0 0.0
    %2495 = vmatpush1.msra.mxu0 0.0
    %2496 = vmatprep.subr.mxu0 0.0
    %2497 = vmatpush1.msra.mxu0 0.0
    %2498 = vmatprep.subr.mxu0 0.0
    %2499 = vmatpush1.msra.mxu0 0.0
    %2500 = vmatprep.subr.mxu0 0.0
    %2501 = vmatpush1.msra.mxu0 0.0
    %2502 = vmatprep.subr.mxu0 0.0
    %2503 = vmatpush1.msra.mxu0 0.0
    %2504 = vmatprep.subr.mxu0 0.0
    %2505 = vmatpush1.msra.mxu0 0.0
    %2506 = vmatprep.subr.mxu0 0.0
    %2507 = vmatpush1.msra.mxu0 0.0
    %2508 = vmatprep.subr.mxu0 0.0
    %2509 = vmatpush1.msra.mxu0 0.0
    %2510 = vmatprep.subr.mxu0 0.0
    %2511 = vmatpush1.msra.mxu0 0.0
    %2512 = vmatprep.subr.mxu0 0.0
    %2513 = vmatpush1.msra.mxu0 0.0
    %2514 = vmatprep.subr.mxu0 0.0
    %2515 = vmatpush1.msra.mxu0 0.0
    %2516 = vmatprep.subr.mxu0 0.0
    %2517 = vmatpush1.msra.mxu0 0.0
    %2518 = vmatprep.subr.mxu0 0.0
    %2519 = vmatpush1.msra.mxu0 0.0
    %2520 = vmatprep.subr.mxu0 0.0
    %2521 = vmatpush1.msra.mxu0 0.0
    %2522 = vmatprep.mubr.f32.mxu0 0.0
    %2523 = vmatmul.mubr.f32.gmra.mrb[0].mxu0 %v2456
    %v2524 = vpop.f32.mrb[0].mxu0
    %v2525 = vadd.f32 %v1823, %v2524
    %v2526 = vpop.f32.mrb[0].mxu0
    %2527 = vdwg.mxu0
    %v2528 = vxor.u32 %v2525, 2147483648
    %v2529 = vmul.f32 %v2528, 1.442695
    %v2530 = vpow.pop %v2529
    %v2531 = vadd.f32 %v2530, 1.0
    %v2532 = vrcp.pop %v2531
    %v2533 = vmul.f32 1.0, %v2532
    %v2534 = vtanh.pop %v2525
    %v2535 = vmul.f32 %v2533, %v2440
    %2537 = vrot.lane.b32.xlu0 %v2534, 64
    %v2538 = vpop.permute.xlu0 %2537
    %v2540 = vmul.f32 %v2533, %v2538
    %2542 = vrot.lane.b32.xlu0 %v2540, 32
    %v2543 = vpop.permute.xlu0 %2542
    %v2545 = vadd.f32 %v2535, %v2543
    %v2546 = vtanh.pop %v2545
    %2548 = vrot.lane.b32.xlu0 %v2546, 64
    %v2549 = vpop.permute.xlu0 %2548
    %v2551 = vmul.f32 %v2533, %v2549
    %2553 = vrot.lane.b32.xlu0 %v1807, 80
    %v2554 = vpop.permute.xlu0 %2553
    %2557 = vrot.lane.b32.xlu0 %v2551, 48
    %v2558 = vpop.permute.xlu0 %2557
    %v2560 = vsel %vm125, %v2554, %v2558
    %v2562 = vsel %vm133, %v2560, 0
    %2564 = vmatprep.subr.mxu0 0.0
    %2565 = vmatpush1.msra.mxu0 %v1808
    %2566 = vmatprep.subr.mxu0 0.0
    %2567 = vmatpush1.msra.mxu0 %v1809
    %2568 = vmatprep.subr.mxu0 0.0
    %2569 = vmatpush1.msra.mxu0 %v1810
    %2570 = vmatprep.subr.mxu0 0.0
    %2571 = vmatpush1.msra.mxu0 %v1811
    %2572 = vmatprep.subr.mxu0 0.0
    %2573 = vmatpush1.msra.mxu0 %v1812
    %2574 = vmatprep.subr.mxu0 0.0
    %2575 = vmatpush1.msra.mxu0 %v1813
    %2576 = vmatprep.subr.mxu0 0.0
    %2577 = vmatpush1.msra.mxu0 0.0
    %2578 = vmatprep.subr.mxu0 0.0
    %2579 = vmatpush1.msra.mxu0 0.0
    %2580 = vmatprep.subr.mxu0 0.0
    %2581 = vmatpush1.msra.mxu0 0.0
    %2582 = vmatprep.subr.mxu0 0.0
    %2583 = vmatpush1.msra.mxu0 0.0
    %2584 = vmatprep.subr.mxu0 0.0
    %2585 = vmatpush1.msra.mxu0 0.0
    %2586 = vmatprep.subr.mxu0 0.0
    %2587 = vmatpush1.msra.mxu0 0.0
    %2588 = vmatprep.subr.mxu0 0.0
    %2589 = vmatpush1.msra.mxu0 0.0
    %2590 = vmatprep.subr.mxu0 0.0
    %2591 = vmatpush1.msra.mxu0 0.0
    %2592 = vmatprep.subr.mxu0 0.0
    %2593 = vmatpush1.msra.mxu0 0.0
    %2594 = vmatprep.subr.mxu0 0.0
    %2595 = vmatpush1.msra.mxu0 0.0
    %2596 = vmatprep.subr.mxu0 0.0
    %2597 = vmatpush1.msra.mxu0 0.0
    %2598 = vmatprep.subr.mxu0 0.0
    %2599 = vmatpush1.msra.mxu0 0.0
    %2600 = vmatprep.subr.mxu0 0.0
    %2601 = vmatpush1.msra.mxu0 0.0
    %2602 = vmatprep.subr.mxu0 0.0
    %2603 = vmatpush1.msra.mxu0 0.0
    %2604 = vmatprep.subr.mxu0 0.0
    %2605 = vmatpush1.msra.mxu0 0.0
    %2606 = vmatprep.subr.mxu0 0.0
    %2607 = vmatpush1.msra.mxu0 0.0
    %2608 = vmatprep.subr.mxu0 0.0
    %2609 = vmatpush1.msra.mxu0 0.0
    %2610 = vmatprep.subr.mxu0 0.0
    %2611 = vmatpush1.msra.mxu0 0.0
    %2612 = vmatprep.subr.mxu0 0.0
    %2613 = vmatpush1.msra.mxu0 0.0
    %2614 = vmatprep.subr.mxu0 0.0
    %2615 = vmatpush1.msra.mxu0 0.0
    %2616 = vmatprep.subr.mxu0 0.0
    %2617 = vmatpush1.msra.mxu0 0.0
    %2618 = vmatprep.subr.mxu0 0.0
    %2619 = vmatpush1.msra.mxu0 0.0
    %2620 = vmatprep.subr.mxu0 0.0
    %2621 = vmatpush1.msra.mxu0 0.0
    %2622 = vmatprep.subr.mxu0 0.0
    %2623 = vmatpush1.msra.mxu0 0.0
    %2624 = vmatprep.subr.mxu0 0.0
    %2625 = vmatpush1.msra.mxu0 0.0
    %2626 = vmatprep.subr.mxu0 0.0
    %2627 = vmatpush1.msra.mxu0 0.0
    %2628 = vmatprep.mubr.f32.mxu0 0.0
    %2629 = vmatmul.mubr.f32.gmra.mrb[0].mxu0 %v2562
    %v2630 = vpop.f32.mrb[0].mxu0
    %v2631 = vadd.f32 %v1823, %v2630
    %v2632 = vpop.f32.mrb[0].mxu0
    %2633 = vdwg.mxu0
    %v2634 = vxor.u32 %v2631, 2147483648
    %v2635 = vmul.f32 %v2634, 1.442695
    %v2636 = vpow.pop %v2635
    %v2637 = vadd.f32 %v2636, 1.0
    %v2638 = vrcp.pop %v2637
    %v2639 = vmul.f32 1.0, %v2638
    %v2640 = vtanh.pop %v2631
    %v2641 = vmul.f32 %v2639, %v2545
    %2643 = vrot.lane.b32.xlu0 %v2640, 64
    %v2644 = vpop.permute.xlu0 %2643
    %v2646 = vmul.f32 %v2639, %v2644
    %2648 = vrot.lane.b32.xlu0 %v2646, 32
    %v2649 = vpop.permute.xlu0 %2648
    %v2651 = vadd.f32 %v2641, %v2649
    %v2652 = vtanh.pop %v2651
    %2654 = vrot.lane.b32.xlu0 %v2652, 64
    %v2655 = vpop.permute.xlu0 %2654
    %v2657 = vmul.f32 %v2639, %v2655
    %v2658 = vld [vmem:[#allocation6] sm:$0xff]
    %v2659 = vld [vmem:[#allocation6 + $0x8] sm:$0xff]
    %v2660 = vld [vmem:[#allocation6 + $0x10] sm:$0xff]
    %v2661 = vld [vmem:[#allocation6 + $0x18] sm:$0xff]
    %v2662 = vld [vmem:[#allocation6 + $0x20] sm:$0xff]
    %v2663 = vld [vmem:[#allocation6 + $0x28] sm:$0xff]
    %v2664 = vld [vmem:[%s8] sm:$0x1]
    %2665 = vrot.lane.b32.xlu0 %v1921, 32
    %v2666 = vpop.permute.xlu0 %2665
    %v2668 = vsel %vm967, %v2666, 0.0
    %v2670 = vlaneseq
    %v2671 = vshrl.u32 %v2670, 7
    %v2672 = vsub.s32 0, %v2671
    %v2673 = vrot.slane %v2664, %v2672
    %v2676 = vsel %vm133, %v2668, 0
    %2678 = vmatprep.subr.mxu0 0.0
    %2679 = vmatpush1.msra.mxu0 %v2658
    %2680 = vmatprep.subr.mxu0 0.0
    %2681 = vmatpush1.msra.mxu0 %v2659
    %2682 = vmatprep.subr.mxu0 0.0
    %2683 = vmatpush1.msra.mxu0 %v2660
    %2684 = vmatprep.subr.mxu0 0.0
    %2685 = vmatpush1.msra.mxu0 %v2661
    %2686 = vmatprep.subr.mxu0 0.0
    %2687 = vmatpush1.msra.mxu0 %v2662
    %2688 = vmatprep.subr.mxu0 0.0
    %2689 = vmatpush1.msra.mxu0 %v2663
    %2690 = vmatprep.subr.mxu0 0.0
    %2691 = vmatpush1.msra.mxu0 0.0
    %2692 = vmatprep.subr.mxu0 0.0
    %2693 = vmatpush1.msra.mxu0 0.0
    %2694 = vmatprep.subr.mxu0 0.0
    %2695 = vmatpush1.msra.mxu0 0.0
    %2696 = vmatprep.subr.mxu0 0.0
    %2697 = vmatpush1.msra.mxu0 0.0
    %2698 = vmatprep.subr.mxu0 0.0
    %2699 = vmatpush1.msra.mxu0 0.0
    %2700 = vmatprep.subr.mxu0 0.0
    %2701 = vmatpush1.msra.mxu0 0.0
    %2702 = vmatprep.subr.mxu0 0.0
    %2703 = vmatpush1.msra.mxu0 0.0
    %2704 = vmatprep.subr.mxu0 0.0
    %2705 = vmatpush1.msra.mxu0 0.0
    %2706 = vmatprep.subr.mxu0 0.0
    %2707 = vmatpush1.msra.mxu0 0.0
    %2708 = vmatprep.subr.mxu0 0.0
    %2709 = vmatpush1.msra.mxu0 0.0
    %2710 = vmatprep.subr.mxu0 0.0
    %2711 = vmatpush1.msra.mxu0 0.0
    %2712 = vmatprep.subr.mxu0 0.0
    %2713 = vmatpush1.msra.mxu0 0.0
    %2714 = vmatprep.subr.mxu0 0.0
    %2715 = vmatpush1.msra.mxu0 0.0
    %2716 = vmatprep.subr.mxu0 0.0
    %2717 = vmatpush1.msra.mxu0 0.0
    %2718 = vmatprep.subr.mxu0 0.0
    %2719 = vmatpush1.msra.mxu0 0.0
    %2720 = vmatprep.subr.mxu0 0.0
    %2721 = vmatpush1.msra.mxu0 0.0
    %2722 = vmatprep.subr.mxu0 0.0
    %2723 = vmatpush1.msra.mxu0 0.0
    %2724 = vmatprep.subr.mxu0 0.0
    %2725 = vmatpush1.msra.mxu0 0.0
    %2726 = vmatprep.subr.mxu0 0.0
    %2727 = vmatpush1.msra.mxu0 0.0
    %2728 = vmatprep.subr.mxu0 0.0
    %2729 = vmatpush1.msra.mxu0 0.0
    %2730 = vmatprep.subr.mxu0 0.0
    %2731 = vmatpush1.msra.mxu0 0.0
    %2732 = vmatprep.subr.mxu0 0.0
    %2733 = vmatpush1.msra.mxu0 0.0
    %2734 = vmatprep.subr.mxu0 0.0
    %2735 = vmatpush1.msra.mxu0 0.0
    %2736 = vmatprep.subr.mxu0 0.0
    %2737 = vmatpush1.msra.mxu0 0.0
    %2738 = vmatprep.subr.mxu0 0.0
    %2739 = vmatpush1.msra.mxu0 0.0
    %2740 = vmatprep.subr.mxu0 0.0
    %2741 = vmatpush1.msra.mxu0 0.0
    %2742 = vmatprep.mubr.f32.mxu0 0.0
    %2743 = vmatmul.mubr.f32.gmra.mrb[0].mxu0 %v2676
    %v2744 = vpop.f32.mrb[0].mxu0
    %v2745 = vadd.f32 %v2673, %v2744
    %v2746 = vpop.f32.mrb[0].mxu0
    %2747 = vdwg.mxu0
    %v2748 = vxor.u32 %v2745, 2147483648
    %v2749 = vmul.f32 %v2748, 1.442695
    %v2750 = vpow.pop %v2749
    %v2751 = vadd.f32 %v2750, 1.0
    %v2752 = vrcp.pop %v2751
    %v2753 = vmul.f32 1.0, %v2752
    %v2754 = vtanh.pop %v2745
    %v2755 = vmul.f32 %v2753, 0.0
    %2757 = vrot.lane.b32.xlu0 %v2754, 96
    %v2758 = vpop.permute.xlu0 %2757
    %v2760 = vmul.f32 %v2753, %v2758
    %2762 = vrot.lane.b32.xlu0 %v2760, 16
    %v2763 = vpop.permute.xlu0 %2762
    %v2765 = vadd.f32 %v2755, %v2763
    %v2766 = vtanh.pop %v2765
    %2768 = vrot.lane.b32.xlu0 %v2766, 32
    %v2769 = vpop.permute.xlu0 %2768
    %v2771 = vmul.f32 %v2753, %v2769
    %2772 = vrot.lane.b32.xlu0 %v2026, 32
    %v2773 = vpop.permute.xlu0 %2772
    %2776 = vrot.lane.b32.xlu0 %v2771, 112
    %v2777 = vpop.permute.xlu0 %2776
    %v2779 = vsel %vm967, %v2773, %v2777
    %v2781 = vsel %vm133, %v2779, 0
    %2783 = vmatprep.subr.mxu0 0.0
    %2784 = vmatpush1.msra.mxu0 %v2658
    %2785 = vmatprep.subr.mxu0 0.0
    %2786 = vmatpush1.msra.mxu0 %v2659
    %2787 = vmatprep.subr.mxu0 0.0
    %2788 = vmatpush1.msra.mxu0 %v2660
    %2789 = vmatprep.subr.mxu0 0.0
    %2790 = vmatpush1.msra.mxu0 %v2661
    %2791 = vmatprep.subr.mxu0 0.0
    %2792 = vmatpush1.msra.mxu0 %v2662
    %2793 = vmatprep.subr.mxu0 0.0
    %2794 = vmatpush1.msra.mxu0 %v2663
    %2795 = vmatprep.subr.mxu0 0.0
    %2796 = vmatpush1.msra.mxu0 0.0
    %2797 = vmatprep.subr.mxu0 0.0
    %2798 = vmatpush1.msra.mxu0 0.0
    %2799 = vmatprep.subr.mxu0 0.0
    %2800 = vmatpush1.msra.mxu0 0.0
    %2801 = vmatprep.subr.mxu0 0.0
    %2802 = vmatpush1.msra.mxu0 0.0
    %2803 = vmatprep.subr.mxu0 0.0
    %2804 = vmatpush1.msra.mxu0 0.0
    %2805 = vmatprep.subr.mxu0 0.0
    %2806 = vmatpush1.msra.mxu0 0.0
    %2807 = vmatprep.subr.mxu0 0.0
    %2808 = vmatpush1.msra.mxu0 0.0
    %2809 = vmatprep.subr.mxu0 0.0
    %2810 = vmatpush1.msra.mxu0 0.0
    %2811 = vmatprep.subr.mxu0 0.0
    %2812 = vmatpush1.msra.mxu0 0.0
    %2813 = vmatprep.subr.mxu0 0.0
    %2814 = vmatpush1.msra.mxu0 0.0
    %2815 = vmatprep.subr.mxu0 0.0
    %2816 = vmatpush1.msra.mxu0 0.0
    %2817 = vmatprep.subr.mxu0 0.0
    %2818 = vmatpush1.msra.mxu0 0.0
    %2819 = vmatprep.subr.mxu0 0.0
    %2820 = vmatpush1.msra.mxu0 0.0
    %2821 = vmatprep.subr.mxu0 0.0
    %2822 = vmatpush1.msra.mxu0 0.0
    %2823 = vmatprep.subr.mxu0 0.0
    %2824 = vmatpush1.msra.mxu0 0.0
    %2825 = vmatprep.subr.mxu0 0.0
    %2826 = vmatpush1.msra.mxu0 0.0
    %2827 = vmatprep.subr.mxu0 0.0
    %2828 = vmatpush1.msra.mxu0 0.0
    %2829 = vmatprep.subr.mxu0 0.0
    %2830 = vmatpush1.msra.mxu0 0.0
    %2831 = vmatprep.subr.mxu0 0.0
    %2832 = vmatpush1.msra.mxu0 0.0
    %2833 = vmatprep.subr.mxu0 0.0
    %2834 = vmatpush1.msra.mxu0 0.0
    %2835 = vmatprep.subr.mxu0 0.0
    %2836 = vmatpush1.msra.mxu0 0.0
    %2837 = vmatprep.subr.mxu0 0.0
    %2838 = vmatpush1.msra.mxu0 0.0
    %2839 = vmatprep.subr.mxu0 0.0
    %2840 = vmatpush1.msra.mxu0 0.0
    %2841 = vmatprep.subr.mxu0 0.0
    %2842 = vmatpush1.msra.mxu0 0.0
    %2843 = vmatprep.subr.mxu0 0.0
    %2844 = vmatpush1.msra.mxu0 0.0
    %2845 = vmatprep.subr.mxu0 0.0
    %2846 = vmatpush1.msra.mxu0 0.0
    %2847 = vmatprep.mubr.f32.mxu0 0.0
    %2848 = vmatmul.mubr.f32.gmra.mrb[0].mxu0 %v2781
    %v2849 = vpop.f32.mrb[0].mxu0
    %v2850 = vadd.f32 %v2673, %v2849
    %v2851 = vpop.f32.mrb[0].mxu0
    %2852 = vdwg.mxu0
    %v2853 = vxor.u32 %v2850, 2147483648
    %v2854 = vmul.f32 %v2853, 1.442695
    %v2855 = vpow.pop %v2854
    %v2856 = vadd.f32 %v2855, 1.0
    %v2857 = vrcp.pop %v2856
    %v2858 = vmul.f32 1.0, %v2857
    %v2859 = vtanh.pop %v2850
    %v2860 = vmul.f32 %v2858, %v2765
    %2862 = vrot.lane.b32.xlu0 %v2859, 96
    %v2863 = vpop.permute.xlu0 %2862
    %v2865 = vmul.f32 %v2858, %v2863
    %2867 = vrot.lane.b32.xlu0 %v2865, 16
    %v2868 = vpop.permute.xlu0 %2867
    %v2870 = vadd.f32 %v2860, %v2868
    %v2871 = vtanh.pop %v2870
    %2873 = vrot.lane.b32.xlu0 %v2871, 32
    %v2874 = vpop.permute.xlu0 %2873
    %v2876 = vmul.f32 %v2858, %v2874
    %2877 = vrot.lane.b32.xlu0 %v2131, 32
    %v2878 = vpop.permute.xlu0 %2877
    %2881 = vrot.lane.b32.xlu0 %v2876, 112
    %v2882 = vpop.permute.xlu0 %2881
    %v2884 = vsel %vm967, %v2878, %v2882
    %v2886 = vsel %vm133, %v2884, 0
    %2888 = vmatprep.subr.mxu0 0.0
    %2889 = vmatpush1.msra.mxu0 %v2658
    %2890 = vmatprep.subr.mxu0 0.0
    %2891 = vmatpush1.msra.mxu0 %v2659
    %2892 = vmatprep.subr.mxu0 0.0
    %2893 = vmatpush1.msra.mxu0 %v2660
    %2894 = vmatprep.subr.mxu0 0.0
    %2895 = vmatpush1.msra.mxu0 %v2661
    %2896 = vmatprep.subr.mxu0 0.0
    %2897 = vmatpush1.msra.mxu0 %v2662
    %2898 = vmatprep.subr.mxu0 0.0
    %2899 = vmatpush1.msra.mxu0 %v2663
    %2900 = vmatprep.subr.mxu0 0.0
    %2901 = vmatpush1.msra.mxu0 0.0
    %2902 = vmatprep.subr.mxu0 0.0
    %2903 = vmatpush1.msra.mxu0 0.0
    %2904 = vmatprep.subr.mxu0 0.0
    %2905 = vmatpush1.msra.mxu0 0.0
    %2906 = vmatprep.subr.mxu0 0.0
    %2907 = vmatpush1.msra.mxu0 0.0
    %2908 = vmatprep.subr.mxu0 0.0
    %2909 = vmatpush1.msra.mxu0 0.0
    %2910 = vmatprep.subr.mxu0 0.0
    %2911 = vmatpush1.msra.mxu0 0.0
    %2912 = vmatprep.subr.mxu0 0.0
    %2913 = vmatpush1.msra.mxu0 0.0
    %2914 = vmatprep.subr.mxu0 0.0
    %2915 = vmatpush1.msra.mxu0 0.0
    %2916 = vmatprep.subr.mxu0 0.0
    %2917 = vmatpush1.msra.mxu0 0.0
    %2918 = vmatprep.subr.mxu0 0.0
    %2919 = vmatpush1.msra.mxu0 0.0
    %2920 = vmatprep.subr.mxu0 0.0
    %2921 = vmatpush1.msra.mxu0 0.0
    %2922 = vmatprep.subr.mxu0 0.0
    %2923 = vmatpush1.msra.mxu0 0.0
    %2924 = vmatprep.subr.mxu0 0.0
    %2925 = vmatpush1.msra.mxu0 0.0
    %2926 = vmatprep.subr.mxu0 0.0
    %2927 = vmatpush1.msra.mxu0 0.0
    %2928 = vmatprep.subr.mxu0 0.0
    %2929 = vmatpush1.msra.mxu0 0.0
    %2930 = vmatprep.subr.mxu0 0.0
    %2931 = vmatpush1.msra.mxu0 0.0
    %2932 = vmatprep.subr.mxu0 0.0
    %2933 = vmatpush1.msra.mxu0 0.0
    %2934 = vmatprep.subr.mxu0 0.0
    %2935 = vmatpush1.msra.mxu0 0.0
    %2936 = vmatprep.subr.mxu0 0.0
    %2937 = vmatpush1.msra.mxu0 0.0
    %2938 = vmatprep.subr.mxu0 0.0
    %2939 = vmatpush1.msra.mxu0 0.0
    %2940 = vmatprep.subr.mxu0 0.0
    %2941 = vmatpush1.msra.mxu0 0.0
    %2942 = vmatprep.subr.mxu0 0.0
    %2943 = vmatpush1.msra.mxu0 0.0
    %2944 = vmatprep.subr.mxu0 0.0
    %2945 = vmatpush1.msra.mxu0 0.0
    %2946 = vmatprep.subr.mxu0 0.0
    %2947 = vmatpush1.msra.mxu0 0.0
    %2948 = vmatprep.subr.mxu0 0.0
    %2949 = vmatpush1.msra.mxu0 0.0
    %2950 = vmatprep.subr.mxu0 0.0
    %2951 = vmatpush1.msra.mxu0 0.0
    %2952 = vmatprep.mubr.f32.mxu0 0.0
    %2953 = vmatmul.mubr.f32.gmra.mrb[0].mxu0 %v2886
    %v2954 = vpop.f32.mrb[0].mxu0
    %v2955 = vadd.f32 %v2673, %v2954
    %v2956 = vpop.f32.mrb[0].mxu0
    %2957 = vdwg.mxu0
    %v2958 = vxor.u32 %v2955, 2147483648
    %v2959 = vmul.f32 %v2958, 1.442695
    %v2960 = vpow.pop %v2959
    %v2961 = vadd.f32 %v2960, 1.0
    %v2962 = vrcp.pop %v2961
    %v2963 = vmul.f32 1.0, %v2962
    %v2964 = vtanh.pop %v2955
    %v2965 = vmul.f32 %v2963, %v2870
    %2967 = vrot.lane.b32.xlu0 %v2964, 96
    %v2968 = vpop.permute.xlu0 %2967
    %v2970 = vmul.f32 %v2963, %v2968
    %2972 = vrot.lane.b32.xlu0 %v2970, 16
    %v2973 = vpop.permute.xlu0 %2972
    %v2975 = vadd.f32 %v2965, %v2973
    %v2976 = vtanh.pop %v2975
    %2978 = vrot.lane.b32.xlu0 %v2976, 32
    %v2979 = vpop.permute.xlu0 %2978
    %v2981 = vmul.f32 %v2963, %v2979
    %2982 = vrot.lane.b32.xlu0 %v2236, 32
    %v2983 = vpop.permute.xlu0 %2982
    %2986 = vrot.lane.b32.xlu0 %v2981, 112
    %v2987 = vpop.permute.xlu0 %2986
    %v2989 = vsel %vm967, %v2983, %v2987
    %v2991 = vsel %vm133, %v2989, 0
    %2993 = vmatprep.subr.mxu0 0.0
    %2994 = vmatpush1.msra.mxu0 %v2658
    %2995 = vmatprep.subr.mxu0 0.0
    %2996 = vmatpush1.msra.mxu0 %v2659
    %2997 = vmatprep.subr.mxu0 0.0
    %2998 = vmatpush1.msra.mxu0 %v2660
    %2999 = vmatprep.subr.mxu0 0.0
    %3000 = vmatpush1.msra.mxu0 %v2661
    %3001 = vmatprep.subr.mxu0 0.0
    %3002 = vmatpush1.msra.mxu0 %v2662
    %3003 = vmatprep.subr.mxu0 0.0
    %3004 = vmatpush1.msra.mxu0 %v2663
    %3005 = vmatprep.subr.mxu0 0.0
    %3006 = vmatpush1.msra.mxu0 0.0
    %3007 = vmatprep.subr.mxu0 0.0
    %3008 = vmatpush1.msra.mxu0 0.0
    %3009 = vmatprep.subr.mxu0 0.0
    %3010 = vmatpush1.msra.mxu0 0.0
    %3011 = vmatprep.subr.mxu0 0.0
    %3012 = vmatpush1.msra.mxu0 0.0
    %3013 = vmatprep.subr.mxu0 0.0
    %3014 = vmatpush1.msra.mxu0 0.0
    %3015 = vmatprep.subr.mxu0 0.0
    %3016 = vmatpush1.msra.mxu0 0.0
    %3017 = vmatprep.subr.mxu0 0.0
    %3018 = vmatpush1.msra.mxu0 0.0
    %3019 = vmatprep.subr.mxu0 0.0
    %3020 = vmatpush1.msra.mxu0 0.0
    %3021 = vmatprep.subr.mxu0 0.0
    %3022 = vmatpush1.msra.mxu0 0.0
    %3023 = vmatprep.subr.mxu0 0.0
    %3024 = vmatpush1.msra.mxu0 0.0
    %3025 = vmatprep.subr.mxu0 0.0
    %3026 = vmatpush1.msra.mxu0 0.0
    %3027 = vmatprep.subr.mxu0 0.0
    %3028 = vmatpush1.msra.mxu0 0.0
    %3029 = vmatprep.subr.mxu0 0.0
    %3030 = vmatpush1.msra.mxu0 0.0
    %3031 = vmatprep.subr.mxu0 0.0
    %3032 = vmatpush1.msra.mxu0 0.0
    %3033 = vmatprep.subr.mxu0 0.0
    %3034 = vmatpush1.msra.mxu0 0.0
    %3035 = vmatprep.subr.mxu0 0.0
    %3036 = vmatpush1.msra.mxu0 0.0
    %3037 = vmatprep.subr.mxu0 0.0
    %3038 = vmatpush1.msra.mxu0 0.0
    %3039 = vmatprep.subr.mxu0 0.0
    %3040 = vmatpush1.msra.mxu0 0.0
    %3041 = vmatprep.subr.mxu0 0.0
    %3042 = vmatpush1.msra.mxu0 0.0
    %3043 = vmatprep.subr.mxu0 0.0
    %3044 = vmatpush1.msra.mxu0 0.0
    %3045 = vmatprep.subr.mxu0 0.0
    %3046 = vmatpush1.msra.mxu0 0.0
    %3047 = vmatprep.subr.mxu0 0.0
    %3048 = vmatpush1.msra.mxu0 0.0
    %3049 = vmatprep.subr.mxu0 0.0
    %3050 = vmatpush1.msra.mxu0 0.0
    %3051 = vmatprep.subr.mxu0 0.0
    %3052 = vmatpush1.msra.mxu0 0.0
    %3053 = vmatprep.subr.mxu0 0.0
    %3054 = vmatpush1.msra.mxu0 0.0
    %3055 = vmatprep.subr.mxu0 0.0
    %3056 = vmatpush1.msra.mxu0 0.0
    %3057 = vmatprep.mubr.f32.mxu0 0.0
    %3058 = vmatmul.mubr.f32.gmra.mrb[0].mxu0 %v2991
    %v3059 = vpop.f32.mrb[0].mxu0
    %v3060 = vadd.f32 %v2673, %v3059
    %v3061 = vpop.f32.mrb[0].mxu0
    %3062 = vdwg.mxu0
    %v3063 = vxor.u32 %v3060, 2147483648
    %v3064 = vmul.f32 %v3063, 1.442695
    %v3065 = vpow.pop %v3064
    %v3066 = vadd.f32 %v3065, 1.0
    %v3067 = vrcp.pop %v3066
    %v3068 = vmul.f32 1.0, %v3067
    %v3069 = vtanh.pop %v3060
    %v3070 = vmul.f32 %v3068, %v2975
    %3072 = vrot.lane.b32.xlu0 %v3069, 96
    %v3073 = vpop.permute.xlu0 %3072
    %v3075 = vmul.f32 %v3068, %v3073
    %3077 = vrot.lane.b32.xlu0 %v3075, 16
    %v3078 = vpop.permute.xlu0 %3077
    %v3080 = vadd.f32 %v3070, %v3078
    %v3081 = vtanh.pop %v3080
    %3083 = vrot.lane.b32.xlu0 %v3081, 32
    %v3084 = vpop.permute.xlu0 %3083
    %v3086 = vmul.f32 %v3068, %v3084
    %3087 = vrot.lane.b32.xlu0 %v2341, 32
    %v3088 = vpop.permute.xlu0 %3087
    %3091 = vrot.lane.b32.xlu0 %v3086, 112
    %v3092 = vpop.permute.xlu0 %3091
    %v3094 = vsel %vm967, %v3088, %v3092
    %v3096 = vsel %vm133, %v3094, 0
    %3098 = vmatprep.subr.mxu0 0.0
    %3099 = vmatpush1.msra.mxu0 %v2658
    %3100 = vmatprep.subr.mxu0 0.0
    %3101 = vmatpush1.msra.mxu0 %v2659
    %3102 = vmatprep.subr.mxu0 0.0
    %3103 = vmatpush1.msra.mxu0 %v2660
    %3104 = vmatprep.subr.mxu0 0.0
    %3105 = vmatpush1.msra.mxu0 %v2661
    %3106 = vmatprep.subr.mxu0 0.0
    %3107 = vmatpush1.msra.mxu0 %v2662
    %3108 = vmatprep.subr.mxu0 0.0
    %3109 = vmatpush1.msra.mxu0 %v2663
    %3110 = vmatprep.subr.mxu0 0.0
    %3111 = vmatpush1.msra.mxu0 0.0
    %3112 = vmatprep.subr.mxu0 0.0
    %3113 = vmatpush1.msra.mxu0 0.0
    %3114 = vmatprep.subr.mxu0 0.0
    %3115 = vmatpush1.msra.mxu0 0.0
    %3116 = vmatprep.subr.mxu0 0.0
    %3117 = vmatpush1.msra.mxu0 0.0
    %3118 = vmatprep.subr.mxu0 0.0
    %3119 = vmatpush1.msra.mxu0 0.0
    %3120 = vmatprep.subr.mxu0 0.0
    %3121 = vmatpush1.msra.mxu0 0.0
    %3122 = vmatprep.subr.mxu0 0.0
    %3123 = vmatpush1.msra.mxu0 0.0
    %3124 = vmatprep.subr.mxu0 0.0
    %3125 = vmatpush1.msra.mxu0 0.0
    %3126 = vmatprep.subr.mxu0 0.0
    %3127 = vmatpush1.msra.mxu0 0.0
    %3128 = vmatprep.subr.mxu0 0.0
    %3129 = vmatpush1.msra.mxu0 0.0
    %3130 = vmatprep.subr.mxu0 0.0
    %3131 = vmatpush1.msra.mxu0 0.0
    %3132 = vmatprep.subr.mxu0 0.0
    %3133 = vmatpush1.msra.mxu0 0.0
    %3134 = vmatprep.subr.mxu0 0.0
    %3135 = vmatpush1.msra.mxu0 0.0
    %3136 = vmatprep.subr.mxu0 0.0
    %3137 = vmatpush1.msra.mxu0 0.0
    %3138 = vmatprep.subr.mxu0 0.0
    %3139 = vmatpush1.msra.mxu0 0.0
    %3140 = vmatprep.subr.mxu0 0.0
    %3141 = vmatpush1.msra.mxu0 0.0
    %3142 = vmatprep.subr.mxu0 0.0
    %3143 = vmatpush1.msra.mxu0 0.0
    %3144 = vmatprep.subr.mxu0 0.0
    %3145 = vmatpush1.msra.mxu0 0.0
    %3146 = vmatprep.subr.mxu0 0.0
    %3147 = vmatpush1.msra.mxu0 0.0
    %3148 = vmatprep.subr.mxu0 0.0
    %3149 = vmatpush1.msra.mxu0 0.0
    %3150 = vmatprep.subr.mxu0 0.0
    %3151 = vmatpush1.msra.mxu0 0.0
    %3152 = vmatprep.subr.mxu0 0.0
    %3153 = vmatpush1.msra.mxu0 0.0
    %3154 = vmatprep.subr.mxu0 0.0
    %3155 = vmatpush1.msra.mxu0 0.0
    %3156 = vmatprep.subr.mxu0 0.0
    %3157 = vmatpush1.msra.mxu0 0.0
    %3158 = vmatprep.subr.mxu0 0.0
    %3159 = vmatpush1.msra.mxu0 0.0
    %3160 = vmatprep.subr.mxu0 0.0
    %3161 = vmatpush1.msra.mxu0 0.0
    %3162 = vmatprep.mubr.f32.mxu0 0.0
    %3163 = vmatmul.mubr.f32.gmra.mrb[0].mxu0 %v3096
    %v3164 = vpop.f32.mrb[0].mxu0
    %v3165 = vadd.f32 %v2673, %v3164
    %v3166 = vpop.f32.mrb[0].mxu0
    %3167 = vdwg.mxu0
    %v3168 = vxor.u32 %v3165, 2147483648
    %v3169 = vmul.f32 %v3168, 1.442695
    %v3170 = vpow.pop %v3169
    %v3171 = vadd.f32 %v3170, 1.0
    %v3172 = vrcp.pop %v3171
    %v3173 = vmul.f32 1.0, %v3172
    %v3174 = vtanh.pop %v3165
    %v3175 = vmul.f32 %v3173, %v3080
    %3177 = vrot.lane.b32.xlu0 %v3174, 96
    %v3178 = vpop.permute.xlu0 %3177
    %v3180 = vmul.f32 %v3173, %v3178
    %3182 = vrot.lane.b32.xlu0 %v3180, 16
    %v3183 = vpop.permute.xlu0 %3182
    %v3185 = vadd.f32 %v3175, %v3183
    %v3186 = vtanh.pop %v3185
    %3188 = vrot.lane.b32.xlu0 %v3186, 32
    %v3189 = vpop.permute.xlu0 %3188
    %v3191 = vmul.f32 %v3173, %v3189
    %3192 = vrot.lane.b32.xlu0 %v2446, 32
    %v3193 = vpop.permute.xlu0 %3192
    %3196 = vrot.lane.b32.xlu0 %v3191, 112
    %v3197 = vpop.permute.xlu0 %3196
    %v3199 = vsel %vm967, %v3193, %v3197
    %v3201 = vsel %vm133, %v3199, 0
    %3203 = vmatprep.subr.mxu0 0.0
    %3204 = vmatpush1.msra.mxu0 %v2658
    %3205 = vmatprep.subr.mxu0 0.0
    %3206 = vmatpush1.msra.mxu0 %v2659
    %3207 = vmatprep.subr.mxu0 0.0
    %3208 = vmatpush1.msra.mxu0 %v2660
    %3209 = vmatprep.subr.mxu0 0.0
    %3210 = vmatpush1.msra.mxu0 %v2661
    %3211 = vmatprep.subr.mxu0 0.0
    %3212 = vmatpush1.msra.mxu0 %v2662
    %3213 = vmatprep.subr.mxu0 0.0
    %3214 = vmatpush1.msra.mxu0 %v2663
    %3215 = vmatprep.subr.mxu0 0.0
    %3216 = vmatpush1.msra.mxu0 0.0
    %3217 = vmatprep.subr.mxu0 0.0
    %3218 = vmatpush1.msra.mxu0 0.0
    %3219 = vmatprep.subr.mxu0 0.0
    %3220 = vmatpush1.msra.mxu0 0.0
    %3221 = vmatprep.subr.mxu0 0.0
    %3222 = vmatpush1.msra.mxu0 0.0
    %3223 = vmatprep.subr.mxu0 0.0
    %3224 = vmatpush1.msra.mxu0 0.0
    %3225 = vmatprep.subr.mxu0 0.0
    %3226 = vmatpush1.msra.mxu0 0.0
    %3227 = vmatprep.subr.mxu0 0.0
    %3228 = vmatpush1.msra.mxu0 0.0
    %3229 = vmatprep.subr.mxu0 0.0
    %3230 = vmatpush1.msra.mxu0 0.0
    %3231 = vmatprep.subr.mxu0 0.0
    %3232 = vmatpush1.msra.mxu0 0.0
    %3233 = vmatprep.subr.mxu0 0.0
    %3234 = vmatpush1.msra.mxu0 0.0
    %3235 = vmatprep.subr.mxu0 0.0
    %3236 = vmatpush1.msra.mxu0 0.0
    %3237 = vmatprep.subr.mxu0 0.0
    %3238 = vmatpush1.msra.mxu0 0.0
    %3239 = vmatprep.subr.mxu0 0.0
    %3240 = vmatpush1.msra.mxu0 0.0
    %3241 = vmatprep.subr.mxu0 0.0
    %3242 = vmatpush1.msra.mxu0 0.0
    %3243 = vmatprep.subr.mxu0 0.0
    %3244 = vmatpush1.msra.mxu0 0.0
    %3245 = vmatprep.subr.mxu0 0.0
    %3246 = vmatpush1.msra.mxu0 0.0
    %3247 = vmatprep.subr.mxu0 0.0
    %3248 = vmatpush1.msra.mxu0 0.0
    %3249 = vmatprep.subr.mxu0 0.0
    %3250 = vmatpush1.msra.mxu0 0.0
    %3251 = vmatprep.subr.mxu0 0.0
    %3252 = vmatpush1.msra.mxu0 0.0
    %3253 = vmatprep.subr.mxu0 0.0
    %3254 = vmatpush1.msra.mxu0 0.0
    %3255 = vmatprep.subr.mxu0 0.0
    %3256 = vmatpush1.msra.mxu0 0.0
    %3257 = vmatprep.subr.mxu0 0.0
    %3258 = vmatpush1.msra.mxu0 0.0
    %3259 = vmatprep.subr.mxu0 0.0
    %3260 = vmatpush1.msra.mxu0 0.0
    %3261 = vmatprep.subr.mxu0 0.0
    %3262 = vmatpush1.msra.mxu0 0.0
    %3263 = vmatprep.subr.mxu0 0.0
    %3264 = vmatpush1.msra.mxu0 0.0
    %3265 = vmatprep.subr.mxu0 0.0
    %3266 = vmatpush1.msra.mxu0 0.0
    %3267 = vmatprep.mubr.f32.mxu0 0.0
    %3268 = vmatmul.mubr.f32.gmra.mrb[0].mxu0 %v3201
    %v3269 = vpop.f32.mrb[0].mxu0
    %v3270 = vadd.f32 %v2673, %v3269
    %v3271 = vpop.f32.mrb[0].mxu0
    %3272 = vdwg.mxu0
    %v3273 = vxor.u32 %v3270, 2147483648
    %v3274 = vmul.f32 %v3273, 1.442695
    %v3275 = vpow.pop %v3274
    %v3276 = vadd.f32 %v3275, 1.0
    %v3277 = vrcp.pop %v3276
    %v3278 = vmul.f32 1.0, %v3277
    %v3279 = vtanh.pop %v3270
    %v3280 = vmul.f32 %v3278, %v3185
    %3282 = vrot.lane.b32.xlu0 %v3279, 96
    %v3283 = vpop.permute.xlu0 %3282
    %v3285 = vmul.f32 %v3278, %v3283
    %3287 = vrot.lane.b32.xlu0 %v3285, 16
    %v3288 = vpop.permute.xlu0 %3287
    %v3290 = vadd.f32 %v3280, %v3288
    %v3291 = vtanh.pop %v3290
    %3293 = vrot.lane.b32.xlu0 %v3291, 32
    %v3294 = vpop.permute.xlu0 %3293
    %v3296 = vmul.f32 %v3278, %v3294
    %3297 = vrot.lane.b32.xlu0 %v2551, 32
    %v3298 = vpop.permute.xlu0 %3297
    %3301 = vrot.lane.b32.xlu0 %v3296, 112
    %v3302 = vpop.permute.xlu0 %3301
    %v3304 = vsel %vm967, %v3298, %v3302
    %v3306 = vsel %vm133, %v3304, 0
    %3308 = vmatprep.subr.mxu0 0.0
    %3309 = vmatpush1.msra.mxu0 %v2658
    %3310 = vmatprep.subr.mxu0 0.0
    %3311 = vmatpush1.msra.mxu0 %v2659
    %3312 = vmatprep.subr.mxu0 0.0
    %3313 = vmatpush1.msra.mxu0 %v2660
    %3314 = vmatprep.subr.mxu0 0.0
    %3315 = vmatpush1.msra.mxu0 %v2661
    %3316 = vmatprep.subr.mxu0 0.0
    %3317 = vmatpush1.msra.mxu0 %v2662
    %3318 = vmatprep.subr.mxu0 0.0
    %3319 = vmatpush1.msra.mxu0 %v2663
    %3320 = vmatprep.subr.mxu0 0.0
    %3321 = vmatpush1.msra.mxu0 0.0
    %3322 = vmatprep.subr.mxu0 0.0
    %3323 = vmatpush1.msra.mxu0 0.0
    %3324 = vmatprep.subr.mxu0 0.0
    %3325 = vmatpush1.msra.mxu0 0.0
    %3326 = vmatprep.subr.mxu0 0.0
    %3327 = vmatpush1.msra.mxu0 0.0
    %3328 = vmatprep.subr.mxu0 0.0
    %3329 = vmatpush1.msra.mxu0 0.0
    %3330 = vmatprep.subr.mxu0 0.0
    %3331 = vmatpush1.msra.mxu0 0.0
    %3332 = vmatprep.subr.mxu0 0.0
    %3333 = vmatpush1.msra.mxu0 0.0
    %3334 = vmatprep.subr.mxu0 0.0
    %3335 = vmatpush1.msra.mxu0 0.0
    %3336 = vmatprep.subr.mxu0 0.0
    %3337 = vmatpush1.msra.mxu0 0.0
    %3338 = vmatprep.subr.mxu0 0.0
    %3339 = vmatpush1.msra.mxu0 0.0
    %3340 = vmatprep.subr.mxu0 0.0
    %3341 = vmatpush1.msra.mxu0 0.0
    %3342 = vmatprep.subr.mxu0 0.0
    %3343 = vmatpush1.msra.mxu0 0.0
    %3344 = vmatprep.subr.mxu0 0.0
    %3345 = vmatpush1.msra.mxu0 0.0
    %3346 = vmatprep.subr.mxu0 0.0
    %3347 = vmatpush1.msra.mxu0 0.0
    %3348 = vmatprep.subr.mxu0 0.0
    %3349 = vmatpush1.msra.mxu0 0.0
    %3350 = vmatprep.subr.mxu0 0.0
    %3351 = vmatpush1.msra.mxu0 0.0
    %3352 = vmatprep.subr.mxu0 0.0
    %3353 = vmatpush1.msra.mxu0 0.0
    %3354 = vmatprep.subr.mxu0 0.0
    %3355 = vmatpush1.msra.mxu0 0.0
    %3356 = vmatprep.subr.mxu0 0.0
    %3357 = vmatpush1.msra.mxu0 0.0
    %3358 = vmatprep.subr.mxu0 0.0
    %3359 = vmatpush1.msra.mxu0 0.0
    %3360 = vmatprep.subr.mxu0 0.0
    %3361 = vmatpush1.msra.mxu0 0.0
    %3362 = vmatprep.subr.mxu0 0.0
    %3363 = vmatpush1.msra.mxu0 0.0
    %3364 = vmatprep.subr.mxu0 0.0
    %3365 = vmatpush1.msra.mxu0 0.0
    %3366 = vmatprep.subr.mxu0 0.0
    %3367 = vmatpush1.msra.mxu0 0.0
    %3368 = vmatprep.subr.mxu0 0.0
    %3369 = vmatpush1.msra.mxu0 0.0
    %3370 = vmatprep.subr.mxu0 0.0
    %3371 = vmatpush1.msra.mxu0 0.0
    %3372 = vmatprep.mubr.f32.mxu0 0.0
    %3373 = vmatmul.mubr.f32.gmra.mrb[0].mxu0 %v3306
    %v3374 = vpop.f32.mrb[0].mxu0
    %v3375 = vadd.f32 %v2673, %v3374
    %v3376 = vpop.f32.mrb[0].mxu0
    %3377 = vdwg.mxu0
    %v3378 = vxor.u32 %v3375, 2147483648
    %v3379 = vmul.f32 %v3378, 1.442695
    %v3380 = vpow.pop %v3379
    %v3381 = vadd.f32 %v3380, 1.0
    %v3382 = vrcp.pop %v3381
    %v3383 = vmul.f32 1.0, %v3382
    %v3384 = vtanh.pop %v3375
    %v3385 = vmul.f32 %v3383, %v3290
    %3387 = vrot.lane.b32.xlu0 %v3384, 96
    %v3388 = vpop.permute.xlu0 %3387
    %v3390 = vmul.f32 %v3383, %v3388
    %3392 = vrot.lane.b32.xlu0 %v3390, 16
    %v3393 = vpop.permute.xlu0 %3392
    %v3395 = vadd.f32 %v3385, %v3393
    %v3396 = vtanh.pop %v3395
    %3398 = vrot.lane.b32.xlu0 %v3396, 32
    %v3399 = vpop.permute.xlu0 %3398
    %v3401 = vmul.f32 %v3383, %v3399
    %3403 = vrot.lane.b32.xlu0 %v2657, 32
    %v3404 = vpop.permute.xlu0 %3403
    %3407 = vrot.lane.b32.xlu0 %v3401, 112
    %v3408 = vpop.permute.xlu0 %3407
    %v3410 = vsel %vm967, %v3404, %v3408
    %v3412 = vsel %vm133, %v3410, 0
    %3414 = vmatprep.subr.mxu0 0.0
    %3415 = vmatpush1.msra.mxu0 %v2658
    %3416 = vmatprep.subr.mxu0 0.0
    %3417 = vmatpush1.msra.mxu0 %v2659
    %3418 = vmatprep.subr.mxu0 0.0
    %3419 = vmatpush1.msra.mxu0 %v2660
    %3420 = vmatprep.subr.mxu0 0.0
    %3421 = vmatpush1.msra.mxu0 %v2661
    %3422 = vmatprep.subr.mxu0 0.0
    %3423 = vmatpush1.msra.mxu0 %v2662
    %3424 = vmatprep.subr.mxu0 0.0
    %3425 = vmatpush1.msra.mxu0 %v2663
    %3426 = vmatprep.subr.mxu0 0.0
    %3427 = vmatpush1.msra.mxu0 0.0
    %3428 = vmatprep.subr.mxu0 0.0
    %3429 = vmatpush1.msra.mxu0 0.0
    %3430 = vmatprep.subr.mxu0 0.0
    %3431 = vmatpush1.msra.mxu0 0.0
    %3432 = vmatprep.subr.mxu0 0.0
    %3433 = vmatpush1.msra.mxu0 0.0
    %3434 = vmatprep.subr.mxu0 0.0
    %3435 = vmatpush1.msra.mxu0 0.0
    %3436 = vmatprep.subr.mxu0 0.0
    %3437 = vmatpush1.msra.mxu0 0.0
    %3438 = vmatprep.subr.mxu0 0.0
    %3439 = vmatpush1.msra.mxu0 0.0
    %3440 = vmatprep.subr.mxu0 0.0
    %3441 = vmatpush1.msra.mxu0 0.0
    %3442 = vmatprep.subr.mxu0 0.0
    %3443 = vmatpush1.msra.mxu0 0.0
    %3444 = vmatprep.subr.mxu0 0.0
    %3445 = vmatpush1.msra.mxu0 0.0
    %3446 = vmatprep.subr.mxu0 0.0
    %3447 = vmatpush1.msra.mxu0 0.0
    %3448 = vmatprep.subr.mxu0 0.0
    %3449 = vmatpush1.msra.mxu0 0.0
    %3450 = vmatprep.subr.mxu0 0.0
    %3451 = vmatpush1.msra.mxu0 0.0
    %3452 = vmatprep.subr.mxu0 0.0
    %3453 = vmatpush1.msra.mxu0 0.0
    %3454 = vmatprep.subr.mxu0 0.0
    %3455 = vmatpush1.msra.mxu0 0.0
    %3456 = vmatprep.subr.mxu0 0.0
    %3457 = vmatpush1.msra.mxu0 0.0
    %3458 = vmatprep.subr.mxu0 0.0
    %3459 = vmatpush1.msra.mxu0 0.0
    %3460 = vmatprep.subr.mxu0 0.0
    %3461 = vmatpush1.msra.mxu0 0.0
    %3462 = vmatprep.subr.mxu0 0.0
    %3463 = vmatpush1.msra.mxu0 0.0
    %3464 = vmatprep.subr.mxu0 0.0
    %3465 = vmatpush1.msra.mxu0 0.0
    %3466 = vmatprep.subr.mxu0 0.0
    %3467 = vmatpush1.msra.mxu0 0.0
    %3468 = vmatprep.subr.mxu0 0.0
    %3469 = vmatpush1.msra.mxu0 0.0
    %3470 = vmatprep.subr.mxu0 0.0
    %3471 = vmatpush1.msra.mxu0 0.0
    %3472 = vmatprep.subr.mxu0 0.0
    %3473 = vmatpush1.msra.mxu0 0.0
    %3474 = vmatprep.subr.mxu0 0.0
    %3475 = vmatpush1.msra.mxu0 0.0
    %3476 = vmatprep.subr.mxu0 0.0
    %3477 = vmatpush1.msra.mxu0 0.0
    %3478 = vmatprep.mubr.f32.mxu0 0.0
    %3479 = vmatmul.mubr.f32.gmra.mrb[0].mxu0 %v3412
    %v3480 = vpop.f32.mrb[0].mxu0
    %v3481 = vadd.f32 %v2673, %v3480
    %v3482 = vpop.f32.mrb[0].mxu0
    %3483 = vdwg.mxu0
    %v3484 = vxor.u32 %v3481, 2147483648
    %v3485 = vmul.f32 %v3484, 1.442695
    %v3486 = vpow.pop %v3485
    %v3487 = vadd.f32 %v3486, 1.0
    %v3488 = vrcp.pop %v3487
    %v3489 = vmul.f32 1.0, %v3488
    %v3490 = vtanh.pop %v3481
    %v3491 = vmul.f32 %v3489, %v3395
    %3493 = vrot.lane.b32.xlu0 %v3490, 96
    %v3494 = vpop.permute.xlu0 %3493
    %v3496 = vmul.f32 %v3489, %v3494
    %3498 = vrot.lane.b32.xlu0 %v3496, 16
    %v3499 = vpop.permute.xlu0 %3498
    %v3501 = vadd.f32 %v3491, %v3499
    %v3502 = vtanh.pop %v3501
    %3504 = vrot.lane.b32.xlu0 %v3502, 32
    %v3505 = vpop.permute.xlu0 %3504
    %v3507 = vmul.f32 %v3489, %v3505
    %v3508 = vld [vmem:[#allocation7] sm:$0xff]
    %v3509 = vld [vmem:[#allocation7 + $0x8] sm:$0xff]
    %v3510 = vld [vmem:[#allocation7 + $0x10] sm:$0xff]
    %v3511 = vld [vmem:[#allocation7 + $0x18] sm:$0xff]
    %v3512 = vld [vmem:[#allocation7 + $0x20] sm:$0xff]
    %v3513 = vld [vmem:[#allocation7 + $0x28] sm:$0xff]
    %v3514 = vld [vmem:[%s10] sm:$0x1]
    %v3516 = vlaneseq
    %v3517 = vshrl.u32 %v3516, 7
    %v3518 = vsub.s32 0, %v3517
    %v3519 = vrot.slane %v3514, %v3518
    %3521 = vmatprep.subr.mxu0 0.0
    %3522 = vmatpush1.msra.mxu0 %v3508
    %3523 = vmatprep.subr.mxu0 0.0
    %3524 = vmatpush1.msra.mxu0 %v3509
    %3525 = vmatprep.subr.mxu0 0.0
    %3526 = vmatpush1.msra.mxu0 %v3510
    %3527 = vmatprep.subr.mxu0 0.0
    %3528 = vmatpush1.msra.mxu0 %v3511
    %3529 = vmatprep.subr.mxu0 0.0
    %3530 = vmatpush1.msra.mxu0 %v3512
    %3531 = vmatprep.subr.mxu0 0.0
    %3532 = vmatpush1.msra.mxu0 %v3513
    %3533 = vmatprep.subr.mxu0 0.0
    %3534 = vmatpush1.msra.mxu0 0.0
    %3535 = vmatprep.subr.mxu0 0.0
    %3536 = vmatpush1.msra.mxu0 0.0
    %3537 = vmatprep.subr.mxu0 0.0
    %3538 = vmatpush1.msra.mxu0 0.0
    %3539 = vmatprep.subr.mxu0 0.0
    %3540 = vmatpush1.msra.mxu0 0.0
    %3541 = vmatprep.subr.mxu0 0.0
    %3542 = vmatpush1.msra.mxu0 0.0
    %3543 = vmatprep.subr.mxu0 0.0
    %3544 = vmatpush1.msra.mxu0 0.0
    %3545 = vmatprep.subr.mxu0 0.0
    %3546 = vmatpush1.msra.mxu0 0.0
    %3547 = vmatprep.subr.mxu0 0.0
    %3548 = vmatpush1.msra.mxu0 0.0
    %3549 = vmatprep.subr.mxu0 0.0
    %3550 = vmatpush1.msra.mxu0 0.0
    %3551 = vmatprep.subr.mxu0 0.0
    %3552 = vmatpush1.msra.mxu0 0.0
    %3553 = vmatprep.subr.mxu0 0.0
    %3554 = vmatpush1.msra.mxu0 0.0
    %3555 = vmatprep.subr.mxu0 0.0
    %3556 = vmatpush1.msra.mxu0 0.0
    %3557 = vmatprep.subr.mxu0 0.0
    %3558 = vmatpush1.msra.mxu0 0.0
    %3559 = vmatprep.subr.mxu0 0.0
    %3560 = vmatpush1.msra.mxu0 0.0
    %3561 = vmatprep.subr.mxu0 0.0
    %3562 = vmatpush1.msra.mxu0 0.0
    %3563 = vmatprep.subr.mxu0 0.0
    %3564 = vmatpush1.msra.mxu0 0.0
    %3565 = vmatprep.subr.mxu0 0.0
    %3566 = vmatpush1.msra.mxu0 0.0
    %3567 = vmatprep.subr.mxu0 0.0
    %3568 = vmatpush1.msra.mxu0 0.0
    %3569 = vmatprep.subr.mxu0 0.0
    %3570 = vmatpush1.msra.mxu0 0.0
    %3571 = vmatprep.subr.mxu0 0.0
    %3572 = vmatpush1.msra.mxu0 0.0
    %3573 = vmatprep.subr.mxu0 0.0
    %3574 = vmatpush1.msra.mxu0 0.0
    %3575 = vmatprep.subr.mxu0 0.0
    %3576 = vmatpush1.msra.mxu0 0.0
    %3577 = vmatprep.subr.mxu0 0.0
    %3578 = vmatpush1.msra.mxu0 0.0
    %3579 = vmatprep.subr.mxu0 0.0
    %3580 = vmatpush1.msra.mxu0 0.0
    %3581 = vmatprep.subr.mxu0 0.0
    %3582 = vmatpush1.msra.mxu0 0.0
    %3583 = vmatprep.subr.mxu0 0.0
    %3584 = vmatpush1.msra.mxu0 0.0
    %3585 = vmatprep.mubr.f32.mxu0 0.0
    %3586 = vmatmul.mubr.f32.gmra.mrb[0].mxu0 %v1826
    %v3587 = vpop.f32.mrb[0].mxu0
    %v3588 = vadd.f32 %v3519, %v3587
    %v3589 = vpop.f32.mrb[0].mxu0
    %3590 = vdwg.mxu0
    %v3591 = vxor.u32 %v3588, 2147483648
    %v3592 = vmul.f32 %v3591, 1.442695
    %v3593 = vpow.pop %v3592
    %v3594 = vadd.f32 %v3593, 1.0
    %v3595 = vrcp.pop %v3594
    %v3596 = vmul.f32 1.0, %v3595
    %v3597 = vtanh.pop %v3588
    %v3598 = vmul.f32 %v3596, 0.0
    %3600 = vrot.lane.b32.xlu0 %v3597, 64
    %v3601 = vpop.permute.xlu0 %3600
    %v3603 = vmul.f32 %v3596, %v3601
    %3605 = vrot.lane.b32.xlu0 %v3603, 32
    %v3606 = vpop.permute.xlu0 %3605
    %v3608 = vadd.f32 %v3598, %v3606
    %v3609 = vtanh.pop %v3608
    %3611 = vrot.lane.b32.xlu0 %v3609, 64
    %v3612 = vpop.permute.xlu0 %3611
    %v3614 = vmul.f32 %v3596, %v3612
    %3616 = vrot.lane.b32.xlu0 %v3614, 48
    %v3617 = vpop.permute.xlu0 %3616
    %v3619 = vsel %vm125, %v1923, %v3617
    %v3621 = vsel %vm133, %v3619, 0
    %3623 = vmatprep.subr.mxu0 0.0
    %3624 = vmatpush1.msra.mxu0 %v3508
    %3625 = vmatprep.subr.mxu0 0.0
    %3626 = vmatpush1.msra.mxu0 %v3509
    %3627 = vmatprep.subr.mxu0 0.0
    %3628 = vmatpush1.msra.mxu0 %v3510
    %3629 = vmatprep.subr.mxu0 0.0
    %3630 = vmatpush1.msra.mxu0 %v3511
    %3631 = vmatprep.subr.mxu0 0.0
    %3632 = vmatpush1.msra.mxu0 %v3512
    %3633 = vmatprep.subr.mxu0 0.0
    %3634 = vmatpush1.msra.mxu0 %v3513
    %3635 = vmatprep.subr.mxu0 0.0
    %3636 = vmatpush1.msra.mxu0 0.0
    %3637 = vmatprep.subr.mxu0 0.0
    %3638 = vmatpush1.msra.mxu0 0.0
    %3639 = vmatprep.subr.mxu0 0.0
    %3640 = vmatpush1.msra.mxu0 0.0
    %3641 = vmatprep.subr.mxu0 0.0
    %3642 = vmatpush1.msra.mxu0 0.0
    %3643 = vmatprep.subr.mxu0 0.0
    %3644 = vmatpush1.msra.mxu0 0.0
    %3645 = vmatprep.subr.mxu0 0.0
    %3646 = vmatpush1.msra.mxu0 0.0
    %3647 = vmatprep.subr.mxu0 0.0
    %3648 = vmatpush1.msra.mxu0 0.0
    %3649 = vmatprep.subr.mxu0 0.0
    %3650 = vmatpush1.msra.mxu0 0.0
    %3651 = vmatprep.subr.mxu0 0.0
    %3652 = vmatpush1.msra.mxu0 0.0
    %3653 = vmatprep.subr.mxu0 0.0
    %3654 = vmatpush1.msra.mxu0 0.0
    %3655 = vmatprep.subr.mxu0 0.0
    %3656 = vmatpush1.msra.mxu0 0.0
    %3657 = vmatprep.subr.mxu0 0.0
    %3658 = vmatpush1.msra.mxu0 0.0
    %3659 = vmatprep.subr.mxu0 0.0
    %3660 = vmatpush1.msra.mxu0 0.0
    %3661 = vmatprep.subr.mxu0 0.0
    %3662 = vmatpush1.msra.mxu0 0.0
    %3663 = vmatprep.subr.mxu0 0.0
    %3664 = vmatpush1.msra.mxu0 0.0
    %3665 = vmatprep.subr.mxu0 0.0
    %3666 = vmatpush1.msra.mxu0 0.0
    %3667 = vmatprep.subr.mxu0 0.0
    %3668 = vmatpush1.msra.mxu0 0.0
    %3669 = vmatprep.subr.mxu0 0.0
    %3670 = vmatpush1.msra.mxu0 0.0
    %3671 = vmatprep.subr.mxu0 0.0
    %3672 = vmatpush1.msra.mxu0 0.0
    %3673 = vmatprep.subr.mxu0 0.0
    %3674 = vmatpush1.msra.mxu0 0.0
    %3675 = vmatprep.subr.mxu0 0.0
    %3676 = vmatpush1.msra.mxu0 0.0
    %3677 = vmatprep.subr.mxu0 0.0
    %3678 = vmatpush1.msra.mxu0 0.0
    %3679 = vmatprep.subr.mxu0 0.0
    %3680 = vmatpush1.msra.mxu0 0.0
    %3681 = vmatprep.subr.mxu0 0.0
    %3682 = vmatpush1.msra.mxu0 0.0
    %3683 = vmatprep.subr.mxu0 0.0
    %3684 = vmatpush1.msra.mxu0 0.0
    %3685 = vmatprep.subr.mxu0 0.0
    %3686 = vmatpush1.msra.mxu0 0.0
    %3687 = vmatprep.mubr.f32.mxu0 0.0
    %3688 = vmatmul.mubr.f32.gmra.mrb[0].mxu0 %v3621
    %v3689 = vpop.f32.mrb[0].mxu0
    %v3690 = vadd.f32 %v3519, %v3689
    %v3691 = vpop.f32.mrb[0].mxu0
    %3692 = vdwg.mxu0
    %v3693 = vxor.u32 %v3690, 2147483648
    %v3694 = vmul.f32 %v3693, 1.442695
    %v3695 = vpow.pop %v3694
    %v3696 = vadd.f32 %v3695, 1.0
    %v3697 = vrcp.pop %v3696
    %v3698 = vmul.f32 1.0, %v3697
    %v3699 = vtanh.pop %v3690
    %v3700 = vmul.f32 %v3698, %v3608
    %3702 = vrot.lane.b32.xlu0 %v3699, 64
    %v3703 = vpop.permute.xlu0 %3702
    %v3705 = vmul.f32 %v3698, %v3703
    %3707 = vrot.lane.b32.xlu0 %v3705, 32
    %v3708 = vpop.permute.xlu0 %3707
    %v3710 = vadd.f32 %v3700, %v3708
    %v3711 = vtanh.pop %v3710
    %3713 = vrot.lane.b32.xlu0 %v3711, 64
    %v3714 = vpop.permute.xlu0 %3713
    %v3716 = vmul.f32 %v3698, %v3714
    %3718 = vrot.lane.b32.xlu0 %v3716, 48
    %v3719 = vpop.permute.xlu0 %3718
    %v3721 = vsel %vm125, %v2028, %v3719
    %v3723 = vsel %vm133, %v3721, 0
    %3725 = vmatprep.subr.mxu0 0.0
    %3726 = vmatpush1.msra.mxu0 %v3508
    %3727 = vmatprep.subr.mxu0 0.0
    %3728 = vmatpush1.msra.mxu0 %v3509
    %3729 = vmatprep.subr.mxu0 0.0
    %3730 = vmatpush1.msra.mxu0 %v3510
    %3731 = vmatprep.subr.mxu0 0.0
    %3732 = vmatpush1.msra.mxu0 %v3511
    %3733 = vmatprep.subr.mxu0 0.0
    %3734 = vmatpush1.msra.mxu0 %v3512
    %3735 = vmatprep.subr.mxu0 0.0
    %3736 = vmatpush1.msra.mxu0 %v3513
    %3737 = vmatprep.subr.mxu0 0.0
    %3738 = vmatpush1.msra.mxu0 0.0
    %3739 = vmatprep.subr.mxu0 0.0
    %3740 = vmatpush1.msra.mxu0 0.0
    %3741 = vmatprep.subr.mxu0 0.0
    %3742 = vmatpush1.msra.mxu0 0.0
    %3743 = vmatprep.subr.mxu0 0.0
    %3744 = vmatpush1.msra.mxu0 0.0
    %3745 = vmatprep.subr.mxu0 0.0
    %3746 = vmatpush1.msra.mxu0 0.0
    %3747 = vmatprep.subr.mxu0 0.0
    %3748 = vmatpush1.msra.mxu0 0.0
    %3749 = vmatprep.subr.mxu0 0.0
    %3750 = vmatpush1.msra.mxu0 0.0
    %3751 = vmatprep.subr.mxu0 0.0
    %3752 = vmatpush1.msra.mxu0 0.0
    %3753 = vmatprep.subr.mxu0 0.0
    %3754 = vmatpush1.msra.mxu0 0.0
    %3755 = vmatprep.subr.mxu0 0.0
    %3756 = vmatpush1.msra.mxu0 0.0
    %3757 = vmatprep.subr.mxu0 0.0
    %3758 = vmatpush1.msra.mxu0 0.0
    %3759 = vmatprep.subr.mxu0 0.0
    %3760 = vmatpush1.msra.mxu0 0.0
    %3761 = vmatprep.subr.mxu0 0.0
    %3762 = vmatpush1.msra.mxu0 0.0
    %3763 = vmatprep.subr.mxu0 0.0
    %3764 = vmatpush1.msra.mxu0 0.0
    %3765 = vmatprep.subr.mxu0 0.0
    %3766 = vmatpush1.msra.mxu0 0.0
    %3767 = vmatprep.subr.mxu0 0.0
    %3768 = vmatpush1.msra.mxu0 0.0
    %3769 = vmatprep.subr.mxu0 0.0
    %3770 = vmatpush1.msra.mxu0 0.0
    %3771 = vmatprep.subr.mxu0 0.0
    %3772 = vmatpush1.msra.mxu0 0.0
    %3773 = vmatprep.subr.mxu0 0.0
    %3774 = vmatpush1.msra.mxu0 0.0
    %3775 = vmatprep.subr.mxu0 0.0
    %3776 = vmatpush1.msra.mxu0 0.0
    %3777 = vmatprep.subr.mxu0 0.0
    %3778 = vmatpush1.msra.mxu0 0.0
    %3779 = vmatprep.subr.mxu0 0.0
    %3780 = vmatpush1.msra.mxu0 0.0
    %3781 = vmatprep.subr.mxu0 0.0
    %3782 = vmatpush1.msra.mxu0 0.0
    %3783 = vmatprep.subr.mxu0 0.0
    %3784 = vmatpush1.msra.mxu0 0.0
    %3785 = vmatprep.subr.mxu0 0.0
    %3786 = vmatpush1.msra.mxu0 0.0
    %3787 = vmatprep.subr.mxu0 0.0
    %3788 = vmatpush1.msra.mxu0 0.0
    %3789 = vmatprep.mubr.f32.mxu0 0.0
    %3790 = vmatmul.mubr.f32.gmra.mrb[0].mxu0 %v3723
    %v3791 = vpop.f32.mrb[0].mxu0
    %v3792 = vadd.f32 %v3519, %v3791
    %v3793 = vpop.f32.mrb[0].mxu0
    %3794 = vdwg.mxu0
    %v3795 = vxor.u32 %v3792, 2147483648
    %v3796 = vmul.f32 %v3795, 1.442695
    %v3797 = vpow.pop %v3796
    %v3798 = vadd.f32 %v3797, 1.0
    %v3799 = vrcp.pop %v3798
    %v3800 = vmul.f32 1.0, %v3799
    %v3801 = vtanh.pop %v3792
    %v3802 = vmul.f32 %v3800, %v3710
    %3804 = vrot.lane.b32.xlu0 %v3801, 64
    %v3805 = vpop.permute.xlu0 %3804
    %v3807 = vmul.f32 %v3800, %v3805
    %3809 = vrot.lane.b32.xlu0 %v3807, 32
    %v3810 = vpop.permute.xlu0 %3809
    %v3812 = vadd.f32 %v3802, %v3810
    %v3813 = vtanh.pop %v3812
    %3815 = vrot.lane.b32.xlu0 %v3813, 64
    %v3816 = vpop.permute.xlu0 %3815
    %v3818 = vmul.f32 %v3800, %v3816
    %3820 = vrot.lane.b32.xlu0 %v3818, 48
    %v3821 = vpop.permute.xlu0 %3820
    %v3823 = vsel %vm125, %v2133, %v3821
    %v3825 = vsel %vm133, %v3823, 0
    %3827 = vmatprep.subr.mxu0 0.0
    %3828 = vmatpush1.msra.mxu0 %v3508
    %3829 = vmatprep.subr.mxu0 0.0
    %3830 = vmatpush1.msra.mxu0 %v3509
    %3831 = vmatprep.subr.mxu0 0.0
    %3832 = vmatpush1.msra.mxu0 %v3510
    %3833 = vmatprep.subr.mxu0 0.0
    %3834 = vmatpush1.msra.mxu0 %v3511
    %3835 = vmatprep.subr.mxu0 0.0
    %3836 = vmatpush1.msra.mxu0 %v3512
    %3837 = vmatprep.subr.mxu0 0.0
    %3838 = vmatpush1.msra.mxu0 %v3513
    %3839 = vmatprep.subr.mxu0 0.0
    %3840 = vmatpush1.msra.mxu0 0.0
    %3841 = vmatprep.subr.mxu0 0.0
    %3842 = vmatpush1.msra.mxu0 0.0
    %3843 = vmatprep.subr.mxu0 0.0
    %3844 = vmatpush1.msra.mxu0 0.0
    %3845 = vmatprep.subr.mxu0 0.0
    %3846 = vmatpush1.msra.mxu0 0.0
    %3847 = vmatprep.subr.mxu0 0.0
    %3848 = vmatpush1.msra.mxu0 0.0
    %3849 = vmatprep.subr.mxu0 0.0
    %3850 = vmatpush1.msra.mxu0 0.0
    %3851 = vmatprep.subr.mxu0 0.0
    %3852 = vmatpush1.msra.mxu0 0.0
    %3853 = vmatprep.subr.mxu0 0.0
    %3854 = vmatpush1.msra.mxu0 0.0
    %3855 = vmatprep.subr.mxu0 0.0
    %3856 = vmatpush1.msra.mxu0 0.0
    %3857 = vmatprep.subr.mxu0 0.0
    %3858 = vmatpush1.msra.mxu0 0.0
    %3859 = vmatprep.subr.mxu0 0.0
    %3860 = vmatpush1.msra.mxu0 0.0
    %3861 = vmatprep.subr.mxu0 0.0
    %3862 = vmatpush1.msra.mxu0 0.0
    %3863 = vmatprep.subr.mxu0 0.0
    %3864 = vmatpush1.msra.mxu0 0.0
    %3865 = vmatprep.subr.mxu0 0.0
    %3866 = vmatpush1.msra.mxu0 0.0
    %3867 = vmatprep.subr.mxu0 0.0
    %3868 = vmatpush1.msra.mxu0 0.0
    %3869 = vmatprep.subr.mxu0 0.0
    %3870 = vmatpush1.msra.mxu0 0.0
    %3871 = vmatprep.subr.mxu0 0.0
    %3872 = vmatpush1.msra.mxu0 0.0
    %3873 = vmatprep.subr.mxu0 0.0
    %3874 = vmatpush1.msra.mxu0 0.0
    %3875 = vmatprep.subr.mxu0 0.0
    %3876 = vmatpush1.msra.mxu0 0.0
    %3877 = vmatprep.subr.mxu0 0.0
    %3878 = vmatpush1.msra.mxu0 0.0
    %3879 = vmatprep.subr.mxu0 0.0
    %3880 = vmatpush1.msra.mxu0 0.0
    %3881 = vmatprep.subr.mxu0 0.0
    %3882 = vmatpush1.msra.mxu0 0.0
    %3883 = vmatprep.subr.mxu0 0.0
    %3884 = vmatpush1.msra.mxu0 0.0
    %3885 = vmatprep.subr.mxu0 0.0
    %3886 = vmatpush1.msra.mxu0 0.0
    %3887 = vmatprep.subr.mxu0 0.0
    %3888 = vmatpush1.msra.mxu0 0.0
    %3889 = vmatprep.subr.mxu0 0.0
    %3890 = vmatpush1.msra.mxu0 0.0
    %3891 = vmatprep.mubr.f32.mxu0 0.0
    %3892 = vmatmul.mubr.f32.gmra.mrb[0].mxu0 %v3825
    %v3893 = vpop.f32.mrb[0].mxu0
    %v3894 = vadd.f32 %v3519, %v3893
    %v3895 = vpop.f32.mrb[0].mxu0
    %3896 = vdwg.mxu0
    %v3897 = vxor.u32 %v3894, 2147483648
    %v3898 = vmul.f32 %v3897, 1.442695
    %v3899 = vpow.pop %v3898
    %v3900 = vadd.f32 %v3899, 1.0
    %v3901 = vrcp.pop %v3900
    %v3902 = vmul.f32 1.0, %v3901
    %v3903 = vtanh.pop %v3894
    %v3904 = vmul.f32 %v3902, %v3812
    %3906 = vrot.lane.b32.xlu0 %v3903, 64
    %v3907 = vpop.permute.xlu0 %3906
    %v3909 = vmul.f32 %v3902, %v3907
    %3911 = vrot.lane.b32.xlu0 %v3909, 32
    %v3912 = vpop.permute.xlu0 %3911
    %v3914 = vadd.f32 %v3904, %v3912
    %v3915 = vtanh.pop %v3914
    %3917 = vrot.lane.b32.xlu0 %v3915, 64
    %v3918 = vpop.permute.xlu0 %3917
    %v3920 = vmul.f32 %v3902, %v3918
    %3922 = vrot.lane.b32.xlu0 %v3920, 48
    %v3923 = vpop.permute.xlu0 %3922
    %v3925 = vsel %vm125, %v2238, %v3923
    %v3927 = vsel %vm133, %v3925, 0
    %3929 = vmatprep.subr.mxu0 0.0
    %3930 = vmatpush1.msra.mxu0 %v3508
    %3931 = vmatprep.subr.mxu0 0.0
    %3932 = vmatpush1.msra.mxu0 %v3509
    %3933 = vmatprep.subr.mxu0 0.0
    %3934 = vmatpush1.msra.mxu0 %v3510
    %3935 = vmatprep.subr.mxu0 0.0
    %3936 = vmatpush1.msra.mxu0 %v3511
    %3937 = vmatprep.subr.mxu0 0.0
    %3938 = vmatpush1.msra.mxu0 %v3512
    %3939 = vmatprep.subr.mxu0 0.0
    %3940 = vmatpush1.msra.mxu0 %v3513
    %3941 = vmatprep.subr.mxu0 0.0
    %3942 = vmatpush1.msra.mxu0 0.0
    %3943 = vmatprep.subr.mxu0 0.0
    %3944 = vmatpush1.msra.mxu0 0.0
    %3945 = vmatprep.subr.mxu0 0.0
    %3946 = vmatpush1.msra.mxu0 0.0
    %3947 = vmatprep.subr.mxu0 0.0
    %3948 = vmatpush1.msra.mxu0 0.0
    %3949 = vmatprep.subr.mxu0 0.0
    %3950 = vmatpush1.msra.mxu0 0.0
    %3951 = vmatprep.subr.mxu0 0.0
    %3952 = vmatpush1.msra.mxu0 0.0
    %3953 = vmatprep.subr.mxu0 0.0
    %3954 = vmatpush1.msra.mxu0 0.0
    %3955 = vmatprep.subr.mxu0 0.0
    %3956 = vmatpush1.msra.mxu0 0.0
    %3957 = vmatprep.subr.mxu0 0.0
    %3958 = vmatpush1.msra.mxu0 0.0
    %3959 = vmatprep.subr.mxu0 0.0
    %3960 = vmatpush1.msra.mxu0 0.0
    %3961 = vmatprep.subr.mxu0 0.0
    %3962 = vmatpush1.msra.mxu0 0.0
    %3963 = vmatprep.subr.mxu0 0.0
    %3964 = vmatpush1.msra.mxu0 0.0
    %3965 = vmatprep.subr.mxu0 0.0
    %3966 = vmatpush1.msra.mxu0 0.0
    %3967 = vmatprep.subr.mxu0 0.0
    %3968 = vmatpush1.msra.mxu0 0.0
    %3969 = vmatprep.subr.mxu0 0.0
    %3970 = vmatpush1.msra.mxu0 0.0
    %3971 = vmatprep.subr.mxu0 0.0
    %3972 = vmatpush1.msra.mxu0 0.0
    %3973 = vmatprep.subr.mxu0 0.0
    %3974 = vmatpush1.msra.mxu0 0.0
    %3975 = vmatprep.subr.mxu0 0.0
    %3976 = vmatpush1.msra.mxu0 0.0
    %3977 = vmatprep.subr.mxu0 0.0
    %3978 = vmatpush1.msra.mxu0 0.0
    %3979 = vmatprep.subr.mxu0 0.0
    %3980 = vmatpush1.msra.mxu0 0.0
    %3981 = vmatprep.subr.mxu0 0.0
    %3982 = vmatpush1.msra.mxu0 0.0
    %3983 = vmatprep.subr.mxu0 0.0
    %3984 = vmatpush1.msra.mxu0 0.0
    %3985 = vmatprep.subr.mxu0 0.0
    %3986 = vmatpush1.msra.mxu0 0.0
    %3987 = vmatprep.subr.mxu0 0.0
    %3988 = vmatpush1.msra.mxu0 0.0
    %3989 = vmatprep.subr.mxu0 0.0
    %3990 = vmatpush1.msra.mxu0 0.0
    %3991 = vmatprep.subr.mxu0 0.0
    %3992 = vmatpush1.msra.mxu0 0.0
    %3993 = vmatprep.mubr.f32.mxu0 0.0
    %3994 = vmatmul.mubr.f32.gmra.mrb[0].mxu0 %v3927
    %v3995 = vpop.f32.mrb[0].mxu0
    %v3996 = vadd.f32 %v3519, %v3995
    %v3997 = vpop.f32.mrb[0].mxu0
    %3998 = vdwg.mxu0
    %v3999 = vxor.u32 %v3996, 2147483648
    %v4000 = vmul.f32 %v3999, 1.442695
    %v4001 = vpow.pop %v4000
    %v4002 = vadd.f32 %v4001, 1.0
    %v4003 = vrcp.pop %v4002
    %v4004 = vmul.f32 1.0, %v4003
    %v4005 = vtanh.pop %v3996
    %v4006 = vmul.f32 %v4004, %v3914
    %4008 = vrot.lane.b32.xlu0 %v4005, 64
    %v4009 = vpop.permute.xlu0 %4008
    %v4011 = vmul.f32 %v4004, %v4009
    %4013 = vrot.lane.b32.xlu0 %v4011, 32
    %v4014 = vpop.permute.xlu0 %4013
    %v4016 = vadd.f32 %v4006, %v4014
    %v4017 = vtanh.pop %v4016
    %4019 = vrot.lane.b32.xlu0 %v4017, 64
    %v4020 = vpop.permute.xlu0 %4019
    %v4022 = vmul.f32 %v4004, %v4020
    %4024 = vrot.lane.b32.xlu0 %v4022, 48
    %v4025 = vpop.permute.xlu0 %4024
    %v4027 = vsel %vm125, %v2343, %v4025
    %v4029 = vsel %vm133, %v4027, 0
    %4031 = vmatprep.subr.mxu0 0.0
    %4032 = vmatpush1.msra.mxu0 %v3508
    %4033 = vmatprep.subr.mxu0 0.0
    %4034 = vmatpush1.msra.mxu0 %v3509
    %4035 = vmatprep.subr.mxu0 0.0
    %4036 = vmatpush1.msra.mxu0 %v3510
    %4037 = vmatprep.subr.mxu0 0.0
    %4038 = vmatpush1.msra.mxu0 %v3511
    %4039 = vmatprep.subr.mxu0 0.0
    %4040 = vmatpush1.msra.mxu0 %v3512
    %4041 = vmatprep.subr.mxu0 0.0
    %4042 = vmatpush1.msra.mxu0 %v3513
    %4043 = vmatprep.subr.mxu0 0.0
    %4044 = vmatpush1.msra.mxu0 0.0
    %4045 = vmatprep.subr.mxu0 0.0
    %4046 = vmatpush1.msra.mxu0 0.0
    %4047 = vmatprep.subr.mxu0 0.0
    %4048 = vmatpush1.msra.mxu0 0.0
    %4049 = vmatprep.subr.mxu0 0.0
    %4050 = vmatpush1.msra.mxu0 0.0
    %4051 = vmatprep.subr.mxu0 0.0
    %4052 = vmatpush1.msra.mxu0 0.0
    %4053 = vmatprep.subr.mxu0 0.0
    %4054 = vmatpush1.msra.mxu0 0.0
    %4055 = vmatprep.subr.mxu0 0.0
    %4056 = vmatpush1.msra.mxu0 0.0
    %4057 = vmatprep.subr.mxu0 0.0
    %4058 = vmatpush1.msra.mxu0 0.0
    %4059 = vmatprep.subr.mxu0 0.0
    %4060 = vmatpush1.msra.mxu0 0.0
    %4061 = vmatprep.subr.mxu0 0.0
    %4062 = vmatpush1.msra.mxu0 0.0
    %4063 = vmatprep.subr.mxu0 0.0
    %4064 = vmatpush1.msra.mxu0 0.0
    %4065 = vmatprep.subr.mxu0 0.0
    %4066 = vmatpush1.msra.mxu0 0.0
    %4067 = vmatprep.subr.mxu0 0.0
    %4068 = vmatpush1.msra.mxu0 0.0
    %4069 = vmatprep.subr.mxu0 0.0
    %4070 = vmatpush1.msra.mxu0 0.0
    %4071 = vmatprep.subr.mxu0 0.0
    %4072 = vmatpush1.msra.mxu0 0.0
    %4073 = vmatprep.subr.mxu0 0.0
    %4074 = vmatpush1.msra.mxu0 0.0
    %4075 = vmatprep.subr.mxu0 0.0
    %4076 = vmatpush1.msra.mxu0 0.0
    %4077 = vmatprep.subr.mxu0 0.0
    %4078 = vmatpush1.msra.mxu0 0.0
    %4079 = vmatprep.subr.mxu0 0.0
    %4080 = vmatpush1.msra.mxu0 0.0
    %4081 = vmatprep.subr.mxu0 0.0
    %4082 = vmatpush1.msra.mxu0 0.0
    %4083 = vmatprep.subr.mxu0 0.0
    %4084 = vmatpush1.msra.mxu0 0.0
    %4085 = vmatprep.subr.mxu0 0.0
    %4086 = vmatpush1.msra.mxu0 0.0
    %4087 = vmatprep.subr.mxu0 0.0
    %4088 = vmatpush1.msra.mxu0 0.0
    %4089 = vmatprep.subr.mxu0 0.0
    %4090 = vmatpush1.msra.mxu0 0.0
    %4091 = vmatprep.subr.mxu0 0.0
    %4092 = vmatpush1.msra.mxu0 0.0
    %4093 = vmatprep.subr.mxu0 0.0
    %4094 = vmatpush1.msra.mxu0 0.0
    %4095 = vmatprep.mubr.f32.mxu0 0.0
    %4096 = vmatmul.mubr.f32.gmra.mrb[0].mxu0 %v4029
    %v4097 = vpop.f32.mrb[0].mxu0
    %v4098 = vadd.f32 %v3519, %v4097
    %v4099 = vpop.f32.mrb[0].mxu0
    %4100 = vdwg.mxu0
    %v4101 = vxor.u32 %v4098, 2147483648
    %v4102 = vmul.f32 %v4101, 1.442695
    %v4103 = vpow.pop %v4102
    %v4104 = vadd.f32 %v4103, 1.0
    %v4105 = vrcp.pop %v4104
    %v4106 = vmul.f32 1.0, %v4105
    %v4107 = vtanh.pop %v4098
    %v4108 = vmul.f32 %v4106, %v4016
    %4110 = vrot.lane.b32.xlu0 %v4107, 64
    %v4111 = vpop.permute.xlu0 %4110
    %v4113 = vmul.f32 %v4106, %v4111
    %4115 = vrot.lane.b32.xlu0 %v4113, 32
    %v4116 = vpop.permute.xlu0 %4115
    %v4118 = vadd.f32 %v4108, %v4116
    %v4119 = vtanh.pop %v4118
    %4121 = vrot.lane.b32.xlu0 %v4119, 64
    %v4122 = vpop.permute.xlu0 %4121
    %v4124 = vmul.f32 %v4106, %v4122
    %4126 = vrot.lane.b32.xlu0 %v4124, 48
    %v4127 = vpop.permute.xlu0 %4126
    %v4129 = vsel %vm125, %v2448, %v4127
    %v4131 = vsel %vm133, %v4129, 0
    %4133 = vmatprep.subr.mxu0 0.0
    %4134 = vmatpush1.msra.mxu0 %v3508
    %4135 = vmatprep.subr.mxu0 0.0
    %4136 = vmatpush1.msra.mxu0 %v3509
    %4137 = vmatprep.subr.mxu0 0.0
    %4138 = vmatpush1.msra.mxu0 %v3510
    %4139 = vmatprep.subr.mxu0 0.0
    %4140 = vmatpush1.msra.mxu0 %v3511
    %4141 = vmatprep.subr.mxu0 0.0
    %4142 = vmatpush1.msra.mxu0 %v3512
    %4143 = vmatprep.subr.mxu0 0.0
    %4144 = vmatpush1.msra.mxu0 %v3513
    %4145 = vmatprep.subr.mxu0 0.0
    %4146 = vmatpush1.msra.mxu0 0.0
    %4147 = vmatprep.subr.mxu0 0.0
    %4148 = vmatpush1.msra.mxu0 0.0
    %4149 = vmatprep.subr.mxu0 0.0
    %4150 = vmatpush1.msra.mxu0 0.0
    %4151 = vmatprep.subr.mxu0 0.0
    %4152 = vmatpush1.msra.mxu0 0.0
    %4153 = vmatprep.subr.mxu0 0.0
    %4154 = vmatpush1.msra.mxu0 0.0
    %4155 = vmatprep.subr.mxu0 0.0
    %4156 = vmatpush1.msra.mxu0 0.0
    %4157 = vmatprep.subr.mxu0 0.0
    %4158 = vmatpush1.msra.mxu0 0.0
    %4159 = vmatprep.subr.mxu0 0.0
    %4160 = vmatpush1.msra.mxu0 0.0
    %4161 = vmatprep.subr.mxu0 0.0
    %4162 = vmatpush1.msra.mxu0 0.0
    %4163 = vmatprep.subr.mxu0 0.0
    %4164 = vmatpush1.msra.mxu0 0.0
    %4165 = vmatprep.subr.mxu0 0.0
    %4166 = vmatpush1.msra.mxu0 0.0
    %4167 = vmatprep.subr.mxu0 0.0
    %4168 = vmatpush1.msra.mxu0 0.0
    %4169 = vmatprep.subr.mxu0 0.0
    %4170 = vmatpush1.msra.mxu0 0.0
    %4171 = vmatprep.subr.mxu0 0.0
    %4172 = vmatpush1.msra.mxu0 0.0
    %4173 = vmatprep.subr.mxu0 0.0
    %4174 = vmatpush1.msra.mxu0 0.0
    %4175 = vmatprep.subr.mxu0 0.0
    %4176 = vmatpush1.msra.mxu0 0.0
    %4177 = vmatprep.subr.mxu0 0.0
    %4178 = vmatpush1.msra.mxu0 0.0
    %4179 = vmatprep.subr.mxu0 0.0
    %4180 = vmatpush1.msra.mxu0 0.0
    %4181 = vmatprep.subr.mxu0 0.0
    %4182 = vmatpush1.msra.mxu0 0.0
    %4183 = vmatprep.subr.mxu0 0.0
    %4184 = vmatpush1.msra.mxu0 0.0
    %4185 = vmatprep.subr.mxu0 0.0
    %4186 = vmatpush1.msra.mxu0 0.0
    %4187 = vmatprep.subr.mxu0 0.0
    %4188 = vmatpush1.msra.mxu0 0.0
    %4189 = vmatprep.subr.mxu0 0.0
    %4190 = vmatpush1.msra.mxu0 0.0
    %4191 = vmatprep.subr.mxu0 0.0
    %4192 = vmatpush1.msra.mxu0 0.0
    %4193 = vmatprep.subr.mxu0 0.0
    %4194 = vmatpush1.msra.mxu0 0.0
    %4195 = vmatprep.subr.mxu0 0.0
    %4196 = vmatpush1.msra.mxu0 0.0
    %4197 = vmatprep.mubr.f32.mxu0 0.0
    %4198 = vmatmul.mubr.f32.gmra.mrb[0].mxu0 %v4131
    %v4199 = vpop.f32.mrb[0].mxu0
    %v4200 = vadd.f32 %v3519, %v4199
    %v4201 = vpop.f32.mrb[0].mxu0
    %4202 = vdwg.mxu0
    %v4203 = vxor.u32 %v4200, 2147483648
    %v4204 = vmul.f32 %v4203, 1.442695
    %v4205 = vpow.pop %v4204
    %v4206 = vadd.f32 %v4205, 1.0
    %v4207 = vrcp.pop %v4206
    %v4208 = vmul.f32 1.0, %v4207
    %v4209 = vtanh.pop %v4200
    %v4210 = vmul.f32 %v4208, %v4118
    %4212 = vrot.lane.b32.xlu0 %v4209, 64
    %v4213 = vpop.permute.xlu0 %4212
    %v4215 = vmul.f32 %v4208, %v4213
    %4217 = vrot.lane.b32.xlu0 %v4215, 32
    %v4218 = vpop.permute.xlu0 %4217
    %v4220 = vadd.f32 %v4210, %v4218
    %v4221 = vtanh.pop %v4220
    %4223 = vrot.lane.b32.xlu0 %v4221, 64
    %v4224 = vpop.permute.xlu0 %4223
    %v4226 = vmul.f32 %v4208, %v4224
    %4228 = vrot.lane.b32.xlu0 %v4226, 48
    %v4229 = vpop.permute.xlu0 %4228
    %v4231 = vsel %vm125, %v2554, %v4229
    %v4233 = vsel %vm133, %v4231, 0
    %4235 = vmatprep.subr.mxu0 0.0
    %4236 = vmatpush1.msra.mxu0 %v3508
    %4237 = vmatprep.subr.mxu0 0.0
    %4238 = vmatpush1.msra.mxu0 %v3509
    %4239 = vmatprep.subr.mxu0 0.0
    %4240 = vmatpush1.msra.mxu0 %v3510
    %4241 = vmatprep.subr.mxu0 0.0
    %4242 = vmatpush1.msra.mxu0 %v3511
    %4243 = vmatprep.subr.mxu0 0.0
    %4244 = vmatpush1.msra.mxu0 %v3512
    %4245 = vmatprep.subr.mxu0 0.0
    %4246 = vmatpush1.msra.mxu0 %v3513
    %4247 = vmatprep.subr.mxu0 0.0
    %4248 = vmatpush1.msra.mxu0 0.0
    %4249 = vmatprep.subr.mxu0 0.0
    %4250 = vmatpush1.msra.mxu0 0.0
    %4251 = vmatprep.subr.mxu0 0.0
    %4252 = vmatpush1.msra.mxu0 0.0
    %4253 = vmatprep.subr.mxu0 0.0
    %4254 = vmatpush1.msra.mxu0 0.0
    %4255 = vmatprep.subr.mxu0 0.0
    %4256 = vmatpush1.msra.mxu0 0.0
    %4257 = vmatprep.subr.mxu0 0.0
    %4258 = vmatpush1.msra.mxu0 0.0
    %4259 = vmatprep.subr.mxu0 0.0
    %4260 = vmatpush1.msra.mxu0 0.0
    %4261 = vmatprep.subr.mxu0 0.0
    %4262 = vmatpush1.msra.mxu0 0.0
    %4263 = vmatprep.subr.mxu0 0.0
    %4264 = vmatpush1.msra.mxu0 0.0
    %4265 = vmatprep.subr.mxu0 0.0
    %4266 = vmatpush1.msra.mxu0 0.0
    %4267 = vmatprep.subr.mxu0 0.0
    %4268 = vmatpush1.msra.mxu0 0.0
    %4269 = vmatprep.subr.mxu0 0.0
    %4270 = vmatpush1.msra.mxu0 0.0
    %4271 = vmatprep.subr.mxu0 0.0
    %4272 = vmatpush1.msra.mxu0 0.0
    %4273 = vmatprep.subr.mxu0 0.0
    %4274 = vmatpush1.msra.mxu0 0.0
    %4275 = vmatprep.subr.mxu0 0.0
    %4276 = vmatpush1.msra.mxu0 0.0
    %4277 = vmatprep.subr.mxu0 0.0
    %4278 = vmatpush1.msra.mxu0 0.0
    %4279 = vmatprep.subr.mxu0 0.0
    %4280 = vmatpush1.msra.mxu0 0.0
    %4281 = vmatprep.subr.mxu0 0.0
    %4282 = vmatpush1.msra.mxu0 0.0
    %4283 = vmatprep.subr.mxu0 0.0
    %4284 = vmatpush1.msra.mxu0 0.0
    %4285 = vmatprep.subr.mxu0 0.0
    %4286 = vmatpush1.msra.mxu0 0.0
    %4287 = vmatprep.subr.mxu0 0.0
    %4288 = vmatpush1.msra.mxu0 0.0
    %4289 = vmatprep.subr.mxu0 0.0
    %4290 = vmatpush1.msra.mxu0 0.0
    %4291 = vmatprep.subr.mxu0 0.0
    %4292 = vmatpush1.msra.mxu0 0.0
    %4293 = vmatprep.subr.mxu0 0.0
    %4294 = vmatpush1.msra.mxu0 0.0
    %4295 = vmatprep.subr.mxu0 0.0
    %4296 = vmatpush1.msra.mxu0 0.0
    %4297 = vmatprep.subr.mxu0 0.0
    %4298 = vmatpush1.msra.mxu0 0.0
    %4299 = vmatprep.mubr.f32.mxu0 0.0
    %4300 = vmatmul.mubr.f32.gmra.mrb[0].mxu0 %v4233
    %v4301 = vpop.f32.mrb[0].mxu0
    %v4302 = vadd.f32 %v3519, %v4301
    %v4303 = vpop.f32.mrb[0].mxu0
    %4304 = vdwg.mxu0
    %v4305 = vxor.u32 %v4302, 2147483648
    %v4306 = vmul.f32 %v4305, 1.442695
    %v4307 = vpow.pop %v4306
    %v4308 = vadd.f32 %v4307, 1.0
    %v4309 = vrcp.pop %v4308
    %v4310 = vmul.f32 1.0, %v4309
    %v4311 = vtanh.pop %v4302
    %v4312 = vmul.f32 %v4310, %v4220
    %4314 = vrot.lane.b32.xlu0 %v4311, 64
    %v4315 = vpop.permute.xlu0 %4314
    %v4317 = vmul.f32 %v4310, %v4315
    %4319 = vrot.lane.b32.xlu0 %v4317, 32
    %v4320 = vpop.permute.xlu0 %4319
    %v4322 = vadd.f32 %v4312, %v4320
    %v4323 = vtanh.pop %v4322
    %4325 = vrot.lane.b32.xlu0 %v4323, 64
    %v4326 = vpop.permute.xlu0 %4325
    %v4328 = vmul.f32 %v4310, %v4326
    %v4329 = vld [vmem:[#allocation9] sm:$0xff]
    %v4330 = vld [vmem:[#allocation9 + $0x8] sm:$0xff]
    %v4331 = vld [vmem:[#allocation9 + $0x10] sm:$0xff]
    %v4332 = vld [vmem:[#allocation9 + $0x18] sm:$0xff]
    %v4333 = vld [vmem:[#allocation9 + $0x20] sm:$0xff]
    %v4334 = vld [vmem:[#allocation9 + $0x28] sm:$0xff]
    %v4335 = vld [vmem:[%s12] sm:$0x1]
    %4336 = vrot.lane.b32.xlu0 %v3614, 32
    %v4337 = vpop.permute.xlu0 %4336
    %v4339 = vsel %vm967, %v4337, 0.0
    %v4341 = vlaneseq
    %v4342 = vshrl.u32 %v4341, 7
    %v4343 = vsub.s32 0, %v4342
    %v4344 = vrot.slane %v4335, %v4343
    %v4347 = vsel %vm133, %v4339, 0
    %4349 = vmatprep.subr.mxu0 0.0
    %4350 = vmatpush1.msra.mxu0 %v4329
    %4351 = vmatprep.subr.mxu0 0.0
    %4352 = vmatpush1.msra.mxu0 %v4330
    %4353 = vmatprep.subr.mxu0 0.0
    %4354 = vmatpush1.msra.mxu0 %v4331
    %4355 = vmatprep.subr.mxu0 0.0
    %4356 = vmatpush1.msra.mxu0 %v4332
    %4357 = vmatprep.subr.mxu0 0.0
    %4358 = vmatpush1.msra.mxu0 %v4333
    %4359 = vmatprep.subr.mxu0 0.0
    %4360 = vmatpush1.msra.mxu0 %v4334
    %4361 = vmatprep.subr.mxu0 0.0
    %4362 = vmatpush1.msra.mxu0 0.0
    %4363 = vmatprep.subr.mxu0 0.0
    %4364 = vmatpush1.msra.mxu0 0.0
    %4365 = vmatprep.subr.mxu0 0.0
    %4366 = vmatpush1.msra.mxu0 0.0
    %4367 = vmatprep.subr.mxu0 0.0
    %4368 = vmatpush1.msra.mxu0 0.0
    %4369 = vmatprep.subr.mxu0 0.0
    %4370 = vmatpush1.msra.mxu0 0.0
    %4371 = vmatprep.subr.mxu0 0.0
    %4372 = vmatpush1.msra.mxu0 0.0
    %4373 = vmatprep.subr.mxu0 0.0
    %4374 = vmatpush1.msra.mxu0 0.0
    %4375 = vmatprep.subr.mxu0 0.0
    %4376 = vmatpush1.msra.mxu0 0.0
    %4377 = vmatprep.subr.mxu0 0.0
    %4378 = vmatpush1.msra.mxu0 0.0
    %4379 = vmatprep.subr.mxu0 0.0
    %4380 = vmatpush1.msra.mxu0 0.0
    %4381 = vmatprep.subr.mxu0 0.0
    %4382 = vmatpush1.msra.mxu0 0.0
    %4383 = vmatprep.subr.mxu0 0.0
    %4384 = vmatpush1.msra.mxu0 0.0
    %4385 = vmatprep.subr.mxu0 0.0
    %4386 = vmatpush1.msra.mxu0 0.0
    %4387 = vmatprep.subr.mxu0 0.0
    %4388 = vmatpush1.msra.mxu0 0.0
    %4389 = vmatprep.subr.mxu0 0.0
    %4390 = vmatpush1.msra.mxu0 0.0
    %4391 = vmatprep.subr.mxu0 0.0
    %4392 = vmatpush1.msra.mxu0 0.0
    %4393 = vmatprep.subr.mxu0 0.0
    %4394 = vmatpush1.msra.mxu0 0.0
    %4395 = vmatprep.subr.mxu0 0.0
    %4396 = vmatpush1.msra.mxu0 0.0
    %4397 = vmatprep.subr.mxu0 0.0
    %4398 = vmatpush1.msra.mxu0 0.0
    %4399 = vmatprep.subr.mxu0 0.0
    %4400 = vmatpush1.msra.mxu0 0.0
    %4401 = vmatprep.subr.mxu0 0.0
    %4402 = vmatpush1.msra.mxu0 0.0
    %4403 = vmatprep.subr.mxu0 0.0
    %4404 = vmatpush1.msra.mxu0 0.0
    %4405 = vmatprep.subr.mxu0 0.0
    %4406 = vmatpush1.msra.mxu0 0.0
    %4407 = vmatprep.subr.mxu0 0.0
    %4408 = vmatpush1.msra.mxu0 0.0
    %4409 = vmatprep.subr.mxu0 0.0
    %4410 = vmatpush1.msra.mxu0 0.0
    %4411 = vmatprep.subr.mxu0 0.0
    %4412 = vmatpush1.msra.mxu0 0.0
    %4413 = vmatprep.mubr.f32.mxu0 0.0
    %4414 = vmatmul.mubr.f32.gmra.mrb[0].mxu0 %v4347
    %v4415 = vpop.f32.mrb[0].mxu0
    %v4416 = vadd.f32 %v4344, %v4415
    %v4417 = vpop.f32.mrb[0].mxu0
    %4418 = vdwg.mxu0
    %v4419 = vxor.u32 %v4416, 2147483648
    %v4420 = vmul.f32 %v4419, 1.442695
    %v4421 = vpow.pop %v4420
    %v4422 = vadd.f32 %v4421, 1.0
    %v4423 = vrcp.pop %v4422
    %v4424 = vmul.f32 1.0, %v4423
    %v4425 = vtanh.pop %v4416
    %v4426 = vmul.f32 %v4424, 0.0
    %4428 = vrot.lane.b32.xlu0 %v4425, 96
    %v4429 = vpop.permute.xlu0 %4428
    %v4431 = vmul.f32 %v4424, %v4429
    %4433 = vrot.lane.b32.xlu0 %v4431, 16
    %v4434 = vpop.permute.xlu0 %4433
    %v4436 = vadd.f32 %v4426, %v4434
    %v4437 = vtanh.pop %v4436
    %4439 = vrot.lane.b32.xlu0 %v4437, 32
    %v4440 = vpop.permute.xlu0 %4439
    %v4442 = vmul.f32 %v4424, %v4440
    %4443 = vrot.lane.b32.xlu0 %v3716, 32
    %v4444 = vpop.permute.xlu0 %4443
    %4447 = vrot.lane.b32.xlu0 %v4442, 112
    %v4448 = vpop.permute.xlu0 %4447
    %v4450 = vsel %vm967, %v4444, %v4448
    %v4452 = vsel %vm133, %v4450, 0
    %4454 = vmatprep.subr.mxu0 0.0
    %4455 = vmatpush1.msra.mxu0 %v4329
    %4456 = vmatprep.subr.mxu0 0.0
    %4457 = vmatpush1.msra.mxu0 %v4330
    %4458 = vmatprep.subr.mxu0 0.0
    %4459 = vmatpush1.msra.mxu0 %v4331
    %4460 = vmatprep.subr.mxu0 0.0
    %4461 = vmatpush1.msra.mxu0 %v4332
    %4462 = vmatprep.subr.mxu0 0.0
    %4463 = vmatpush1.msra.mxu0 %v4333
    %4464 = vmatprep.subr.mxu0 0.0
    %4465 = vmatpush1.msra.mxu0 %v4334
    %4466 = vmatprep.subr.mxu0 0.0
    %4467 = vmatpush1.msra.mxu0 0.0
    %4468 = vmatprep.subr.mxu0 0.0
    %4469 = vmatpush1.msra.mxu0 0.0
    %4470 = vmatprep.subr.mxu0 0.0
    %4471 = vmatpush1.msra.mxu0 0.0
    %4472 = vmatprep.subr.mxu0 0.0
    %4473 = vmatpush1.msra.mxu0 0.0
    %4474 = vmatprep.subr.mxu0 0.0
    %4475 = vmatpush1.msra.mxu0 0.0
    %4476 = vmatprep.subr.mxu0 0.0
    %4477 = vmatpush1.msra.mxu0 0.0
    %4478 = vmatprep.subr.mxu0 0.0
    %4479 = vmatpush1.msra.mxu0 0.0
    %4480 = vmatprep.subr.mxu0 0.0
    %4481 = vmatpush1.msra.mxu0 0.0
    %4482 = vmatprep.subr.mxu0 0.0
    %4483 = vmatpush1.msra.mxu0 0.0
    %4484 = vmatprep.subr.mxu0 0.0
    %4485 = vmatpush1.msra.mxu0 0.0
    %4486 = vmatprep.subr.mxu0 0.0
    %4487 = vmatpush1.msra.mxu0 0.0
    %4488 = vmatprep.subr.mxu0 0.0
    %4489 = vmatpush1.msra.mxu0 0.0
    %4490 = vmatprep.subr.mxu0 0.0
    %4491 = vmatpush1.msra.mxu0 0.0
    %4492 = vmatprep.subr.mxu0 0.0
    %4493 = vmatpush1.msra.mxu0 0.0
    %4494 = vmatprep.subr.mxu0 0.0
    %4495 = vmatpush1.msra.mxu0 0.0
    %4496 = vmatprep.subr.mxu0 0.0
    %4497 = vmatpush1.msra.mxu0 0.0
    %4498 = vmatprep.subr.mxu0 0.0
    %4499 = vmatpush1.msra.mxu0 0.0
    %4500 = vmatprep.subr.mxu0 0.0
    %4501 = vmatpush1.msra.mxu0 0.0
    %4502 = vmatprep.subr.mxu0 0.0
    %4503 = vmatpush1.msra.mxu0 0.0
    %4504 = vmatprep.subr.mxu0 0.0
    %4505 = vmatpush1.msra.mxu0 0.0
    %4506 = vmatprep.subr.mxu0 0.0
    %4507 = vmatpush1.msra.mxu0 0.0
    %4508 = vmatprep.subr.mxu0 0.0
    %4509 = vmatpush1.msra.mxu0 0.0
    %4510 = vmatprep.subr.mxu0 0.0
    %4511 = vmatpush1.msra.mxu0 0.0
    %4512 = vmatprep.subr.mxu0 0.0
    %4513 = vmatpush1.msra.mxu0 0.0
    %4514 = vmatprep.subr.mxu0 0.0
    %4515 = vmatpush1.msra.mxu0 0.0
    %4516 = vmatprep.subr.mxu0 0.0
    %4517 = vmatpush1.msra.mxu0 0.0
    %4518 = vmatprep.mubr.f32.mxu0 0.0
    %4519 = vmatmul.mubr.f32.gmra.mrb[0].mxu0 %v4452
    %v4520 = vpop.f32.mrb[0].mxu0
    %v4521 = vadd.f32 %v4344, %v4520
    %v4522 = vpop.f32.mrb[0].mxu0
    %4523 = vdwg.mxu0
    %v4524 = vxor.u32 %v4521, 2147483648
    %v4525 = vmul.f32 %v4524, 1.442695
    %v4526 = vpow.pop %v4525
    %v4527 = vadd.f32 %v4526, 1.0
    %v4528 = vrcp.pop %v4527
    %v4529 = vmul.f32 1.0, %v4528
    %v4530 = vtanh.pop %v4521
    %v4531 = vmul.f32 %v4529, %v4436
    %4533 = vrot.lane.b32.xlu0 %v4530, 96
    %v4534 = vpop.permute.xlu0 %4533
    %v4536 = vmul.f32 %v4529, %v4534
    %4538 = vrot.lane.b32.xlu0 %v4536, 16
    %v4539 = vpop.permute.xlu0 %4538
    %v4541 = vadd.f32 %v4531, %v4539
    %v4542 = vtanh.pop %v4541
    %4544 = vrot.lane.b32.xlu0 %v4542, 32
    %v4545 = vpop.permute.xlu0 %4544
    %v4547 = vmul.f32 %v4529, %v4545
    %4548 = vrot.lane.b32.xlu0 %v3818, 32
    %v4549 = vpop.permute.xlu0 %4548
    %4552 = vrot.lane.b32.xlu0 %v4547, 112
    %v4553 = vpop.permute.xlu0 %4552
    %v4555 = vsel %vm967, %v4549, %v4553
    %v4557 = vsel %vm133, %v4555, 0
    %4559 = vmatprep.subr.mxu0 0.0
    %4560 = vmatpush1.msra.mxu0 %v4329
    %4561 = vmatprep.subr.mxu0 0.0
    %4562 = vmatpush1.msra.mxu0 %v4330
    %4563 = vmatprep.subr.mxu0 0.0
    %4564 = vmatpush1.msra.mxu0 %v4331
    %4565 = vmatprep.subr.mxu0 0.0
    %4566 = vmatpush1.msra.mxu0 %v4332
    %4567 = vmatprep.subr.mxu0 0.0
    %4568 = vmatpush1.msra.mxu0 %v4333
    %4569 = vmatprep.subr.mxu0 0.0
    %4570 = vmatpush1.msra.mxu0 %v4334
    %4571 = vmatprep.subr.mxu0 0.0
    %4572 = vmatpush1.msra.mxu0 0.0
    %4573 = vmatprep.subr.mxu0 0.0
    %4574 = vmatpush1.msra.mxu0 0.0
    %4575 = vmatprep.subr.mxu0 0.0
    %4576 = vmatpush1.msra.mxu0 0.0
    %4577 = vmatprep.subr.mxu0 0.0
    %4578 = vmatpush1.msra.mxu0 0.0
    %4579 = vmatprep.subr.mxu0 0.0
    %4580 = vmatpush1.msra.mxu0 0.0
    %4581 = vmatprep.subr.mxu0 0.0
    %4582 = vmatpush1.msra.mxu0 0.0
    %4583 = vmatprep.subr.mxu0 0.0
    %4584 = vmatpush1.msra.mxu0 0.0
    %4585 = vmatprep.subr.mxu0 0.0
    %4586 = vmatpush1.msra.mxu0 0.0
    %4587 = vmatprep.subr.mxu0 0.0
    %4588 = vmatpush1.msra.mxu0 0.0
    %4589 = vmatprep.subr.mxu0 0.0
    %4590 = vmatpush1.msra.mxu0 0.0
    %4591 = vmatprep.subr.mxu0 0.0
    %4592 = vmatpush1.msra.mxu0 0.0
    %4593 = vmatprep.subr.mxu0 0.0
    %4594 = vmatpush1.msra.mxu0 0.0
    %4595 = vmatprep.subr.mxu0 0.0
    %4596 = vmatpush1.msra.mxu0 0.0
    %4597 = vmatprep.subr.mxu0 0.0
    %4598 = vmatpush1.msra.mxu0 0.0
    %4599 = vmatprep.subr.mxu0 0.0
    %4600 = vmatpush1.msra.mxu0 0.0
    %4601 = vmatprep.subr.mxu0 0.0
    %4602 = vmatpush1.msra.mxu0 0.0
    %4603 = vmatprep.subr.mxu0 0.0
    %4604 = vmatpush1.msra.mxu0 0.0
    %4605 = vmatprep.subr.mxu0 0.0
    %4606 = vmatpush1.msra.mxu0 0.0
    %4607 = vmatprep.subr.mxu0 0.0
    %4608 = vmatpush1.msra.mxu0 0.0
    %4609 = vmatprep.subr.mxu0 0.0
    %4610 = vmatpush1.msra.mxu0 0.0
    %4611 = vmatprep.subr.mxu0 0.0
    %4612 = vmatpush1.msra.mxu0 0.0
    %4613 = vmatprep.subr.mxu0 0.0
    %4614 = vmatpush1.msra.mxu0 0.0
    %4615 = vmatprep.subr.mxu0 0.0
    %4616 = vmatpush1.msra.mxu0 0.0
    %4617 = vmatprep.subr.mxu0 0.0
    %4618 = vmatpush1.msra.mxu0 0.0
    %4619 = vmatprep.subr.mxu0 0.0
    %4620 = vmatpush1.msra.mxu0 0.0
    %4621 = vmatprep.subr.mxu0 0.0
    %4622 = vmatpush1.msra.mxu0 0.0
    %4623 = vmatprep.mubr.f32.mxu0 0.0
    %4624 = vmatmul.mubr.f32.gmra.mrb[0].mxu0 %v4557
    %v4625 = vpop.f32.mrb[0].mxu0
    %v4626 = vadd.f32 %v4344, %v4625
    %v4627 = vpop.f32.mrb[0].mxu0
    %4628 = vdwg.mxu0
    %v4629 = vxor.u32 %v4626, 2147483648
    %v4630 = vmul.f32 %v4629, 1.442695
    %v4631 = vpow.pop %v4630
    %v4632 = vadd.f32 %v4631, 1.0
    %v4633 = vrcp.pop %v4632
    %v4634 = vmul.f32 1.0, %v4633
    %v4635 = vtanh.pop %v4626
    %v4636 = vmul.f32 %v4634, %v4541
    %4638 = vrot.lane.b32.xlu0 %v4635, 96
    %v4639 = vpop.permute.xlu0 %4638
    %v4641 = vmul.f32 %v4634, %v4639
    %4643 = vrot.lane.b32.xlu0 %v4641, 16
    %v4644 = vpop.permute.xlu0 %4643
    %v4646 = vadd.f32 %v4636, %v4644
    %v4647 = vtanh.pop %v4646
    %4649 = vrot.lane.b32.xlu0 %v4647, 32
    %v4650 = vpop.permute.xlu0 %4649
    %v4652 = vmul.f32 %v4634, %v4650
    %4653 = vrot.lane.b32.xlu0 %v3920, 32
    %v4654 = vpop.permute.xlu0 %4653
    %4657 = vrot.lane.b32.xlu0 %v4652, 112
    %v4658 = vpop.permute.xlu0 %4657
    %v4660 = vsel %vm967, %v4654, %v4658
    %v4662 = vsel %vm133, %v4660, 0
    %4664 = vmatprep.subr.mxu0 0.0
    %4665 = vmatpush1.msra.mxu0 %v4329
    %4666 = vmatprep.subr.mxu0 0.0
    %4667 = vmatpush1.msra.mxu0 %v4330
    %4668 = vmatprep.subr.mxu0 0.0
    %4669 = vmatpush1.msra.mxu0 %v4331
    %4670 = vmatprep.subr.mxu0 0.0
    %4671 = vmatpush1.msra.mxu0 %v4332
    %4672 = vmatprep.subr.mxu0 0.0
    %4673 = vmatpush1.msra.mxu0 %v4333
    %4674 = vmatprep.subr.mxu0 0.0
    %4675 = vmatpush1.msra.mxu0 %v4334
    %4676 = vmatprep.subr.mxu0 0.0
    %4677 = vmatpush1.msra.mxu0 0.0
    %4678 = vmatprep.subr.mxu0 0.0
    %4679 = vmatpush1.msra.mxu0 0.0
    %4680 = vmatprep.subr.mxu0 0.0
    %4681 = vmatpush1.msra.mxu0 0.0
    %4682 = vmatprep.subr.mxu0 0.0
    %4683 = vmatpush1.msra.mxu0 0.0
    %4684 = vmatprep.subr.mxu0 0.0
    %4685 = vmatpush1.msra.mxu0 0.0
    %4686 = vmatprep.subr.mxu0 0.0
    %4687 = vmatpush1.msra.mxu0 0.0
    %4688 = vmatprep.subr.mxu0 0.0
    %4689 = vmatpush1.msra.mxu0 0.0
    %4690 = vmatprep.subr.mxu0 0.0
    %4691 = vmatpush1.msra.mxu0 0.0
    %4692 = vmatprep.subr.mxu0 0.0
    %4693 = vmatpush1.msra.mxu0 0.0
    %4694 = vmatprep.subr.mxu0 0.0
    %4695 = vmatpush1.msra.mxu0 0.0
    %4696 = vmatprep.subr.mxu0 0.0
    %4697 = vmatpush1.msra.mxu0 0.0
    %4698 = vmatprep.subr.mxu0 0.0
    %4699 = vmatpush1.msra.mxu0 0.0
    %4700 = vmatprep.subr.mxu0 0.0
    %4701 = vmatpush1.msra.mxu0 0.0
    %4702 = vmatprep.subr.mxu0 0.0
    %4703 = vmatpush1.msra.mxu0 0.0
    %4704 = vmatprep.subr.mxu0 0.0
    %4705 = vmatpush1.msra.mxu0 0.0
    %4706 = vmatprep.subr.mxu0 0.0
    %4707 = vmatpush1.msra.mxu0 0.0
    %4708 = vmatprep.subr.mxu0 0.0
    %4709 = vmatpush1.msra.mxu0 0.0
    %4710 = vmatprep.subr.mxu0 0.0
    %4711 = vmatpush1.msra.mxu0 0.0
    %4712 = vmatprep.subr.mxu0 0.0
    %4713 = vmatpush1.msra.mxu0 0.0
    %4714 = vmatprep.subr.mxu0 0.0
    %4715 = vmatpush1.msra.mxu0 0.0
    %4716 = vmatprep.subr.mxu0 0.0
    %4717 = vmatpush1.msra.mxu0 0.0
    %4718 = vmatprep.subr.mxu0 0.0
    %4719 = vmatpush1.msra.mxu0 0.0
    %4720 = vmatprep.subr.mxu0 0.0
    %4721 = vmatpush1.msra.mxu0 0.0
    %4722 = vmatprep.subr.mxu0 0.0
    %4723 = vmatpush1.msra.mxu0 0.0
    %4724 = vmatprep.subr.mxu0 0.0
    %4725 = vmatpush1.msra.mxu0 0.0
    %4726 = vmatprep.subr.mxu0 0.0
    %4727 = vmatpush1.msra.mxu0 0.0
    %4728 = vmatprep.mubr.f32.mxu0 0.0
    %4729 = vmatmul.mubr.f32.gmra.mrb[0].mxu0 %v4662
    %v4730 = vpop.f32.mrb[0].mxu0
    %v4731 = vadd.f32 %v4344, %v4730
    %v4732 = vpop.f32.mrb[0].mxu0
    %4733 = vdwg.mxu0
    %v4734 = vxor.u32 %v4731, 2147483648
    %v4735 = vmul.f32 %v4734, 1.442695
    %v4736 = vpow.pop %v4735
    %v4737 = vadd.f32 %v4736, 1.0
    %v4738 = vrcp.pop %v4737
    %v4739 = vmul.f32 1.0, %v4738
    %v4740 = vtanh.pop %v4731
    %v4741 = vmul.f32 %v4739, %v4646
    %4743 = vrot.lane.b32.xlu0 %v4740, 96
    %v4744 = vpop.permute.xlu0 %4743
    %v4746 = vmul.f32 %v4739, %v4744
    %4748 = vrot.lane.b32.xlu0 %v4746, 16
    %v4749 = vpop.permute.xlu0 %4748
    %v4751 = vadd.f32 %v4741, %v4749
    %v4752 = vtanh.pop %v4751
    %4754 = vrot.lane.b32.xlu0 %v4752, 32
    %v4755 = vpop.permute.xlu0 %4754
    %v4757 = vmul.f32 %v4739, %v4755
    %4758 = vrot.lane.b32.xlu0 %v4022, 32
    %v4759 = vpop.permute.xlu0 %4758
    %4762 = vrot.lane.b32.xlu0 %v4757, 112
    %v4763 = vpop.permute.xlu0 %4762
    %v4765 = vsel %vm967, %v4759, %v4763
    %v4767 = vsel %vm133, %v4765, 0
    %4769 = vmatprep.subr.mxu0 0.0
    %4770 = vmatpush1.msra.mxu0 %v4329
    %4771 = vmatprep.subr.mxu0 0.0
    %4772 = vmatpush1.msra.mxu0 %v4330
    %4773 = vmatprep.subr.mxu0 0.0
    %4774 = vmatpush1.msra.mxu0 %v4331
    %4775 = vmatprep.subr.mxu0 0.0
    %4776 = vmatpush1.msra.mxu0 %v4332
    %4777 = vmatprep.subr.mxu0 0.0
    %4778 = vmatpush1.msra.mxu0 %v4333
    %4779 = vmatprep.subr.mxu0 0.0
    %4780 = vmatpush1.msra.mxu0 %v4334
    %4781 = vmatprep.subr.mxu0 0.0
    %4782 = vmatpush1.msra.mxu0 0.0
    %4783 = vmatprep.subr.mxu0 0.0
    %4784 = vmatpush1.msra.mxu0 0.0
    %4785 = vmatprep.subr.mxu0 0.0
    %4786 = vmatpush1.msra.mxu0 0.0
    %4787 = vmatprep.subr.mxu0 0.0
    %4788 = vmatpush1.msra.mxu0 0.0
    %4789 = vmatprep.subr.mxu0 0.0
    %4790 = vmatpush1.msra.mxu0 0.0
    %4791 = vmatprep.subr.mxu0 0.0
    %4792 = vmatpush1.msra.mxu0 0.0
    %4793 = vmatprep.subr.mxu0 0.0
    %4794 = vmatpush1.msra.mxu0 0.0
    %4795 = vmatprep.subr.mxu0 0.0
    %4796 = vmatpush1.msra.mxu0 0.0
    %4797 = vmatprep.subr.mxu0 0.0
    %4798 = vmatpush1.msra.mxu0 0.0
    %4799 = vmatprep.subr.mxu0 0.0
    %4800 = vmatpush1.msra.mxu0 0.0
    %4801 = vmatprep.subr.mxu0 0.0
    %4802 = vmatpush1.msra.mxu0 0.0
    %4803 = vmatprep.subr.mxu0 0.0
    %4804 = vmatpush1.msra.mxu0 0.0
    %4805 = vmatprep.subr.mxu0 0.0
    %4806 = vmatpush1.msra.mxu0 0.0
    %4807 = vmatprep.subr.mxu0 0.0
    %4808 = vmatpush1.msra.mxu0 0.0
    %4809 = vmatprep.subr.mxu0 0.0
    %4810 = vmatpush1.msra.mxu0 0.0
    %4811 = vmatprep.subr.mxu0 0.0
    %4812 = vmatpush1.msra.mxu0 0.0
    %4813 = vmatprep.subr.mxu0 0.0
    %4814 = vmatpush1.msra.mxu0 0.0
    %4815 = vmatprep.subr.mxu0 0.0
    %4816 = vmatpush1.msra.mxu0 0.0
    %4817 = vmatprep.subr.mxu0 0.0
    %4818 = vmatpush1.msra.mxu0 0.0
    %4819 = vmatprep.subr.mxu0 0.0
    %4820 = vmatpush1.msra.mxu0 0.0
    %4821 = vmatprep.subr.mxu0 0.0
    %4822 = vmatpush1.msra.mxu0 0.0
    %4823 = vmatprep.subr.mxu0 0.0
    %4824 = vmatpush1.msra.mxu0 0.0
    %4825 = vmatprep.subr.mxu0 0.0
    %4826 = vmatpush1.msra.mxu0 0.0
    %4827 = vmatprep.subr.mxu0 0.0
    %4828 = vmatpush1.msra.mxu0 0.0
    %4829 = vmatprep.subr.mxu0 0.0
    %4830 = vmatpush1.msra.mxu0 0.0
    %4831 = vmatprep.subr.mxu0 0.0
    %4832 = vmatpush1.msra.mxu0 0.0
    %4833 = vmatprep.mubr.f32.mxu0 0.0
    %4834 = vmatmul.mubr.f32.gmra.mrb[0].mxu0 %v4767
    %v4835 = vpop.f32.mrb[0].mxu0
    %v4836 = vadd.f32 %v4344, %v4835
    %v4837 = vpop.f32.mrb[0].mxu0
    %4838 = vdwg.mxu0
    %v4839 = vxor.u32 %v4836, 2147483648
    %v4840 = vmul.f32 %v4839, 1.442695
    %v4841 = vpow.pop %v4840
    %v4842 = vadd.f32 %v4841, 1.0
    %v4843 = vrcp.pop %v4842
    %v4844 = vmul.f32 1.0, %v4843
    %v4845 = vtanh.pop %v4836
    %v4846 = vmul.f32 %v4844, %v4751
    %4848 = vrot.lane.b32.xlu0 %v4845, 96
    %v4849 = vpop.permute.xlu0 %4848
    %v4851 = vmul.f32 %v4844, %v4849
    %4853 = vrot.lane.b32.xlu0 %v4851, 16
    %v4854 = vpop.permute.xlu0 %4853
    %v4856 = vadd.f32 %v4846, %v4854
    %v4857 = vtanh.pop %v4856
    %4859 = vrot.lane.b32.xlu0 %v4857, 32
    %v4860 = vpop.permute.xlu0 %4859
    %v4862 = vmul.f32 %v4844, %v4860
    %4863 = vrot.lane.b32.xlu0 %v4124, 32
    %v4864 = vpop.permute.xlu0 %4863
    %4867 = vrot.lane.b32.xlu0 %v4862, 112
    %v4868 = vpop.permute.xlu0 %4867
    %v4870 = vsel %vm967, %v4864, %v4868
    %v4872 = vsel %vm133, %v4870, 0
    %4874 = vmatprep.subr.mxu0 0.0
    %4875 = vmatpush1.msra.mxu0 %v4329
    %4876 = vmatprep.subr.mxu0 0.0
    %4877 = vmatpush1.msra.mxu0 %v4330
    %4878 = vmatprep.subr.mxu0 0.0
    %4879 = vmatpush1.msra.mxu0 %v4331
    %4880 = vmatprep.subr.mxu0 0.0
    %4881 = vmatpush1.msra.mxu0 %v4332
    %4882 = vmatprep.subr.mxu0 0.0
    %4883 = vmatpush1.msra.mxu0 %v4333
    %4884 = vmatprep.subr.mxu0 0.0
    %4885 = vmatpush1.msra.mxu0 %v4334
    %4886 = vmatprep.subr.mxu0 0.0
    %4887 = vmatpush1.msra.mxu0 0.0
    %4888 = vmatprep.subr.mxu0 0.0
    %4889 = vmatpush1.msra.mxu0 0.0
    %4890 = vmatprep.subr.mxu0 0.0
    %4891 = vmatpush1.msra.mxu0 0.0
    %4892 = vmatprep.subr.mxu0 0.0
    %4893 = vmatpush1.msra.mxu0 0.0
    %4894 = vmatprep.subr.mxu0 0.0
    %4895 = vmatpush1.msra.mxu0 0.0
    %4896 = vmatprep.subr.mxu0 0.0
    %4897 = vmatpush1.msra.mxu0 0.0
    %4898 = vmatprep.subr.mxu0 0.0
    %4899 = vmatpush1.msra.mxu0 0.0
    %4900 = vmatprep.subr.mxu0 0.0
    %4901 = vmatpush1.msra.mxu0 0.0
    %4902 = vmatprep.subr.mxu0 0.0
    %4903 = vmatpush1.msra.mxu0 0.0
    %4904 = vmatprep.subr.mxu0 0.0
    %4905 = vmatpush1.msra.mxu0 0.0
    %4906 = vmatprep.subr.mxu0 0.0
    %4907 = vmatpush1.msra.mxu0 0.0
    %4908 = vmatprep.subr.mxu0 0.0
    %4909 = vmatpush1.msra.mxu0 0.0
    %4910 = vmatprep.subr.mxu0 0.0
    %4911 = vmatpush1.msra.mxu0 0.0
    %4912 = vmatprep.subr.mxu0 0.0
    %4913 = vmatpush1.msra.mxu0 0.0
    %4914 = vmatprep.subr.mxu0 0.0
    %4915 = vmatpush1.msra.mxu0 0.0
    %4916 = vmatprep.subr.mxu0 0.0
    %4917 = vmatpush1.msra.mxu0 0.0
    %4918 = vmatprep.subr.mxu0 0.0
    %4919 = vmatpush1.msra.mxu0 0.0
    %4920 = vmatprep.subr.mxu0 0.0
    %4921 = vmatpush1.msra.mxu0 0.0
    %4922 = vmatprep.subr.mxu0 0.0
    %4923 = vmatpush1.msra.mxu0 0.0
    %4924 = vmatprep.subr.mxu0 0.0
    %4925 = vmatpush1.msra.mxu0 0.0
    %4926 = vmatprep.subr.mxu0 0.0
    %4927 = vmatpush1.msra.mxu0 0.0
    %4928 = vmatprep.subr.mxu0 0.0
    %4929 = vmatpush1.msra.mxu0 0.0
    %4930 = vmatprep.subr.mxu0 0.0
    %4931 = vmatpush1.msra.mxu0 0.0
    %4932 = vmatprep.subr.mxu0 0.0
    %4933 = vmatpush1.msra.mxu0 0.0
    %4934 = vmatprep.subr.mxu0 0.0
    %4935 = vmatpush1.msra.mxu0 0.0
    %4936 = vmatprep.subr.mxu0 0.0
    %4937 = vmatpush1.msra.mxu0 0.0
    %4938 = vmatprep.mubr.f32.mxu0 0.0
    %4939 = vmatmul.mubr.f32.gmra.mrb[0].mxu0 %v4872
    %v4940 = vpop.f32.mrb[0].mxu0
    %v4941 = vadd.f32 %v4344, %v4940
    %v4942 = vpop.f32.mrb[0].mxu0
    %4943 = vdwg.mxu0
    %v4944 = vxor.u32 %v4941, 2147483648
    %v4945 = vmul.f32 %v4944, 1.442695
    %v4946 = vpow.pop %v4945
    %v4947 = vadd.f32 %v4946, 1.0
    %v4948 = vrcp.pop %v4947
    %v4949 = vmul.f32 1.0, %v4948
    %v4950 = vtanh.pop %v4941
    %v4951 = vmul.f32 %v4949, %v4856
    %4953 = vrot.lane.b32.xlu0 %v4950, 96
    %v4954 = vpop.permute.xlu0 %4953
    %v4956 = vmul.f32 %v4949, %v4954
    %4958 = vrot.lane.b32.xlu0 %v4956, 16
    %v4959 = vpop.permute.xlu0 %4958
    %v4961 = vadd.f32 %v4951, %v4959
    %v4962 = vtanh.pop %v4961
    %4964 = vrot.lane.b32.xlu0 %v4962, 32
    %v4965 = vpop.permute.xlu0 %4964
    %v4967 = vmul.f32 %v4949, %v4965
    %4968 = vrot.lane.b32.xlu0 %v4226, 32
    %v4969 = vpop.permute.xlu0 %4968
    %4972 = vrot.lane.b32.xlu0 %v4967, 112
    %v4973 = vpop.permute.xlu0 %4972
    %v4975 = vsel %vm967, %v4969, %v4973
    %v4977 = vsel %vm133, %v4975, 0
    %4979 = vmatprep.subr.mxu0 0.0
    %4980 = vmatpush1.msra.mxu0 %v4329
    %4981 = vmatprep.subr.mxu0 0.0
    %4982 = vmatpush1.msra.mxu0 %v4330
    %4983 = vmatprep.subr.mxu0 0.0
    %4984 = vmatpush1.msra.mxu0 %v4331
    %4985 = vmatprep.subr.mxu0 0.0
    %4986 = vmatpush1.msra.mxu0 %v4332
    %4987 = vmatprep.subr.mxu0 0.0
    %4988 = vmatpush1.msra.mxu0 %v4333
    %4989 = vmatprep.subr.mxu0 0.0
    %4990 = vmatpush1.msra.mxu0 %v4334
    %4991 = vmatprep.subr.mxu0 0.0
    %4992 = vmatpush1.msra.mxu0 0.0
    %4993 = vmatprep.subr.mxu0 0.0
    %4994 = vmatpush1.msra.mxu0 0.0
    %4995 = vmatprep.subr.mxu0 0.0
    %4996 = vmatpush1.msra.mxu0 0.0
    %4997 = vmatprep.subr.mxu0 0.0
    %4998 = vmatpush1.msra.mxu0 0.0
    %4999 = vmatprep.subr.mxu0 0.0
    %5000 = vmatpush1.msra.mxu0 0.0
    %5001 = vmatprep.subr.mxu0 0.0
    %5002 = vmatpush1.msra.mxu0 0.0
    %5003 = vmatprep.subr.mxu0 0.0
    %5004 = vmatpush1.msra.mxu0 0.0
    %5005 = vmatprep.subr.mxu0 0.0
    %5006 = vmatpush1.msra.mxu0 0.0
    %5007 = vmatprep.subr.mxu0 0.0
    %5008 = vmatpush1.msra.mxu0 0.0
    %5009 = vmatprep.subr.mxu0 0.0
    %5010 = vmatpush1.msra.mxu0 0.0
    %5011 = vmatprep.subr.mxu0 0.0
    %5012 = vmatpush1.msra.mxu0 0.0
    %5013 = vmatprep.subr.mxu0 0.0
    %5014 = vmatpush1.msra.mxu0 0.0
    %5015 = vmatprep.subr.mxu0 0.0
    %5016 = vmatpush1.msra.mxu0 0.0
    %5017 = vmatprep.subr.mxu0 0.0
    %5018 = vmatpush1.msra.mxu0 0.0
    %5019 = vmatprep.subr.mxu0 0.0
    %5020 = vmatpush1.msra.mxu0 0.0
    %5021 = vmatprep.subr.mxu0 0.0
    %5022 = vmatpush1.msra.mxu0 0.0
    %5023 = vmatprep.subr.mxu0 0.0
    %5024 = vmatpush1.msra.mxu0 0.0
    %5025 = vmatprep.subr.mxu0 0.0
    %5026 = vmatpush1.msra.mxu0 0.0
    %5027 = vmatprep.subr.mxu0 0.0
    %5028 = vmatpush1.msra.mxu0 0.0
    %5029 = vmatprep.subr.mxu0 0.0
    %5030 = vmatpush1.msra.mxu0 0.0
    %5031 = vmatprep.subr.mxu0 0.0
    %5032 = vmatpush1.msra.mxu0 0.0
    %5033 = vmatprep.subr.mxu0 0.0
    %5034 = vmatpush1.msra.mxu0 0.0
    %5035 = vmatprep.subr.mxu0 0.0
    %5036 = vmatpush1.msra.mxu0 0.0
    %5037 = vmatprep.subr.mxu0 0.0
    %5038 = vmatpush1.msra.mxu0 0.0
    %5039 = vmatprep.subr.mxu0 0.0
    %5040 = vmatpush1.msra.mxu0 0.0
    %5041 = vmatprep.subr.mxu0 0.0
    %5042 = vmatpush1.msra.mxu0 0.0
    %5043 = vmatprep.mubr.f32.mxu0 0.0
    %5044 = vmatmul.mubr.f32.gmra.mrb[0].mxu0 %v4977
    %v5045 = vpop.f32.mrb[0].mxu0
    %v5046 = vadd.f32 %v4344, %v5045
    %v5047 = vpop.f32.mrb[0].mxu0
    %5048 = vdwg.mxu0
    %v5049 = vxor.u32 %v5046, 2147483648
    %v5050 = vmul.f32 %v5049, 1.442695
    %v5051 = vpow.pop %v5050
    %v5052 = vadd.f32 %v5051, 1.0
    %v5053 = vrcp.pop %v5052
    %v5054 = vmul.f32 1.0, %v5053
    %v5055 = vtanh.pop %v5046
    %v5056 = vmul.f32 %v5054, %v4961
    %5058 = vrot.lane.b32.xlu0 %v5055, 96
    %v5059 = vpop.permute.xlu0 %5058
    %v5061 = vmul.f32 %v5054, %v5059
    %5063 = vrot.lane.b32.xlu0 %v5061, 16
    %v5064 = vpop.permute.xlu0 %5063
    %v5066 = vadd.f32 %v5056, %v5064
    %v5067 = vtanh.pop %v5066
    %5069 = vrot.lane.b32.xlu0 %v5067, 32
    %v5070 = vpop.permute.xlu0 %5069
    %v5072 = vmul.f32 %v5054, %v5070
    %5074 = vrot.lane.b32.xlu0 %v4328, 32
    %v5075 = vpop.permute.xlu0 %5074
    %5078 = vrot.lane.b32.xlu0 %v5072, 112
    %v5079 = vpop.permute.xlu0 %5078
    %v5081 = vsel %vm967, %v5075, %v5079
    %v5083 = vsel %vm133, %v5081, 0
    %5085 = vmatprep.subr.mxu0 0.0
    %5086 = vmatpush1.msra.mxu0 %v4329
    %5087 = vmatprep.subr.mxu0 0.0
    %5088 = vmatpush1.msra.mxu0 %v4330
    %5089 = vmatprep.subr.mxu0 0.0
    %5090 = vmatpush1.msra.mxu0 %v4331
    %5091 = vmatprep.subr.mxu0 0.0
    %5092 = vmatpush1.msra.mxu0 %v4332
    %5093 = vmatprep.subr.mxu0 0.0
    %5094 = vmatpush1.msra.mxu0 %v4333
    %5095 = vmatprep.subr.mxu0 0.0
    %5096 = vmatpush1.msra.mxu0 %v4334
    %5097 = vmatprep.subr.mxu0 0.0
    %5098 = vmatpush1.msra.mxu0 0.0
    %5099 = vmatprep.subr.mxu0 0.0
    %5100 = vmatpush1.msra.mxu0 0.0
    %5101 = vmatprep.subr.mxu0 0.0
    %5102 = vmatpush1.msra.mxu0 0.0
    %5103 = vmatprep.subr.mxu0 0.0
    %5104 = vmatpush1.msra.mxu0 0.0
    %5105 = vmatprep.subr.mxu0 0.0
    %5106 = vmatpush1.msra.mxu0 0.0
    %5107 = vmatprep.subr.mxu0 0.0
    %5108 = vmatpush1.msra.mxu0 0.0
    %5109 = vmatprep.subr.mxu0 0.0
    %5110 = vmatpush1.msra.mxu0 0.0
    %5111 = vmatprep.subr.mxu0 0.0
    %5112 = vmatpush1.msra.mxu0 0.0
    %5113 = vmatprep.subr.mxu0 0.0
    %5114 = vmatpush1.msra.mxu0 0.0
    %5115 = vmatprep.subr.mxu0 0.0
    %5116 = vmatpush1.msra.mxu0 0.0
    %5117 = vmatprep.subr.mxu0 0.0
    %5118 = vmatpush1.msra.mxu0 0.0
    %5119 = vmatprep.subr.mxu0 0.0
    %5120 = vmatpush1.msra.mxu0 0.0
    %5121 = vmatprep.subr.mxu0 0.0
    %5122 = vmatpush1.msra.mxu0 0.0
    %5123 = vmatprep.subr.mxu0 0.0
    %5124 = vmatpush1.msra.mxu0 0.0
    %5125 = vmatprep.subr.mxu0 0.0
    %5126 = vmatpush1.msra.mxu0 0.0
    %5127 = vmatprep.subr.mxu0 0.0
    %5128 = vmatpush1.msra.mxu0 0.0
    %5129 = vmatprep.subr.mxu0 0.0
    %5130 = vmatpush1.msra.mxu0 0.0
    %5131 = vmatprep.subr.mxu0 0.0
    %5132 = vmatpush1.msra.mxu0 0.0
    %5133 = vmatprep.subr.mxu0 0.0
    %5134 = vmatpush1.msra.mxu0 0.0
    %5135 = vmatprep.subr.mxu0 0.0
    %5136 = vmatpush1.msra.mxu0 0.0
    %5137 = vmatprep.subr.mxu0 0.0
    %5138 = vmatpush1.msra.mxu0 0.0
    %5139 = vmatprep.subr.mxu0 0.0
    %5140 = vmatpush1.msra.mxu0 0.0
    %5141 = vmatprep.subr.mxu0 0.0
    %5142 = vmatpush1.msra.mxu0 0.0
    %5143 = vmatprep.subr.mxu0 0.0
    %5144 = vmatpush1.msra.mxu0 0.0
    %5145 = vmatprep.subr.mxu0 0.0
    %5146 = vmatpush1.msra.mxu0 0.0
    %5147 = vmatprep.subr.mxu0 0.0
    %5148 = vmatpush1.msra.mxu0 0.0
    %5149 = vmatprep.mubr.f32.mxu0 0.0
    %5150 = vmatmul.mubr.f32.gmra.mrb[0].mxu0 %v5083
    %v5151 = vpop.f32.mrb[0].mxu0
    %v5152 = vadd.f32 %v4344, %v5151
    %v5153 = vpop.f32.mrb[0].mxu0
    %5154 = vdwg.mxu0
    %v5155 = vxor.u32 %v5152, 2147483648
    %v5156 = vmul.f32 %v5155, 1.442695
    %v5157 = vpow.pop %v5156
    %v5158 = vadd.f32 %v5157, 1.0
    %v5159 = vrcp.pop %v5158
    %v5160 = vmul.f32 1.0, %v5159
    %v5161 = vtanh.pop %v5152
    %v5162 = vmul.f32 %v5160, %v5066
    %5164 = vrot.lane.b32.xlu0 %v5161, 96
    %v5165 = vpop.permute.xlu0 %5164
    %v5167 = vmul.f32 %v5160, %v5165
    %5169 = vrot.lane.b32.xlu0 %v5167, 16
    %v5170 = vpop.permute.xlu0 %5169
    %v5172 = vadd.f32 %v5162, %v5170
    %v5173 = vtanh.pop %v5172
    %5175 = vrot.lane.b32.xlu0 %v5173, 32
    %v5176 = vpop.permute.xlu0 %5175
    %v5178 = vmul.f32 %v5160, %v5176
    %5179 = vrot.lane.b32.xlu0 %v2771, 80
    %v5180 = vpop.permute.xlu0 %5179
    %v5182 = vsel %vm125, %v5180, 0.0
    %v5184 = vsel %vm133, %v5182, 0
    %5186 = vmatprep.subr.mxu0 0.0
    %5187 = vmatpush1.msra.mxu0 %v118
    %5188 = vmatprep.subr.mxu0 0.0
    %5189 = vmatpush1.msra.mxu0 %v119
    %5190 = vmatprep.subr.mxu0 0.0
    %5191 = vmatpush1.msra.mxu0 %v120
    %5192 = vmatprep.subr.mxu0 0.0
    %5193 = vmatpush1.msra.mxu0 %v121
    %5194 = vmatprep.subr.mxu0 0.0
    %5195 = vmatpush1.msra.mxu0 %v122
    %5196 = vmatprep.subr.mxu0 0.0
    %5197 = vmatpush1.msra.mxu0 %v123
    %5198 = vmatprep.subr.mxu0 0.0
    %5199 = vmatpush1.msra.mxu0 0.0
    %5200 = vmatprep.subr.mxu0 0.0
    %5201 = vmatpush1.msra.mxu0 0.0
    %5202 = vmatprep.subr.mxu0 0.0
    %5203 = vmatpush1.msra.mxu0 0.0
    %5204 = vmatprep.subr.mxu0 0.0
    %5205 = vmatpush1.msra.mxu0 0.0
    %5206 = vmatprep.subr.mxu0 0.0
    %5207 = vmatpush1.msra.mxu0 0.0
    %5208 = vmatprep.subr.mxu0 0.0
    %5209 = vmatpush1.msra.mxu0 0.0
    %5210 = vmatprep.subr.mxu0 0.0
    %5211 = vmatpush1.msra.mxu0 0.0
    %5212 = vmatprep.subr.mxu0 0.0
    %5213 = vmatpush1.msra.mxu0 0.0
    %5214 = vmatprep.subr.mxu0 0.0
    %5215 = vmatpush1.msra.mxu0 0.0
    %5216 = vmatprep.subr.mxu0 0.0
    %5217 = vmatpush1.msra.mxu0 0.0
    %5218 = vmatprep.subr.mxu0 0.0
    %5219 = vmatpush1.msra.mxu0 0.0
    %5220 = vmatprep.subr.mxu0 0.0
    %5221 = vmatpush1.msra.mxu0 0.0
    %5222 = vmatprep.subr.mxu0 0.0
    %5223 = vmatpush1.msra.mxu0 0.0
    %5224 = vmatprep.subr.mxu0 0.0
    %5225 = vmatpush1.msra.mxu0 0.0
    %5226 = vmatprep.subr.mxu0 0.0
    %5227 = vmatpush1.msra.mxu0 0.0
    %5228 = vmatprep.subr.mxu0 0.0
    %5229 = vmatpush1.msra.mxu0 0.0
    %5230 = vmatprep.subr.mxu0 0.0
    %5231 = vmatpush1.msra.mxu0 0.0
    %5232 = vmatprep.subr.mxu0 0.0
    %5233 = vmatpush1.msra.mxu0 0.0
    %5234 = vmatprep.subr.mxu0 0.0
    %5235 = vmatpush1.msra.mxu0 0.0
    %5236 = vmatprep.subr.mxu0 0.0
    %5237 = vmatpush1.msra.mxu0 0.0
    %5238 = vmatprep.subr.mxu0 0.0
    %5239 = vmatpush1.msra.mxu0 0.0
    %5240 = vmatprep.subr.mxu0 0.0
    %5241 = vmatpush1.msra.mxu0 0.0
    %5242 = vmatprep.subr.mxu0 0.0
    %5243 = vmatpush1.msra.mxu0 0.0
    %5244 = vmatprep.subr.mxu0 0.0
    %5245 = vmatpush1.msra.mxu0 0.0
    %5246 = vmatprep.subr.mxu0 0.0
    %5247 = vmatpush1.msra.mxu0 0.0
    %5248 = vmatprep.subr.mxu0 0.0
    %5249 = vmatpush1.msra.mxu0 0.0
    %5250 = vmatprep.mubr.f32.mxu0 0.0
    %5251 = vmatmul.mubr.f32.gmra.mrb[0].mxu0 %v5184
    %v5252 = vpop.f32.mrb[0].mxu0
    %v5253 = vadd.f32 %v131, %v5252
    %v5254 = vpop.f32.mrb[0].mxu0
    %5255 = vdwg.mxu0
    %v5256 = vxor.u32 %v5253, 2147483648
    %v5257 = vmul.f32 %v5256, 1.442695
    %v5258 = vpow.pop %v5257
    %v5259 = vadd.f32 %v5258, 1.0
    %v5260 = vrcp.pop %v5259
    %v5261 = vmul.f32 1.0, %v5260
    %v5262 = vtanh.pop %v5253
    %v5263 = vmul.f32 %v5261, 0.0
    %5265 = vrot.lane.b32.xlu0 %v5262, 64
    %v5266 = vpop.permute.xlu0 %5265
    %v5268 = vmul.f32 %v5261, %v5266
    %5270 = vrot.lane.b32.xlu0 %v5268, 32
    %v5271 = vpop.permute.xlu0 %5270
    %v5273 = vadd.f32 %v5263, %v5271
    %v5274 = vtanh.pop %v5273
    %5276 = vrot.lane.b32.xlu0 %v5274, 64
    %v5277 = vpop.permute.xlu0 %5276
    %v5279 = vmul.f32 %v5261, %v5277
    %5280 = vrot.lane.b32.xlu0 %v2876, 80
    %v5281 = vpop.permute.xlu0 %5280
    %5284 = vrot.lane.b32.xlu0 %v5279, 48
    %v5285 = vpop.permute.xlu0 %5284
    %v5287 = vsel %vm125, %v5281, %v5285
    %v5289 = vsel %vm133, %v5287, 0
    %5291 = vmatprep.subr.mxu0 0.0
    %5292 = vmatpush1.msra.mxu0 %v118
    %5293 = vmatprep.subr.mxu0 0.0
    %5294 = vmatpush1.msra.mxu0 %v119
    %5295 = vmatprep.subr.mxu0 0.0
    %5296 = vmatpush1.msra.mxu0 %v120
    %5297 = vmatprep.subr.mxu0 0.0
    %5298 = vmatpush1.msra.mxu0 %v121
    %5299 = vmatprep.subr.mxu0 0.0
    %5300 = vmatpush1.msra.mxu0 %v122
    %5301 = vmatprep.subr.mxu0 0.0
    %5302 = vmatpush1.msra.mxu0 %v123
    %5303 = vmatprep.subr.mxu0 0.0
    %5304 = vmatpush1.msra.mxu0 0.0
    %5305 = vmatprep.subr.mxu0 0.0
    %5306 = vmatpush1.msra.mxu0 0.0
    %5307 = vmatprep.subr.mxu0 0.0
    %5308 = vmatpush1.msra.mxu0 0.0
    %5309 = vmatprep.subr.mxu0 0.0
    %5310 = vmatpush1.msra.mxu0 0.0
    %5311 = vmatprep.subr.mxu0 0.0
    %5312 = vmatpush1.msra.mxu0 0.0
    %5313 = vmatprep.subr.mxu0 0.0
    %5314 = vmatpush1.msra.mxu0 0.0
    %5315 = vmatprep.subr.mxu0 0.0
    %5316 = vmatpush1.msra.mxu0 0.0
    %5317 = vmatprep.subr.mxu0 0.0
    %5318 = vmatpush1.msra.mxu0 0.0
    %5319 = vmatprep.subr.mxu0 0.0
    %5320 = vmatpush1.msra.mxu0 0.0
    %5321 = vmatprep.subr.mxu0 0.0
    %5322 = vmatpush1.msra.mxu0 0.0
    %5323 = vmatprep.subr.mxu0 0.0
    %5324 = vmatpush1.msra.mxu0 0.0
    %5325 = vmatprep.subr.mxu0 0.0
    %5326 = vmatpush1.msra.mxu0 0.0
    %5327 = vmatprep.subr.mxu0 0.0
    %5328 = vmatpush1.msra.mxu0 0.0
    %5329 = vmatprep.subr.mxu0 0.0
    %5330 = vmatpush1.msra.mxu0 0.0
    %5331 = vmatprep.subr.mxu0 0.0
    %5332 = vmatpush1.msra.mxu0 0.0
    %5333 = vmatprep.subr.mxu0 0.0
    %5334 = vmatpush1.msra.mxu0 0.0
    %5335 = vmatprep.subr.mxu0 0.0
    %5336 = vmatpush1.msra.mxu0 0.0
    %5337 = vmatprep.subr.mxu0 0.0
    %5338 = vmatpush1.msra.mxu0 0.0
    %5339 = vmatprep.subr.mxu0 0.0
    %5340 = vmatpush1.msra.mxu0 0.0
    %5341 = vmatprep.subr.mxu0 0.0
    %5342 = vmatpush1.msra.mxu0 0.0
    %5343 = vmatprep.subr.mxu0 0.0
    %5344 = vmatpush1.msra.mxu0 0.0
    %5345 = vmatprep.subr.mxu0 0.0
    %5346 = vmatpush1.msra.mxu0 0.0
    %5347 = vmatprep.subr.mxu0 0.0
    %5348 = vmatpush1.msra.mxu0 0.0
    %5349 = vmatprep.subr.mxu0 0.0
    %5350 = vmatpush1.msra.mxu0 0.0
    %5351 = vmatprep.subr.mxu0 0.0
    %5352 = vmatpush1.msra.mxu0 0.0
    %5353 = vmatprep.subr.mxu0 0.0
    %5354 = vmatpush1.msra.mxu0 0.0
    %5355 = vmatprep.mubr.f32.mxu0 0.0
    %5356 = vmatmul.mubr.f32.gmra.mrb[0].mxu0 %v5289
    %v5357 = vpop.f32.mrb[0].mxu0
    %v5358 = vadd.f32 %v131, %v5357
    %v5359 = vpop.f32.mrb[0].mxu0
    %5360 = vdwg.mxu0
    %v5361 = vxor.u32 %v5358, 2147483648
    %v5362 = vmul.f32 %v5361, 1.442695
    %v5363 = vpow.pop %v5362
    %v5364 = vadd.f32 %v5363, 1.0
    %v5365 = vrcp.pop %v5364
    %v5366 = vmul.f32 1.0, %v5365
    %v5367 = vtanh.pop %v5358
    %v5368 = vmul.f32 %v5366, %v5273
    %5370 = vrot.lane.b32.xlu0 %v5367, 64
    %v5371 = vpop.permute.xlu0 %5370
    %v5373 = vmul.f32 %v5366, %v5371
    %5375 = vrot.lane.b32.xlu0 %v5373, 32
    %v5376 = vpop.permute.xlu0 %5375
    %v5378 = vadd.f32 %v5368, %v5376
    %v5379 = vtanh.pop %v5378
    %5381 = vrot.lane.b32.xlu0 %v5379, 64
    %v5382 = vpop.permute.xlu0 %5381
    %v5384 = vmul.f32 %v5366, %v5382
    %5385 = vrot.lane.b32.xlu0 %v2981, 80
    %v5386 = vpop.permute.xlu0 %5385
    %5389 = vrot.lane.b32.xlu0 %v5384, 48
    %v5390 = vpop.permute.xlu0 %5389
    %v5392 = vsel %vm125, %v5386, %v5390
    %v5394 = vsel %vm133, %v5392, 0
    %5396 = vmatprep.subr.mxu0 0.0
    %5397 = vmatpush1.msra.mxu0 %v118
    %5398 = vmatprep.subr.mxu0 0.0
    %5399 = vmatpush1.msra.mxu0 %v119
    %5400 = vmatprep.subr.mxu0 0.0
    %5401 = vmatpush1.msra.mxu0 %v120
    %5402 = vmatprep.subr.mxu0 0.0
    %5403 = vmatpush1.msra.mxu0 %v121
    %5404 = vmatprep.subr.mxu0 0.0
    %5405 = vmatpush1.msra.mxu0 %v122
    %5406 = vmatprep.subr.mxu0 0.0
    %5407 = vmatpush1.msra.mxu0 %v123
    %5408 = vmatprep.subr.mxu0 0.0
    %5409 = vmatpush1.msra.mxu0 0.0
    %5410 = vmatprep.subr.mxu0 0.0
    %5411 = vmatpush1.msra.mxu0 0.0
    %5412 = vmatprep.subr.mxu0 0.0
    %5413 = vmatpush1.msra.mxu0 0.0
    %5414 = vmatprep.subr.mxu0 0.0
    %5415 = vmatpush1.msra.mxu0 0.0
    %5416 = vmatprep.subr.mxu0 0.0
    %5417 = vmatpush1.msra.mxu0 0.0
    %5418 = vmatprep.subr.mxu0 0.0
    %5419 = vmatpush1.msra.mxu0 0.0
    %5420 = vmatprep.subr.mxu0 0.0
    %5421 = vmatpush1.msra.mxu0 0.0
    %5422 = vmatprep.subr.mxu0 0.0
    %5423 = vmatpush1.msra.mxu0 0.0
    %5424 = vmatprep.subr.mxu0 0.0
    %5425 = vmatpush1.msra.mxu0 0.0
    %5426 = vmatprep.subr.mxu0 0.0
    %5427 = vmatpush1.msra.mxu0 0.0
    %5428 = vmatprep.subr.mxu0 0.0
    %5429 = vmatpush1.msra.mxu0 0.0
    %5430 = vmatprep.subr.mxu0 0.0
    %5431 = vmatpush1.msra.mxu0 0.0
    %5432 = vmatprep.subr.mxu0 0.0
    %5433 = vmatpush1.msra.mxu0 0.0
    %5434 = vmatprep.subr.mxu0 0.0
    %5435 = vmatpush1.msra.mxu0 0.0
    %5436 = vmatprep.subr.mxu0 0.0
    %5437 = vmatpush1.msra.mxu0 0.0
    %5438 = vmatprep.subr.mxu0 0.0
    %5439 = vmatpush1.msra.mxu0 0.0
    %5440 = vmatprep.subr.mxu0 0.0
    %5441 = vmatpush1.msra.mxu0 0.0
    %5442 = vmatprep.subr.mxu0 0.0
    %5443 = vmatpush1.msra.mxu0 0.0
    %5444 = vmatprep.subr.mxu0 0.0
    %5445 = vmatpush1.msra.mxu0 0.0
    %5446 = vmatprep.subr.mxu0 0.0
    %5447 = vmatpush1.msra.mxu0 0.0
    %5448 = vmatprep.subr.mxu0 0.0
    %5449 = vmatpush1.msra.mxu0 0.0
    %5450 = vmatprep.subr.mxu0 0.0
    %5451 = vmatpush1.msra.mxu0 0.0
    %5452 = vmatprep.subr.mxu0 0.0
    %5453 = vmatpush1.msra.mxu0 0.0
    %5454 = vmatprep.subr.mxu0 0.0
    %5455 = vmatpush1.msra.mxu0 0.0
    %5456 = vmatprep.subr.mxu0 0.0
    %5457 = vmatpush1.msra.mxu0 0.0
    %5458 = vmatprep.subr.mxu0 0.0
    %5459 = vmatpush1.msra.mxu0 0.0
    %5460 = vmatprep.mubr.f32.mxu0 0.0
    %5461 = vmatmul.mubr.f32.gmra.mrb[0].mxu0 %v5394
    %v5462 = vpop.f32.mrb[0].mxu0
    %v5463 = vadd.f32 %v131, %v5462
    %v5464 = vpop.f32.mrb[0].mxu0
    %5465 = vdwg.mxu0
    %v5466 = vxor.u32 %v5463, 2147483648
    %v5467 = vmul.f32 %v5466, 1.442695
    %v5468 = vpow.pop %v5467
    %v5469 = vadd.f32 %v5468, 1.0
    %v5470 = vrcp.pop %v5469
    %v5471 = vmul.f32 1.0, %v5470
    %v5472 = vtanh.pop %v5463
    %v5473 = vmul.f32 %v5471, %v5378
    %5475 = vrot.lane.b32.xlu0 %v5472, 64
    %v5476 = vpop.permute.xlu0 %5475
    %v5478 = vmul.f32 %v5471, %v5476
    %5480 = vrot.lane.b32.xlu0 %v5478, 32
    %v5481 = vpop.permute.xlu0 %5480
    %v5483 = vadd.f32 %v5473, %v5481
    %v5484 = vtanh.pop %v5483
    %5486 = vrot.lane.b32.xlu0 %v5484, 64
    %v5487 = vpop.permute.xlu0 %5486
    %v5489 = vmul.f32 %v5471, %v5487
    %5490 = vrot.lane.b32.xlu0 %v3086, 80
    %v5491 = vpop.permute.xlu0 %5490
    %5494 = vrot.lane.b32.xlu0 %v5489, 48
    %v5495 = vpop.permute.xlu0 %5494
    %v5497 = vsel %vm125, %v5491, %v5495
    %v5499 = vsel %vm133, %v5497, 0
    %5501 = vmatprep.subr.mxu0 0.0
    %5502 = vmatpush1.msra.mxu0 %v118
    %5503 = vmatprep.subr.mxu0 0.0
    %5504 = vmatpush1.msra.mxu0 %v119
    %5505 = vmatprep.subr.mxu0 0.0
    %5506 = vmatpush1.msra.mxu0 %v120
    %5507 = vmatprep.subr.mxu0 0.0
    %5508 = vmatpush1.msra.mxu0 %v121
    %5509 = vmatprep.subr.mxu0 0.0
    %5510 = vmatpush1.msra.mxu0 %v122
    %5511 = vmatprep.subr.mxu0 0.0
    %5512 = vmatpush1.msra.mxu0 %v123
    %5513 = vmatprep.subr.mxu0 0.0
    %5514 = vmatpush1.msra.mxu0 0.0
    %5515 = vmatprep.subr.mxu0 0.0
    %5516 = vmatpush1.msra.mxu0 0.0
    %5517 = vmatprep.subr.mxu0 0.0
    %5518 = vmatpush1.msra.mxu0 0.0
    %5519 = vmatprep.subr.mxu0 0.0
    %5520 = vmatpush1.msra.mxu0 0.0
    %5521 = vmatprep.subr.mxu0 0.0
    %5522 = vmatpush1.msra.mxu0 0.0
    %5523 = vmatprep.subr.mxu0 0.0
    %5524 = vmatpush1.msra.mxu0 0.0
    %5525 = vmatprep.subr.mxu0 0.0
    %5526 = vmatpush1.msra.mxu0 0.0
    %5527 = vmatprep.subr.mxu0 0.0
    %5528 = vmatpush1.msra.mxu0 0.0
    %5529 = vmatprep.subr.mxu0 0.0
    %5530 = vmatpush1.msra.mxu0 0.0
    %5531 = vmatprep.subr.mxu0 0.0
    %5532 = vmatpush1.msra.mxu0 0.0
    %5533 = vmatprep.subr.mxu0 0.0
    %5534 = vmatpush1.msra.mxu0 0.0
    %5535 = vmatprep.subr.mxu0 0.0
    %5536 = vmatpush1.msra.mxu0 0.0
    %5537 = vmatprep.subr.mxu0 0.0
    %5538 = vmatpush1.msra.mxu0 0.0
    %5539 = vmatprep.subr.mxu0 0.0
    %5540 = vmatpush1.msra.mxu0 0.0
    %5541 = vmatprep.subr.mxu0 0.0
    %5542 = vmatpush1.msra.mxu0 0.0
    %5543 = vmatprep.subr.mxu0 0.0
    %5544 = vmatpush1.msra.mxu0 0.0
    %5545 = vmatprep.subr.mxu0 0.0
    %5546 = vmatpush1.msra.mxu0 0.0
    %5547 = vmatprep.subr.mxu0 0.0
    %5548 = vmatpush1.msra.mxu0 0.0
    %5549 = vmatprep.subr.mxu0 0.0
    %5550 = vmatpush1.msra.mxu0 0.0
    %5551 = vmatprep.subr.mxu0 0.0
    %5552 = vmatpush1.msra.mxu0 0.0
    %5553 = vmatprep.subr.mxu0 0.0
    %5554 = vmatpush1.msra.mxu0 0.0
    %5555 = vmatprep.subr.mxu0 0.0
    %5556 = vmatpush1.msra.mxu0 0.0
    %5557 = vmatprep.subr.mxu0 0.0
    %5558 = vmatpush1.msra.mxu0 0.0
    %5559 = vmatprep.subr.mxu0 0.0
    %5560 = vmatpush1.msra.mxu0 0.0
    %5561 = vmatprep.subr.mxu0 0.0
    %5562 = vmatpush1.msra.mxu0 0.0
    %5563 = vmatprep.subr.mxu0 0.0
    %5564 = vmatpush1.msra.mxu0 0.0
    %5565 = vmatprep.mubr.f32.mxu0 0.0
    %5566 = vmatmul.mubr.f32.gmra.mrb[0].mxu0 %v5499
    %v5567 = vpop.f32.mrb[0].mxu0
    %v5568 = vadd.f32 %v131, %v5567
    %v5569 = vpop.f32.mrb[0].mxu0
    %5570 = vdwg.mxu0
    %v5571 = vxor.u32 %v5568, 2147483648
    %v5572 = vmul.f32 %v5571, 1.442695
    %v5573 = vpow.pop %v5572
    %v5574 = vadd.f32 %v5573, 1.0
    %v5575 = vrcp.pop %v5574
    %v5576 = vmul.f32 1.0, %v5575
    %v5577 = vtanh.pop %v5568
    %v5578 = vmul.f32 %v5576, %v5483
    %5580 = vrot.lane.b32.xlu0 %v5577, 64
    %v5581 = vpop.permute.xlu0 %5580
    %v5583 = vmul.f32 %v5576, %v5581
    %5585 = vrot.lane.b32.xlu0 %v5583, 32
    %v5586 = vpop.permute.xlu0 %5585
    %v5588 = vadd.f32 %v5578, %v5586
    %v5589 = vtanh.pop %v5588
    %5591 = vrot.lane.b32.xlu0 %v5589, 64
    %v5592 = vpop.permute.xlu0 %5591
    %v5594 = vmul.f32 %v5576, %v5592
    %5595 = vrot.lane.b32.xlu0 %v3191, 80
    %v5596 = vpop.permute.xlu0 %5595
    %5599 = vrot.lane.b32.xlu0 %v5594, 48
    %v5600 = vpop.permute.xlu0 %5599
    %v5602 = vsel %vm125, %v5596, %v5600
    %v5604 = vsel %vm133, %v5602, 0
    %5606 = vmatprep.subr.mxu0 0.0
    %5607 = vmatpush1.msra.mxu0 %v118
    %5608 = vmatprep.subr.mxu0 0.0
    %5609 = vmatpush1.msra.mxu0 %v119
    %5610 = vmatprep.subr.mxu0 0.0
    %5611 = vmatpush1.msra.mxu0 %v120
    %5612 = vmatprep.subr.mxu0 0.0
    %5613 = vmatpush1.msra.mxu0 %v121
    %5614 = vmatprep.subr.mxu0 0.0
    %5615 = vmatpush1.msra.mxu0 %v122
    %5616 = vmatprep.subr.mxu0 0.0
    %5617 = vmatpush1.msra.mxu0 %v123
    %5618 = vmatprep.subr.mxu0 0.0
    %5619 = vmatpush1.msra.mxu0 0.0
    %5620 = vmatprep.subr.mxu0 0.0
    %5621 = vmatpush1.msra.mxu0 0.0
    %5622 = vmatprep.subr.mxu0 0.0
    %5623 = vmatpush1.msra.mxu0 0.0
    %5624 = vmatprep.subr.mxu0 0.0
    %5625 = vmatpush1.msra.mxu0 0.0
    %5626 = vmatprep.subr.mxu0 0.0
    %5627 = vmatpush1.msra.mxu0 0.0
    %5628 = vmatprep.subr.mxu0 0.0
    %5629 = vmatpush1.msra.mxu0 0.0
    %5630 = vmatprep.subr.mxu0 0.0
    %5631 = vmatpush1.msra.mxu0 0.0
    %5632 = vmatprep.subr.mxu0 0.0
    %5633 = vmatpush1.msra.mxu0 0.0
    %5634 = vmatprep.subr.mxu0 0.0
    %5635 = vmatpush1.msra.mxu0 0.0
    %5636 = vmatprep.subr.mxu0 0.0
    %5637 = vmatpush1.msra.mxu0 0.0
    %5638 = vmatprep.subr.mxu0 0.0
    %5639 = vmatpush1.msra.mxu0 0.0
    %5640 = vmatprep.subr.mxu0 0.0
    %5641 = vmatpush1.msra.mxu0 0.0
    %5642 = vmatprep.subr.mxu0 0.0
    %5643 = vmatpush1.msra.mxu0 0.0
    %5644 = vmatprep.subr.mxu0 0.0
    %5645 = vmatpush1.msra.mxu0 0.0
    %5646 = vmatprep.subr.mxu0 0.0
    %5647 = vmatpush1.msra.mxu0 0.0
    %5648 = vmatprep.subr.mxu0 0.0
    %5649 = vmatpush1.msra.mxu0 0.0
    %5650 = vmatprep.subr.mxu0 0.0
    %5651 = vmatpush1.msra.mxu0 0.0
    %5652 = vmatprep.subr.mxu0 0.0
    %5653 = vmatpush1.msra.mxu0 0.0
    %5654 = vmatprep.subr.mxu0 0.0
    %5655 = vmatpush1.msra.mxu0 0.0
    %5656 = vmatprep.subr.mxu0 0.0
    %5657 = vmatpush1.msra.mxu0 0.0
    %5658 = vmatprep.subr.mxu0 0.0
    %5659 = vmatpush1.msra.mxu0 0.0
    %5660 = vmatprep.subr.mxu0 0.0
    %5661 = vmatpush1.msra.mxu0 0.0
    %5662 = vmatprep.subr.mxu0 0.0
    %5663 = vmatpush1.msra.mxu0 0.0
    %5664 = vmatprep.subr.mxu0 0.0
    %5665 = vmatpush1.msra.mxu0 0.0
    %5666 = vmatprep.subr.mxu0 0.0
    %5667 = vmatpush1.msra.mxu0 0.0
    %5668 = vmatprep.subr.mxu0 0.0
    %5669 = vmatpush1.msra.mxu0 0.0
    %5670 = vmatprep.mubr.f32.mxu0 0.0
    %5671 = vmatmul.mubr.f32.gmra.mrb[0].mxu0 %v5604
    %v5672 = vpop.f32.mrb[0].mxu0
    %v5673 = vadd.f32 %v131, %v5672
    %v5674 = vpop.f32.mrb[0].mxu0
    %5675 = vdwg.mxu0
    %v5676 = vxor.u32 %v5673, 2147483648
    %v5677 = vmul.f32 %v5676, 1.442695
    %v5678 = vpow.pop %v5677
    %v5679 = vadd.f32 %v5678, 1.0
    %v5680 = vrcp.pop %v5679
    %v5681 = vmul.f32 1.0, %v5680
    %v5682 = vtanh.pop %v5673
    %v5683 = vmul.f32 %v5681, %v5588
    %5685 = vrot.lane.b32.xlu0 %v5682, 64
    %v5686 = vpop.permute.xlu0 %5685
    %v5688 = vmul.f32 %v5681, %v5686
    %5690 = vrot.lane.b32.xlu0 %v5688, 32
    %v5691 = vpop.permute.xlu0 %5690
    %v5693 = vadd.f32 %v5683, %v5691
    %v5694 = vtanh.pop %v5693
    %5696 = vrot.lane.b32.xlu0 %v5694, 64
    %v5697 = vpop.permute.xlu0 %5696
    %v5699 = vmul.f32 %v5681, %v5697
    %5700 = vrot.lane.b32.xlu0 %v3296, 80
    %v5701 = vpop.permute.xlu0 %5700
    %5704 = vrot.lane.b32.xlu0 %v5699, 48
    %v5705 = vpop.permute.xlu0 %5704
    %v5707 = vsel %vm125, %v5701, %v5705
    %v5709 = vsel %vm133, %v5707, 0
    %5711 = vmatprep.subr.mxu0 0.0
    %5712 = vmatpush1.msra.mxu0 %v118
    %5713 = vmatprep.subr.mxu0 0.0
    %5714 = vmatpush1.msra.mxu0 %v119
    %5715 = vmatprep.subr.mxu0 0.0
    %5716 = vmatpush1.msra.mxu0 %v120
    %5717 = vmatprep.subr.mxu0 0.0
    %5718 = vmatpush1.msra.mxu0 %v121
    %5719 = vmatprep.subr.mxu0 0.0
    %5720 = vmatpush1.msra.mxu0 %v122
    %5721 = vmatprep.subr.mxu0 0.0
    %5722 = vmatpush1.msra.mxu0 %v123
    %5723 = vmatprep.subr.mxu0 0.0
    %5724 = vmatpush1.msra.mxu0 0.0
    %5725 = vmatprep.subr.mxu0 0.0
    %5726 = vmatpush1.msra.mxu0 0.0
    %5727 = vmatprep.subr.mxu0 0.0
    %5728 = vmatpush1.msra.mxu0 0.0
    %5729 = vmatprep.subr.mxu0 0.0
    %5730 = vmatpush1.msra.mxu0 0.0
    %5731 = vmatprep.subr.mxu0 0.0
    %5732 = vmatpush1.msra.mxu0 0.0
    %5733 = vmatprep.subr.mxu0 0.0
    %5734 = vmatpush1.msra.mxu0 0.0
    %5735 = vmatprep.subr.mxu0 0.0
    %5736 = vmatpush1.msra.mxu0 0.0
    %5737 = vmatprep.subr.mxu0 0.0
    %5738 = vmatpush1.msra.mxu0 0.0
    %5739 = vmatprep.subr.mxu0 0.0
    %5740 = vmatpush1.msra.mxu0 0.0
    %5741 = vmatprep.subr.mxu0 0.0
    %5742 = vmatpush1.msra.mxu0 0.0
    %5743 = vmatprep.subr.mxu0 0.0
    %5744 = vmatpush1.msra.mxu0 0.0
    %5745 = vmatprep.subr.mxu0 0.0
    %5746 = vmatpush1.msra.mxu0 0.0
    %5747 = vmatprep.subr.mxu0 0.0
    %5748 = vmatpush1.msra.mxu0 0.0
    %5749 = vmatprep.subr.mxu0 0.0
    %5750 = vmatpush1.msra.mxu0 0.0
    %5751 = vmatprep.subr.mxu0 0.0
    %5752 = vmatpush1.msra.mxu0 0.0
    %5753 = vmatprep.subr.mxu0 0.0
    %5754 = vmatpush1.msra.mxu0 0.0
    %5755 = vmatprep.subr.mxu0 0.0
    %5756 = vmatpush1.msra.mxu0 0.0
    %5757 = vmatprep.subr.mxu0 0.0
    %5758 = vmatpush1.msra.mxu0 0.0
    %5759 = vmatprep.subr.mxu0 0.0
    %5760 = vmatpush1.msra.mxu0 0.0
    %5761 = vmatprep.subr.mxu0 0.0
    %5762 = vmatpush1.msra.mxu0 0.0
    %5763 = vmatprep.subr.mxu0 0.0
    %5764 = vmatpush1.msra.mxu0 0.0
    %5765 = vmatprep.subr.mxu0 0.0
    %5766 = vmatpush1.msra.mxu0 0.0
    %5767 = vmatprep.subr.mxu0 0.0
    %5768 = vmatpush1.msra.mxu0 0.0
    %5769 = vmatprep.subr.mxu0 0.0
    %5770 = vmatpush1.msra.mxu0 0.0
    %5771 = vmatprep.subr.mxu0 0.0
    %5772 = vmatpush1.msra.mxu0 0.0
    %5773 = vmatprep.subr.mxu0 0.0
    %5774 = vmatpush1.msra.mxu0 0.0
    %5775 = vmatprep.mubr.f32.mxu0 0.0
    %5776 = vmatmul.mubr.f32.gmra.mrb[0].mxu0 %v5709
    %v5777 = vpop.f32.mrb[0].mxu0
    %v5778 = vadd.f32 %v131, %v5777
    %v5779 = vpop.f32.mrb[0].mxu0
    %5780 = vdwg.mxu0
    %v5781 = vxor.u32 %v5778, 2147483648
    %v5782 = vmul.f32 %v5781, 1.442695
    %v5783 = vpow.pop %v5782
    %v5784 = vadd.f32 %v5783, 1.0
    %v5785 = vrcp.pop %v5784
    %v5786 = vmul.f32 1.0, %v5785
    %v5787 = vtanh.pop %v5778
    %v5788 = vmul.f32 %v5786, %v5693
    %5790 = vrot.lane.b32.xlu0 %v5787, 64
    %v5791 = vpop.permute.xlu0 %5790
    %v5793 = vmul.f32 %v5786, %v5791
    %5795 = vrot.lane.b32.xlu0 %v5793, 32
    %v5796 = vpop.permute.xlu0 %5795
    %v5798 = vadd.f32 %v5788, %v5796
    %v5799 = vtanh.pop %v5798
    %5801 = vrot.lane.b32.xlu0 %v5799, 64
    %v5802 = vpop.permute.xlu0 %5801
    %v5804 = vmul.f32 %v5786, %v5802
    %5805 = vrot.lane.b32.xlu0 %v3401, 80
    %v5806 = vpop.permute.xlu0 %5805
    %5809 = vrot.lane.b32.xlu0 %v5804, 48
    %v5810 = vpop.permute.xlu0 %5809
    %v5812 = vsel %vm125, %v5806, %v5810
    %v5814 = vsel %vm133, %v5812, 0
    %5816 = vmatprep.subr.mxu0 0.0
    %5817 = vmatpush1.msra.mxu0 %v118
    %5818 = vmatprep.subr.mxu0 0.0
    %5819 = vmatpush1.msra.mxu0 %v119
    %5820 = vmatprep.subr.mxu0 0.0
    %5821 = vmatpush1.msra.mxu0 %v120
    %5822 = vmatprep.subr.mxu0 0.0
    %5823 = vmatpush1.msra.mxu0 %v121
    %5824 = vmatprep.subr.mxu0 0.0
    %5825 = vmatpush1.msra.mxu0 %v122
    %5826 = vmatprep.subr.mxu0 0.0
    %5827 = vmatpush1.msra.mxu0 %v123
    %5828 = vmatprep.subr.mxu0 0.0
    %5829 = vmatpush1.msra.mxu0 0.0
    %5830 = vmatprep.subr.mxu0 0.0
    %5831 = vmatpush1.msra.mxu0 0.0
    %5832 = vmatprep.subr.mxu0 0.0
    %5833 = vmatpush1.msra.mxu0 0.0
    %5834 = vmatprep.subr.mxu0 0.0
    %5835 = vmatpush1.msra.mxu0 0.0
    %5836 = vmatprep.subr.mxu0 0.0
    %5837 = vmatpush1.msra.mxu0 0.0
    %5838 = vmatprep.subr.mxu0 0.0
    %5839 = vmatpush1.msra.mxu0 0.0
    %5840 = vmatprep.subr.mxu0 0.0
    %5841 = vmatpush1.msra.mxu0 0.0
    %5842 = vmatprep.subr.mxu0 0.0
    %5843 = vmatpush1.msra.mxu0 0.0
    %5844 = vmatprep.subr.mxu0 0.0
    %5845 = vmatpush1.msra.mxu0 0.0
    %5846 = vmatprep.subr.mxu0 0.0
    %5847 = vmatpush1.msra.mxu0 0.0
    %5848 = vmatprep.subr.mxu0 0.0
    %5849 = vmatpush1.msra.mxu0 0.0
    %5850 = vmatprep.subr.mxu0 0.0
    %5851 = vmatpush1.msra.mxu0 0.0
    %5852 = vmatprep.subr.mxu0 0.0
    %5853 = vmatpush1.msra.mxu0 0.0
    %5854 = vmatprep.subr.mxu0 0.0
    %5855 = vmatpush1.msra.mxu0 0.0
    %5856 = vmatprep.subr.mxu0 0.0
    %5857 = vmatpush1.msra.mxu0 0.0
    %5858 = vmatprep.subr.mxu0 0.0
    %5859 = vmatpush1.msra.mxu0 0.0
    %5860 = vmatprep.subr.mxu0 0.0
    %5861 = vmatpush1.msra.mxu0 0.0
    %5862 = vmatprep.subr.mxu0 0.0
    %5863 = vmatpush1.msra.mxu0 0.0
    %5864 = vmatprep.subr.mxu0 0.0
    %5865 = vmatpush1.msra.mxu0 0.0
    %5866 = vmatprep.subr.mxu0 0.0
    %5867 = vmatpush1.msra.mxu0 0.0
    %5868 = vmatprep.subr.mxu0 0.0
    %5869 = vmatpush1.msra.mxu0 0.0
    %5870 = vmatprep.subr.mxu0 0.0
    %5871 = vmatpush1.msra.mxu0 0.0
    %5872 = vmatprep.subr.mxu0 0.0
    %5873 = vmatpush1.msra.mxu0 0.0
    %5874 = vmatprep.subr.mxu0 0.0
    %5875 = vmatpush1.msra.mxu0 0.0
    %5876 = vmatprep.subr.mxu0 0.0
    %5877 = vmatpush1.msra.mxu0 0.0
    %5878 = vmatprep.subr.mxu0 0.0
    %5879 = vmatpush1.msra.mxu0 0.0
    %5880 = vmatprep.mubr.f32.mxu0 0.0
    %5881 = vmatmul.mubr.f32.gmra.mrb[0].mxu0 %v5814
    %v5882 = vpop.f32.mrb[0].mxu0
    %v5883 = vadd.f32 %v131, %v5882
    %v5884 = vpop.f32.mrb[0].mxu0
    %5885 = vdwg.mxu0
    %v5886 = vxor.u32 %v5883, 2147483648
    %v5887 = vmul.f32 %v5886, 1.442695
    %v5888 = vpow.pop %v5887
    %v5889 = vadd.f32 %v5888, 1.0
    %v5890 = vrcp.pop %v5889
    %v5891 = vmul.f32 1.0, %v5890
    %v5892 = vtanh.pop %v5883
    %v5893 = vmul.f32 %v5891, %v5798
    %5895 = vrot.lane.b32.xlu0 %v5892, 64
    %v5896 = vpop.permute.xlu0 %5895
    %v5898 = vmul.f32 %v5891, %v5896
    %5900 = vrot.lane.b32.xlu0 %v5898, 32
    %v5901 = vpop.permute.xlu0 %5900
    %v5903 = vadd.f32 %v5893, %v5901
    %v5904 = vtanh.pop %v5903
    %5906 = vrot.lane.b32.xlu0 %v5904, 64
    %v5907 = vpop.permute.xlu0 %5906
    %v5909 = vmul.f32 %v5891, %v5907
    %5911 = vrot.lane.b32.xlu0 %v3507, 80
    %v5912 = vpop.permute.xlu0 %5911
    %5915 = vrot.lane.b32.xlu0 %v5909, 48
    %v5916 = vpop.permute.xlu0 %5915
    %v5918 = vsel %vm125, %v5912, %v5916
    %v5920 = vsel %vm133, %v5918, 0
    %5922 = vmatprep.subr.mxu0 0.0
    %5923 = vmatpush1.msra.mxu0 %v118
    %5924 = vmatprep.subr.mxu0 0.0
    %5925 = vmatpush1.msra.mxu0 %v119
    %5926 = vmatprep.subr.mxu0 0.0
    %5927 = vmatpush1.msra.mxu0 %v120
    %5928 = vmatprep.subr.mxu0 0.0
    %5929 = vmatpush1.msra.mxu0 %v121
    %5930 = vmatprep.subr.mxu0 0.0
    %5931 = vmatpush1.msra.mxu0 %v122
    %5932 = vmatprep.subr.mxu0 0.0
    %5933 = vmatpush1.msra.mxu0 %v123
    %5934 = vmatprep.subr.mxu0 0.0
    %5935 = vmatpush1.msra.mxu0 0.0
    %5936 = vmatprep.subr.mxu0 0.0
    %5937 = vmatpush1.msra.mxu0 0.0
    %5938 = vmatprep.subr.mxu0 0.0
    %5939 = vmatpush1.msra.mxu0 0.0
    %5940 = vmatprep.subr.mxu0 0.0
    %5941 = vmatpush1.msra.mxu0 0.0
    %5942 = vmatprep.subr.mxu0 0.0
    %5943 = vmatpush1.msra.mxu0 0.0
    %5944 = vmatprep.subr.mxu0 0.0
    %5945 = vmatpush1.msra.mxu0 0.0
    %5946 = vmatprep.subr.mxu0 0.0
    %5947 = vmatpush1.msra.mxu0 0.0
    %5948 = vmatprep.subr.mxu0 0.0
    %5949 = vmatpush1.msra.mxu0 0.0
    %5950 = vmatprep.subr.mxu0 0.0
    %5951 = vmatpush1.msra.mxu0 0.0
    %5952 = vmatprep.subr.mxu0 0.0
    %5953 = vmatpush1.msra.mxu0 0.0
    %5954 = vmatprep.subr.mxu0 0.0
    %5955 = vmatpush1.msra.mxu0 0.0
    %5956 = vmatprep.subr.mxu0 0.0
    %5957 = vmatpush1.msra.mxu0 0.0
    %5958 = vmatprep.subr.mxu0 0.0
    %5959 = vmatpush1.msra.mxu0 0.0
    %5960 = vmatprep.subr.mxu0 0.0
    %5961 = vmatpush1.msra.mxu0 0.0
    %5962 = vmatprep.subr.mxu0 0.0
    %5963 = vmatpush1.msra.mxu0 0.0
    %5964 = vmatprep.subr.mxu0 0.0
    %5965 = vmatpush1.msra.mxu0 0.0
    %5966 = vmatprep.subr.mxu0 0.0
    %5967 = vmatpush1.msra.mxu0 0.0
    %5968 = vmatprep.subr.mxu0 0.0
    %5969 = vmatpush1.msra.mxu0 0.0
    %5970 = vmatprep.subr.mxu0 0.0
    %5971 = vmatpush1.msra.mxu0 0.0
    %5972 = vmatprep.subr.mxu0 0.0
    %5973 = vmatpush1.msra.mxu0 0.0
    %5974 = vmatprep.subr.mxu0 0.0
    %5975 = vmatpush1.msra.mxu0 0.0
    %5976 = vmatprep.subr.mxu0 0.0
    %5977 = vmatpush1.msra.mxu0 0.0
    %5978 = vmatprep.subr.mxu0 0.0
    %5979 = vmatpush1.msra.mxu0 0.0
    %5980 = vmatprep.subr.mxu0 0.0
    %5981 = vmatpush1.msra.mxu0 0.0
    %5982 = vmatprep.subr.mxu0 0.0
    %5983 = vmatpush1.msra.mxu0 0.0
    %5984 = vmatprep.subr.mxu0 0.0
    %5985 = vmatpush1.msra.mxu0 0.0
    %5986 = vmatprep.mubr.f32.mxu0 0.0
    %5987 = vmatmul.mubr.f32.gmra.mrb[0].mxu0 %v5920
    %v5988 = vpop.f32.mrb[0].mxu0
    %v5989 = vadd.f32 %v131, %v5988
    %v5990 = vpop.f32.mrb[0].mxu0
    %5991 = vdwg.mxu0
    %v5992 = vxor.u32 %v5989, 2147483648
    %v5993 = vmul.f32 %v5992, 1.442695
    %v5994 = vpow.pop %v5993
    %v5995 = vadd.f32 %v5994, 1.0
    %v5996 = vrcp.pop %v5995
    %v5997 = vmul.f32 1.0, %v5996
    %v5998 = vtanh.pop %v5989
    %v5999 = vmul.f32 %v5997, %v5903
    %6001 = vrot.lane.b32.xlu0 %v5998, 64
    %v6002 = vpop.permute.xlu0 %6001
    %v6004 = vmul.f32 %v5997, %v6002
    %6006 = vrot.lane.b32.xlu0 %v6004, 32
    %v6007 = vpop.permute.xlu0 %6006
    %v6009 = vadd.f32 %v5999, %v6007
    %v6010 = vtanh.pop %v6009
    %6012 = vrot.lane.b32.xlu0 %v6010, 64
    %v6013 = vpop.permute.xlu0 %6012
    %v6015 = vmul.f32 %v5997, %v6013
    %6016 = vrot.lane.b32.xlu0 %v5279, 32
    %v6017 = vpop.permute.xlu0 %6016
    %v6019 = vsel %vm967, %v6017, 0.0
    %v6021 = vsel %vm133, %v6019, 0
    %6023 = vmatprep.subr.mxu0 0.0
    %6024 = vmatpush1.msra.mxu0 %v957
    %6025 = vmatprep.subr.mxu0 0.0
    %6026 = vmatpush1.msra.mxu0 %v958
    %6027 = vmatprep.subr.mxu0 0.0
    %6028 = vmatpush1.msra.mxu0 %v959
    %6029 = vmatprep.subr.mxu0 0.0
    %6030 = vmatpush1.msra.mxu0 %v960
    %6031 = vmatprep.subr.mxu0 0.0
    %6032 = vmatpush1.msra.mxu0 %v961
    %6033 = vmatprep.subr.mxu0 0.0
    %6034 = vmatpush1.msra.mxu0 %v962
    %6035 = vmatprep.subr.mxu0 0.0
    %6036 = vmatpush1.msra.mxu0 0.0
    %6037 = vmatprep.subr.mxu0 0.0
    %6038 = vmatpush1.msra.mxu0 0.0
    %6039 = vmatprep.subr.mxu0 0.0
    %6040 = vmatpush1.msra.mxu0 0.0
    %6041 = vmatprep.subr.mxu0 0.0
    %6042 = vmatpush1.msra.mxu0 0.0
    %6043 = vmatprep.subr.mxu0 0.0
    %6044 = vmatpush1.msra.mxu0 0.0
    %6045 = vmatprep.subr.mxu0 0.0
    %6046 = vmatpush1.msra.mxu0 0.0
    %6047 = vmatprep.subr.mxu0 0.0
    %6048 = vmatpush1.msra.mxu0 0.0
    %6049 = vmatprep.subr.mxu0 0.0
    %6050 = vmatpush1.msra.mxu0 0.0
    %6051 = vmatprep.subr.mxu0 0.0
    %6052 = vmatpush1.msra.mxu0 0.0
    %6053 = vmatprep.subr.mxu0 0.0
    %6054 = vmatpush1.msra.mxu0 0.0
    %6055 = vmatprep.subr.mxu0 0.0
    %6056 = vmatpush1.msra.mxu0 0.0
    %6057 = vmatprep.subr.mxu0 0.0
    %6058 = vmatpush1.msra.mxu0 0.0
    %6059 = vmatprep.subr.mxu0 0.0
    %6060 = vmatpush1.msra.mxu0 0.0
    %6061 = vmatprep.subr.mxu0 0.0
    %6062 = vmatpush1.msra.mxu0 0.0
    %6063 = vmatprep.subr.mxu0 0.0
    %6064 = vmatpush1.msra.mxu0 0.0
    %6065 = vmatprep.subr.mxu0 0.0
    %6066 = vmatpush1.msra.mxu0 0.0
    %6067 = vmatprep.subr.mxu0 0.0
    %6068 = vmatpush1.msra.mxu0 0.0
    %6069 = vmatprep.subr.mxu0 0.0
    %6070 = vmatpush1.msra.mxu0 0.0
    %6071 = vmatprep.subr.mxu0 0.0
    %6072 = vmatpush1.msra.mxu0 0.0
    %6073 = vmatprep.subr.mxu0 0.0
    %6074 = vmatpush1.msra.mxu0 0.0
    %6075 = vmatprep.subr.mxu0 0.0
    %6076 = vmatpush1.msra.mxu0 0.0
    %6077 = vmatprep.subr.mxu0 0.0
    %6078 = vmatpush1.msra.mxu0 0.0
    %6079 = vmatprep.subr.mxu0 0.0
    %6080 = vmatpush1.msra.mxu0 0.0
    %6081 = vmatprep.subr.mxu0 0.0
    %6082 = vmatpush1.msra.mxu0 0.0
    %6083 = vmatprep.subr.mxu0 0.0
    %6084 = vmatpush1.msra.mxu0 0.0
    %6085 = vmatprep.subr.mxu0 0.0
    %6086 = vmatpush1.msra.mxu0 0.0
    %6087 = vmatprep.mubr.f32.mxu0 0.0
    %6088 = vmatmul.mubr.f32.gmra.mrb[0].mxu0 %v6021
    %v6089 = vpop.f32.mrb[0].mxu0
    %v6090 = vadd.f32 %v973, %v6089
    %v6091 = vpop.f32.mrb[0].mxu0
    %6092 = vdwg.mxu0
    %v6093 = vxor.u32 %v6090, 2147483648
    %v6094 = vmul.f32 %v6093, 1.442695
    %v6095 = vpow.pop %v6094
    %v6096 = vadd.f32 %v6095, 1.0
    %v6097 = vrcp.pop %v6096
    %v6098 = vmul.f32 1.0, %v6097
    %v6099 = vtanh.pop %v6090
    %v6100 = vmul.f32 %v6098, 0.0
    %6102 = vrot.lane.b32.xlu0 %v6099, 96
    %v6103 = vpop.permute.xlu0 %6102
    %v6105 = vmul.f32 %v6098, %v6103
    %6107 = vrot.lane.b32.xlu0 %v6105, 16
    %v6108 = vpop.permute.xlu0 %6107
    %v6110 = vadd.f32 %v6100, %v6108
    %v6111 = vtanh.pop %v6110
    %6113 = vrot.lane.b32.xlu0 %v6111, 32
    %v6114 = vpop.permute.xlu0 %6113
    %v6116 = vmul.f32 %v6098, %v6114
    %6117 = vrot.lane.b32.xlu0 %v5384, 32
    %v6118 = vpop.permute.xlu0 %6117
    %6121 = vrot.lane.b32.xlu0 %v6116, 112
    %v6122 = vpop.permute.xlu0 %6121
    %v6124 = vsel %vm967, %v6118, %v6122
    %v6126 = vsel %vm133, %v6124, 0
    %6128 = vmatprep.subr.mxu0 0.0
    %6129 = vmatpush1.msra.mxu0 %v957
    %6130 = vmatprep.subr.mxu0 0.0
    %6131 = vmatpush1.msra.mxu0 %v958
    %6132 = vmatprep.subr.mxu0 0.0
    %6133 = vmatpush1.msra.mxu0 %v959
    %6134 = vmatprep.subr.mxu0 0.0
    %6135 = vmatpush1.msra.mxu0 %v960
    %6136 = vmatprep.subr.mxu0 0.0
    %6137 = vmatpush1.msra.mxu0 %v961
    %6138 = vmatprep.subr.mxu0 0.0
    %6139 = vmatpush1.msra.mxu0 %v962
    %6140 = vmatprep.subr.mxu0 0.0
    %6141 = vmatpush1.msra.mxu0 0.0
    %6142 = vmatprep.subr.mxu0 0.0
    %6143 = vmatpush1.msra.mxu0 0.0
    %6144 = vmatprep.subr.mxu0 0.0
    %6145 = vmatpush1.msra.mxu0 0.0
    %6146 = vmatprep.subr.mxu0 0.0
    %6147 = vmatpush1.msra.mxu0 0.0
    %6148 = vmatprep.subr.mxu0 0.0
    %6149 = vmatpush1.msra.mxu0 0.0
    %6150 = vmatprep.subr.mxu0 0.0
    %6151 = vmatpush1.msra.mxu0 0.0
    %6152 = vmatprep.subr.mxu0 0.0
    %6153 = vmatpush1.msra.mxu0 0.0
    %6154 = vmatprep.subr.mxu0 0.0
    %6155 = vmatpush1.msra.mxu0 0.0
    %6156 = vmatprep.subr.mxu0 0.0
    %6157 = vmatpush1.msra.mxu0 0.0
    %6158 = vmatprep.subr.mxu0 0.0
    %6159 = vmatpush1.msra.mxu0 0.0
    %6160 = vmatprep.subr.mxu0 0.0
    %6161 = vmatpush1.msra.mxu0 0.0
    %6162 = vmatprep.subr.mxu0 0.0
    %6163 = vmatpush1.msra.mxu0 0.0
    %6164 = vmatprep.subr.mxu0 0.0
    %6165 = vmatpush1.msra.mxu0 0.0
    %6166 = vmatprep.subr.mxu0 0.0
    %6167 = vmatpush1.msra.mxu0 0.0
    %6168 = vmatprep.subr.mxu0 0.0
    %6169 = vmatpush1.msra.mxu0 0.0
    %6170 = vmatprep.subr.mxu0 0.0
    %6171 = vmatpush1.msra.mxu0 0.0
    %6172 = vmatprep.subr.mxu0 0.0
    %6173 = vmatpush1.msra.mxu0 0.0
    %6174 = vmatprep.subr.mxu0 0.0
    %6175 = vmatpush1.msra.mxu0 0.0
    %6176 = vmatprep.subr.mxu0 0.0
    %6177 = vmatpush1.msra.mxu0 0.0
    %6178 = vmatprep.subr.mxu0 0.0
    %6179 = vmatpush1.msra.mxu0 0.0
    %6180 = vmatprep.subr.mxu0 0.0
    %6181 = vmatpush1.msra.mxu0 0.0
    %6182 = vmatprep.subr.mxu0 0.0
    %6183 = vmatpush1.msra.mxu0 0.0
    %6184 = vmatprep.subr.mxu0 0.0
    %6185 = vmatpush1.msra.mxu0 0.0
    %6186 = vmatprep.subr.mxu0 0.0
    %6187 = vmatpush1.msra.mxu0 0.0
    %6188 = vmatprep.subr.mxu0 0.0
    %6189 = vmatpush1.msra.mxu0 0.0
    %6190 = vmatprep.subr.mxu0 0.0
    %6191 = vmatpush1.msra.mxu0 0.0
    %6192 = vmatprep.mubr.f32.mxu0 0.0
    %6193 = vmatmul.mubr.f32.gmra.mrb[0].mxu0 %v6126
    %v6194 = vpop.f32.mrb[0].mxu0
    %v6195 = vadd.f32 %v973, %v6194
    %v6196 = vpop.f32.mrb[0].mxu0
    %6197 = vdwg.mxu0
    %v6198 = vxor.u32 %v6195, 2147483648
    %v6199 = vmul.f32 %v6198, 1.442695
    %v6200 = vpow.pop %v6199
    %v6201 = vadd.f32 %v6200, 1.0
    %v6202 = vrcp.pop %v6201
    %v6203 = vmul.f32 1.0, %v6202
    %v6204 = vtanh.pop %v6195
    %v6205 = vmul.f32 %v6203, %v6110
    %6207 = vrot.lane.b32.xlu0 %v6204, 96
    %v6208 = vpop.permute.xlu0 %6207
    %v6210 = vmul.f32 %v6203, %v6208
    %6212 = vrot.lane.b32.xlu0 %v6210, 16
    %v6213 = vpop.permute.xlu0 %6212
    %v6215 = vadd.f32 %v6205, %v6213
    %v6216 = vtanh.pop %v6215
    %6218 = vrot.lane.b32.xlu0 %v6216, 32
    %v6219 = vpop.permute.xlu0 %6218
    %v6221 = vmul.f32 %v6203, %v6219
    %6222 = vrot.lane.b32.xlu0 %v5489, 32
    %v6223 = vpop.permute.xlu0 %6222
    %6226 = vrot.lane.b32.xlu0 %v6221, 112
    %v6227 = vpop.permute.xlu0 %6226
    %v6229 = vsel %vm967, %v6223, %v6227
    %v6231 = vsel %vm133, %v6229, 0
    %6233 = vmatprep.subr.mxu0 0.0
    %6234 = vmatpush1.msra.mxu0 %v957
    %6235 = vmatprep.subr.mxu0 0.0
    %6236 = vmatpush1.msra.mxu0 %v958
    %6237 = vmatprep.subr.mxu0 0.0
    %6238 = vmatpush1.msra.mxu0 %v959
    %6239 = vmatprep.subr.mxu0 0.0
    %6240 = vmatpush1.msra.mxu0 %v960
    %6241 = vmatprep.subr.mxu0 0.0
    %6242 = vmatpush1.msra.mxu0 %v961
    %6243 = vmatprep.subr.mxu0 0.0
    %6244 = vmatpush1.msra.mxu0 %v962
    %6245 = vmatprep.subr.mxu0 0.0
    %6246 = vmatpush1.msra.mxu0 0.0
    %6247 = vmatprep.subr.mxu0 0.0
    %6248 = vmatpush1.msra.mxu0 0.0
    %6249 = vmatprep.subr.mxu0 0.0
    %6250 = vmatpush1.msra.mxu0 0.0
    %6251 = vmatprep.subr.mxu0 0.0
    %6252 = vmatpush1.msra.mxu0 0.0
    %6253 = vmatprep.subr.mxu0 0.0
    %6254 = vmatpush1.msra.mxu0 0.0
    %6255 = vmatprep.subr.mxu0 0.0
    %6256 = vmatpush1.msra.mxu0 0.0
    %6257 = vmatprep.subr.mxu0 0.0
    %6258 = vmatpush1.msra.mxu0 0.0
    %6259 = vmatprep.subr.mxu0 0.0
    %6260 = vmatpush1.msra.mxu0 0.0
    %6261 = vmatprep.subr.mxu0 0.0
    %6262 = vmatpush1.msra.mxu0 0.0
    %6263 = vmatprep.subr.mxu0 0.0
    %6264 = vmatpush1.msra.mxu0 0.0
    %6265 = vmatprep.subr.mxu0 0.0
    %6266 = vmatpush1.msra.mxu0 0.0
    %6267 = vmatprep.subr.mxu0 0.0
    %6268 = vmatpush1.msra.mxu0 0.0
    %6269 = vmatprep.subr.mxu0 0.0
    %6270 = vmatpush1.msra.mxu0 0.0
    %6271 = vmatprep.subr.mxu0 0.0
    %6272 = vmatpush1.msra.mxu0 0.0
    %6273 = vmatprep.subr.mxu0 0.0
    %6274 = vmatpush1.msra.mxu0 0.0
    %6275 = vmatprep.subr.mxu0 0.0
    %6276 = vmatpush1.msra.mxu0 0.0
    %6277 = vmatprep.subr.mxu0 0.0
    %6278 = vmatpush1.msra.mxu0 0.0
    %6279 = vmatprep.subr.mxu0 0.0
    %6280 = vmatpush1.msra.mxu0 0.0
    %6281 = vmatprep.subr.mxu0 0.0
    %6282 = vmatpush1.msra.mxu0 0.0
    %6283 = vmatprep.subr.mxu0 0.0
    %6284 = vmatpush1.msra.mxu0 0.0
    %6285 = vmatprep.subr.mxu0 0.0
    %6286 = vmatpush1.msra.mxu0 0.0
    %6287 = vmatprep.subr.mxu0 0.0
    %6288 = vmatpush1.msra.mxu0 0.0
    %6289 = vmatprep.subr.mxu0 0.0
    %6290 = vmatpush1.msra.mxu0 0.0
    %6291 = vmatprep.subr.mxu0 0.0
    %6292 = vmatpush1.msra.mxu0 0.0
    %6293 = vmatprep.subr.mxu0 0.0
    %6294 = vmatpush1.msra.mxu0 0.0
    %6295 = vmatprep.subr.mxu0 0.0
    %6296 = vmatpush1.msra.mxu0 0.0
    %6297 = vmatprep.mubr.f32.mxu0 0.0
    %6298 = vmatmul.mubr.f32.gmra.mrb[0].mxu0 %v6231
    %v6299 = vpop.f32.mrb[0].mxu0
    %v6300 = vadd.f32 %v973, %v6299
    %v6301 = vpop.f32.mrb[0].mxu0
    %6302 = vdwg.mxu0
    %v6303 = vxor.u32 %v6300, 2147483648
    %v6304 = vmul.f32 %v6303, 1.442695
    %v6305 = vpow.pop %v6304
    %v6306 = vadd.f32 %v6305, 1.0
    %v6307 = vrcp.pop %v6306
    %v6308 = vmul.f32 1.0, %v6307
    %v6309 = vtanh.pop %v6300
    %v6310 = vmul.f32 %v6308, %v6215
    %6312 = vrot.lane.b32.xlu0 %v6309, 96
    %v6313 = vpop.permute.xlu0 %6312
    %v6315 = vmul.f32 %v6308, %v6313
    %6317 = vrot.lane.b32.xlu0 %v6315, 16
    %v6318 = vpop.permute.xlu0 %6317
    %v6320 = vadd.f32 %v6310, %v6318
    %v6321 = vtanh.pop %v6320
    %6323 = vrot.lane.b32.xlu0 %v6321, 32
    %v6324 = vpop.permute.xlu0 %6323
    %v6326 = vmul.f32 %v6308, %v6324
    %6327 = vrot.lane.b32.xlu0 %v5594, 32
    %v6328 = vpop.permute.xlu0 %6327
    %6331 = vrot.lane.b32.xlu0 %v6326, 112
    %v6332 = vpop.permute.xlu0 %6331
    %v6334 = vsel %vm967, %v6328, %v6332
    %v6336 = vsel %vm133, %v6334, 0
    %6338 = vmatprep.subr.mxu0 0.0
    %6339 = vmatpush1.msra.mxu0 %v957
    %6340 = vmatprep.subr.mxu0 0.0
    %6341 = vmatpush1.msra.mxu0 %v958
    %6342 = vmatprep.subr.mxu0 0.0
    %6343 = vmatpush1.msra.mxu0 %v959
    %6344 = vmatprep.subr.mxu0 0.0
    %6345 = vmatpush1.msra.mxu0 %v960
    %6346 = vmatprep.subr.mxu0 0.0
    %6347 = vmatpush1.msra.mxu0 %v961
    %6348 = vmatprep.subr.mxu0 0.0
    %6349 = vmatpush1.msra.mxu0 %v962
    %6350 = vmatprep.subr.mxu0 0.0
    %6351 = vmatpush1.msra.mxu0 0.0
    %6352 = vmatprep.subr.mxu0 0.0
    %6353 = vmatpush1.msra.mxu0 0.0
    %6354 = vmatprep.subr.mxu0 0.0
    %6355 = vmatpush1.msra.mxu0 0.0
    %6356 = vmatprep.subr.mxu0 0.0
    %6357 = vmatpush1.msra.mxu0 0.0
    %6358 = vmatprep.subr.mxu0 0.0
    %6359 = vmatpush1.msra.mxu0 0.0
    %6360 = vmatprep.subr.mxu0 0.0
    %6361 = vmatpush1.msra.mxu0 0.0
    %6362 = vmatprep.subr.mxu0 0.0
    %6363 = vmatpush1.msra.mxu0 0.0
    %6364 = vmatprep.subr.mxu0 0.0
    %6365 = vmatpush1.msra.mxu0 0.0
    %6366 = vmatprep.subr.mxu0 0.0
    %6367 = vmatpush1.msra.mxu0 0.0
    %6368 = vmatprep.subr.mxu0 0.0
    %6369 = vmatpush1.msra.mxu0 0.0
    %6370 = vmatprep.subr.mxu0 0.0
    %6371 = vmatpush1.msra.mxu0 0.0
    %6372 = vmatprep.subr.mxu0 0.0
    %6373 = vmatpush1.msra.mxu0 0.0
    %6374 = vmatprep.subr.mxu0 0.0
    %6375 = vmatpush1.msra.mxu0 0.0
    %6376 = vmatprep.subr.mxu0 0.0
    %6377 = vmatpush1.msra.mxu0 0.0
    %6378 = vmatprep.subr.mxu0 0.0
    %6379 = vmatpush1.msra.mxu0 0.0
    %6380 = vmatprep.subr.mxu0 0.0
    %6381 = vmatpush1.msra.mxu0 0.0
    %6382 = vmatprep.subr.mxu0 0.0
    %6383 = vmatpush1.msra.mxu0 0.0
    %6384 = vmatprep.subr.mxu0 0.0
    %6385 = vmatpush1.msra.mxu0 0.0
    %6386 = vmatprep.subr.mxu0 0.0
    %6387 = vmatpush1.msra.mxu0 0.0
    %6388 = vmatprep.subr.mxu0 0.0
    %6389 = vmatpush1.msra.mxu0 0.0
    %6390 = vmatprep.subr.mxu0 0.0
    %6391 = vmatpush1.msra.mxu0 0.0
    %6392 = vmatprep.subr.mxu0 0.0
    %6393 = vmatpush1.msra.mxu0 0.0
    %6394 = vmatprep.subr.mxu0 0.0
    %6395 = vmatpush1.msra.mxu0 0.0
    %6396 = vmatprep.subr.mxu0 0.0
    %6397 = vmatpush1.msra.mxu0 0.0
    %6398 = vmatprep.subr.mxu0 0.0
    %6399 = vmatpush1.msra.mxu0 0.0
    %6400 = vmatprep.subr.mxu0 0.0
    %6401 = vmatpush1.msra.mxu0 0.0
    %6402 = vmatprep.mubr.f32.mxu0 0.0
    %6403 = vmatmul.mubr.f32.gmra.mrb[0].mxu0 %v6336
    %v6404 = vpop.f32.mrb[0].mxu0
    %v6405 = vadd.f32 %v973, %v6404
    %v6406 = vpop.f32.mrb[0].mxu0
    %6407 = vdwg.mxu0
    %v6408 = vxor.u32 %v6405, 2147483648
    %v6409 = vmul.f32 %v6408, 1.442695
    %v6410 = vpow.pop %v6409
    %v6411 = vadd.f32 %v6410, 1.0
    %v6412 = vrcp.pop %v6411
    %v6413 = vmul.f32 1.0, %v6412
    %v6414 = vtanh.pop %v6405
    %v6415 = vmul.f32 %v6413, %v6320
    %6417 = vrot.lane.b32.xlu0 %v6414, 96
    %v6418 = vpop.permute.xlu0 %6417
    %v6420 = vmul.f32 %v6413, %v6418
    %6422 = vrot.lane.b32.xlu0 %v6420, 16
    %v6423 = vpop.permute.xlu0 %6422
    %v6425 = vadd.f32 %v6415, %v6423
    %v6426 = vtanh.pop %v6425
    %6428 = vrot.lane.b32.xlu0 %v6426, 32
    %v6429 = vpop.permute.xlu0 %6428
    %v6431 = vmul.f32 %v6413, %v6429
    %6432 = vrot.lane.b32.xlu0 %v5699, 32
    %v6433 = vpop.permute.xlu0 %6432
    %6436 = vrot.lane.b32.xlu0 %v6431, 112
    %v6437 = vpop.permute.xlu0 %6436
    %v6439 = vsel %vm967, %v6433, %v6437
    %v6441 = vsel %vm133, %v6439, 0
    %6443 = vmatprep.subr.mxu0 0.0
    %6444 = vmatpush1.msra.mxu0 %v957
    %6445 = vmatprep.subr.mxu0 0.0
    %6446 = vmatpush1.msra.mxu0 %v958
    %6447 = vmatprep.subr.mxu0 0.0
    %6448 = vmatpush1.msra.mxu0 %v959
    %6449 = vmatprep.subr.mxu0 0.0
    %6450 = vmatpush1.msra.mxu0 %v960
    %6451 = vmatprep.subr.mxu0 0.0
    %6452 = vmatpush1.msra.mxu0 %v961
    %6453 = vmatprep.subr.mxu0 0.0
    %6454 = vmatpush1.msra.mxu0 %v962
    %6455 = vmatprep.subr.mxu0 0.0
    %6456 = vmatpush1.msra.mxu0 0.0
    %6457 = vmatprep.subr.mxu0 0.0
    %6458 = vmatpush1.msra.mxu0 0.0
    %6459 = vmatprep.subr.mxu0 0.0
    %6460 = vmatpush1.msra.mxu0 0.0
    %6461 = vmatprep.subr.mxu0 0.0
    %6462 = vmatpush1.msra.mxu0 0.0
    %6463 = vmatprep.subr.mxu0 0.0
    %6464 = vmatpush1.msra.mxu0 0.0
    %6465 = vmatprep.subr.mxu0 0.0
    %6466 = vmatpush1.msra.mxu0 0.0
    %6467 = vmatprep.subr.mxu0 0.0
    %6468 = vmatpush1.msra.mxu0 0.0
    %6469 = vmatprep.subr.mxu0 0.0
    %6470 = vmatpush1.msra.mxu0 0.0
    %6471 = vmatprep.subr.mxu0 0.0
    %6472 = vmatpush1.msra.mxu0 0.0
    %6473 = vmatprep.subr.mxu0 0.0
    %6474 = vmatpush1.msra.mxu0 0.0
    %6475 = vmatprep.subr.mxu0 0.0
    %6476 = vmatpush1.msra.mxu0 0.0
    %6477 = vmatprep.subr.mxu0 0.0
    %6478 = vmatpush1.msra.mxu0 0.0
    %6479 = vmatprep.subr.mxu0 0.0
    %6480 = vmatpush1.msra.mxu0 0.0
    %6481 = vmatprep.subr.mxu0 0.0
    %6482 = vmatpush1.msra.mxu0 0.0
    %6483 = vmatprep.subr.mxu0 0.0
    %6484 = vmatpush1.msra.mxu0 0.0
    %6485 = vmatprep.subr.mxu0 0.0
    %6486 = vmatpush1.msra.mxu0 0.0
    %6487 = vmatprep.subr.mxu0 0.0
    %6488 = vmatpush1.msra.mxu0 0.0
    %6489 = vmatprep.subr.mxu0 0.0
    %6490 = vmatpush1.msra.mxu0 0.0
    %6491 = vmatprep.subr.mxu0 0.0
    %6492 = vmatpush1.msra.mxu0 0.0
    %6493 = vmatprep.subr.mxu0 0.0
    %6494 = vmatpush1.msra.mxu0 0.0
    %6495 = vmatprep.subr.mxu0 0.0
    %6496 = vmatpush1.msra.mxu0 0.0
    %6497 = vmatprep.subr.mxu0 0.0
    %6498 = vmatpush1.msra.mxu0 0.0
    %6499 = vmatprep.subr.mxu0 0.0
    %6500 = vmatpush1.msra.mxu0 0.0
    %6501 = vmatprep.subr.mxu0 0.0
    %6502 = vmatpush1.msra.mxu0 0.0
    %6503 = vmatprep.subr.mxu0 0.0
    %6504 = vmatpush1.msra.mxu0 0.0
    %6505 = vmatprep.subr.mxu0 0.0
    %6506 = vmatpush1.msra.mxu0 0.0
    %6507 = vmatprep.mubr.f32.mxu0 0.0
    %6508 = vmatmul.mubr.f32.gmra.mrb[0].mxu0 %v6441
    %v6509 = vpop.f32.mrb[0].mxu0
    %v6510 = vadd.f32 %v973, %v6509
    %v6511 = vpop.f32.mrb[0].mxu0
    %6512 = vdwg.mxu0
    %v6513 = vxor.u32 %v6510, 2147483648
    %v6514 = vmul.f32 %v6513, 1.442695
    %v6515 = vpow.pop %v6514
    %v6516 = vadd.f32 %v6515, 1.0
    %v6517 = vrcp.pop %v6516
    %v6518 = vmul.f32 1.0, %v6517
    %v6519 = vtanh.pop %v6510
    %v6520 = vmul.f32 %v6518, %v6425
    %6522 = vrot.lane.b32.xlu0 %v6519, 96
    %v6523 = vpop.permute.xlu0 %6522
    %v6525 = vmul.f32 %v6518, %v6523
    %6527 = vrot.lane.b32.xlu0 %v6525, 16
    %v6528 = vpop.permute.xlu0 %6527
    %v6530 = vadd.f32 %v6520, %v6528
    %v6531 = vtanh.pop %v6530
    %6533 = vrot.lane.b32.xlu0 %v6531, 32
    %v6534 = vpop.permute.xlu0 %6533
    %v6536 = vmul.f32 %v6518, %v6534
    %6537 = vrot.lane.b32.xlu0 %v5804, 32
    %v6538 = vpop.permute.xlu0 %6537
    %6541 = vrot.lane.b32.xlu0 %v6536, 112
    %v6542 = vpop.permute.xlu0 %6541
    %v6544 = vsel %vm967, %v6538, %v6542
    %v6546 = vsel %vm133, %v6544, 0
    %6548 = vmatprep.subr.mxu0 0.0
    %6549 = vmatpush1.msra.mxu0 %v957
    %6550 = vmatprep.subr.mxu0 0.0
    %6551 = vmatpush1.msra.mxu0 %v958
    %6552 = vmatprep.subr.mxu0 0.0
    %6553 = vmatpush1.msra.mxu0 %v959
    %6554 = vmatprep.subr.mxu0 0.0
    %6555 = vmatpush1.msra.mxu0 %v960
    %6556 = vmatprep.subr.mxu0 0.0
    %6557 = vmatpush1.msra.mxu0 %v961
    %6558 = vmatprep.subr.mxu0 0.0
    %6559 = vmatpush1.msra.mxu0 %v962
    %6560 = vmatprep.subr.mxu0 0.0
    %6561 = vmatpush1.msra.mxu0 0.0
    %6562 = vmatprep.subr.mxu0 0.0
    %6563 = vmatpush1.msra.mxu0 0.0
    %6564 = vmatprep.subr.mxu0 0.0
    %6565 = vmatpush1.msra.mxu0 0.0
    %6566 = vmatprep.subr.mxu0 0.0
    %6567 = vmatpush1.msra.mxu0 0.0
    %6568 = vmatprep.subr.mxu0 0.0
    %6569 = vmatpush1.msra.mxu0 0.0
    %6570 = vmatprep.subr.mxu0 0.0
    %6571 = vmatpush1.msra.mxu0 0.0
    %6572 = vmatprep.subr.mxu0 0.0
    %6573 = vmatpush1.msra.mxu0 0.0
    %6574 = vmatprep.subr.mxu0 0.0
    %6575 = vmatpush1.msra.mxu0 0.0
    %6576 = vmatprep.subr.mxu0 0.0
    %6577 = vmatpush1.msra.mxu0 0.0
    %6578 = vmatprep.subr.mxu0 0.0
    %6579 = vmatpush1.msra.mxu0 0.0
    %6580 = vmatprep.subr.mxu0 0.0
    %6581 = vmatpush1.msra.mxu0 0.0
    %6582 = vmatprep.subr.mxu0 0.0
    %6583 = vmatpush1.msra.mxu0 0.0
    %6584 = vmatprep.subr.mxu0 0.0
    %6585 = vmatpush1.msra.mxu0 0.0
    %6586 = vmatprep.subr.mxu0 0.0
    %6587 = vmatpush1.msra.mxu0 0.0
    %6588 = vmatprep.subr.mxu0 0.0
    %6589 = vmatpush1.msra.mxu0 0.0
    %6590 = vmatprep.subr.mxu0 0.0
    %6591 = vmatpush1.msra.mxu0 0.0
    %6592 = vmatprep.subr.mxu0 0.0
    %6593 = vmatpush1.msra.mxu0 0.0
    %6594 = vmatprep.subr.mxu0 0.0
    %6595 = vmatpush1.msra.mxu0 0.0
    %6596 = vmatprep.subr.mxu0 0.0
    %6597 = vmatpush1.msra.mxu0 0.0
    %6598 = vmatprep.subr.mxu0 0.0
    %6599 = vmatpush1.msra.mxu0 0.0
    %6600 = vmatprep.subr.mxu0 0.0
    %6601 = vmatpush1.msra.mxu0 0.0
    %6602 = vmatprep.subr.mxu0 0.0
    %6603 = vmatpush1.msra.mxu0 0.0
    %6604 = vmatprep.subr.mxu0 0.0
    %6605 = vmatpush1.msra.mxu0 0.0
    %6606 = vmatprep.subr.mxu0 0.0
    %6607 = vmatpush1.msra.mxu0 0.0
    %6608 = vmatprep.subr.mxu0 0.0
    %6609 = vmatpush1.msra.mxu0 0.0
    %6610 = vmatprep.subr.mxu0 0.0
    %6611 = vmatpush1.msra.mxu0 0.0
    %6612 = vmatprep.mubr.f32.mxu0 0.0
    %6613 = vmatmul.mubr.f32.gmra.mrb[0].mxu0 %v6546
    %v6614 = vpop.f32.mrb[0].mxu0
    %v6615 = vadd.f32 %v973, %v6614
    %v6616 = vpop.f32.mrb[0].mxu0
    %6617 = vdwg.mxu0
    %v6618 = vxor.u32 %v6615, 2147483648
    %v6619 = vmul.f32 %v6618, 1.442695
    %v6620 = vpow.pop %v6619
    %v6621 = vadd.f32 %v6620, 1.0
    %v6622 = vrcp.pop %v6621
    %v6623 = vmul.f32 1.0, %v6622
    %v6624 = vtanh.pop %v6615
    %v6625 = vmul.f32 %v6623, %v6530
    %6627 = vrot.lane.b32.xlu0 %v6624, 96
    %v6628 = vpop.permute.xlu0 %6627
    %v6630 = vmul.f32 %v6623, %v6628
    %6632 = vrot.lane.b32.xlu0 %v6630, 16
    %v6633 = vpop.permute.xlu0 %6632
    %v6635 = vadd.f32 %v6625, %v6633
    %v6636 = vtanh.pop %v6635
    %6638 = vrot.lane.b32.xlu0 %v6636, 32
    %v6639 = vpop.permute.xlu0 %6638
    %v6641 = vmul.f32 %v6623, %v6639
    %6642 = vrot.lane.b32.xlu0 %v5909, 32
    %v6643 = vpop.permute.xlu0 %6642
    %6646 = vrot.lane.b32.xlu0 %v6641, 112
    %v6647 = vpop.permute.xlu0 %6646
    %v6649 = vsel %vm967, %v6643, %v6647
    %v6651 = vsel %vm133, %v6649, 0
    %6653 = vmatprep.subr.mxu0 0.0
    %6654 = vmatpush1.msra.mxu0 %v957
    %6655 = vmatprep.subr.mxu0 0.0
    %6656 = vmatpush1.msra.mxu0 %v958
    %6657 = vmatprep.subr.mxu0 0.0
    %6658 = vmatpush1.msra.mxu0 %v959
    %6659 = vmatprep.subr.mxu0 0.0
    %6660 = vmatpush1.msra.mxu0 %v960
    %6661 = vmatprep.subr.mxu0 0.0
    %6662 = vmatpush1.msra.mxu0 %v961
    %6663 = vmatprep.subr.mxu0 0.0
    %6664 = vmatpush1.msra.mxu0 %v962
    %6665 = vmatprep.subr.mxu0 0.0
    %6666 = vmatpush1.msra.mxu0 0.0
    %6667 = vmatprep.subr.mxu0 0.0
    %6668 = vmatpush1.msra.mxu0 0.0
    %6669 = vmatprep.subr.mxu0 0.0
    %6670 = vmatpush1.msra.mxu0 0.0
    %6671 = vmatprep.subr.mxu0 0.0
    %6672 = vmatpush1.msra.mxu0 0.0
    %6673 = vmatprep.subr.mxu0 0.0
    %6674 = vmatpush1.msra.mxu0 0.0
    %6675 = vmatprep.subr.mxu0 0.0
    %6676 = vmatpush1.msra.mxu0 0.0
    %6677 = vmatprep.subr.mxu0 0.0
    %6678 = vmatpush1.msra.mxu0 0.0
    %6679 = vmatprep.subr.mxu0 0.0
    %6680 = vmatpush1.msra.mxu0 0.0
    %6681 = vmatprep.subr.mxu0 0.0
    %6682 = vmatpush1.msra.mxu0 0.0
    %6683 = vmatprep.subr.mxu0 0.0
    %6684 = vmatpush1.msra.mxu0 0.0
    %6685 = vmatprep.subr.mxu0 0.0
    %6686 = vmatpush1.msra.mxu0 0.0
    %6687 = vmatprep.subr.mxu0 0.0
    %6688 = vmatpush1.msra.mxu0 0.0
    %6689 = vmatprep.subr.mxu0 0.0
    %6690 = vmatpush1.msra.mxu0 0.0
    %6691 = vmatprep.subr.mxu0 0.0
    %6692 = vmatpush1.msra.mxu0 0.0
    %6693 = vmatprep.subr.mxu0 0.0
    %6694 = vmatpush1.msra.mxu0 0.0
    %6695 = vmatprep.subr.mxu0 0.0
    %6696 = vmatpush1.msra.mxu0 0.0
    %6697 = vmatprep.subr.mxu0 0.0
    %6698 = vmatpush1.msra.mxu0 0.0
    %6699 = vmatprep.subr.mxu0 0.0
    %6700 = vmatpush1.msra.mxu0 0.0
    %6701 = vmatprep.subr.mxu0 0.0
    %6702 = vmatpush1.msra.mxu0 0.0
    %6703 = vmatprep.subr.mxu0 0.0
    %6704 = vmatpush1.msra.mxu0 0.0
    %6705 = vmatprep.subr.mxu0 0.0
    %6706 = vmatpush1.msra.mxu0 0.0
    %6707 = vmatprep.subr.mxu0 0.0
    %6708 = vmatpush1.msra.mxu0 0.0
    %6709 = vmatprep.subr.mxu0 0.0
    %6710 = vmatpush1.msra.mxu0 0.0
    %6711 = vmatprep.subr.mxu0 0.0
    %6712 = vmatpush1.msra.mxu0 0.0
    %6713 = vmatprep.subr.mxu0 0.0
    %6714 = vmatpush1.msra.mxu0 0.0
    %6715 = vmatprep.subr.mxu0 0.0
    %6716 = vmatpush1.msra.mxu0 0.0
    %6717 = vmatprep.mubr.f32.mxu0 0.0
    %6718 = vmatmul.mubr.f32.gmra.mrb[0].mxu0 %v6651
    %v6719 = vpop.f32.mrb[0].mxu0
    %v6720 = vadd.f32 %v973, %v6719
    %v6721 = vpop.f32.mrb[0].mxu0
    %6722 = vdwg.mxu0
    %v6723 = vxor.u32 %v6720, 2147483648
    %v6724 = vmul.f32 %v6723, 1.442695
    %v6725 = vpow.pop %v6724
    %v6726 = vadd.f32 %v6725, 1.0
    %v6727 = vrcp.pop %v6726
    %v6728 = vmul.f32 1.0, %v6727
    %v6729 = vtanh.pop %v6720
    %v6730 = vmul.f32 %v6728, %v6635
    %6732 = vrot.lane.b32.xlu0 %v6729, 96
    %v6733 = vpop.permute.xlu0 %6732
    %v6735 = vmul.f32 %v6728, %v6733
    %6737 = vrot.lane.b32.xlu0 %v6735, 16
    %v6738 = vpop.permute.xlu0 %6737
    %v6740 = vadd.f32 %v6730, %v6738
    %v6741 = vtanh.pop %v6740
    %6743 = vrot.lane.b32.xlu0 %v6741, 32
    %v6744 = vpop.permute.xlu0 %6743
    %v6746 = vmul.f32 %v6728, %v6744
    %6748 = vrot.lane.b32.xlu0 %v6015, 32
    %v6749 = vpop.permute.xlu0 %6748
    %6752 = vrot.lane.b32.xlu0 %v6746, 112
    %v6753 = vpop.permute.xlu0 %6752
    %v6755 = vsel %vm967, %v6749, %v6753
    %v6757 = vsel %vm133, %v6755, 0
    %6759 = vmatprep.subr.mxu0 0.0
    %6760 = vmatpush1.msra.mxu0 %v957
    %6761 = vmatprep.subr.mxu0 0.0
    %6762 = vmatpush1.msra.mxu0 %v958
    %6763 = vmatprep.subr.mxu0 0.0
    %6764 = vmatpush1.msra.mxu0 %v959
    %6765 = vmatprep.subr.mxu0 0.0
    %6766 = vmatpush1.msra.mxu0 %v960
    %6767 = vmatprep.subr.mxu0 0.0
    %6768 = vmatpush1.msra.mxu0 %v961
    %6769 = vmatprep.subr.mxu0 0.0
    %6770 = vmatpush1.msra.mxu0 %v962
    %6771 = vmatprep.subr.mxu0 0.0
    %6772 = vmatpush1.msra.mxu0 0.0
    %6773 = vmatprep.subr.mxu0 0.0
    %6774 = vmatpush1.msra.mxu0 0.0
    %6775 = vmatprep.subr.mxu0 0.0
    %6776 = vmatpush1.msra.mxu0 0.0
    %6777 = vmatprep.subr.mxu0 0.0
    %6778 = vmatpush1.msra.mxu0 0.0
    %6779 = vmatprep.subr.mxu0 0.0
    %6780 = vmatpush1.msra.mxu0 0.0
    %6781 = vmatprep.subr.mxu0 0.0
    %6782 = vmatpush1.msra.mxu0 0.0
    %6783 = vmatprep.subr.mxu0 0.0
    %6784 = vmatpush1.msra.mxu0 0.0
    %6785 = vmatprep.subr.mxu0 0.0
    %6786 = vmatpush1.msra.mxu0 0.0
    %6787 = vmatprep.subr.mxu0 0.0
    %6788 = vmatpush1.msra.mxu0 0.0
    %6789 = vmatprep.subr.mxu0 0.0
    %6790 = vmatpush1.msra.mxu0 0.0
    %6791 = vmatprep.subr.mxu0 0.0
    %6792 = vmatpush1.msra.mxu0 0.0
    %6793 = vmatprep.subr.mxu0 0.0
    %6794 = vmatpush1.msra.mxu0 0.0
    %6795 = vmatprep.subr.mxu0 0.0
    %6796 = vmatpush1.msra.mxu0 0.0
    %6797 = vmatprep.subr.mxu0 0.0
    %6798 = vmatpush1.msra.mxu0 0.0
    %6799 = vmatprep.subr.mxu0 0.0
    %6800 = vmatpush1.msra.mxu0 0.0
    %6801 = vmatprep.subr.mxu0 0.0
    %6802 = vmatpush1.msra.mxu0 0.0
    %6803 = vmatprep.subr.mxu0 0.0
    %6804 = vmatpush1.msra.mxu0 0.0
    %6805 = vmatprep.subr.mxu0 0.0
    %6806 = vmatpush1.msra.mxu0 0.0
    %6807 = vmatprep.subr.mxu0 0.0
    %6808 = vmatpush1.msra.mxu0 0.0
    %6809 = vmatprep.subr.mxu0 0.0
    %6810 = vmatpush1.msra.mxu0 0.0
    %6811 = vmatprep.subr.mxu0 0.0
    %6812 = vmatpush1.msra.mxu0 0.0
    %6813 = vmatprep.subr.mxu0 0.0
    %6814 = vmatpush1.msra.mxu0 0.0
    %6815 = vmatprep.subr.mxu0 0.0
    %6816 = vmatpush1.msra.mxu0 0.0
    %6817 = vmatprep.subr.mxu0 0.0
    %6818 = vmatpush1.msra.mxu0 0.0
    %6819 = vmatprep.subr.mxu0 0.0
    %6820 = vmatpush1.msra.mxu0 0.0
    %6821 = vmatprep.subr.mxu0 0.0
    %6822 = vmatpush1.msra.mxu0 0.0
    %6823 = vmatprep.mubr.f32.mxu0 0.0
    %6824 = vmatmul.mubr.f32.gmra.mrb[0].mxu0 %v6757
    %v6825 = vpop.f32.mrb[0].mxu0
    %v6826 = vadd.f32 %v973, %v6825
    %v6827 = vpop.f32.mrb[0].mxu0
    %6828 = vdwg.mxu0
    %v6829 = vxor.u32 %v6826, 2147483648
    %v6830 = vmul.f32 %v6829, 1.442695
    %v6831 = vpow.pop %v6830
    %v6832 = vadd.f32 %v6831, 1.0
    %v6833 = vrcp.pop %v6832
    %v6834 = vmul.f32 1.0, %v6833
    %v6835 = vtanh.pop %v6826
    %v6836 = vmul.f32 %v6834, %v6740
    %6838 = vrot.lane.b32.xlu0 %v6835, 96
    %v6839 = vpop.permute.xlu0 %6838
    %v6841 = vmul.f32 %v6834, %v6839
    %6843 = vrot.lane.b32.xlu0 %v6841, 16
    %v6844 = vpop.permute.xlu0 %6843
    %v6846 = vadd.f32 %v6836, %v6844
    %v6847 = vtanh.pop %v6846
    %6849 = vrot.lane.b32.xlu0 %v6847, 32
    %v6850 = vpop.permute.xlu0 %6849
    %v6852 = vmul.f32 %v6834, %v6850
    %6853 = vrot.lane.b32.xlu0 %v6116, 80
    %v6854 = vpop.permute.xlu0 %6853
    %v6856 = vsel %vm125, %v6854, 0.0
    %v6858 = vsel %vm133, %v6856, 0
    %6860 = vmatprep.subr.mxu0 0.0
    %6861 = vmatpush1.msra.mxu0 %v3508
    %6862 = vmatprep.subr.mxu0 0.0
    %6863 = vmatpush1.msra.mxu0 %v3509
    %6864 = vmatprep.subr.mxu0 0.0
    %6865 = vmatpush1.msra.mxu0 %v3510
    %6866 = vmatprep.subr.mxu0 0.0
    %6867 = vmatpush1.msra.mxu0 %v3511
    %6868 = vmatprep.subr.mxu0 0.0
    %6869 = vmatpush1.msra.mxu0 %v3512
    %6870 = vmatprep.subr.mxu0 0.0
    %6871 = vmatpush1.msra.mxu0 %v3513
    %6872 = vmatprep.subr.mxu0 0.0
    %6873 = vmatpush1.msra.mxu0 0.0
    %6874 = vmatprep.subr.mxu0 0.0
    %6875 = vmatpush1.msra.mxu0 0.0
    %6876 = vmatprep.subr.mxu0 0.0
    %6877 = vmatpush1.msra.mxu0 0.0
    %6878 = vmatprep.subr.mxu0 0.0
    %6879 = vmatpush1.msra.mxu0 0.0
    %6880 = vmatprep.subr.mxu0 0.0
    %6881 = vmatpush1.msra.mxu0 0.0
    %6882 = vmatprep.subr.mxu0 0.0
    %6883 = vmatpush1.msra.mxu0 0.0
    %6884 = vmatprep.subr.mxu0 0.0
    %6885 = vmatpush1.msra.mxu0 0.0
    %6886 = vmatprep.subr.mxu0 0.0
    %6887 = vmatpush1.msra.mxu0 0.0
    %6888 = vmatprep.subr.mxu0 0.0
    %6889 = vmatpush1.msra.mxu0 0.0
    %6890 = vmatprep.subr.mxu0 0.0
    %6891 = vmatpush1.msra.mxu0 0.0
    %6892 = vmatprep.subr.mxu0 0.0
    %6893 = vmatpush1.msra.mxu0 0.0
    %6894 = vmatprep.subr.mxu0 0.0
    %6895 = vmatpush1.msra.mxu0 0.0
    %6896 = vmatprep.subr.mxu0 0.0
    %6897 = vmatpush1.msra.mxu0 0.0
    %6898 = vmatprep.subr.mxu0 0.0
    %6899 = vmatpush1.msra.mxu0 0.0
    %6900 = vmatprep.subr.mxu0 0.0
    %6901 = vmatpush1.msra.mxu0 0.0
    %6902 = vmatprep.subr.mxu0 0.0
    %6903 = vmatpush1.msra.mxu0 0.0
    %6904 = vmatprep.subr.mxu0 0.0
    %6905 = vmatpush1.msra.mxu0 0.0
    %6906 = vmatprep.subr.mxu0 0.0
    %6907 = vmatpush1.msra.mxu0 0.0
    %6908 = vmatprep.subr.mxu0 0.0
    %6909 = vmatpush1.msra.mxu0 0.0
    %6910 = vmatprep.subr.mxu0 0.0
    %6911 = vmatpush1.msra.mxu0 0.0
    %6912 = vmatprep.subr.mxu0 0.0
    %6913 = vmatpush1.msra.mxu0 0.0
    %6914 = vmatprep.subr.mxu0 0.0
    %6915 = vmatpush1.msra.mxu0 0.0
    %6916 = vmatprep.subr.mxu0 0.0
    %6917 = vmatpush1.msra.mxu0 0.0
    %6918 = vmatprep.subr.mxu0 0.0
    %6919 = vmatpush1.msra.mxu0 0.0
    %6920 = vmatprep.subr.mxu0 0.0
    %6921 = vmatpush1.msra.mxu0 0.0
    %6922 = vmatprep.subr.mxu0 0.0
    %6923 = vmatpush1.msra.mxu0 0.0
    %6924 = vmatprep.mubr.f32.mxu0 0.0
    %6925 = vmatmul.mubr.f32.gmra.mrb[0].mxu0 %v6858
    %v6926 = vpop.f32.mrb[0].mxu0
    %v6927 = vadd.f32 %v3519, %v6926
    %v6928 = vpop.f32.mrb[0].mxu0
    %6929 = vdwg.mxu0
    %v6930 = vxor.u32 %v6927, 2147483648
    %v6931 = vmul.f32 %v6930, 1.442695
    %v6932 = vpow.pop %v6931
    %v6933 = vadd.f32 %v6932, 1.0
    %v6934 = vrcp.pop %v6933
    %v6935 = vmul.f32 1.0, %v6934
    %v6936 = vtanh.pop %v6927
    %v6937 = vmul.f32 %v6935, 0.0
    %6939 = vrot.lane.b32.xlu0 %v6936, 64
    %v6940 = vpop.permute.xlu0 %6939
    %v6942 = vmul.f32 %v6935, %v6940
    %6944 = vrot.lane.b32.xlu0 %v6942, 32
    %v6945 = vpop.permute.xlu0 %6944
    %v6947 = vadd.f32 %v6937, %v6945
    %v6948 = vtanh.pop %v6947
    %6950 = vrot.lane.b32.xlu0 %v6948, 64
    %v6951 = vpop.permute.xlu0 %6950
    %v6953 = vmul.f32 %v6935, %v6951
    %6954 = vrot.lane.b32.xlu0 %v6221, 80
    %v6955 = vpop.permute.xlu0 %6954
    %6958 = vrot.lane.b32.xlu0 %v6953, 48
    %v6959 = vpop.permute.xlu0 %6958
    %v6961 = vsel %vm125, %v6955, %v6959
    %v6963 = vsel %vm133, %v6961, 0
    %6965 = vmatprep.subr.mxu0 0.0
    %6966 = vmatpush1.msra.mxu0 %v3508
    %6967 = vmatprep.subr.mxu0 0.0
    %6968 = vmatpush1.msra.mxu0 %v3509
    %6969 = vmatprep.subr.mxu0 0.0
    %6970 = vmatpush1.msra.mxu0 %v3510
    %6971 = vmatprep.subr.mxu0 0.0
    %6972 = vmatpush1.msra.mxu0 %v3511
    %6973 = vmatprep.subr.mxu0 0.0
    %6974 = vmatpush1.msra.mxu0 %v3512
    %6975 = vmatprep.subr.mxu0 0.0
    %6976 = vmatpush1.msra.mxu0 %v3513
    %6977 = vmatprep.subr.mxu0 0.0
    %6978 = vmatpush1.msra.mxu0 0.0
    %6979 = vmatprep.subr.mxu0 0.0
    %6980 = vmatpush1.msra.mxu0 0.0
    %6981 = vmatprep.subr.mxu0 0.0
    %6982 = vmatpush1.msra.mxu0 0.0
    %6983 = vmatprep.subr.mxu0 0.0
    %6984 = vmatpush1.msra.mxu0 0.0
    %6985 = vmatprep.subr.mxu0 0.0
    %6986 = vmatpush1.msra.mxu0 0.0
    %6987 = vmatprep.subr.mxu0 0.0
    %6988 = vmatpush1.msra.mxu0 0.0
    %6989 = vmatprep.subr.mxu0 0.0
    %6990 = vmatpush1.msra.mxu0 0.0
    %6991 = vmatprep.subr.mxu0 0.0
    %6992 = vmatpush1.msra.mxu0 0.0
    %6993 = vmatprep.subr.mxu0 0.0
    %6994 = vmatpush1.msra.mxu0 0.0
    %6995 = vmatprep.subr.mxu0 0.0
    %6996 = vmatpush1.msra.mxu0 0.0
    %6997 = vmatprep.subr.mxu0 0.0
    %6998 = vmatpush1.msra.mxu0 0.0
    %6999 = vmatprep.subr.mxu0 0.0
    %7000 = vmatpush1.msra.mxu0 0.0
    %7001 = vmatprep.subr.mxu0 0.0
    %7002 = vmatpush1.msra.mxu0 0.0
    %7003 = vmatprep.subr.mxu0 0.0
    %7004 = vmatpush1.msra.mxu0 0.0
    %7005 = vmatprep.subr.mxu0 0.0
    %7006 = vmatpush1.msra.mxu0 0.0
    %7007 = vmatprep.subr.mxu0 0.0
    %7008 = vmatpush1.msra.mxu0 0.0
    %7009 = vmatprep.subr.mxu0 0.0
    %7010 = vmatpush1.msra.mxu0 0.0
    %7011 = vmatprep.subr.mxu0 0.0
    %7012 = vmatpush1.msra.mxu0 0.0
    %7013 = vmatprep.subr.mxu0 0.0
    %7014 = vmatpush1.msra.mxu0 0.0
    %7015 = vmatprep.subr.mxu0 0.0
    %7016 = vmatpush1.msra.mxu0 0.0
    %7017 = vmatprep.subr.mxu0 0.0
    %7018 = vmatpush1.msra.mxu0 0.0
    %7019 = vmatprep.subr.mxu0 0.0
    %7020 = vmatpush1.msra.mxu0 0.0
    %7021 = vmatprep.subr.mxu0 0.0
    %7022 = vmatpush1.msra.mxu0 0.0
    %7023 = vmatprep.subr.mxu0 0.0
    %7024 = vmatpush1.msra.mxu0 0.0
    %7025 = vmatprep.subr.mxu0 0.0
    %7026 = vmatpush1.msra.mxu0 0.0
    %7027 = vmatprep.subr.mxu0 0.0
    %7028 = vmatpush1.msra.mxu0 0.0
    %7029 = vmatprep.mubr.f32.mxu0 0.0
    %7030 = vmatmul.mubr.f32.gmra.mrb[0].mxu0 %v6963
    %v7031 = vpop.f32.mrb[0].mxu0
    %v7032 = vadd.f32 %v3519, %v7031
    %v7033 = vpop.f32.mrb[0].mxu0
    %7034 = vdwg.mxu0
    %v7035 = vxor.u32 %v7032, 2147483648
    %v7036 = vmul.f32 %v7035, 1.442695
    %v7037 = vpow.pop %v7036
    %v7038 = vadd.f32 %v7037, 1.0
    %v7039 = vrcp.pop %v7038
    %v7040 = vmul.f32 1.0, %v7039
    %v7041 = vtanh.pop %v7032
    %v7042 = vmul.f32 %v7040, %v6947
    %7044 = vrot.lane.b32.xlu0 %v7041, 64
    %v7045 = vpop.permute.xlu0 %7044
    %v7047 = vmul.f32 %v7040, %v7045
    %7049 = vrot.lane.b32.xlu0 %v7047, 32
    %v7050 = vpop.permute.xlu0 %7049
    %v7052 = vadd.f32 %v7042, %v7050
    %v7053 = vtanh.pop %v7052
    %7055 = vrot.lane.b32.xlu0 %v7053, 64
    %v7056 = vpop.permute.xlu0 %7055
    %v7058 = vmul.f32 %v7040, %v7056
    %7059 = vrot.lane.b32.xlu0 %v6326, 80
    %v7060 = vpop.permute.xlu0 %7059
    %7063 = vrot.lane.b32.xlu0 %v7058, 48
    %v7064 = vpop.permute.xlu0 %7063
    %v7066 = vsel %vm125, %v7060, %v7064
    %v7068 = vsel %vm133, %v7066, 0
    %7070 = vmatprep.subr.mxu0 0.0
    %7071 = vmatpush1.msra.mxu0 %v3508
    %7072 = vmatprep.subr.mxu0 0.0
    %7073 = vmatpush1.msra.mxu0 %v3509
    %7074 = vmatprep.subr.mxu0 0.0
    %7075 = vmatpush1.msra.mxu0 %v3510
    %7076 = vmatprep.subr.mxu0 0.0
    %7077 = vmatpush1.msra.mxu0 %v3511
    %7078 = vmatprep.subr.mxu0 0.0
    %7079 = vmatpush1.msra.mxu0 %v3512
    %7080 = vmatprep.subr.mxu0 0.0
    %7081 = vmatpush1.msra.mxu0 %v3513
    %7082 = vmatprep.subr.mxu0 0.0
    %7083 = vmatpush1.msra.mxu0 0.0
    %7084 = vmatprep.subr.mxu0 0.0
    %7085 = vmatpush1.msra.mxu0 0.0
    %7086 = vmatprep.subr.mxu0 0.0
    %7087 = vmatpush1.msra.mxu0 0.0
    %7088 = vmatprep.subr.mxu0 0.0
    %7089 = vmatpush1.msra.mxu0 0.0
    %7090 = vmatprep.subr.mxu0 0.0
    %7091 = vmatpush1.msra.mxu0 0.0
    %7092 = vmatprep.subr.mxu0 0.0
    %7093 = vmatpush1.msra.mxu0 0.0
    %7094 = vmatprep.subr.mxu0 0.0
    %7095 = vmatpush1.msra.mxu0 0.0
    %7096 = vmatprep.subr.mxu0 0.0
    %7097 = vmatpush1.msra.mxu0 0.0
    %7098 = vmatprep.subr.mxu0 0.0
    %7099 = vmatpush1.msra.mxu0 0.0
    %7100 = vmatprep.subr.mxu0 0.0
    %7101 = vmatpush1.msra.mxu0 0.0
    %7102 = vmatprep.subr.mxu0 0.0
    %7103 = vmatpush1.msra.mxu0 0.0
    %7104 = vmatprep.subr.mxu0 0.0
    %7105 = vmatpush1.msra.mxu0 0.0
    %7106 = vmatprep.subr.mxu0 0.0
    %7107 = vmatpush1.msra.mxu0 0.0
    %7108 = vmatprep.subr.mxu0 0.0
    %7109 = vmatpush1.msra.mxu0 0.0
    %7110 = vmatprep.subr.mxu0 0.0
    %7111 = vmatpush1.msra.mxu0 0.0
    %7112 = vmatprep.subr.mxu0 0.0
    %7113 = vmatpush1.msra.mxu0 0.0
    %7114 = vmatprep.subr.mxu0 0.0
    %7115 = vmatpush1.msra.mxu0 0.0
    %7116 = vmatprep.subr.mxu0 0.0
    %7117 = vmatpush1.msra.mxu0 0.0
    %7118 = vmatprep.subr.mxu0 0.0
    %7119 = vmatpush1.msra.mxu0 0.0
    %7120 = vmatprep.subr.mxu0 0.0
    %7121 = vmatpush1.msra.mxu0 0.0
    %7122 = vmatprep.subr.mxu0 0.0
    %7123 = vmatpush1.msra.mxu0 0.0
    %7124 = vmatprep.subr.mxu0 0.0
    %7125 = vmatpush1.msra.mxu0 0.0
    %7126 = vmatprep.subr.mxu0 0.0
    %7127 = vmatpush1.msra.mxu0 0.0
    %7128 = vmatprep.subr.mxu0 0.0
    %7129 = vmatpush1.msra.mxu0 0.0
    %7130 = vmatprep.subr.mxu0 0.0
    %7131 = vmatpush1.msra.mxu0 0.0
    %7132 = vmatprep.subr.mxu0 0.0
    %7133 = vmatpush1.msra.mxu0 0.0
    %7134 = vmatprep.mubr.f32.mxu0 0.0
    %7135 = vmatmul.mubr.f32.gmra.mrb[0].mxu0 %v7068
    %v7136 = vpop.f32.mrb[0].mxu0
    %v7137 = vadd.f32 %v3519, %v7136
    %v7138 = vpop.f32.mrb[0].mxu0
    %7139 = vdwg.mxu0
    %v7140 = vxor.u32 %v7137, 2147483648
    %v7141 = vmul.f32 %v7140, 1.442695
    %v7142 = vpow.pop %v7141
    %v7143 = vadd.f32 %v7142, 1.0
    %v7144 = vrcp.pop %v7143
    %v7145 = vmul.f32 1.0, %v7144
    %v7146 = vtanh.pop %v7137
    %v7147 = vmul.f32 %v7145, %v7052
    %7149 = vrot.lane.b32.xlu0 %v7146, 64
    %v7150 = vpop.permute.xlu0 %7149
    %v7152 = vmul.f32 %v7145, %v7150
    %7154 = vrot.lane.b32.xlu0 %v7152, 32
    %v7155 = vpop.permute.xlu0 %7154
    %v7157 = vadd.f32 %v7147, %v7155
    %v7158 = vtanh.pop %v7157
    %7160 = vrot.lane.b32.xlu0 %v7158, 64
    %v7161 = vpop.permute.xlu0 %7160
    %v7163 = vmul.f32 %v7145, %v7161
    %7164 = vrot.lane.b32.xlu0 %v6431, 80
    %v7165 = vpop.permute.xlu0 %7164
    %7168 = vrot.lane.b32.xlu0 %v7163, 48
    %v7169 = vpop.permute.xlu0 %7168
    %v7171 = vsel %vm125, %v7165, %v7169
    %v7173 = vsel %vm133, %v7171, 0
    %7175 = vmatprep.subr.mxu0 0.0
    %7176 = vmatpush1.msra.mxu0 %v3508
    %7177 = vmatprep.subr.mxu0 0.0
    %7178 = vmatpush1.msra.mxu0 %v3509
    %7179 = vmatprep.subr.mxu0 0.0
    %7180 = vmatpush1.msra.mxu0 %v3510
    %7181 = vmatprep.subr.mxu0 0.0
    %7182 = vmatpush1.msra.mxu0 %v3511
    %7183 = vmatprep.subr.mxu0 0.0
    %7184 = vmatpush1.msra.mxu0 %v3512
    %7185 = vmatprep.subr.mxu0 0.0
    %7186 = vmatpush1.msra.mxu0 %v3513
    %7187 = vmatprep.subr.mxu0 0.0
    %7188 = vmatpush1.msra.mxu0 0.0
    %7189 = vmatprep.subr.mxu0 0.0
    %7190 = vmatpush1.msra.mxu0 0.0
    %7191 = vmatprep.subr.mxu0 0.0
    %7192 = vmatpush1.msra.mxu0 0.0
    %7193 = vmatprep.subr.mxu0 0.0
    %7194 = vmatpush1.msra.mxu0 0.0
    %7195 = vmatprep.subr.mxu0 0.0
    %7196 = vmatpush1.msra.mxu0 0.0
    %7197 = vmatprep.subr.mxu0 0.0
    %7198 = vmatpush1.msra.mxu0 0.0
    %7199 = vmatprep.subr.mxu0 0.0
    %7200 = vmatpush1.msra.mxu0 0.0
    %7201 = vmatprep.subr.mxu0 0.0
    %7202 = vmatpush1.msra.mxu0 0.0
    %7203 = vmatprep.subr.mxu0 0.0
    %7204 = vmatpush1.msra.mxu0 0.0
    %7205 = vmatprep.subr.mxu0 0.0
    %7206 = vmatpush1.msra.mxu0 0.0
    %7207 = vmatprep.subr.mxu0 0.0
    %7208 = vmatpush1.msra.mxu0 0.0
    %7209 = vmatprep.subr.mxu0 0.0
    %7210 = vmatpush1.msra.mxu0 0.0
    %7211 = vmatprep.subr.mxu0 0.0
    %7212 = vmatpush1.msra.mxu0 0.0
    %7213 = vmatprep.subr.mxu0 0.0
    %7214 = vmatpush1.msra.mxu0 0.0
    %7215 = vmatprep.subr.mxu0 0.0
    %7216 = vmatpush1.msra.mxu0 0.0
    %7217 = vmatprep.subr.mxu0 0.0
    %7218 = vmatpush1.msra.mxu0 0.0
    %7219 = vmatprep.subr.mxu0 0.0
    %7220 = vmatpush1.msra.mxu0 0.0
    %7221 = vmatprep.subr.mxu0 0.0
    %7222 = vmatpush1.msra.mxu0 0.0
    %7223 = vmatprep.subr.mxu0 0.0
    %7224 = vmatpush1.msra.mxu0 0.0
    %7225 = vmatprep.subr.mxu0 0.0
    %7226 = vmatpush1.msra.mxu0 0.0
    %7227 = vmatprep.subr.mxu0 0.0
    %7228 = vmatpush1.msra.mxu0 0.0
    %7229 = vmatprep.subr.mxu0 0.0
    %7230 = vmatpush1.msra.mxu0 0.0
    %7231 = vmatprep.subr.mxu0 0.0
    %7232 = vmatpush1.msra.mxu0 0.0
    %7233 = vmatprep.subr.mxu0 0.0
    %7234 = vmatpush1.msra.mxu0 0.0
    %7235 = vmatprep.subr.mxu0 0.0
    %7236 = vmatpush1.msra.mxu0 0.0
    %7237 = vmatprep.subr.mxu0 0.0
    %7238 = vmatpush1.msra.mxu0 0.0
    %7239 = vmatprep.mubr.f32.mxu0 0.0
    %7240 = vmatmul.mubr.f32.gmra.mrb[0].mxu0 %v7173
    %v7241 = vpop.f32.mrb[0].mxu0
    %v7242 = vadd.f32 %v3519, %v7241
    %v7243 = vpop.f32.mrb[0].mxu0
    %7244 = vdwg.mxu0
    %v7245 = vxor.u32 %v7242, 2147483648
    %v7246 = vmul.f32 %v7245, 1.442695
    %v7247 = vpow.pop %v7246
    %v7248 = vadd.f32 %v7247, 1.0
    %v7249 = vrcp.pop %v7248
    %v7250 = vmul.f32 1.0, %v7249
    %v7251 = vtanh.pop %v7242
    %v7252 = vmul.f32 %v7250, %v7157
    %7254 = vrot.lane.b32.xlu0 %v7251, 64
    %v7255 = vpop.permute.xlu0 %7254
    %v7257 = vmul.f32 %v7250, %v7255
    %7259 = vrot.lane.b32.xlu0 %v7257, 32
    %v7260 = vpop.permute.xlu0 %7259
    %v7262 = vadd.f32 %v7252, %v7260
    %v7263 = vtanh.pop %v7262
    %7265 = vrot.lane.b32.xlu0 %v7263, 64
    %v7266 = vpop.permute.xlu0 %7265
    %v7268 = vmul.f32 %v7250, %v7266
    %7269 = vrot.lane.b32.xlu0 %v6536, 80
    %v7270 = vpop.permute.xlu0 %7269
    %7273 = vrot.lane.b32.xlu0 %v7268, 48
    %v7274 = vpop.permute.xlu0 %7273
    %v7276 = vsel %vm125, %v7270, %v7274
    %v7278 = vsel %vm133, %v7276, 0
    %7280 = vmatprep.subr.mxu0 0.0
    %7281 = vmatpush1.msra.mxu0 %v3508
    %7282 = vmatprep.subr.mxu0 0.0
    %7283 = vmatpush1.msra.mxu0 %v3509
    %7284 = vmatprep.subr.mxu0 0.0
    %7285 = vmatpush1.msra.mxu0 %v3510
    %7286 = vmatprep.subr.mxu0 0.0
    %7287 = vmatpush1.msra.mxu0 %v3511
    %7288 = vmatprep.subr.mxu0 0.0
    %7289 = vmatpush1.msra.mxu0 %v3512
    %7290 = vmatprep.subr.mxu0 0.0
    %7291 = vmatpush1.msra.mxu0 %v3513
    %7292 = vmatprep.subr.mxu0 0.0
    %7293 = vmatpush1.msra.mxu0 0.0
    %7294 = vmatprep.subr.mxu0 0.0
    %7295 = vmatpush1.msra.mxu0 0.0
    %7296 = vmatprep.subr.mxu0 0.0
    %7297 = vmatpush1.msra.mxu0 0.0
    %7298 = vmatprep.subr.mxu0 0.0
    %7299 = vmatpush1.msra.mxu0 0.0
    %7300 = vmatprep.subr.mxu0 0.0
    %7301 = vmatpush1.msra.mxu0 0.0
    %7302 = vmatprep.subr.mxu0 0.0
    %7303 = vmatpush1.msra.mxu0 0.0
    %7304 = vmatprep.subr.mxu0 0.0
    %7305 = vmatpush1.msra.mxu0 0.0
    %7306 = vmatprep.subr.mxu0 0.0
    %7307 = vmatpush1.msra.mxu0 0.0
    %7308 = vmatprep.subr.mxu0 0.0
    %7309 = vmatpush1.msra.mxu0 0.0
    %7310 = vmatprep.subr.mxu0 0.0
    %7311 = vmatpush1.msra.mxu0 0.0
    %7312 = vmatprep.subr.mxu0 0.0
    %7313 = vmatpush1.msra.mxu0 0.0
    %7314 = vmatprep.subr.mxu0 0.0
    %7315 = vmatpush1.msra.mxu0 0.0
    %7316 = vmatprep.subr.mxu0 0.0
    %7317 = vmatpush1.msra.mxu0 0.0
    %7318 = vmatprep.subr.mxu0 0.0
    %7319 = vmatpush1.msra.mxu0 0.0
    %7320 = vmatprep.subr.mxu0 0.0
    %7321 = vmatpush1.msra.mxu0 0.0
    %7322 = vmatprep.subr.mxu0 0.0
    %7323 = vmatpush1.msra.mxu0 0.0
    %7324 = vmatprep.subr.mxu0 0.0
    %7325 = vmatpush1.msra.mxu0 0.0
    %7326 = vmatprep.subr.mxu0 0.0
    %7327 = vmatpush1.msra.mxu0 0.0
    %7328 = vmatprep.subr.mxu0 0.0
    %7329 = vmatpush1.msra.mxu0 0.0
    %7330 = vmatprep.subr.mxu0 0.0
    %7331 = vmatpush1.msra.mxu0 0.0
    %7332 = vmatprep.subr.mxu0 0.0
    %7333 = vmatpush1.msra.mxu0 0.0
    %7334 = vmatprep.subr.mxu0 0.0
    %7335 = vmatpush1.msra.mxu0 0.0
    %7336 = vmatprep.subr.mxu0 0.0
    %7337 = vmatpush1.msra.mxu0 0.0
    %7338 = vmatprep.subr.mxu0 0.0
    %7339 = vmatpush1.msra.mxu0 0.0
    %7340 = vmatprep.subr.mxu0 0.0
    %7341 = vmatpush1.msra.mxu0 0.0
    %7342 = vmatprep.subr.mxu0 0.0
    %7343 = vmatpush1.msra.mxu0 0.0
    %7344 = vmatprep.mubr.f32.mxu0 0.0
    %7345 = vmatmul.mubr.f32.gmra.mrb[0].mxu0 %v7278
    %v7346 = vpop.f32.mrb[0].mxu0
    %v7347 = vadd.f32 %v3519, %v7346
    %v7348 = vpop.f32.mrb[0].mxu0
    %7349 = vdwg.mxu0
    %v7350 = vxor.u32 %v7347, 2147483648
    %v7351 = vmul.f32 %v7350, 1.442695
    %v7352 = vpow.pop %v7351
    %v7353 = vadd.f32 %v7352, 1.0
    %v7354 = vrcp.pop %v7353
    %v7355 = vmul.f32 1.0, %v7354
    %v7356 = vtanh.pop %v7347
    %v7357 = vmul.f32 %v7355, %v7262
    %7359 = vrot.lane.b32.xlu0 %v7356, 64
    %v7360 = vpop.permute.xlu0 %7359
    %v7362 = vmul.f32 %v7355, %v7360
    %7364 = vrot.lane.b32.xlu0 %v7362, 32
    %v7365 = vpop.permute.xlu0 %7364
    %v7367 = vadd.f32 %v7357, %v7365
    %v7368 = vtanh.pop %v7367
    %7370 = vrot.lane.b32.xlu0 %v7368, 64
    %v7371 = vpop.permute.xlu0 %7370
    %v7373 = vmul.f32 %v7355, %v7371
    %7374 = vrot.lane.b32.xlu0 %v6641, 80
    %v7375 = vpop.permute.xlu0 %7374
    %7378 = vrot.lane.b32.xlu0 %v7373, 48
    %v7379 = vpop.permute.xlu0 %7378
    %v7381 = vsel %vm125, %v7375, %v7379
    %v7383 = vsel %vm133, %v7381, 0
    %7385 = vmatprep.subr.mxu0 0.0
    %7386 = vmatpush1.msra.mxu0 %v3508
    %7387 = vmatprep.subr.mxu0 0.0
    %7388 = vmatpush1.msra.mxu0 %v3509
    %7389 = vmatprep.subr.mxu0 0.0
    %7390 = vmatpush1.msra.mxu0 %v3510
    %7391 = vmatprep.subr.mxu0 0.0
    %7392 = vmatpush1.msra.mxu0 %v3511
    %7393 = vmatprep.subr.mxu0 0.0
    %7394 = vmatpush1.msra.mxu0 %v3512
    %7395 = vmatprep.subr.mxu0 0.0
    %7396 = vmatpush1.msra.mxu0 %v3513
    %7397 = vmatprep.subr.mxu0 0.0
    %7398 = vmatpush1.msra.mxu0 0.0
    %7399 = vmatprep.subr.mxu0 0.0
    %7400 = vmatpush1.msra.mxu0 0.0
    %7401 = vmatprep.subr.mxu0 0.0
    %7402 = vmatpush1.msra.mxu0 0.0
    %7403 = vmatprep.subr.mxu0 0.0
    %7404 = vmatpush1.msra.mxu0 0.0
    %7405 = vmatprep.subr.mxu0 0.0
    %7406 = vmatpush1.msra.mxu0 0.0
    %7407 = vmatprep.subr.mxu0 0.0
    %7408 = vmatpush1.msra.mxu0 0.0
    %7409 = vmatprep.subr.mxu0 0.0
    %7410 = vmatpush1.msra.mxu0 0.0
    %7411 = vmatprep.subr.mxu0 0.0
    %7412 = vmatpush1.msra.mxu0 0.0
    %7413 = vmatprep.subr.mxu0 0.0
    %7414 = vmatpush1.msra.mxu0 0.0
    %7415 = vmatprep.subr.mxu0 0.0
    %7416 = vmatpush1.msra.mxu0 0.0
    %7417 = vmatprep.subr.mxu0 0.0
    %7418 = vmatpush1.msra.mxu0 0.0
    %7419 = vmatprep.subr.mxu0 0.0
    %7420 = vmatpush1.msra.mxu0 0.0
    %7421 = vmatprep.subr.mxu0 0.0
    %7422 = vmatpush1.msra.mxu0 0.0
    %7423 = vmatprep.subr.mxu0 0.0
    %7424 = vmatpush1.msra.mxu0 0.0
    %7425 = vmatprep.subr.mxu0 0.0
    %7426 = vmatpush1.msra.mxu0 0.0
    %7427 = vmatprep.subr.mxu0 0.0
    %7428 = vmatpush1.msra.mxu0 0.0
    %7429 = vmatprep.subr.mxu0 0.0
    %7430 = vmatpush1.msra.mxu0 0.0
    %7431 = vmatprep.subr.mxu0 0.0
    %7432 = vmatpush1.msra.mxu0 0.0
    %7433 = vmatprep.subr.mxu0 0.0
    %7434 = vmatpush1.msra.mxu0 0.0
    %7435 = vmatprep.subr.mxu0 0.0
    %7436 = vmatpush1.msra.mxu0 0.0
    %7437 = vmatprep.subr.mxu0 0.0
    %7438 = vmatpush1.msra.mxu0 0.0
    %7439 = vmatprep.subr.mxu0 0.0
    %7440 = vmatpush1.msra.mxu0 0.0
    %7441 = vmatprep.subr.mxu0 0.0
    %7442 = vmatpush1.msra.mxu0 0.0
    %7443 = vmatprep.subr.mxu0 0.0
    %7444 = vmatpush1.msra.mxu0 0.0
    %7445 = vmatprep.subr.mxu0 0.0
    %7446 = vmatpush1.msra.mxu0 0.0
    %7447 = vmatprep.subr.mxu0 0.0
    %7448 = vmatpush1.msra.mxu0 0.0
    %7449 = vmatprep.mubr.f32.mxu0 0.0
    %7450 = vmatmul.mubr.f32.gmra.mrb[0].mxu0 %v7383
    %v7451 = vpop.f32.mrb[0].mxu0
    %v7452 = vadd.f32 %v3519, %v7451
    %v7453 = vpop.f32.mrb[0].mxu0
    %7454 = vdwg.mxu0
    %v7455 = vxor.u32 %v7452, 2147483648
    %v7456 = vmul.f32 %v7455, 1.442695
    %v7457 = vpow.pop %v7456
    %v7458 = vadd.f32 %v7457, 1.0
    %v7459 = vrcp.pop %v7458
    %v7460 = vmul.f32 1.0, %v7459
    %v7461 = vtanh.pop %v7452
    %v7462 = vmul.f32 %v7460, %v7367
    %7464 = vrot.lane.b32.xlu0 %v7461, 64
    %v7465 = vpop.permute.xlu0 %7464
    %v7467 = vmul.f32 %v7460, %v7465
    %7469 = vrot.lane.b32.xlu0 %v7467, 32
    %v7470 = vpop.permute.xlu0 %7469
    %v7472 = vadd.f32 %v7462, %v7470
    %v7473 = vtanh.pop %v7472
    %7475 = vrot.lane.b32.xlu0 %v7473, 64
    %v7476 = vpop.permute.xlu0 %7475
    %v7478 = vmul.f32 %v7460, %v7476
    %7479 = vrot.lane.b32.xlu0 %v6746, 80
    %v7480 = vpop.permute.xlu0 %7479
    %7483 = vrot.lane.b32.xlu0 %v7478, 48
    %v7484 = vpop.permute.xlu0 %7483
    %v7486 = vsel %vm125, %v7480, %v7484
    %v7488 = vsel %vm133, %v7486, 0
    %7490 = vmatprep.subr.mxu0 0.0
    %7491 = vmatpush1.msra.mxu0 %v3508
    %7492 = vmatprep.subr.mxu0 0.0
    %7493 = vmatpush1.msra.mxu0 %v3509
    %7494 = vmatprep.subr.mxu0 0.0
    %7495 = vmatpush1.msra.mxu0 %v3510
    %7496 = vmatprep.subr.mxu0 0.0
    %7497 = vmatpush1.msra.mxu0 %v3511
    %7498 = vmatprep.subr.mxu0 0.0
    %7499 = vmatpush1.msra.mxu0 %v3512
    %7500 = vmatprep.subr.mxu0 0.0
    %7501 = vmatpush1.msra.mxu0 %v3513
    %7502 = vmatprep.subr.mxu0 0.0
    %7503 = vmatpush1.msra.mxu0 0.0
    %7504 = vmatprep.subr.mxu0 0.0
    %7505 = vmatpush1.msra.mxu0 0.0
    %7506 = vmatprep.subr.mxu0 0.0
    %7507 = vmatpush1.msra.mxu0 0.0
    %7508 = vmatprep.subr.mxu0 0.0
    %7509 = vmatpush1.msra.mxu0 0.0
    %7510 = vmatprep.subr.mxu0 0.0
    %7511 = vmatpush1.msra.mxu0 0.0
    %7512 = vmatprep.subr.mxu0 0.0
    %7513 = vmatpush1.msra.mxu0 0.0
    %7514 = vmatprep.subr.mxu0 0.0
    %7515 = vmatpush1.msra.mxu0 0.0
    %7516 = vmatprep.subr.mxu0 0.0
    %7517 = vmatpush1.msra.mxu0 0.0
    %7518 = vmatprep.subr.mxu0 0.0
    %7519 = vmatpush1.msra.mxu0 0.0
    %7520 = vmatprep.subr.mxu0 0.0
    %7521 = vmatpush1.msra.mxu0 0.0
    %7522 = vmatprep.subr.mxu0 0.0
    %7523 = vmatpush1.msra.mxu0 0.0
    %7524 = vmatprep.subr.mxu0 0.0
    %7525 = vmatpush1.msra.mxu0 0.0
    %7526 = vmatprep.subr.mxu0 0.0
    %7527 = vmatpush1.msra.mxu0 0.0
    %7528 = vmatprep.subr.mxu0 0.0
    %7529 = vmatpush1.msra.mxu0 0.0
    %7530 = vmatprep.subr.mxu0 0.0
    %7531 = vmatpush1.msra.mxu0 0.0
    %7532 = vmatprep.subr.mxu0 0.0
    %7533 = vmatpush1.msra.mxu0 0.0
    %7534 = vmatprep.subr.mxu0 0.0
    %7535 = vmatpush1.msra.mxu0 0.0
    %7536 = vmatprep.subr.mxu0 0.0
    %7537 = vmatpush1.msra.mxu0 0.0
    %7538 = vmatprep.subr.mxu0 0.0
    %7539 = vmatpush1.msra.mxu0 0.0
    %7540 = vmatprep.subr.mxu0 0.0
    %7541 = vmatpush1.msra.mxu0 0.0
    %7542 = vmatprep.subr.mxu0 0.0
    %7543 = vmatpush1.msra.mxu0 0.0
    %7544 = vmatprep.subr.mxu0 0.0
    %7545 = vmatpush1.msra.mxu0 0.0
    %7546 = vmatprep.subr.mxu0 0.0
    %7547 = vmatpush1.msra.mxu0 0.0
    %7548 = vmatprep.subr.mxu0 0.0
    %7549 = vmatpush1.msra.mxu0 0.0
    %7550 = vmatprep.subr.mxu0 0.0
    %7551 = vmatpush1.msra.mxu0 0.0
    %7552 = vmatprep.subr.mxu0 0.0
    %7553 = vmatpush1.msra.mxu0 0.0
    %7554 = vmatprep.mubr.f32.mxu0 0.0
    %7555 = vmatmul.mubr.f32.gmra.mrb[0].mxu0 %v7488
    %v7556 = vpop.f32.mrb[0].mxu0
    %v7557 = vadd.f32 %v3519, %v7556
    %v7558 = vpop.f32.mrb[0].mxu0
    %7559 = vdwg.mxu0
    %v7560 = vxor.u32 %v7557, 2147483648
    %v7561 = vmul.f32 %v7560, 1.442695
    %v7562 = vpow.pop %v7561
    %v7563 = vadd.f32 %v7562, 1.0
    %v7564 = vrcp.pop %v7563
    %v7565 = vmul.f32 1.0, %v7564
    %v7566 = vtanh.pop %v7557
    %v7567 = vmul.f32 %v7565, %v7472
    %7569 = vrot.lane.b32.xlu0 %v7566, 64
    %v7570 = vpop.permute.xlu0 %7569
    %v7572 = vmul.f32 %v7565, %v7570
    %7574 = vrot.lane.b32.xlu0 %v7572, 32
    %v7575 = vpop.permute.xlu0 %7574
    %v7577 = vadd.f32 %v7567, %v7575
    %v7578 = vtanh.pop %v7577
    %7580 = vrot.lane.b32.xlu0 %v7578, 64
    %v7581 = vpop.permute.xlu0 %7580
    %v7583 = vmul.f32 %v7565, %v7581
    %7585 = vrot.lane.b32.xlu0 %v6852, 80
    %v7586 = vpop.permute.xlu0 %7585
    %7589 = vrot.lane.b32.xlu0 %v7583, 48
    %v7590 = vpop.permute.xlu0 %7589
    %v7592 = vsel %vm125, %v7586, %v7590
    %v7594 = vsel %vm133, %v7592, 0
    %7596 = vmatprep.subr.mxu0 0.0
    %7597 = vmatpush1.msra.mxu0 %v3508
    %7598 = vmatprep.subr.mxu0 0.0
    %7599 = vmatpush1.msra.mxu0 %v3509
    %7600 = vmatprep.subr.mxu0 0.0
    %7601 = vmatpush1.msra.mxu0 %v3510
    %7602 = vmatprep.subr.mxu0 0.0
    %7603 = vmatpush1.msra.mxu0 %v3511
    %7604 = vmatprep.subr.mxu0 0.0
    %7605 = vmatpush1.msra.mxu0 %v3512
    %7606 = vmatprep.subr.mxu0 0.0
    %7607 = vmatpush1.msra.mxu0 %v3513
    %7608 = vmatprep.subr.mxu0 0.0
    %7609 = vmatpush1.msra.mxu0 0.0
    %7610 = vmatprep.subr.mxu0 0.0
    %7611 = vmatpush1.msra.mxu0 0.0
    %7612 = vmatprep.subr.mxu0 0.0
    %7613 = vmatpush1.msra.mxu0 0.0
    %7614 = vmatprep.subr.mxu0 0.0
    %7615 = vmatpush1.msra.mxu0 0.0
    %7616 = vmatprep.subr.mxu0 0.0
    %7617 = vmatpush1.msra.mxu0 0.0
    %7618 = vmatprep.subr.mxu0 0.0
    %7619 = vmatpush1.msra.mxu0 0.0
    %7620 = vmatprep.subr.mxu0 0.0
    %7621 = vmatpush1.msra.mxu0 0.0
    %7622 = vmatprep.subr.mxu0 0.0
    %7623 = vmatpush1.msra.mxu0 0.0
    %7624 = vmatprep.subr.mxu0 0.0
    %7625 = vmatpush1.msra.mxu0 0.0
    %7626 = vmatprep.subr.mxu0 0.0
    %7627 = vmatpush1.msra.mxu0 0.0
    %7628 = vmatprep.subr.mxu0 0.0
    %7629 = vmatpush1.msra.mxu0 0.0
    %7630 = vmatprep.subr.mxu0 0.0
    %7631 = vmatpush1.msra.mxu0 0.0
    %7632 = vmatprep.subr.mxu0 0.0
    %7633 = vmatpush1.msra.mxu0 0.0
    %7634 = vmatprep.subr.mxu0 0.0
    %7635 = vmatpush1.msra.mxu0 0.0
    %7636 = vmatprep.subr.mxu0 0.0
    %7637 = vmatpush1.msra.mxu0 0.0
    %7638 = vmatprep.subr.mxu0 0.0
    %7639 = vmatpush1.msra.mxu0 0.0
    %7640 = vmatprep.subr.mxu0 0.0
    %7641 = vmatpush1.msra.mxu0 0.0
    %7642 = vmatprep.subr.mxu0 0.0
    %7643 = vmatpush1.msra.mxu0 0.0
    %7644 = vmatprep.subr.mxu0 0.0
    %7645 = vmatpush1.msra.mxu0 0.0
    %7646 = vmatprep.subr.mxu0 0.0
    %7647 = vmatpush1.msra.mxu0 0.0
    %7648 = vmatprep.subr.mxu0 0.0
    %7649 = vmatpush1.msra.mxu0 0.0
    %7650 = vmatprep.subr.mxu0 0.0
    %7651 = vmatpush1.msra.mxu0 0.0
    %7652 = vmatprep.subr.mxu0 0.0
    %7653 = vmatpush1.msra.mxu0 0.0
    %7654 = vmatprep.subr.mxu0 0.0
    %7655 = vmatpush1.msra.mxu0 0.0
    %7656 = vmatprep.subr.mxu0 0.0
    %7657 = vmatpush1.msra.mxu0 0.0
    %7658 = vmatprep.subr.mxu0 0.0
    %7659 = vmatpush1.msra.mxu0 0.0
    %7660 = vmatprep.mubr.f32.mxu0 0.0
    %7661 = vmatmul.mubr.f32.gmra.mrb[0].mxu0 %v7594
    %v7662 = vpop.f32.mrb[0].mxu0
    %v7663 = vadd.f32 %v3519, %v7662
    %v7664 = vpop.f32.mrb[0].mxu0
    %7665 = vdwg.mxu0
    %v7666 = vxor.u32 %v7663, 2147483648
    %v7667 = vmul.f32 %v7666, 1.442695
    %v7668 = vpow.pop %v7667
    %v7669 = vadd.f32 %v7668, 1.0
    %v7670 = vrcp.pop %v7669
    %v7671 = vmul.f32 1.0, %v7670
    %v7672 = vtanh.pop %v7663
    %v7673 = vmul.f32 %v7671, %v7577
    %7675 = vrot.lane.b32.xlu0 %v7672, 64
    %v7676 = vpop.permute.xlu0 %7675
    %v7678 = vmul.f32 %v7671, %v7676
    %7680 = vrot.lane.b32.xlu0 %v7678, 32
    %v7681 = vpop.permute.xlu0 %7680
    %v7683 = vadd.f32 %v7673, %v7681
    %v7684 = vtanh.pop %v7683
    %7686 = vrot.lane.b32.xlu0 %v7684, 64
    %v7687 = vpop.permute.xlu0 %7686
    %v7689 = vmul.f32 %v7671, %v7687
    %7690 = vrot.lane.b32.xlu0 %v6953, 32
    %v7691 = vpop.permute.xlu0 %7690
    %v7693 = vsel %vm967, %v7691, 0.0
    %v7695 = vsel %vm133, %v7693, 0
    %7697 = vmatprep.subr.mxu0 0.0
    %7698 = vmatpush1.msra.mxu0 %v4329
    %7699 = vmatprep.subr.mxu0 0.0
    %7700 = vmatpush1.msra.mxu0 %v4330
    %7701 = vmatprep.subr.mxu0 0.0
    %7702 = vmatpush1.msra.mxu0 %v4331
    %7703 = vmatprep.subr.mxu0 0.0
    %7704 = vmatpush1.msra.mxu0 %v4332
    %7705 = vmatprep.subr.mxu0 0.0
    %7706 = vmatpush1.msra.mxu0 %v4333
    %7707 = vmatprep.subr.mxu0 0.0
    %7708 = vmatpush1.msra.mxu0 %v4334
    %7709 = vmatprep.subr.mxu0 0.0
    %7710 = vmatpush1.msra.mxu0 0.0
    %7711 = vmatprep.subr.mxu0 0.0
    %7712 = vmatpush1.msra.mxu0 0.0
    %7713 = vmatprep.subr.mxu0 0.0
    %7714 = vmatpush1.msra.mxu0 0.0
    %7715 = vmatprep.subr.mxu0 0.0
    %7716 = vmatpush1.msra.mxu0 0.0
    %7717 = vmatprep.subr.mxu0 0.0
    %7718 = vmatpush1.msra.mxu0 0.0
    %7719 = vmatprep.subr.mxu0 0.0
    %7720 = vmatpush1.msra.mxu0 0.0
    %7721 = vmatprep.subr.mxu0 0.0
    %7722 = vmatpush1.msra.mxu0 0.0
    %7723 = vmatprep.subr.mxu0 0.0
    %7724 = vmatpush1.msra.mxu0 0.0
    %7725 = vmatprep.subr.mxu0 0.0
    %7726 = vmatpush1.msra.mxu0 0.0
    %7727 = vmatprep.subr.mxu0 0.0
    %7728 = vmatpush1.msra.mxu0 0.0
    %7729 = vmatprep.subr.mxu0 0.0
    %7730 = vmatpush1.msra.mxu0 0.0
    %7731 = vmatprep.subr.mxu0 0.0
    %7732 = vmatpush1.msra.mxu0 0.0
    %7733 = vmatprep.subr.mxu0 0.0
    %7734 = vmatpush1.msra.mxu0 0.0
    %7735 = vmatprep.subr.mxu0 0.0
    %7736 = vmatpush1.msra.mxu0 0.0
    %7737 = vmatprep.subr.mxu0 0.0
    %7738 = vmatpush1.msra.mxu0 0.0
    %7739 = vmatprep.subr.mxu0 0.0
    %7740 = vmatpush1.msra.mxu0 0.0
    %7741 = vmatprep.subr.mxu0 0.0
    %7742 = vmatpush1.msra.mxu0 0.0
    %7743 = vmatprep.subr.mxu0 0.0
    %7744 = vmatpush1.msra.mxu0 0.0
    %7745 = vmatprep.subr.mxu0 0.0
    %7746 = vmatpush1.msra.mxu0 0.0
    %7747 = vmatprep.subr.mxu0 0.0
    %7748 = vmatpush1.msra.mxu0 0.0
    %7749 = vmatprep.subr.mxu0 0.0
    %7750 = vmatpush1.msra.mxu0 0.0
    %7751 = vmatprep.subr.mxu0 0.0
    %7752 = vmatpush1.msra.mxu0 0.0
    %7753 = vmatprep.subr.mxu0 0.0
    %7754 = vmatpush1.msra.mxu0 0.0
    %7755 = vmatprep.subr.mxu0 0.0
    %7756 = vmatpush1.msra.mxu0 0.0
    %7757 = vmatprep.subr.mxu0 0.0
    %7758 = vmatpush1.msra.mxu0 0.0
    %7759 = vmatprep.subr.mxu0 0.0
    %7760 = vmatpush1.msra.mxu0 0.0
    %7761 = vmatprep.mubr.f32.mxu0 0.0
    %7762 = vmatmul.mubr.f32.gmra.mrb[0].mxu0 %v7695
    %v7763 = vpop.f32.mrb[0].mxu0
    %v7764 = vadd.f32 %v4344, %v7763
    %v7765 = vpop.f32.mrb[0].mxu0
    %7766 = vdwg.mxu0
    %v7767 = vxor.u32 %v7764, 2147483648
    %v7768 = vmul.f32 %v7767, 1.442695
    %v7769 = vpow.pop %v7768
    %v7770 = vadd.f32 %v7769, 1.0
    %v7771 = vrcp.pop %v7770
    %v7772 = vmul.f32 1.0, %v7771
    %v7773 = vtanh.pop %v7764
    %v7774 = vmul.f32 %v7772, 0.0
    %7776 = vrot.lane.b32.xlu0 %v7773, 96
    %v7777 = vpop.permute.xlu0 %7776
    %v7779 = vmul.f32 %v7772, %v7777
    %7781 = vrot.lane.b32.xlu0 %v7779, 16
    %v7782 = vpop.permute.xlu0 %7781
    %v7784 = vadd.f32 %v7774, %v7782
    %v7785 = vtanh.pop %v7784
    %7787 = vrot.lane.b32.xlu0 %v7785, 32
    %v7788 = vpop.permute.xlu0 %7787
    %v7790 = vmul.f32 %v7772, %v7788
    %7791 = vrot.lane.b32.xlu0 %v7058, 32
    %v7792 = vpop.permute.xlu0 %7791
    %7795 = vrot.lane.b32.xlu0 %v7790, 112
    %v7796 = vpop.permute.xlu0 %7795
    %v7798 = vsel %vm967, %v7792, %v7796
    %v7800 = vsel %vm133, %v7798, 0
    %7802 = vmatprep.subr.mxu0 0.0
    %7803 = vmatpush1.msra.mxu0 %v4329
    %7804 = vmatprep.subr.mxu0 0.0
    %7805 = vmatpush1.msra.mxu0 %v4330
    %7806 = vmatprep.subr.mxu0 0.0
    %7807 = vmatpush1.msra.mxu0 %v4331
    %7808 = vmatprep.subr.mxu0 0.0
    %7809 = vmatpush1.msra.mxu0 %v4332
    %7810 = vmatprep.subr.mxu0 0.0
    %7811 = vmatpush1.msra.mxu0 %v4333
    %7812 = vmatprep.subr.mxu0 0.0
    %7813 = vmatpush1.msra.mxu0 %v4334
    %7814 = vmatprep.subr.mxu0 0.0
    %7815 = vmatpush1.msra.mxu0 0.0
    %7816 = vmatprep.subr.mxu0 0.0
    %7817 = vmatpush1.msra.mxu0 0.0
    %7818 = vmatprep.subr.mxu0 0.0
    %7819 = vmatpush1.msra.mxu0 0.0
    %7820 = vmatprep.subr.mxu0 0.0
    %7821 = vmatpush1.msra.mxu0 0.0
    %7822 = vmatprep.subr.mxu0 0.0
    %7823 = vmatpush1.msra.mxu0 0.0
    %7824 = vmatprep.subr.mxu0 0.0
    %7825 = vmatpush1.msra.mxu0 0.0
    %7826 = vmatprep.subr.mxu0 0.0
    %7827 = vmatpush1.msra.mxu0 0.0
    %7828 = vmatprep.subr.mxu0 0.0
    %7829 = vmatpush1.msra.mxu0 0.0
    %7830 = vmatprep.subr.mxu0 0.0
    %7831 = vmatpush1.msra.mxu0 0.0
    %7832 = vmatprep.subr.mxu0 0.0
    %7833 = vmatpush1.msra.mxu0 0.0
    %7834 = vmatprep.subr.mxu0 0.0
    %7835 = vmatpush1.msra.mxu0 0.0
    %7836 = vmatprep.subr.mxu0 0.0
    %7837 = vmatpush1.msra.mxu0 0.0
    %7838 = vmatprep.subr.mxu0 0.0
    %7839 = vmatpush1.msra.mxu0 0.0
    %7840 = vmatprep.subr.mxu0 0.0
    %7841 = vmatpush1.msra.mxu0 0.0
    %7842 = vmatprep.subr.mxu0 0.0
    %7843 = vmatpush1.msra.mxu0 0.0
    %7844 = vmatprep.subr.mxu0 0.0
    %7845 = vmatpush1.msra.mxu0 0.0
    %7846 = vmatprep.subr.mxu0 0.0
    %7847 = vmatpush1.msra.mxu0 0.0
    %7848 = vmatprep.subr.mxu0 0.0
    %7849 = vmatpush1.msra.mxu0 0.0
    %7850 = vmatprep.subr.mxu0 0.0
    %7851 = vmatpush1.msra.mxu0 0.0
    %7852 = vmatprep.subr.mxu0 0.0
    %7853 = vmatpush1.msra.mxu0 0.0
    %7854 = vmatprep.subr.mxu0 0.0
    %7855 = vmatpush1.msra.mxu0 0.0
    %7856 = vmatprep.subr.mxu0 0.0
    %7857 = vmatpush1.msra.mxu0 0.0
    %7858 = vmatprep.subr.mxu0 0.0
    %7859 = vmatpush1.msra.mxu0 0.0
    %7860 = vmatprep.subr.mxu0 0.0
    %7861 = vmatpush1.msra.mxu0 0.0
    %7862 = vmatprep.subr.mxu0 0.0
    %7863 = vmatpush1.msra.mxu0 0.0
    %7864 = vmatprep.subr.mxu0 0.0
    %7865 = vmatpush1.msra.mxu0 0.0
    %7866 = vmatprep.mubr.f32.mxu0 0.0
    %7867 = vmatmul.mubr.f32.gmra.mrb[0].mxu0 %v7800
    %v7868 = vpop.f32.mrb[0].mxu0
    %v7869 = vadd.f32 %v4344, %v7868
    %v7870 = vpop.f32.mrb[0].mxu0
    %7871 = vdwg.mxu0
    %v7872 = vxor.u32 %v7869, 2147483648
    %v7873 = vmul.f32 %v7872, 1.442695
    %v7874 = vpow.pop %v7873
    %v7875 = vadd.f32 %v7874, 1.0
    %v7876 = vrcp.pop %v7875
    %v7877 = vmul.f32 1.0, %v7876
    %v7878 = vtanh.pop %v7869
    %v7879 = vmul.f32 %v7877, %v7784
    %7881 = vrot.lane.b32.xlu0 %v7878, 96
    %v7882 = vpop.permute.xlu0 %7881
    %v7884 = vmul.f32 %v7877, %v7882
    %7886 = vrot.lane.b32.xlu0 %v7884, 16
    %v7887 = vpop.permute.xlu0 %7886
    %v7889 = vadd.f32 %v7879, %v7887
    %v7890 = vtanh.pop %v7889
    %7892 = vrot.lane.b32.xlu0 %v7890, 32
    %v7893 = vpop.permute.xlu0 %7892
    %v7895 = vmul.f32 %v7877, %v7893
    %7896 = vrot.lane.b32.xlu0 %v7163, 32
    %v7897 = vpop.permute.xlu0 %7896
    %7900 = vrot.lane.b32.xlu0 %v7895, 112
    %v7901 = vpop.permute.xlu0 %7900
    %v7903 = vsel %vm967, %v7897, %v7901
    %v7905 = vsel %vm133, %v7903, 0
    %7907 = vmatprep.subr.mxu0 0.0
    %7908 = vmatpush1.msra.mxu0 %v4329
    %7909 = vmatprep.subr.mxu0 0.0
    %7910 = vmatpush1.msra.mxu0 %v4330
    %7911 = vmatprep.subr.mxu0 0.0
    %7912 = vmatpush1.msra.mxu0 %v4331
    %7913 = vmatprep.subr.mxu0 0.0
    %7914 = vmatpush1.msra.mxu0 %v4332
    %7915 = vmatprep.subr.mxu0 0.0
    %7916 = vmatpush1.msra.mxu0 %v4333
    %7917 = vmatprep.subr.mxu0 0.0
    %7918 = vmatpush1.msra.mxu0 %v4334
    %7919 = vmatprep.subr.mxu0 0.0
    %7920 = vmatpush1.msra.mxu0 0.0
    %7921 = vmatprep.subr.mxu0 0.0
    %7922 = vmatpush1.msra.mxu0 0.0
    %7923 = vmatprep.subr.mxu0 0.0
    %7924 = vmatpush1.msra.mxu0 0.0
    %7925 = vmatprep.subr.mxu0 0.0
    %7926 = vmatpush1.msra.mxu0 0.0
    %7927 = vmatprep.subr.mxu0 0.0
    %7928 = vmatpush1.msra.mxu0 0.0
    %7929 = vmatprep.subr.mxu0 0.0
    %7930 = vmatpush1.msra.mxu0 0.0
    %7931 = vmatprep.subr.mxu0 0.0
    %7932 = vmatpush1.msra.mxu0 0.0
    %7933 = vmatprep.subr.mxu0 0.0
    %7934 = vmatpush1.msra.mxu0 0.0
    %7935 = vmatprep.subr.mxu0 0.0
    %7936 = vmatpush1.msra.mxu0 0.0
    %7937 = vmatprep.subr.mxu0 0.0
    %7938 = vmatpush1.msra.mxu0 0.0
    %7939 = vmatprep.subr.mxu0 0.0
    %7940 = vmatpush1.msra.mxu0 0.0
    %7941 = vmatprep.subr.mxu0 0.0
    %7942 = vmatpush1.msra.mxu0 0.0
    %7943 = vmatprep.subr.mxu0 0.0
    %7944 = vmatpush1.msra.mxu0 0.0
    %7945 = vmatprep.subr.mxu0 0.0
    %7946 = vmatpush1.msra.mxu0 0.0
    %7947 = vmatprep.subr.mxu0 0.0
    %7948 = vmatpush1.msra.mxu0 0.0
    %7949 = vmatprep.subr.mxu0 0.0
    %7950 = vmatpush1.msra.mxu0 0.0
    %7951 = vmatprep.subr.mxu0 0.0
    %7952 = vmatpush1.msra.mxu0 0.0
    %7953 = vmatprep.subr.mxu0 0.0
    %7954 = vmatpush1.msra.mxu0 0.0
    %7955 = vmatprep.subr.mxu0 0.0
    %7956 = vmatpush1.msra.mxu0 0.0
    %7957 = vmatprep.subr.mxu0 0.0
    %7958 = vmatpush1.msra.mxu0 0.0
    %7959 = vmatprep.subr.mxu0 0.0
    %7960 = vmatpush1.msra.mxu0 0.0
    %7961 = vmatprep.subr.mxu0 0.0
    %7962 = vmatpush1.msra.mxu0 0.0
    %7963 = vmatprep.subr.mxu0 0.0
    %7964 = vmatpush1.msra.mxu0 0.0
    %7965 = vmatprep.subr.mxu0 0.0
    %7966 = vmatpush1.msra.mxu0 0.0
    %7967 = vmatprep.subr.mxu0 0.0
    %7968 = vmatpush1.msra.mxu0 0.0
    %7969 = vmatprep.subr.mxu0 0.0
    %7970 = vmatpush1.msra.mxu0 0.0
    %7971 = vmatprep.mubr.f32.mxu0 0.0
    %7972 = vmatmul.mubr.f32.gmra.mrb[0].mxu0 %v7905
    %v7973 = vpop.f32.mrb[0].mxu0
    %v7974 = vadd.f32 %v4344, %v7973
    %v7975 = vpop.f32.mrb[0].mxu0
    %7976 = vdwg.mxu0
    %v7977 = vxor.u32 %v7974, 2147483648
    %v7978 = vmul.f32 %v7977, 1.442695
    %v7979 = vpow.pop %v7978
    %v7980 = vadd.f32 %v7979, 1.0
    %v7981 = vrcp.pop %v7980
    %v7982 = vmul.f32 1.0, %v7981
    %v7983 = vtanh.pop %v7974
    %v7984 = vmul.f32 %v7982, %v7889
    %7986 = vrot.lane.b32.xlu0 %v7983, 96
    %v7987 = vpop.permute.xlu0 %7986
    %v7989 = vmul.f32 %v7982, %v7987
    %7991 = vrot.lane.b32.xlu0 %v7989, 16
    %v7992 = vpop.permute.xlu0 %7991
    %v7994 = vadd.f32 %v7984, %v7992
    %v7995 = vtanh.pop %v7994
    %7997 = vrot.lane.b32.xlu0 %v7995, 32
    %v7998 = vpop.permute.xlu0 %7997
    %v8000 = vmul.f32 %v7982, %v7998
    %8001 = vrot.lane.b32.xlu0 %v7268, 32
    %v8002 = vpop.permute.xlu0 %8001
    %8005 = vrot.lane.b32.xlu0 %v8000, 112
    %v8006 = vpop.permute.xlu0 %8005
    %v8008 = vsel %vm967, %v8002, %v8006
    %v8010 = vsel %vm133, %v8008, 0
    %8012 = vmatprep.subr.mxu0 0.0
    %8013 = vmatpush1.msra.mxu0 %v4329
    %8014 = vmatprep.subr.mxu0 0.0
    %8015 = vmatpush1.msra.mxu0 %v4330
    %8016 = vmatprep.subr.mxu0 0.0
    %8017 = vmatpush1.msra.mxu0 %v4331
    %8018 = vmatprep.subr.mxu0 0.0
    %8019 = vmatpush1.msra.mxu0 %v4332
    %8020 = vmatprep.subr.mxu0 0.0
    %8021 = vmatpush1.msra.mxu0 %v4333
    %8022 = vmatprep.subr.mxu0 0.0
    %8023 = vmatpush1.msra.mxu0 %v4334
    %8024 = vmatprep.subr.mxu0 0.0
    %8025 = vmatpush1.msra.mxu0 0.0
    %8026 = vmatprep.subr.mxu0 0.0
    %8027 = vmatpush1.msra.mxu0 0.0
    %8028 = vmatprep.subr.mxu0 0.0
    %8029 = vmatpush1.msra.mxu0 0.0
    %8030 = vmatprep.subr.mxu0 0.0
    %8031 = vmatpush1.msra.mxu0 0.0
    %8032 = vmatprep.subr.mxu0 0.0
    %8033 = vmatpush1.msra.mxu0 0.0
    %8034 = vmatprep.subr.mxu0 0.0
    %8035 = vmatpush1.msra.mxu0 0.0
    %8036 = vmatprep.subr.mxu0 0.0
    %8037 = vmatpush1.msra.mxu0 0.0
    %8038 = vmatprep.subr.mxu0 0.0
    %8039 = vmatpush1.msra.mxu0 0.0
    %8040 = vmatprep.subr.mxu0 0.0
    %8041 = vmatpush1.msra.mxu0 0.0
    %8042 = vmatprep.subr.mxu0 0.0
    %8043 = vmatpush1.msra.mxu0 0.0
    %8044 = vmatprep.subr.mxu0 0.0
    %8045 = vmatpush1.msra.mxu0 0.0
    %8046 = vmatprep.subr.mxu0 0.0
    %8047 = vmatpush1.msra.mxu0 0.0
    %8048 = vmatprep.subr.mxu0 0.0
    %8049 = vmatpush1.msra.mxu0 0.0
    %8050 = vmatprep.subr.mxu0 0.0
    %8051 = vmatpush1.msra.mxu0 0.0
    %8052 = vmatprep.subr.mxu0 0.0
    %8053 = vmatpush1.msra.mxu0 0.0
    %8054 = vmatprep.subr.mxu0 0.0
    %8055 = vmatpush1.msra.mxu0 0.0
    %8056 = vmatprep.subr.mxu0 0.0
    %8057 = vmatpush1.msra.mxu0 0.0
    %8058 = vmatprep.subr.mxu0 0.0
    %8059 = vmatpush1.msra.mxu0 0.0
    %8060 = vmatprep.subr.mxu0 0.0
    %8061 = vmatpush1.msra.mxu0 0.0
    %8062 = vmatprep.subr.mxu0 0.0
    %8063 = vmatpush1.msra.mxu0 0.0
    %8064 = vmatprep.subr.mxu0 0.0
    %8065 = vmatpush1.msra.mxu0 0.0
    %8066 = vmatprep.subr.mxu0 0.0
    %8067 = vmatpush1.msra.mxu0 0.0
    %8068 = vmatprep.subr.mxu0 0.0
    %8069 = vmatpush1.msra.mxu0 0.0
    %8070 = vmatprep.subr.mxu0 0.0
    %8071 = vmatpush1.msra.mxu0 0.0
    %8072 = vmatprep.subr.mxu0 0.0
    %8073 = vmatpush1.msra.mxu0 0.0
    %8074 = vmatprep.subr.mxu0 0.0
    %8075 = vmatpush1.msra.mxu0 0.0
    %8076 = vmatprep.mubr.f32.mxu0 0.0
    %8077 = vmatmul.mubr.f32.gmra.mrb[0].mxu0 %v8010
    %v8078 = vpop.f32.mrb[0].mxu0
    %v8079 = vadd.f32 %v4344, %v8078
    %v8080 = vpop.f32.mrb[0].mxu0
    %8081 = vdwg.mxu0
    %v8082 = vxor.u32 %v8079, 2147483648
    %v8083 = vmul.f32 %v8082, 1.442695
    %v8084 = vpow.pop %v8083
    %v8085 = vadd.f32 %v8084, 1.0
    %v8086 = vrcp.pop %v8085
    %v8087 = vmul.f32 1.0, %v8086
    %v8088 = vtanh.pop %v8079
    %v8089 = vmul.f32 %v8087, %v7994
    %8091 = vrot.lane.b32.xlu0 %v8088, 96
    %v8092 = vpop.permute.xlu0 %8091
    %v8094 = vmul.f32 %v8087, %v8092
    %8096 = vrot.lane.b32.xlu0 %v8094, 16
    %v8097 = vpop.permute.xlu0 %8096
    %v8099 = vadd.f32 %v8089, %v8097
    %v8100 = vtanh.pop %v8099
    %8102 = vrot.lane.b32.xlu0 %v8100, 32
    %v8103 = vpop.permute.xlu0 %8102
    %v8105 = vmul.f32 %v8087, %v8103
    %8106 = vrot.lane.b32.xlu0 %v7373, 32
    %v8107 = vpop.permute.xlu0 %8106
    %8110 = vrot.lane.b32.xlu0 %v8105, 112
    %v8111 = vpop.permute.xlu0 %8110
    %v8113 = vsel %vm967, %v8107, %v8111
    %v8115 = vsel %vm133, %v8113, 0
    %8117 = vmatprep.subr.mxu0 0.0
    %8118 = vmatpush1.msra.mxu0 %v4329
    %8119 = vmatprep.subr.mxu0 0.0
    %8120 = vmatpush1.msra.mxu0 %v4330
    %8121 = vmatprep.subr.mxu0 0.0
    %8122 = vmatpush1.msra.mxu0 %v4331
    %8123 = vmatprep.subr.mxu0 0.0
    %8124 = vmatpush1.msra.mxu0 %v4332
    %8125 = vmatprep.subr.mxu0 0.0
    %8126 = vmatpush1.msra.mxu0 %v4333
    %8127 = vmatprep.subr.mxu0 0.0
    %8128 = vmatpush1.msra.mxu0 %v4334
    %8129 = vmatprep.subr.mxu0 0.0
    %8130 = vmatpush1.msra.mxu0 0.0
    %8131 = vmatprep.subr.mxu0 0.0
    %8132 = vmatpush1.msra.mxu0 0.0
    %8133 = vmatprep.subr.mxu0 0.0
    %8134 = vmatpush1.msra.mxu0 0.0
    %8135 = vmatprep.subr.mxu0 0.0
    %8136 = vmatpush1.msra.mxu0 0.0
    %8137 = vmatprep.subr.mxu0 0.0
    %8138 = vmatpush1.msra.mxu0 0.0
    %8139 = vmatprep.subr.mxu0 0.0
    %8140 = vmatpush1.msra.mxu0 0.0
    %8141 = vmatprep.subr.mxu0 0.0
    %8142 = vmatpush1.msra.mxu0 0.0
    %8143 = vmatprep.subr.mxu0 0.0
    %8144 = vmatpush1.msra.mxu0 0.0
    %8145 = vmatprep.subr.mxu0 0.0
    %8146 = vmatpush1.msra.mxu0 0.0
    %8147 = vmatprep.subr.mxu0 0.0
    %8148 = vmatpush1.msra.mxu0 0.0
    %8149 = vmatprep.subr.mxu0 0.0
    %8150 = vmatpush1.msra.mxu0 0.0
    %8151 = vmatprep.subr.mxu0 0.0
    %8152 = vmatpush1.msra.mxu0 0.0
    %8153 = vmatprep.subr.mxu0 0.0
    %8154 = vmatpush1.msra.mxu0 0.0
    %8155 = vmatprep.subr.mxu0 0.0
    %8156 = vmatpush1.msra.mxu0 0.0
    %8157 = vmatprep.subr.mxu0 0.0
    %8158 = vmatpush1.msra.mxu0 0.0
    %8159 = vmatprep.subr.mxu0 0.0
    %8160 = vmatpush1.msra.mxu0 0.0
    %8161 = vmatprep.subr.mxu0 0.0
    %8162 = vmatpush1.msra.mxu0 0.0
    %8163 = vmatprep.subr.mxu0 0.0
    %8164 = vmatpush1.msra.mxu0 0.0
    %8165 = vmatprep.subr.mxu0 0.0
    %8166 = vmatpush1.msra.mxu0 0.0
    %8167 = vmatprep.subr.mxu0 0.0
    %8168 = vmatpush1.msra.mxu0 0.0
    %8169 = vmatprep.subr.mxu0 0.0
    %8170 = vmatpush1.msra.mxu0 0.0
    %8171 = vmatprep.subr.mxu0 0.0
    %8172 = vmatpush1.msra.mxu0 0.0
    %8173 = vmatprep.subr.mxu0 0.0
    %8174 = vmatpush1.msra.mxu0 0.0
    %8175 = vmatprep.subr.mxu0 0.0
    %8176 = vmatpush1.msra.mxu0 0.0
    %8177 = vmatprep.subr.mxu0 0.0
    %8178 = vmatpush1.msra.mxu0 0.0
    %8179 = vmatprep.subr.mxu0 0.0
    %8180 = vmatpush1.msra.mxu0 0.0
    %8181 = vmatprep.mubr.f32.mxu0 0.0
    %8182 = vmatmul.mubr.f32.gmra.mrb[0].mxu0 %v8115
    %v8183 = vpop.f32.mrb[0].mxu0
    %v8184 = vadd.f32 %v4344, %v8183
    %v8185 = vpop.f32.mrb[0].mxu0
    %8186 = vdwg.mxu0
    %v8187 = vxor.u32 %v8184, 2147483648
    %v8188 = vmul.f32 %v8187, 1.442695
    %v8189 = vpow.pop %v8188
    %v8190 = vadd.f32 %v8189, 1.0
    %v8191 = vrcp.pop %v8190
    %v8192 = vmul.f32 1.0, %v8191
    %v8193 = vtanh.pop %v8184
    %v8194 = vmul.f32 %v8192, %v8099
    %8196 = vrot.lane.b32.xlu0 %v8193, 96
    %v8197 = vpop.permute.xlu0 %8196
    %v8199 = vmul.f32 %v8192, %v8197
    %8201 = vrot.lane.b32.xlu0 %v8199, 16
    %v8202 = vpop.permute.xlu0 %8201
    %v8204 = vadd.f32 %v8194, %v8202
    %v8205 = vtanh.pop %v8204
    %8207 = vrot.lane.b32.xlu0 %v8205, 32
    %v8208 = vpop.permute.xlu0 %8207
    %v8210 = vmul.f32 %v8192, %v8208
    %8211 = vrot.lane.b32.xlu0 %v7478, 32
    %v8212 = vpop.permute.xlu0 %8211
    %8215 = vrot.lane.b32.xlu0 %v8210, 112
    %v8216 = vpop.permute.xlu0 %8215
    %v8218 = vsel %vm967, %v8212, %v8216
    %v8220 = vsel %vm133, %v8218, 0
    %8222 = vmatprep.subr.mxu0 0.0
    %8223 = vmatpush1.msra.mxu0 %v4329
    %8224 = vmatprep.subr.mxu0 0.0
    %8225 = vmatpush1.msra.mxu0 %v4330
    %8226 = vmatprep.subr.mxu0 0.0
    %8227 = vmatpush1.msra.mxu0 %v4331
    %8228 = vmatprep.subr.mxu0 0.0
    %8229 = vmatpush1.msra.mxu0 %v4332
    %8230 = vmatprep.subr.mxu0 0.0
    %8231 = vmatpush1.msra.mxu0 %v4333
    %8232 = vmatprep.subr.mxu0 0.0
    %8233 = vmatpush1.msra.mxu0 %v4334
    %8234 = vmatprep.subr.mxu0 0.0
    %8235 = vmatpush1.msra.mxu0 0.0
    %8236 = vmatprep.subr.mxu0 0.0
    %8237 = vmatpush1.msra.mxu0 0.0
    %8238 = vmatprep.subr.mxu0 0.0
    %8239 = vmatpush1.msra.mxu0 0.0
    %8240 = vmatprep.subr.mxu0 0.0
    %8241 = vmatpush1.msra.mxu0 0.0
    %8242 = vmatprep.subr.mxu0 0.0
    %8243 = vmatpush1.msra.mxu0 0.0
    %8244 = vmatprep.subr.mxu0 0.0
    %8245 = vmatpush1.msra.mxu0 0.0
    %8246 = vmatprep.subr.mxu0 0.0
    %8247 = vmatpush1.msra.mxu0 0.0
    %8248 = vmatprep.subr.mxu0 0.0
    %8249 = vmatpush1.msra.mxu0 0.0
    %8250 = vmatprep.subr.mxu0 0.0
    %8251 = vmatpush1.msra.mxu0 0.0
    %8252 = vmatprep.subr.mxu0 0.0
    %8253 = vmatpush1.msra.mxu0 0.0
    %8254 = vmatprep.subr.mxu0 0.0
    %8255 = vmatpush1.msra.mxu0 0.0
    %8256 = vmatprep.subr.mxu0 0.0
    %8257 = vmatpush1.msra.mxu0 0.0
    %8258 = vmatprep.subr.mxu0 0.0
    %8259 = vmatpush1.msra.mxu0 0.0
    %8260 = vmatprep.subr.mxu0 0.0
    %8261 = vmatpush1.msra.mxu0 0.0
    %8262 = vmatprep.subr.mxu0 0.0
    %8263 = vmatpush1.msra.mxu0 0.0
    %8264 = vmatprep.subr.mxu0 0.0
    %8265 = vmatpush1.msra.mxu0 0.0
    %8266 = vmatprep.subr.mxu0 0.0
    %8267 = vmatpush1.msra.mxu0 0.0
    %8268 = vmatprep.subr.mxu0 0.0
    %8269 = vmatpush1.msra.mxu0 0.0
    %8270 = vmatprep.subr.mxu0 0.0
    %8271 = vmatpush1.msra.mxu0 0.0
    %8272 = vmatprep.subr.mxu0 0.0
    %8273 = vmatpush1.msra.mxu0 0.0
    %8274 = vmatprep.subr.mxu0 0.0
    %8275 = vmatpush1.msra.mxu0 0.0
    %8276 = vmatprep.subr.mxu0 0.0
    %8277 = vmatpush1.msra.mxu0 0.0
    %8278 = vmatprep.subr.mxu0 0.0
    %8279 = vmatpush1.msra.mxu0 0.0
    %8280 = vmatprep.subr.mxu0 0.0
    %8281 = vmatpush1.msra.mxu0 0.0
    %8282 = vmatprep.subr.mxu0 0.0
    %8283 = vmatpush1.msra.mxu0 0.0
    %8284 = vmatprep.subr.mxu0 0.0
    %8285 = vmatpush1.msra.mxu0 0.0
    %8286 = vmatprep.mubr.f32.mxu0 0.0
    %8287 = vmatmul.mubr.f32.gmra.mrb[0].mxu0 %v8220
    %v8288 = vpop.f32.mrb[0].mxu0
    %v8289 = vadd.f32 %v4344, %v8288
    %v8290 = vpop.f32.mrb[0].mxu0
    %8291 = vdwg.mxu0
    %v8292 = vxor.u32 %v8289, 2147483648
    %v8293 = vmul.f32 %v8292, 1.442695
    %v8294 = vpow.pop %v8293
    %v8295 = vadd.f32 %v8294, 1.0
    %v8296 = vrcp.pop %v8295
    %v8297 = vmul.f32 1.0, %v8296
    %v8298 = vtanh.pop %v8289
    %v8299 = vmul.f32 %v8297, %v8204
    %8301 = vrot.lane.b32.xlu0 %v8298, 96
    %v8302 = vpop.permute.xlu0 %8301
    %v8304 = vmul.f32 %v8297, %v8302
    %8306 = vrot.lane.b32.xlu0 %v8304, 16
    %v8307 = vpop.permute.xlu0 %8306
    %v8309 = vadd.f32 %v8299, %v8307
    %v8310 = vtanh.pop %v8309
    %8312 = vrot.lane.b32.xlu0 %v8310, 32
    %v8313 = vpop.permute.xlu0 %8312
    %v8315 = vmul.f32 %v8297, %v8313
    %8316 = vrot.lane.b32.xlu0 %v7583, 32
    %v8317 = vpop.permute.xlu0 %8316
    %8320 = vrot.lane.b32.xlu0 %v8315, 112
    %v8321 = vpop.permute.xlu0 %8320
    %v8323 = vsel %vm967, %v8317, %v8321
    %v8325 = vsel %vm133, %v8323, 0
    %8327 = vmatprep.subr.mxu0 0.0
    %8328 = vmatpush1.msra.mxu0 %v4329
    %8329 = vmatprep.subr.mxu0 0.0
    %8330 = vmatpush1.msra.mxu0 %v4330
    %8331 = vmatprep.subr.mxu0 0.0
    %8332 = vmatpush1.msra.mxu0 %v4331
    %8333 = vmatprep.subr.mxu0 0.0
    %8334 = vmatpush1.msra.mxu0 %v4332
    %8335 = vmatprep.subr.mxu0 0.0
    %8336 = vmatpush1.msra.mxu0 %v4333
    %8337 = vmatprep.subr.mxu0 0.0
    %8338 = vmatpush1.msra.mxu0 %v4334
    %8339 = vmatprep.subr.mxu0 0.0
    %8340 = vmatpush1.msra.mxu0 0.0
    %8341 = vmatprep.subr.mxu0 0.0
    %8342 = vmatpush1.msra.mxu0 0.0
    %8343 = vmatprep.subr.mxu0 0.0
    %8344 = vmatpush1.msra.mxu0 0.0
    %8345 = vmatprep.subr.mxu0 0.0
    %8346 = vmatpush1.msra.mxu0 0.0
    %8347 = vmatprep.subr.mxu0 0.0
    %8348 = vmatpush1.msra.mxu0 0.0
    %8349 = vmatprep.subr.mxu0 0.0
    %8350 = vmatpush1.msra.mxu0 0.0
    %8351 = vmatprep.subr.mxu0 0.0
    %8352 = vmatpush1.msra.mxu0 0.0
    %8353 = vmatprep.subr.mxu0 0.0
    %8354 = vmatpush1.msra.mxu0 0.0
    %8355 = vmatprep.subr.mxu0 0.0
    %8356 = vmatpush1.msra.mxu0 0.0
    %8357 = vmatprep.subr.mxu0 0.0
    %8358 = vmatpush1.msra.mxu0 0.0
    %8359 = vmatprep.subr.mxu0 0.0
    %8360 = vmatpush1.msra.mxu0 0.0
    %8361 = vmatprep.subr.mxu0 0.0
    %8362 = vmatpush1.msra.mxu0 0.0
    %8363 = vmatprep.subr.mxu0 0.0
    %8364 = vmatpush1.msra.mxu0 0.0
    %8365 = vmatprep.subr.mxu0 0.0
    %8366 = vmatpush1.msra.mxu0 0.0
    %8367 = vmatprep.subr.mxu0 0.0
    %8368 = vmatpush1.msra.mxu0 0.0
    %8369 = vmatprep.subr.mxu0 0.0
    %8370 = vmatpush1.msra.mxu0 0.0
    %8371 = vmatprep.subr.mxu0 0.0
    %8372 = vmatpush1.msra.mxu0 0.0
    %8373 = vmatprep.subr.mxu0 0.0
    %8374 = vmatpush1.msra.mxu0 0.0
    %8375 = vmatprep.subr.mxu0 0.0
    %8376 = vmatpush1.msra.mxu0 0.0
    %8377 = vmatprep.subr.mxu0 0.0
    %8378 = vmatpush1.msra.mxu0 0.0
    %8379 = vmatprep.subr.mxu0 0.0
    %8380 = vmatpush1.msra.mxu0 0.0
    %8381 = vmatprep.subr.mxu0 0.0
    %8382 = vmatpush1.msra.mxu0 0.0
    %8383 = vmatprep.subr.mxu0 0.0
    %8384 = vmatpush1.msra.mxu0 0.0
    %8385 = vmatprep.subr.mxu0 0.0
    %8386 = vmatpush1.msra.mxu0 0.0
    %8387 = vmatprep.subr.mxu0 0.0
    %8388 = vmatpush1.msra.mxu0 0.0
    %8389 = vmatprep.subr.mxu0 0.0
    %8390 = vmatpush1.msra.mxu0 0.0
    %8391 = vmatprep.mubr.f32.mxu0 0.0
    %8392 = vmatmul.mubr.f32.gmra.mrb[0].mxu0 %v8325
    %v8393 = vpop.f32.mrb[0].mxu0
    %v8394 = vadd.f32 %v4344, %v8393
    %v8395 = vpop.f32.mrb[0].mxu0
    %8396 = vdwg.mxu0
    %v8397 = vxor.u32 %v8394, 2147483648
    %v8398 = vmul.f32 %v8397, 1.442695
    %v8399 = vpow.pop %v8398
    %v8400 = vadd.f32 %v8399, 1.0
    %v8401 = vrcp.pop %v8400
    %v8402 = vmul.f32 1.0, %v8401
    %v8403 = vtanh.pop %v8394
    %v8404 = vmul.f32 %v8402, %v8309
    %8406 = vrot.lane.b32.xlu0 %v8403, 96
    %v8407 = vpop.permute.xlu0 %8406
    %v8409 = vmul.f32 %v8402, %v8407
    %8411 = vrot.lane.b32.xlu0 %v8409, 16
    %v8412 = vpop.permute.xlu0 %8411
    %v8414 = vadd.f32 %v8404, %v8412
    %v8415 = vtanh.pop %v8414
    %8417 = vrot.lane.b32.xlu0 %v8415, 32
    %v8418 = vpop.permute.xlu0 %8417
    %v8420 = vmul.f32 %v8402, %v8418
    %8422 = vrot.lane.b32.xlu0 %v7689, 32
    %v8423 = vpop.permute.xlu0 %8422
    %8426 = vrot.lane.b32.xlu0 %v8420, 112
    %v8427 = vpop.permute.xlu0 %8426
    %v8429 = vsel %vm967, %v8423, %v8427
    %v8431 = vsel %vm133, %v8429, 0
    %8433 = vmatprep.subr.mxu0 0.0
    %8434 = vmatpush1.msra.mxu0 %v4329
    %8435 = vmatprep.subr.mxu0 0.0
    %8436 = vmatpush1.msra.mxu0 %v4330
    %8437 = vmatprep.subr.mxu0 0.0
    %8438 = vmatpush1.msra.mxu0 %v4331
    %8439 = vmatprep.subr.mxu0 0.0
    %8440 = vmatpush1.msra.mxu0 %v4332
    %8441 = vmatprep.subr.mxu0 0.0
    %8442 = vmatpush1.msra.mxu0 %v4333
    %8443 = vmatprep.subr.mxu0 0.0
    %8444 = vmatpush1.msra.mxu0 %v4334
    %8445 = vmatprep.subr.mxu0 0.0
    %8446 = vmatpush1.msra.mxu0 0.0
    %8447 = vmatprep.subr.mxu0 0.0
    %8448 = vmatpush1.msra.mxu0 0.0
    %8449 = vmatprep.subr.mxu0 0.0
    %8450 = vmatpush1.msra.mxu0 0.0
    %8451 = vmatprep.subr.mxu0 0.0
    %8452 = vmatpush1.msra.mxu0 0.0
    %8453 = vmatprep.subr.mxu0 0.0
    %8454 = vmatpush1.msra.mxu0 0.0
    %8455 = vmatprep.subr.mxu0 0.0
    %8456 = vmatpush1.msra.mxu0 0.0
    %8457 = vmatprep.subr.mxu0 0.0
    %8458 = vmatpush1.msra.mxu0 0.0
    %8459 = vmatprep.subr.mxu0 0.0
    %8460 = vmatpush1.msra.mxu0 0.0
    %8461 = vmatprep.subr.mxu0 0.0
    %8462 = vmatpush1.msra.mxu0 0.0
    %8463 = vmatprep.subr.mxu0 0.0
    %8464 = vmatpush1.msra.mxu0 0.0
    %8465 = vmatprep.subr.mxu0 0.0
    %8466 = vmatpush1.msra.mxu0 0.0
    %8467 = vmatprep.subr.mxu0 0.0
    %8468 = vmatpush1.msra.mxu0 0.0
    %8469 = vmatprep.subr.mxu0 0.0
    %8470 = vmatpush1.msra.mxu0 0.0
    %8471 = vmatprep.subr.mxu0 0.0
    %8472 = vmatpush1.msra.mxu0 0.0
    %8473 = vmatprep.subr.mxu0 0.0
    %8474 = vmatpush1.msra.mxu0 0.0
    %8475 = vmatprep.subr.mxu0 0.0
    %8476 = vmatpush1.msra.mxu0 0.0
    %8477 = vmatprep.subr.mxu0 0.0
    %8478 = vmatpush1.msra.mxu0 0.0
    %8479 = vmatprep.subr.mxu0 0.0
    %8480 = vmatpush1.msra.mxu0 0.0
    %8481 = vmatprep.subr.mxu0 0.0
    %8482 = vmatpush1.msra.mxu0 0.0
    %8483 = vmatprep.subr.mxu0 0.0
    %8484 = vmatpush1.msra.mxu0 0.0
    %8485 = vmatprep.subr.mxu0 0.0
    %8486 = vmatpush1.msra.mxu0 0.0
    %8487 = vmatprep.subr.mxu0 0.0
    %8488 = vmatpush1.msra.mxu0 0.0
    %8489 = vmatprep.subr.mxu0 0.0
    %8490 = vmatpush1.msra.mxu0 0.0
    %8491 = vmatprep.subr.mxu0 0.0
    %8492 = vmatpush1.msra.mxu0 0.0
    %8493 = vmatprep.subr.mxu0 0.0
    %8494 = vmatpush1.msra.mxu0 0.0
    %8495 = vmatprep.subr.mxu0 0.0
    %8496 = vmatpush1.msra.mxu0 0.0
    %8497 = vmatprep.mubr.f32.mxu0 0.0
    %8498 = vmatmul.mubr.f32.gmra.mrb[0].mxu0 %v8431
    %v8499 = vpop.f32.mrb[0].mxu0
    %v8500 = vadd.f32 %v4344, %v8499
    %v8501 = vpop.f32.mrb[0].mxu0
    %8502 = vdwg.mxu0
    %v8503 = vxor.u32 %v8500, 2147483648
    %v8504 = vmul.f32 %v8503, 1.442695
    %v8505 = vpow.pop %v8504
    %v8506 = vadd.f32 %v8505, 1.0
    %v8507 = vrcp.pop %v8506
    %v8508 = vmul.f32 1.0, %v8507
    %v8509 = vtanh.pop %v8500
    %v8510 = vmul.f32 %v8508, %v8414
    %8512 = vrot.lane.b32.xlu0 %v8509, 96
    %v8513 = vpop.permute.xlu0 %8512
    %v8515 = vmul.f32 %v8508, %v8513
    %8517 = vrot.lane.b32.xlu0 %v8515, 16
    %v8518 = vpop.permute.xlu0 %8517
    %v8520 = vadd.f32 %v8510, %v8518
    %v8521 = vtanh.pop %v8520
    %8523 = vrot.lane.b32.xlu0 %v8521, 32
    %v8524 = vpop.permute.xlu0 %8523
    %v8526 = vmul.f32 %v8508, %v8524
    %8527 = vrot.lane.b32.xlu0 %v1176, 96
    %v8528 = vpop.permute.xlu0 %8527
    %8530 = vrot.lane.b32.xlu0 %v1491, 16
    %v8531 = vpop.permute.xlu0 %8530
    %8533 = vrot.lane.b32.xlu0 %v1596, 32
    %v8534 = vpop.permute.xlu0 %8533
    %8536 = vrot.lane.b32.xlu0 %v1701, 48
    %v8537 = vpop.permute.xlu0 %8536
    %8539 = vrot.lane.b32.xlu0 %v1807, 64
    %v8540 = vpop.permute.xlu0 %8539
    %v8542 = vsel %vm125, %v1816, %v8528
    %v8543 = vsel %vm967, %v8542, %v1287
    %v8544 = vsel %vm133, %v8543, %v1386
    %vm8545 = vcmask 523264
    %v8546 = vsel %vm8545, %v8544, %v8531
    %vm8547 = vcmask 654336
    %v8548 = vsel %vm8547, %v8546, %v8534
    %vm8549 = vcmask 785408
    %v8550 = vsel %vm8549, %v8548, %v8537
    %vm8551 = vcmask 916480
    %v8552 = vsel %vm8551, %v8550, %v8540
    %8553 = vst [vmem:[%s13] sm:$0x3] %v8552
    %8554 = vrot.lane.b32.xlu0 %v4442, 80
    %v8555 = vpop.permute.xlu0 %8554
    %8557 = vrot.lane.b32.xlu0 %v4547, 96
    %v8558 = vpop.permute.xlu0 %8557
    %8560 = vrot.lane.b32.xlu0 %v4862, 16
    %v8561 = vpop.permute.xlu0 %8560
    %8563 = vrot.lane.b32.xlu0 %v4967, 32
    %v8564 = vpop.permute.xlu0 %8563
    %8566 = vrot.lane.b32.xlu0 %v5072, 48
    %v8567 = vpop.permute.xlu0 %8566
    %8570 = vrot.lane.b32.xlu0 %v5178, 64
    %v8571 = vpop.permute.xlu0 %8570
    %v8573 = vsel %vm125, %v8555, %v8558
    %v8574 = vsel %vm967, %v8573, %v4658
    %v8575 = vsel %vm133, %v8574, %v4757
    %v8576 = vsel %vm8545, %v8575, %v8561
    %v8577 = vsel %vm8547, %v8576, %v8564
    %v8578 = vsel %vm8549, %v8577, %v8567
    %v8579 = vsel %vm8551, %v8578, %v8571
    %8580 = vst [vmem:[%s14] sm:$0x3] %v8579
    %8581 = vrot.lane.b32.xlu0 %v7790, 80
    %v8582 = vpop.permute.xlu0 %8581
    %8584 = vrot.lane.b32.xlu0 %v7895, 96
    %v8585 = vpop.permute.xlu0 %8584
    %8587 = vrot.lane.b32.xlu0 %v8210, 16
    %v8588 = vpop.permute.xlu0 %8587
    %8590 = vrot.lane.b32.xlu0 %v8315, 32
    %v8591 = vpop.permute.xlu0 %8590
    %8593 = vrot.lane.b32.xlu0 %v8420, 48
    %v8594 = vpop.permute.xlu0 %8593
    %8597 = vrot.lane.b32.xlu0 %v8526, 64
    %v8598 = vpop.permute.xlu0 %8597
    %v8600 = vsel %vm125, %v8582, %v8585
    %v8601 = vsel %vm967, %v8600, %v8006
    %v8602 = vsel %vm133, %v8601, %v8105
    %v8603 = vsel %vm8545, %v8602, %v8588
    %v8604 = vsel %vm8547, %v8603, %v8591
    %v8605 = vsel %vm8549, %v8604, %v8594
    %v8606 = vsel %vm8551, %v8605, %v8598
    %8607 = vst [vmem:[%s15] sm:$0x3] %v8606
    %v8608 = vrot.slane %v2876, 6
    %v8610 = vrot.slane %v2981, 4
    %v8612 = vrot.slane %v3086, 2
    %v8614 = vrot.slane %v3296, 6
    %v8616 = vrot.slane %v3401, 4
    %v8618 = vrot.slane %v3507, 2
    %vm8620 = vcmask 1041408
    %v8621 = vsel %vm8620, %v2771, %v8608
    %vm8622 = vcmask 1043456
    %v8623 = vsel %vm8622, %v8621, %v8610
    %vm8624 = vcmask 1045504
    %v8625 = vsel %vm8624, %v8623, %v8612
    %v8626 = vsel %vm8620, %v3191, %v8614
    %v8627 = vsel %vm8622, %v8626, %v8616
    %v8628 = vsel %vm8624, %v8627, %v8618
    %v8629 = vrot.slane %v4547, 6
    %v8631 = vrot.slane %v4652, 4
    %v8633 = vrot.slane %v4757, 2
    %v8635 = vrot.slane %v4967, 6
    %v8637 = vrot.slane %v5072, 4
    %v8639 = vrot.slane %v5178, 2
    %v8641 = vsel %vm8620, %v4442, %v8629
    %v8642 = vsel %vm8622, %v8641, %v8631
    %v8643 = vsel %vm8624, %v8642, %v8633
    %v8644 = vsel %vm8620, %v4862, %v8635
    %v8645 = vsel %vm8622, %v8644, %v8637
    %v8646 = vsel %vm8624, %v8645, %v8639
    %v8647 = vrot.slane %v7895, 6
    %v8649 = vrot.slane %v8000, 4
    %v8651 = vrot.slane %v8105, 2
    %v8653 = vrot.slane %v8315, 6
    %v8655 = vrot.slane %v8420, 4
    %v8657 = vrot.slane %v8526, 2
    %v8659 = vsel %vm8620, %v7790, %v8647
    %v8660 = vsel %vm8622, %v8659, %v8649
    %v8661 = vsel %vm8624, %v8660, %v8651
    %v8662 = vsel %vm8620, %v8210, %v8653
    %v8663 = vsel %vm8622, %v8662, %v8655
    %v8664 = vsel %vm8624, %v8663, %v8657
    %8667 = vrot.lane.b32.xlu0 %v8625, 80
    %v8668 = vpop.permute.xlu0 %8667
    %8669 = vrot.lane.b32.xlu0 %v8628, 80
    %v8670 = vpop.permute.xlu0 %8669
    %v8673 = vsub.f32 %v116, %v8668
    %v8674 = vsub.f32 %v117, %v8670
    %v8675 = vmul.f32 %v8673, %v8673
    %v8676 = vmul.f32 %v8674, %v8674
    %v8677 = vsel %vm125, %v8675, 0.0
    %v8678 = vsel %vm125, %v8676, 0.0
    %v8679 = vadd.f32 %v8677, %v8678
    %8680 = vadd.xlane.f32.xlu0 %v8679
    %v8681 = vpop.xlane.xlu0 %8680
    %v8682 = vrot.slane %v8681, 4
    %v8683 = vadd.f32 %v8681, %v8682
    %v8684 = vrot.slane %v8683, 2
    %v8685 = vadd.f32 %v8683, %v8684
    %v8686 = vrot.slane %v8685, 1
    %v8687 = vadd.f32 %v8685, %v8686
    %s8688 = vtos %v8687
    %v8689 = vrcp.pop 256.0
    %s8690 = vtos %v8689
    %s8691 = smul.f32 %s8688, %s8690
    %v8692 = vstv %s8691
    %8695 = vrot.lane.b32.xlu0 %v8643, 80
    %v8696 = vpop.permute.xlu0 %8695
    %8697 = vrot.lane.b32.xlu0 %v8646, 80
    %v8698 = vpop.permute.xlu0 %8697
    %v8701 = vsub.f32 %v116, %v8696
    %v8702 = vsub.f32 %v117, %v8698
    %v8703 = vmul.f32 %v8701, %v8701
    %v8704 = vmul.f32 %v8702, %v8702
    %v8705 = vsel %vm125, %v8703, 0.0
    %v8706 = vsel %vm125, %v8704, 0.0
    %v8707 = vadd.f32 %v8705, %v8706
    %8708 = vadd.xlane.f32.xlu0 %v8707
    %v8709 = vpop.xlane.xlu0 %8708
    %v8710 = vrot.slane %v8709, 4
    %v8711 = vadd.f32 %v8709, %v8710
    %v8712 = vrot.slane %v8711, 2
    %v8713 = vadd.f32 %v8711, %v8712
    %v8714 = vrot.slane %v8713, 1
    %v8715 = vadd.f32 %v8713, %v8714
    %s8716 = vtos %v8715
    %v8717 = vrcp.pop 256.0
    %s8718 = vtos %v8717
    %s8719 = smul.f32 %s8716, %s8718
    %v8720 = vstv %s8719
    %8723 = vrot.lane.b32.xlu0 %v8661, 80
    %v8724 = vpop.permute.xlu0 %8723
    %8725 = vrot.lane.b32.xlu0 %v8664, 80
    %v8726 = vpop.permute.xlu0 %8725
    %v8729 = vsub.f32 %v116, %v8724
    %v8730 = vsub.f32 %v117, %v8726
    %v8731 = vmul.f32 %v8729, %v8729
    %v8732 = vmul.f32 %v8730, %v8730
    %v8733 = vsel %vm125, %v8731, 0.0
    %v8734 = vsel %vm125, %v8732, 0.0
    %v8735 = vadd.f32 %v8733, %v8734
    %8736 = vadd.xlane.f32.xlu0 %v8735
    %v8737 = vpop.xlane.xlu0 %8736
    %v8738 = vrot.slane %v8737, 4
    %v8739 = vadd.f32 %v8737, %v8738
    %v8740 = vrot.slane %v8739, 2
    %v8741 = vadd.f32 %v8739, %v8740
    %v8742 = vrot.slane %v8741, 1
    %v8743 = vadd.f32 %v8741, %v8742
    %s8744 = vtos %v8743
    %v8745 = vrcp.pop 256.0
    %s8746 = vtos %v8745
    %s8747 = smul.f32 %s8744, %s8746
    %v8748 = vstv %s8747
    %vm8749 = vcmask 7168
    %v8750 = vsel %vm8749, %v8692, %v8720
    %vm8751 = vcmask 15360
    %v8752 = vsel %vm8751, %v8750, %v8748
    %vm8753 = vcmask 16384
    %8754 = vst.msk [vmem:[%s16] sm:$0x1] %vm8753, %v8752
    // Predicated region
    $region74: #{usad_forward.1} parent=1 // pred_check
      _
    $region75: #{usad_forward.1} parent=1 // pred_check_branch
      %8756 = sbr.rel (0) target = $region77
    $region76: #{usad_forward.1} parent=1 // pred_region
      _
    $region77: #{usad_forward.1} parent=1 // pred_fallthru
      _
    // Predicated region
    $region78: #{usad_forward.1} parent=1 // pred_check
      _
    $region79: #{usad_forward.1} parent=1 // pred_check_branch
      %8758 = sbr.rel (0) target = $region81
    $region80: #{usad_forward.1} parent=1 // pred_region
      _
    $region81: #{usad_forward.1} parent=1 // pred_fallthru
      _
    // Predicated region
    $region82: #{usad_forward.1} parent=1 // pred_check
      _
    $region83: #{usad_forward.1} parent=1 // pred_check_branch
      %8760 = sbr.rel (0) target = $region85
    $region84: #{usad_forward.1} parent=1 // pred_region
      _
    $region85: #{usad_forward.1} parent=1 // pred_fallthru
      _
    // Predicated region
    $region86: #{usad_forward.1} parent=1 // pred_check
      _
    $region87: #{usad_forward.1} parent=1 // pred_check_branch
      %8762 = sbr.rel (0) target = $region89
    $region88: #{usad_forward.1} parent=1 // pred_region
      _
    $region89: #{usad_forward.1} parent=1 // pred_fallthru
      _
    // Predicated region
    $region90: #{usad_forward.1} parent=1 // pred_check
      _
    $region91: #{usad_forward.1} parent=1 // pred_check_branch
      %8764 = sbr.rel (0) target = $region93
    $region92: #{usad_forward.1} parent=1 // pred_region
      _
    $region93: #{usad_forward.1} parent=1 // pred_fallthru
      _
    // Predicated region
    $region94: #{usad_forward.1} parent=1 // pred_check
      _
    $region95: #{usad_forward.1} parent=1 // pred_check_branch
      %8766 = sbr.rel (0) target = $region97
    $region96: #{usad_forward.1} parent=1 // pred_region
      _
    $region97: #{usad_forward.1} parent=1 // pred_fallthru
      _
    // Predicated region
    $region98: #{usad_forward.1} parent=1 // pred_check
      _
    $region99: #{usad_forward.1} parent=1 // pred_check_branch
      %8768 = sbr.rel (0) target = $region101
    $region100: #{usad_forward.1} parent=1 // pred_region
      _
    $region101: #{usad_forward.1} parent=1 // pred_fallthru
      _
    // Predicated region
    $region102: #{usad_forward.1} parent=1 // pred_check
      _
    $region103: #{usad_forward.1} parent=1 // pred_check_branch
      %8770 = sbr.rel (0) target = $region105
    $region104: #{usad_forward.1} parent=1 // pred_region
      _
    $region105: #{usad_forward.1} parent=1 // pred_fallthru
      _
    %8771 = vsyncpa [#allocation3], 1
    %8772 = vsyncpa [#allocation5], 1
    %8773 = vsyncpa [#allocation8], 1

</llo_original>
